<compile_context>
chip_gen: v6e
topology: v6e:2x2x1
jax: 0.10.0
libtpu: 0.0.40
codegen_flags: <defaults>
</compile_context>

<pallas_src>
import numpy as np
import jax
import jax.numpy as jnp
from jax.experimental import pallas as pl
from jax.experimental.pallas import tpu as pltpu

# ---- Fixed filters from the PyTorch module (deterministic "weights") ----
filter_vals = np.array([[-1, -1, 1, 1],
                        [-1, -1, 1, 1],
                        [-1, -1, 1, 1],
                        [-1, -1, 1, 1]], dtype=np.float32)
filter_1 = filter_vals
filter_2 = -filter_1
filter_3 = filter_1.T
filter_4 = -filter_3
FILTERS = np.stack([filter_1, filter_2, filter_3, filter_4])  # (4, 4, 4)

_LANE = 128


def _round_up(a, m):
    return ((a + m - 1) // m) * m


def _build_conv_matrix(weight, H, W):
    """Banded im2col matrix: Wmat[(c,i,j), (h,w)] = weight[c,0,h-i,w-j] for valid taps.

    conv(x)[n,c,i,j] == (Wmat @ x_flat)[(c,i,j), n] with x_flat[(h,w), n] = x[n,0,h,w].
    Works for arbitrary (traced) weights; only KH*KW static scatters at trace time.
    """
    C, _, KH, KW = weight.shape
    Ho, Wo = H - KH + 1, W - KW + 1
    rows = np.arange(Ho * Wo)
    ii, jj = np.divmod(rows, Wo)                      # output-pixel coords (static)
    wmat = jnp.zeros((C, Ho * Wo, H * W), jnp.float32)
    for kh in range(KH):
        for kw in range(KW):
            cols = (ii + kh) * W + (jj + kw)          # static input-pixel indices
            wmat = wmat.at[:, rows, cols].set(weight[:, 0, kh, kw][:, None])
    return wmat.reshape(C * Ho * Wo, H * W)


def _make_kernel(C, H, W, Ho, Wo, Hp, Wp):
    HoWo = Ho * Wo

    def kernel(wmat_ref, x_ref, conv_ref, relu_ref, pool_ref, hmax_ref):
        # wmat_ref: (C*Ho*Wo, H*W) f32 VMEM  banded weight matrix (constant per grid)
        # x_ref   : (H*W, T)       f32 VMEM  batch tile on the lane axis
        # conv_ref: (C*Ho*Wo, T)   f32       flat conv output
        # relu_ref: (C*Ho*Wo, T)   f32       flat relu output
        # pool_ref: (C*Hp, Wp, T)  f32       pooled output
        # hmax_ref: (C*Hp, Wo, T)  f32 VMEM  scratch: row-pair maxima

        # ---- conv as a single MXU matmul: (C*Ho*Wo, K=H*W) @ (K, T) ----
        conv = jnp.dot(wmat_ref[...], x_ref[...],
                       preferred_element_type=jnp.float32,
                       precision=jax.lax.Precision.HIGHEST)
        conv_ref[...] = conv
        relu_ref[...] = jnp.maximum(conv, 0.0)

        # ---- max pool 2x2, H direction: row-pair maxima (contiguous sublane reads) ----
        for c in range(C):
            base = c * HoWo
            for p in range(Hp):
                a = relu_ref[pl.ds(base + (2 * p) * Wo, Wo), :]        # row 2p   (Wo, T)
                b = relu_ref[pl.ds(base + (2 * p + 1) * Wo, Wo), :]    # row 2p+1 (Wo, T)
                hmax_ref[c * Hp + p] = jnp.maximum(a, b)

        # ---- W direction: stride-2 sublane reads, batched over all channels ----
        even = hmax_ref[:, pl.ds(0, Wp, stride=2), :]                  # (C*Hp, Wp, T)
        odd = hmax_ref[:, pl.ds(1, Wp, stride=2), :]
        pool_ref[...] = jnp.maximum(even, odd)

    return kernel


def pooled_net(x, weight, *, tile_n=1024, vmem_limit_bytes=48 * 1024 * 1024):
    """x: (N, 1, H, W) f32; weight: (C, 1, KH, KW) f32 -> (conv, relu, pooled) in NCHW."""
    x = jnp.asarray(x, jnp.float32)
    weight = jnp.asarray(weight, jnp.float32)
    N, Cin, H, W = x.shape
    assert Cin == 1
    C, _, KH, KW = weight.shape
    Ho, Wo = H - KH + 1, W - KW + 1
    Hp, Wp = Ho // 2, Wo // 2

    # Lane-dense batch tiling: always a multiple of 128 lanes; prefer >= 2 grid
    # blocks (v7x megacore sharding) whenever the padded batch allows it.
    Nr = _round_up(N, _LANE)
    TILE_N = min(_round_up(tile_n, _LANE), Nr)
    if Nr <= TILE_N and TILE_N >= 2 * _LANE:
        TILE_N = _round_up(TILE_N // 2, _LANE)
    n_blocks = -(-Nr // TILE_N)
    Npad = n_blocks * TILE_N

    # Batch-in-lanes layout, flattened for the MXU: (H*W, Npad).
    xb = jnp.transpose(x[:, 0, :, :], (1, 2, 0)).reshape(H * W, N)
    if Npad != N:
        xb = jnp.pad(xb, ((0, 0), (0, Npad - N)))

    wmat = _build_conv_matrix(weight, H, W)            # (C*Ho*Wo, H*W)
    kernel = _make_kernel(C, H, W, Ho, Wo, Hp, Wp)

    conv_t, relu_t, pool_t = pl.pallas_call(
        kernel,
        out_shape=(
            jax.ShapeDtypeStruct((C * Ho * Wo, Npad), jnp.float32),
            jax.ShapeDtypeStruct((C * Ho * Wo, Npad), jnp.float32),
            jax.ShapeDtypeStruct((C * Hp, Wp, Npad), jnp.float32),
        ),
        grid=(n_blocks,),
        in_specs=[
            pl.BlockSpec((C * Ho * Wo, H * W), lambda n: (0, 0)),   # weights: fetched once
            pl.BlockSpec((H * W, TILE_N), lambda n: (0, n)),        # batch tile (lanes)
        ],
        out_specs=[
            pl.BlockSpec((C * Ho * Wo, TILE_N), lambda n: (0, n)),
            pl.BlockSpec((C * Ho * Wo, TILE_N), lambda n: (0, n)),
            pl.BlockSpec((C * Hp, Wp, TILE_N), lambda n: (0, 0, n)),
        ],
        scratch_shapes=[pltpu.VMEM((C * Hp, Wo, TILE_N), jnp.float32)],
        compiler_params=pltpu.CompilerParams(
            dimension_semantics=("parallel",),
            vmem_limit_bytes=vmem_limit_bytes,
        ),
    )(wmat, xb)

    # Back to NCHW and drop batch padding (layout plumbing outside the kernel).
    conv = jnp.transpose(conv_t.reshape(C, Ho, Wo, Npad), (3, 0, 1, 2))[:N]
    relu = jnp.transpose(relu_t.reshape(C, Ho, Wo, Npad), (3, 0, 1, 2))[:N]
    pool = jnp.transpose(pool_t.reshape(C, Hp, Wp, Npad), (3, 0, 1, 2))[:N]
    return conv, relu, pool


if __name__ == "__main__":
    key = jax.random.PRNGKey(0)
    x = jax.random.normal(key, (2, 1, 16, 16), dtype=jnp.float32)
    weight = jnp.asarray(FILTERS[:, None, :, :], dtype=jnp.float32)      # (4, 1, 4, 4)

    conv_out, relu_out, pool_out = jax.block_until_ready(pooled_net(x, weight))

    # Plain-JAX reference (same semantics as the PyTorch forward).
    ref_conv = jax.lax.conv_general_dilated(
        x, weight, window_strides=(1, 1), padding="VALID",
        dimension_numbers=("NCHW", "OIHW", "NCHW"))
    ref_relu = jnp.maximum(ref_conv, 0.0)
    ref_pool = jax.lax.reduce_window(
        ref_relu, -jnp.inf, jax.lax.max,
        window_dimensions=(1, 1, 2, 2), window_strides=(1, 1, 2, 2),
        padding="VALID")

    assert conv_out.shape == (2, 4, 13, 13)
    assert relu_out.shape == (2, 4, 13, 13)
    assert pool_out.shape == (2, 4, 6, 6)
    assert np.allclose(np.asarray(conv_out), np.asarray(ref_conv), atol=1e-4)
    assert np.allclose(np.asarray(relu_out), np.asarray(ref_relu), atol=1e-4)
    assert np.allclose(np.asarray(pool_out), np.asarray(ref_pool), atol=1e-4)
    print("KERNEL_OK")
</pallas_src>

<mosaic_0001>
module attributes {stable_mosaic.version = 11 : i64} {
  func.func @kernel(%arg0: i32, %arg1: memref<676x256xf32, #tpu.memory_space<vmem>>, %arg2: memref<256x128xf32, #tpu.memory_space<vmem>>, %arg3: memref<676x128xf32, #tpu.memory_space<vmem>>, %arg4: memref<676x128xf32, #tpu.memory_space<vmem>>, %arg5: memref<24x6x128xf32, #tpu.memory_space<vmem>>, %arg6: memref<24x13x128xf32, #tpu.memory_space<vmem>>) attributes {dimension_semantics = [#tpu.dimension_semantics<parallel>], iteration_bounds = array<i64: 1>, scalar_prefetch = 0 : i64, scratch_operands = 1 : i64, tpu.core_type = #tpu.core_type<tc>, window_params = [{pipeline_mode = #tpu.pipeline_mode<synchronous>, transform_indices = @transform_0, window_bounds = array<i64: 676, 256>}, {transform_indices = @transform_1, window_bounds = array<i64: 256, 128>}, {transform_indices = @transform_2, window_bounds = array<i64: 676, 128>}, {transform_indices = @transform_3, window_bounds = array<i64: 676, 128>}, {transform_indices = @transform_4, window_bounds = array<i64: 24, 6, 128>}]} {
    %c0 = arith.constant 0 : index
    %c0_0 = arith.constant 0 : index
    %0 = vector.load %arg1[%c0, %c0_0] : memref<676x256xf32, #tpu.memory_space<vmem>>, vector<676x256xf32>
    %c0_1 = arith.constant 0 : index
    %c0_2 = arith.constant 0 : index
    %1 = vector.load %arg2[%c0_1, %c0_2] : memref<256x128xf32, #tpu.memory_space<vmem>>, vector<256x128xf32>
    %cst = arith.constant dense<0.000000e+00> : vector<676x128xf32>
    %2 = tpu.matmul %0, %1, %cst {dimension_numbers = #tpu.dot_dimension_numbers<[1], [0], [0], [1], [0, 0, 1, 1], [], []>, precision = #tpu.contract_precision<fp32>} : vector<676x256xf32>, vector<256x128xf32>, vector<676x128xf32> -> vector<676x128xf32>
    %c0_3 = arith.constant 0 : index
    %c0_4 = arith.constant 0 : index
    %3 = vector.load %arg3[%c0_3, %c0_4] : memref<676x128xf32, #tpu.memory_space<vmem>>, vector<676x128xf32>
    tpu.vector_store %arg3[%c0_3, %c0_4], %2 {strides = array<i32>} : memref<676x128xf32, #tpu.memory_space<vmem>>, vector<676x128xf32>,
    %cst_5 = arith.constant 0.000000e+00 : f32
    %4 = vector.broadcast %cst_5 : f32 to vector<676x128xf32>
    %5 = arith.maximumf %2, %4 : vector<676x128xf32>
    %c0_6 = arith.constant 0 : index
    %c0_7 = arith.constant 0 : index
    %6 = vector.load %arg4[%c0_6, %c0_7] : memref<676x128xf32, #tpu.memory_space<vmem>>, vector<676x128xf32>
    tpu.vector_store %arg4[%c0_6, %c0_7], %5 {strides = array<i32>} : memref<676x128xf32, #tpu.memory_space<vmem>>, vector<676x128xf32>,
    %c0_8 = arith.constant 0 : index
    %c0_9 = arith.constant 0 : index
    %7 = vector.load %arg4[%c0_8, %c0_9] : memref<676x128xf32, #tpu.memory_space<vmem>>, vector<13x128xf32>
    %c13 = arith.constant 13 : index
    %c0_10 = arith.constant 0 : index
    %8 = vector.load %arg4[%c13, %c0_10] : memref<676x128xf32, #tpu.memory_space<vmem>>, vector<13x128xf32>
    %9 = arith.maximumf %7, %8 : vector<13x128xf32>
    %c0_11 = arith.constant 0 : index
    %c0_12 = arith.constant 0 : index
    %c0_13 = arith.constant 0 : index
    %10 = vector.load %arg6[%c0_11, %c0_12, %c0_13] : memref<24x13x128xf32, #tpu.memory_space<vmem>>, vector<1x13x128xf32>
    %11 = vector.shape_cast %10 : vector<1x13x128xf32> to vector<13x128xf32>
    %12 = vector.shape_cast %9 : vector<13x128xf32> to vector<1x13x128xf32>
    tpu.vector_store %arg6[%c0_11, %c0_12, %c0_13], %12 {strides = array<i32>} : memref<24x13x128xf32, #tpu.memory_space<vmem>>, vector<1x13x128xf32>,
    %c26 = arith.constant 26 : index
    %c0_14 = arith.constant 0 : index
    %13 = vector.load %arg4[%c26, %c0_14] : memref<676x128xf32, #tpu.memory_space<vmem>>, vector<13x128xf32>
    %c39 = arith.constant 39 : index
    %c0_15 = arith.constant 0 : index
    %14 = vector.load %arg4[%c39, %c0_15] : memref<676x128xf32, #tpu.memory_space<vmem>>, vector<13x128xf32>
    %15 = arith.maximumf %13, %14 : vector<13x128xf32>
    %c1 = arith.constant 1 : index
    %c0_16 = arith.constant 0 : index
    %c0_17 = arith.constant 0 : index
    %16 = vector.load %arg6[%c1, %c0_16, %c0_17] : memref<24x13x128xf32, #tpu.memory_space<vmem>>, vector<1x13x128xf32>
    %17 = vector.shape_cast %16 : vector<1x13x128xf32> to vector<13x128xf32>
    %18 = vector.shape_cast %15 : vector<13x128xf32> to vector<1x13x128xf32>
    tpu.vector_store %arg6[%c1, %c0_16, %c0_17], %18 {strides = array<i32>} : memref<24x13x128xf32, #tpu.memory_space<vmem>>, vector<1x13x128xf32>,
    %c52 = arith.constant 52 : index
    %c0_18 = arith.constant 0 : index
    %19 = vector.load %arg4[%c52, %c0_18] : memref<676x128xf32, #tpu.memory_space<vmem>>, vector<13x128xf32>
    %c65 = arith.constant 65 : index
    %c0_19 = arith.constant 0 : index
    %20 = vector.load %arg4[%c65, %c0_19] : memref<676x128xf32, #tpu.memory_space<vmem>>, vector<13x128xf32>
    %21 = arith.maximumf %19, %20 : vector<13x128xf32>
    %c2 = arith.constant 2 : index
    %c0_20 = arith.constant 0 : index
    %c0_21 = arith.constant 0 : index
    %22 = vector.load %arg6[%c2, %c0_20, %c0_21] : memref<24x13x128xf32, #tpu.memory_space<vmem>>, vector<1x13x128xf32>
    %23 = vector.shape_cast %22 : vector<1x13x128xf32> to vector<13x128xf32>
    %24 = vector.shape_cast %21 : vector<13x128xf32> to vector<1x13x128xf32>
    tpu.vector_store %arg6[%c2, %c0_20, %c0_21], %24 {strides = array<i32>} : memref<24x13x128xf32, #tpu.memory_space<vmem>>, vector<1x13x128xf32>,
    %c78 = arith.constant 78 : index
    %c0_22 = arith.constant 0 : index
    %25 = vector.load %arg4[%c78, %c0_22] : memref<676x128xf32, #tpu.memory_space<vmem>>, vector<13x128xf32>
    %c91 = arith.constant 91 : index
    %c0_23 = arith.constant 0 : index
    %26 = vector.load %arg4[%c91, %c0_23] : memref<676x128xf32, #tpu.memory_space<vmem>>, vector<13x128xf32>
    %27 = arith.maximumf %25, %26 : vector<13x128xf32>
    %c3 = arith.constant 3 : index
    %c0_24 = arith.constant 0 : index
    %c0_25 = arith.constant 0 : index
    %28 = vector.load %arg6[%c3, %c0_24, %c0_25] : memref<24x13x128xf32, #tpu.memory_space<vmem>>, vector<1x13x128xf32>
    %29 = vector.shape_cast %28 : vector<1x13x128xf32> to vector<13x128xf32>
    %30 = vector.shape_cast %27 : vector<13x128xf32> to vector<1x13x128xf32>
    tpu.vector_store %arg6[%c3, %c0_24, %c0_25], %30 {strides = array<i32>} : memref<24x13x128xf32, #tpu.memory_space<vmem>>, vector<1x13x128xf32>,
    %c104 = arith.constant 104 : index
    %c0_26 = arith.constant 0 : index
    %31 = vector.load %arg4[%c104, %c0_26] : memref<676x128xf32, #tpu.memory_space<vmem>>, vector<13x128xf32>
    %c117 = arith.constant 117 : index
    %c0_27 = arith.constant 0 : index
    %32 = vector.load %arg4[%c117, %c0_27] : memref<676x128xf32, #tpu.memory_space<vmem>>, vector<13x128xf32>
    %33 = arith.maximumf %31, %32 : vector<13x128xf32>
    %c4 = arith.constant 4 : index
    %c0_28 = arith.constant 0 : index
    %c0_29 = arith.constant 0 : index
    %34 = vector.load %arg6[%c4, %c0_28, %c0_29] : memref<24x13x128xf32, #tpu.memory_space<vmem>>, vector<1x13x128xf32>
    %35 = vector.shape_cast %34 : vector<1x13x128xf32> to vector<13x128xf32>
    %36 = vector.shape_cast %33 : vector<13x128xf32> to vector<1x13x128xf32>
    tpu.vector_store %arg6[%c4, %c0_28, %c0_29], %36 {strides = array<i32>} : memref<24x13x128xf32, #tpu.memory_space<vmem>>, vector<1x13x128xf32>,
    %c130 = arith.constant 130 : index
    %c0_30 = arith.constant 0 : index
    %37 = vector.load %arg4[%c130, %c0_30] : memref<676x128xf32, #tpu.memory_space<vmem>>, vector<13x128xf32>
    %c143 = arith.constant 143 : index
    %c0_31 = arith.constant 0 : index
    %38 = vector.load %arg4[%c143, %c0_31] : memref<676x128xf32, #tpu.memory_space<vmem>>, vector<13x128xf32>
    %39 = arith.maximumf %37, %38 : vector<13x128xf32>
    %c5 = arith.constant 5 : index
    %c0_32 = arith.constant 0 : index
    %c0_33 = arith.constant 0 : index
    %40 = vector.load %arg6[%c5, %c0_32, %c0_33] : memref<24x13x128xf32, #tpu.memory_space<vmem>>, vector<1x13x128xf32>
    %41 = vector.shape_cast %40 : vector<1x13x128xf32> to vector<13x128xf32>
    %42 = vector.shape_cast %39 : vector<13x128xf32> to vector<1x13x128xf32>
    tpu.vector_store %arg6[%c5, %c0_32, %c0_33], %42 {strides = array<i32>} : memref<24x13x128xf32, #tpu.memory_space<vmem>>, vector<1x13x128xf32>,
    %c169 = arith.constant 169 : index
    %c0_34 = arith.constant 0 : index
    %43 = vector.load %arg4[%c169, %c0_34] : memref<676x128xf32, #tpu.memory_space<vmem>>, vector<13x128xf32>
    %c182 = arith.constant 182 : index
    %c0_35 = arith.constant 0 : index
    %44 = vector.load %arg4[%c182, %c0_35] : memref<676x128xf32, #tpu.memory_space<vmem>>, vector<13x128xf32>
    %45 = arith.maximumf %43, %44 : vector<13x128xf32>
    %c6 = arith.constant 6 : index
    %c0_36 = arith.constant 0 : index
    %c0_37 = arith.constant 0 : index
    %46 = vector.load %arg6[%c6, %c0_36, %c0_37] : memref<24x13x128xf32, #tpu.memory_space<vmem>>, vector<1x13x128xf32>
    %47 = vector.shape_cast %46 : vector<1x13x128xf32> to vector<13x128xf32>
    %48 = vector.shape_cast %45 : vector<13x128xf32> to vector<1x13x128xf32>
    tpu.vector_store %arg6[%c6, %c0_36, %c0_37], %48 {strides = array<i32>} : memref<24x13x128xf32, #tpu.memory_space<vmem>>, vector<1x13x128xf32>,
    %c195 = arith.constant 195 : index
    %c0_38 = arith.constant 0 : index
    %49 = vector.load %arg4[%c195, %c0_38] : memref<676x128xf32, #tpu.memory_space<vmem>>, vector<13x128xf32>
    %c208 = arith.constant 208 : index
    %c0_39 = arith.constant 0 : index
    %50 = vector.load %arg4[%c208, %c0_39] : memref<676x128xf32, #tpu.memory_space<vmem>>, vector<13x128xf32>
    %51 = arith.maximumf %49, %50 : vector<13x128xf32>
    %c7 = arith.constant 7 : index
    %c0_40 = arith.constant 0 : index
    %c0_41 = arith.constant 0 : index
    %52 = vector.load %arg6[%c7, %c0_40, %c0_41] : memref<24x13x128xf32, #tpu.memory_space<vmem>>, vector<1x13x128xf32>
    %53 = vector.shape_cast %52 : vector<1x13x128xf32> to vector<13x128xf32>
    %54 = vector.shape_cast %51 : vector<13x128xf32> to vector<1x13x128xf32>
    tpu.vector_store %arg6[%c7, %c0_40, %c0_41], %54 {strides = array<i32>} : memref<24x13x128xf32, #tpu.memory_space<vmem>>, vector<1x13x128xf32>,
    %c221 = arith.constant 221 : index
    %c0_42 = arith.constant 0 : index
    %55 = vector.load %arg4[%c221, %c0_42] : memref<676x128xf32, #tpu.memory_space<vmem>>, vector<13x128xf32>
    %c234 = arith.constant 234 : index
    %c0_43 = arith.constant 0 : index
    %56 = vector.load %arg4[%c234, %c0_43] : memref<676x128xf32, #tpu.memory_space<vmem>>, vector<13x128xf32>
    %57 = arith.maximumf %55, %56 : vector<13x128xf32>
    %c8 = arith.constant 8 : index
    %c0_44 = arith.constant 0 : index
    %c0_45 = arith.constant 0 : index
    %58 = vector.load %arg6[%c8, %c0_44, %c0_45] : memref<24x13x128xf32, #tpu.memory_space<vmem>>, vector<1x13x128xf32>
    %59 = vector.shape_cast %58 : vector<1x13x128xf32> to vector<13x128xf32>
    %60 = vector.shape_cast %57 : vector<13x128xf32> to vector<1x13x128xf32>
    tpu.vector_store %arg6[%c8, %c0_44, %c0_45], %60 {strides = array<i32>} : memref<24x13x128xf32, #tpu.memory_space<vmem>>, vector<1x13x128xf32>,
    %c247 = arith.constant 247 : index
    %c0_46 = arith.constant 0 : index
    %61 = vector.load %arg4[%c247, %c0_46] : memref<676x128xf32, #tpu.memory_space<vmem>>, vector<13x128xf32>
    %c260 = arith.constant 260 : index
    %c0_47 = arith.constant 0 : index
    %62 = vector.load %arg4[%c260, %c0_47] : memref<676x128xf32, #tpu.memory_space<vmem>>, vector<13x128xf32>
    %63 = arith.maximumf %61, %62 : vector<13x128xf32>
    %c9 = arith.constant 9 : index
    %c0_48 = arith.constant 0 : index
    %c0_49 = arith.constant 0 : index
    %64 = vector.load %arg6[%c9, %c0_48, %c0_49] : memref<24x13x128xf32, #tpu.memory_space<vmem>>, vector<1x13x128xf32>
    %65 = vector.shape_cast %64 : vector<1x13x128xf32> to vector<13x128xf32>
    %66 = vector.shape_cast %63 : vector<13x128xf32> to vector<1x13x128xf32>
    tpu.vector_store %arg6[%c9, %c0_48, %c0_49], %66 {strides = array<i32>} : memref<24x13x128xf32, #tpu.memory_space<vmem>>, vector<1x13x128xf32>,
    %c273 = arith.constant 273 : index
    %c0_50 = arith.constant 0 : index
    %67 = vector.load %arg4[%c273, %c0_50] : memref<676x128xf32, #tpu.memory_space<vmem>>, vector<13x128xf32>
    %c286 = arith.constant 286 : index
    %c0_51 = arith.constant 0 : index
    %68 = vector.load %arg4[%c286, %c0_51] : memref<676x128xf32, #tpu.memory_space<vmem>>, vector<13x128xf32>
    %69 = arith.maximumf %67, %68 : vector<13x128xf32>
    %c10 = arith.constant 10 : index
    %c0_52 = arith.constant 0 : index
    %c0_53 = arith.constant 0 : index
    %70 = vector.load %arg6[%c10, %c0_52, %c0_53] : memref<24x13x128xf32, #tpu.memory_space<vmem>>, vector<1x13x128xf32>
    %71 = vector.shape_cast %70 : vector<1x13x128xf32> to vector<13x128xf32>
    %72 = vector.shape_cast %69 : vector<13x128xf32> to vector<1x13x128xf32>
    tpu.vector_store %arg6[%c10, %c0_52, %c0_53], %72 {strides = array<i32>} : memref<24x13x128xf32, #tpu.memory_space<vmem>>, vector<1x13x128xf32>,
    %c299 = arith.constant 299 : index
    %c0_54 = arith.constant 0 : index
    %73 = vector.load %arg4[%c299, %c0_54] : memref<676x128xf32, #tpu.memory_space<vmem>>, vector<13x128xf32>
    %c312 = arith.constant 312 : index
    %c0_55 = arith.constant 0 : index
    %74 = vector.load %arg4[%c312, %c0_55] : memref<676x128xf32, #tpu.memory_space<vmem>>, vector<13x128xf32>
    %75 = arith.maximumf %73, %74 : vector<13x128xf32>
    %c11 = arith.constant 11 : index
    %c0_56 = arith.constant 0 : index
    %c0_57 = arith.constant 0 : index
    %76 = vector.load %arg6[%c11, %c0_56, %c0_57] : memref<24x13x128xf32, #tpu.memory_space<vmem>>, vector<1x13x128xf32>
    %77 = vector.shape_cast %76 : vector<1x13x128xf32> to vector<13x128xf32>
    %78 = vector.shape_cast %75 : vector<13x128xf32> to vector<1x13x128xf32>
    tpu.vector_store %arg6[%c11, %c0_56, %c0_57], %78 {strides = array<i32>} : memref<24x13x128xf32, #tpu.memory_space<vmem>>, vector<1x13x128xf32>,
    %c338 = arith.constant 338 : index
    %c0_58 = arith.constant 0 : index
    %79 = vector.load %arg4[%c338, %c0_58] : memref<676x128xf32, #tpu.memory_space<vmem>>, vector<13x128xf32>
    %c351 = arith.constant 351 : index
    %c0_59 = arith.constant 0 : index
    %80 = vector.load %arg4[%c351, %c0_59] : memref<676x128xf32, #tpu.memory_space<vmem>>, vector<13x128xf32>
    %81 = arith.maximumf %79, %80 : vector<13x128xf32>
    %c12 = arith.constant 12 : index
    %c0_60 = arith.constant 0 : index
    %c0_61 = arith.constant 0 : index
    %82 = vector.load %arg6[%c12, %c0_60, %c0_61] : memref<24x13x128xf32, #tpu.memory_space<vmem>>, vector<1x13x128xf32>
    %83 = vector.shape_cast %82 : vector<1x13x128xf32> to vector<13x128xf32>
    %84 = vector.shape_cast %81 : vector<13x128xf32> to vector<1x13x128xf32>
    tpu.vector_store %arg6[%c12, %c0_60, %c0_61], %84 {strides = array<i32>} : memref<24x13x128xf32, #tpu.memory_space<vmem>>, vector<1x13x128xf32>,
    %c364 = arith.constant 364 : index
    %c0_62 = arith.constant 0 : index
    %85 = vector.load %arg4[%c364, %c0_62] : memref<676x128xf32, #tpu.memory_space<vmem>>, vector<13x128xf32>
    %c377 = arith.constant 377 : index
    %c0_63 = arith.constant 0 : index
    %86 = vector.load %arg4[%c377, %c0_63] : memref<676x128xf32, #tpu.memory_space<vmem>>, vector<13x128xf32>
    %87 = arith.maximumf %85, %86 : vector<13x128xf32>
    %c13_64 = arith.constant 13 : index
    %c0_65 = arith.constant 0 : index
    %c0_66 = arith.constant 0 : index
    %88 = vector.load %arg6[%c13_64, %c0_65, %c0_66] : memref<24x13x128xf32, #tpu.memory_space<vmem>>, vector<1x13x128xf32>
    %89 = vector.shape_cast %88 : vector<1x13x128xf32> to vector<13x128xf32>
    %90 = vector.shape_cast %87 : vector<13x128xf32> to vector<1x13x128xf32>
    tpu.vector_store %arg6[%c13_64, %c0_65, %c0_66], %90 {strides = array<i32>} : memref<24x13x128xf32, #tpu.memory_space<vmem>>, vector<1x13x128xf32>,
    %c390 = arith.constant 390 : index
    %c0_67 = arith.constant 0 : index
    %91 = vector.load %arg4[%c390, %c0_67] : memref<676x128xf32, #tpu.memory_space<vmem>>, vector<13x128xf32>
    %c403 = arith.constant 403 : index
    %c0_68 = arith.constant 0 : index
    %92 = vector.load %arg4[%c403, %c0_68] : memref<676x128xf32, #tpu.memory_space<vmem>>, vector<13x128xf32>
    %93 = arith.maximumf %91, %92 : vector<13x128xf32>
    %c14 = arith.constant 14 : index
    %c0_69 = arith.constant 0 : index
    %c0_70 = arith.constant 0 : index
    %94 = vector.load %arg6[%c14, %c0_69, %c0_70] : memref<24x13x128xf32, #tpu.memory_space<vmem>>, vector<1x13x128xf32>
    %95 = vector.shape_cast %94 : vector<1x13x128xf32> to vector<13x128xf32>
    %96 = vector.shape_cast %93 : vector<13x128xf32> to vector<1x13x128xf32>
    tpu.vector_store %arg6[%c14, %c0_69, %c0_70], %96 {strides = array<i32>} : memref<24x13x128xf32, #tpu.memory_space<vmem>>, vector<1x13x128xf32>,
    %c416 = arith.constant 416 : index
    %c0_71 = arith.constant 0 : index
    %97 = vector.load %arg4[%c416, %c0_71] : memref<676x128xf32, #tpu.memory_space<vmem>>, vector<13x128xf32>
    %c429 = arith.constant 429 : index
    %c0_72 = arith.constant 0 : index
    %98 = vector.load %arg4[%c429, %c0_72] : memref<676x128xf32, #tpu.memory_space<vmem>>, vector<13x128xf32>
    %99 = arith.maximumf %97, %98 : vector<13x128xf32>
    %c15 = arith.constant 15 : index
    %c0_73 = arith.constant 0 : index
    %c0_74 = arith.constant 0 : index
    %100 = vector.load %arg6[%c15, %c0_73, %c0_74] : memref<24x13x128xf32, #tpu.memory_space<vmem>>, vector<1x13x128xf32>
    %101 = vector.shape_cast %100 : vector<1x13x128xf32> to vector<13x128xf32>
    %102 = vector.shape_cast %99 : vector<13x128xf32> to vector<1x13x128xf32>
    tpu.vector_store %arg6[%c15, %c0_73, %c0_74], %102 {strides = array<i32>} : memref<24x13x128xf32, #tpu.memory_space<vmem>>, vector<1x13x128xf32>,
    %c442 = arith.constant 442 : index
    %c0_75 = arith.constant 0 : index
    %103 = vector.load %arg4[%c442, %c0_75] : memref<676x128xf32, #tpu.memory_space<vmem>>, vector<13x128xf32>
    %c455 = arith.constant 455 : index
    %c0_76 = arith.constant 0 : index
    %104 = vector.load %arg4[%c455, %c0_76] : memref<676x128xf32, #tpu.memory_space<vmem>>, vector<13x128xf32>
    %105 = arith.maximumf %103, %104 : vector<13x128xf32>
    %c16 = arith.constant 16 : index
    %c0_77 = arith.constant 0 : index
    %c0_78 = arith.constant 0 : index
    %106 = vector.load %arg6[%c16, %c0_77, %c0_78] : memref<24x13x128xf32, #tpu.memory_space<vmem>>, vector<1x13x128xf32>
    %107 = vector.shape_cast %106 : vector<1x13x128xf32> to vector<13x128xf32>
    %108 = vector.shape_cast %105 : vector<13x128xf32> to vector<1x13x128xf32>
    tpu.vector_store %arg6[%c16, %c0_77, %c0_78], %108 {strides = array<i32>} : memref<24x13x128xf32, #tpu.memory_space<vmem>>, vector<1x13x128xf32>,
    %c468 = arith.constant 468 : index
    %c0_79 = arith.constant 0 : index
    %109 = vector.load %arg4[%c468, %c0_79] : memref<676x128xf32, #tpu.memory_space<vmem>>, vector<13x128xf32>
    %c481 = arith.constant 481 : index
    %c0_80 = arith.constant 0 : index
    %110 = vector.load %arg4[%c481, %c0_80] : memref<676x128xf32, #tpu.memory_space<vmem>>, vector<13x128xf32>
    %111 = arith.maximumf %109, %110 : vector<13x128xf32>
    %c17 = arith.constant 17 : index
    %c0_81 = arith.constant 0 : index
    %c0_82 = arith.constant 0 : index
    %112 = vector.load %arg6[%c17, %c0_81, %c0_82] : memref<24x13x128xf32, #tpu.memory_space<vmem>>, vector<1x13x128xf32>
    %113 = vector.shape_cast %112 : vector<1x13x128xf32> to vector<13x128xf32>
    %114 = vector.shape_cast %111 : vector<13x128xf32> to vector<1x13x128xf32>
    tpu.vector_store %arg6[%c17, %c0_81, %c0_82], %114 {strides = array<i32>} : memref<24x13x128xf32, #tpu.memory_space<vmem>>, vector<1x13x128xf32>,
    %c507 = arith.constant 507 : index
    %c0_83 = arith.constant 0 : index
    %115 = vector.load %arg4[%c507, %c0_83] : memref<676x128xf32, #tpu.memory_space<vmem>>, vector<13x128xf32>
    %c520 = arith.constant 520 : index
    %c0_84 = arith.constant 0 : index
    %116 = vector.load %arg4[%c520, %c0_84] : memref<676x128xf32, #tpu.memory_space<vmem>>, vector<13x128xf32>
    %117 = arith.maximumf %115, %116 : vector<13x128xf32>
    %c18 = arith.constant 18 : index
    %c0_85 = arith.constant 0 : index
    %c0_86 = arith.constant 0 : index
    %118 = vector.load %arg6[%c18, %c0_85, %c0_86] : memref<24x13x128xf32, #tpu.memory_space<vmem>>, vector<1x13x128xf32>
    %119 = vector.shape_cast %118 : vector<1x13x128xf32> to vector<13x128xf32>
    %120 = vector.shape_cast %117 : vector<13x128xf32> to vector<1x13x128xf32>
    tpu.vector_store %arg6[%c18, %c0_85, %c0_86], %120 {strides = array<i32>} : memref<24x13x128xf32, #tpu.memory_space<vmem>>, vector<1x13x128xf32>,
    %c533 = arith.constant 533 : index
    %c0_87 = arith.constant 0 : index
    %121 = vector.load %arg4[%c533, %c0_87] : memref<676x128xf32, #tpu.memory_space<vmem>>, vector<13x128xf32>
    %c546 = arith.constant 546 : index
    %c0_88 = arith.constant 0 : index
    %122 = vector.load %arg4[%c546, %c0_88] : memref<676x128xf32, #tpu.memory_space<vmem>>, vector<13x128xf32>
    %123 = arith.maximumf %121, %122 : vector<13x128xf32>
    %c19 = arith.constant 19 : index
    %c0_89 = arith.constant 0 : index
    %c0_90 = arith.constant 0 : index
    %124 = vector.load %arg6[%c19, %c0_89, %c0_90] : memref<24x13x128xf32, #tpu.memory_space<vmem>>, vector<1x13x128xf32>
    %125 = vector.shape_cast %124 : vector<1x13x128xf32> to vector<13x128xf32>
    %126 = vector.shape_cast %123 : vector<13x128xf32> to vector<1x13x128xf32>
    tpu.vector_store %arg6[%c19, %c0_89, %c0_90], %126 {strides = array<i32>} : memref<24x13x128xf32, #tpu.memory_space<vmem>>, vector<1x13x128xf32>,
    %c559 = arith.constant 559 : index
    %c0_91 = arith.constant 0 : index
    %127 = vector.load %arg4[%c559, %c0_91] : memref<676x128xf32, #tpu.memory_space<vmem>>, vector<13x128xf32>
    %c572 = arith.constant 572 : index
    %c0_92 = arith.constant 0 : index
    %128 = vector.load %arg4[%c572, %c0_92] : memref<676x128xf32, #tpu.memory_space<vmem>>, vector<13x128xf32>
    %129 = arith.maximumf %127, %128 : vector<13x128xf32>
    %c20 = arith.constant 20 : index
    %c0_93 = arith.constant 0 : index
    %c0_94 = arith.constant 0 : index
    %130 = vector.load %arg6[%c20, %c0_93, %c0_94] : memref<24x13x128xf32, #tpu.memory_space<vmem>>, vector<1x13x128xf32>
    %131 = vector.shape_cast %130 : vector<1x13x128xf32> to vector<13x128xf32>
    %132 = vector.shape_cast %129 : vector<13x128xf32> to vector<1x13x128xf32>
    tpu.vector_store %arg6[%c20, %c0_93, %c0_94], %132 {strides = array<i32>} : memref<24x13x128xf32, #tpu.memory_space<vmem>>, vector<1x13x128xf32>,
    %c585 = arith.constant 585 : index
    %c0_95 = arith.constant 0 : index
    %133 = vector.load %arg4[%c585, %c0_95] : memref<676x128xf32, #tpu.memory_space<vmem>>, vector<13x128xf32>
    %c598 = arith.constant 598 : index
    %c0_96 = arith.constant 0 : index
    %134 = vector.load %arg4[%c598, %c0_96] : memref<676x128xf32, #tpu.memory_space<vmem>>, vector<13x128xf32>
    %135 = arith.maximumf %133, %134 : vector<13x128xf32>
    %c21 = arith.constant 21 : index
    %c0_97 = arith.constant 0 : index
    %c0_98 = arith.constant 0 : index
    %136 = vector.load %arg6[%c21, %c0_97, %c0_98] : memref<24x13x128xf32, #tpu.memory_space<vmem>>, vector<1x13x128xf32>
    %137 = vector.shape_cast %136 : vector<1x13x128xf32> to vector<13x128xf32>
    %138 = vector.shape_cast %135 : vector<13x128xf32> to vector<1x13x128xf32>
    tpu.vector_store %arg6[%c21, %c0_97, %c0_98], %138 {strides = array<i32>} : memref<24x13x128xf32, #tpu.memory_space<vmem>>, vector<1x13x128xf32>,
    %c611 = arith.constant 611 : index
    %c0_99 = arith.constant 0 : index
    %139 = vector.load %arg4[%c611, %c0_99] : memref<676x128xf32, #tpu.memory_space<vmem>>, vector<13x128xf32>
    %c624 = arith.constant 624 : index
    %c0_100 = arith.constant 0 : index
    %140 = vector.load %arg4[%c624, %c0_100] : memref<676x128xf32, #tpu.memory_space<vmem>>, vector<13x128xf32>
    %141 = arith.maximumf %139, %140 : vector<13x128xf32>
    %c22 = arith.constant 22 : index
    %c0_101 = arith.constant 0 : index
    %c0_102 = arith.constant 0 : index
    %142 = vector.load %arg6[%c22, %c0_101, %c0_102] : memref<24x13x128xf32, #tpu.memory_space<vmem>>, vector<1x13x128xf32>
    %143 = vector.shape_cast %142 : vector<1x13x128xf32> to vector<13x128xf32>
    %144 = vector.shape_cast %141 : vector<13x128xf32> to vector<1x13x128xf32>
    tpu.vector_store %arg6[%c22, %c0_101, %c0_102], %144 {strides = array<i32>} : memref<24x13x128xf32, #tpu.memory_space<vmem>>, vector<1x13x128xf32>,
    %c637 = arith.constant 637 : index
    %c0_103 = arith.constant 0 : index
    %145 = vector.load %arg4[%c637, %c0_103] : memref<676x128xf32, #tpu.memory_space<vmem>>, vector<13x128xf32>
    %c650 = arith.constant 650 : index
    %c0_104 = arith.constant 0 : index
    %146 = vector.load %arg4[%c650, %c0_104] : memref<676x128xf32, #tpu.memory_space<vmem>>, vector<13x128xf32>
    %147 = arith.maximumf %145, %146 : vector<13x128xf32>
    %c23 = arith.constant 23 : index
    %c0_105 = arith.constant 0 : index
    %c0_106 = arith.constant 0 : index
    %148 = vector.load %arg6[%c23, %c0_105, %c0_106] : memref<24x13x128xf32, #tpu.memory_space<vmem>>, vector<1x13x128xf32>
    %149 = vector.shape_cast %148 : vector<1x13x128xf32> to vector<13x128xf32>
    %150 = vector.shape_cast %147 : vector<13x128xf32> to vector<1x13x128xf32>
    tpu.vector_store %arg6[%c23, %c0_105, %c0_106], %150 {strides = array<i32>} : memref<24x13x128xf32, #tpu.memory_space<vmem>>, vector<1x13x128xf32>,
    %c0_107 = arith.constant 0 : index
    %c0_108 = arith.constant 0 : index
    %c0_109 = arith.constant 0 : index
    %151 = tpu.strided_load %arg6[%c0_107, %c0_108, %c0_109] {strides = array<i32: 1, 2, 1>} : memref<24x13x128xf32, #tpu.memory_space<vmem>>, vector<24x6x128xf32>
    %c0_110 = arith.constant 0 : index
    %c1_111 = arith.constant 1 : index
    %c0_112 = arith.constant 0 : index
    %152 = tpu.strided_load %arg6[%c0_110, %c1_111, %c0_112] {strides = array<i32: 1, 2, 1>} : memref<24x13x128xf32, #tpu.memory_space<vmem>>, vector<24x6x128xf32>
    %153 = arith.maximumf %151, %152 : vector<24x6x128xf32>
    %c0_113 = arith.constant 0 : index
    %c0_114 = arith.constant 0 : index
    %c0_115 = arith.constant 0 : index
    %154 = vector.load %arg5[%c0_113, %c0_114, %c0_115] : memref<24x6x128xf32, #tpu.memory_space<vmem>>, vector<24x6x128xf32>
    tpu.vector_store %arg5[%c0_113, %c0_114, %c0_115], %153 {strides = array<i32>} : memref<24x6x128xf32, #tpu.memory_space<vmem>>, vector<24x6x128xf32>,
    return
  }
  func.func @transform_0(%arg0: i32) -> (i32, i32) {
    %c0_i32 = arith.constant 0 : i32
    %c0_i32_0 = arith.constant 0 : i32
    %c0_i32_1 = arith.constant 0 : i32
    return %c0_i32, %c0_i32_0 : i32, i32
  }
  func.func @transform_1(%arg0: i32) -> (i32, i32) {
    %c0_i32 = arith.constant 0 : i32
    %c0_i32_0 = arith.constant 0 : i32
    return %c0_i32, %arg0 : i32, i32
  }
  func.func @transform_2(%arg0: i32) -> (i32, i32) {
    %c0_i32 = arith.constant 0 : i32
    %c0_i32_0 = arith.constant 0 : i32
    return %c0_i32, %arg0 : i32, i32
  }
  func.func @transform_3(%arg0: i32) -> (i32, i32) {
    %c0_i32 = arith.constant 0 : i32
    %c0_i32_0 = arith.constant 0 : i32
    return %c0_i32, %arg0 : i32, i32
  }
  func.func @transform_4(%arg0: i32) -> (i32, i32, i32) {
    %c0_i32 = arith.constant 0 : i32
    %c0_i32_0 = arith.constant 0 : i32
    %c0_i32_1 = arith.constant 0 : i32
    return %c0_i32, %c0_i32_0, %arg0 : i32, i32, i32
  }
}

</mosaic_0001>

<llo_original>
// kernel: tpu_custom_call.1
$region0: #{tpu_custom_call.1}
  #allocation0 [shape = 'u32[]', space=smem, size = 0x4, offset = 0x4, fixed_abs, tag = 'smem constant byte address 0x4 - core index']
  #allocation1 [shape = 'u32[144,128]{1,0:T(1,128)}', space=vmem, size = 0x12000, scoped, tag = 'internal scratch']
  #allocation2 [shape = 'f32[24,13,128]{2,1,0:T(8,128)}', space=vmem, size = 0x30000, scoped, tag = 'scratch operand']
  %s0 = inlined_call_operand.hbm [shape: f32[676,256], index: 0, kind: input, shape index: {}]
  %s1 = inlined_call_operand.hbm [shape: f32[256,128], index: 1, kind: input, shape index: {}]
  %s2 = inlined_call_operand.hbm [shape: f32[676,128], index: 2, kind: output, shape index: {0}]
  %s3 = inlined_call_operand.hbm [shape: f32[676,128], index: 3, kind: output, shape index: {1}]
  %s4 = inlined_call_operand.vmem [shape: f32[24,6,128], index: 4, kind: output, shape index: {2}]
  %5 = xla_tuple %s2, %s3, %s4
  %s6 = sld [smem:[#allocation0]]
  $region42: #{tpu_custom_call.1} parent=0
    _
  %s8 = ssub.s32 1, %s6
  %s9 = scalar_select 0, %s8, %s6
  $region1: #{tpu_custom_call.1} parent=0
    #allocation3 [shape = 'u8[696320]{0}', space=vmem, size = 0xaa000, scoped, tag = 'input window, operand 0, single buffered']
    #allocation4 [shape = 's32[1]{0}', space=sflag, size = 0x4, scoped, tag = 'scoped memory for tpu_custom_call.1']
    #allocation5 [shape = 's32[1]{0}', space=sflag, size = 0x4, scoped, tag = 'scoped memory for tpu_custom_call.1']
    #allocation6 [shape = 'u8[131072]{0}', space=vmem, size = 0x20000, scoped, tag = 'input window, operand 1, single buffered']
    #allocation7 [shape = 's32[1]{0}', space=sflag, size = 0x4, scoped, tag = 'scoped memory for tpu_custom_call.1']
    #allocation8 [shape = 'u8[348160]{0}', space=vmem, size = 0x55000, scoped, tag = 'output window, operand 0, single buffered']
    #allocation9 [shape = 'u8[348160]{0}', space=vmem, size = 0x55000, scoped, tag = 'output window, operand 1, single buffered']
    #allocation10 [shape = 's32[1]{0}', space=sflag, size = 0x4, scoped, tag = 'scoped memory for tpu_custom_call.1']
    %10 = vsyncpa [#allocation4], 0
    %11 = vsyncpa [#allocation7], 0
    %12 = vsyncpa [#allocation5], 0
    %13 = vsyncpa [#allocation10], 0
    // Predicated region
    $region2: #{tpu_custom_call.1} parent=1 // pred_check
      _
    $region3: #{tpu_custom_call.1} parent=1 // pred_check_branch
      %15 = sbr.rel (0) target = $region5
    $region4: #{tpu_custom_call.1} parent=1 // pred_region
      %s17 = ssub.s32 21760, 21760
      %18 = vsyncadd [#allocation4], %s17
      %s19 = sshll.u32 [#allocation3], 4
      %s20 = int_to_ptr.vmem [resolvable:$true] %s19
      %25 = dma.hbm_to_vmem [thread:$0]  %s0, 21760, %s20, [#allocation4], 256, 256, 16
    $region5: #{tpu_custom_call.1} parent=1 // pred_fallthru
      _
    // Predicated region
    $region6: #{tpu_custom_call.1} parent=1 // pred_check
      _
    $region7: #{tpu_custom_call.1} parent=1 // pred_check_branch
      %27 = sbr.rel (0) target = $region9
    $region8: #{tpu_custom_call.1} parent=1 // pred_region
      %s29 = ssub.s32 4096, 4096
      %30 = vsyncadd [#allocation7], %s29
      %s31 = sshll.u32 [#allocation6], 4
      %s32 = int_to_ptr.vmem [resolvable:$true] %s31
      %37 = dma.hbm_to_vmem [thread:$0]  %s1, 4096, %s32, [#allocation7], 128, 128, 8
    $region9: #{tpu_custom_call.1} parent=1 // pred_fallthru
      _
    // Predicated region
    $region10: #{tpu_custom_call.1} parent=1 // pred_check
      _
    $region11: #{tpu_custom_call.1} parent=1 // pred_check_branch
      %39 = sbr.rel (0) target = $region13
    $region12: #{tpu_custom_call.1} parent=1 // pred_region
      %40 = dma.done [#allocation4], 21760
    $region13: #{tpu_custom_call.1} parent=1 // pred_fallthru
      _
    // Predicated region
    $region14: #{tpu_custom_call.1} parent=1 // pred_check
      _
    $region15: #{tpu_custom_call.1} parent=1 // pred_check_branch
      %42 = sbr.rel (0) target = $region17
    $region16: #{tpu_custom_call.1} parent=1 // pred_region
      %43 = dma.done [#allocation7], 4096
    $region17: #{tpu_custom_call.1} parent=1 // pred_fallthru
      _
    %v44 = vld [vmem:[#allocation3] sm:$0xff]
    %v45 = vld [vmem:[#allocation3 + $0x8] sm:$0xff]
    %v46 = vld [vmem:[#allocation3 + $0x10] sm:$0xff]
    %v47 = vld [vmem:[#allocation3 + $0x18] sm:$0xff]
    %v48 = vld [vmem:[#allocation3 + $0x20] sm:$0xff]
    %v49 = vld [vmem:[#allocation3 + $0x28] sm:$0xff]
    %v50 = vld [vmem:[#allocation3 + $0x30] sm:$0xff]
    %v51 = vld [vmem:[#allocation3 + $0x38] sm:$0xff]
    %v52 = vld [vmem:[#allocation3 + $0x40] sm:$0xff]
    %v53 = vld [vmem:[#allocation3 + $0x48] sm:$0xff]
    %v54 = vld [vmem:[#allocation3 + $0x50] sm:$0xff]
    %v55 = vld [vmem:[#allocation3 + $0x58] sm:$0xff]
    %v56 = vld [vmem:[#allocation3 + $0x60] sm:$0xff]
    %v57 = vld [vmem:[#allocation3 + $0x68] sm:$0xff]
    %v58 = vld [vmem:[#allocation3 + $0x70] sm:$0xff]
    %v59 = vld [vmem:[#allocation3 + $0x78] sm:$0xff]
    %v60 = vld [vmem:[#allocation3 + $0x80] sm:$0xff]
    %v61 = vld [vmem:[#allocation3 + $0x88] sm:$0xff]
    %v62 = vld [vmem:[#allocation3 + $0x90] sm:$0xff]
    %v63 = vld [vmem:[#allocation3 + $0x98] sm:$0xff]
    %v64 = vld [vmem:[#allocation3 + $0xa0] sm:$0xff]
    %v65 = vld [vmem:[#allocation3 + $0xa8] sm:$0xff]
    %v66 = vld [vmem:[#allocation3 + $0xb0] sm:$0xff]
    %v67 = vld [vmem:[#allocation3 + $0xb8] sm:$0xff]
    %v68 = vld [vmem:[#allocation3 + $0xc0] sm:$0xff]
    %v69 = vld [vmem:[#allocation3 + $0xc8] sm:$0xff]
    %v70 = vld [vmem:[#allocation3 + $0xd0] sm:$0xff]
    %v71 = vld [vmem:[#allocation3 + $0xd8] sm:$0xff]
    %v72 = vld [vmem:[#allocation3 + $0xe0] sm:$0xff]
    %v73 = vld [vmem:[#allocation3 + $0xe8] sm:$0xff]
    %v74 = vld [vmem:[#allocation3 + $0xf0] sm:$0xff]
    %v75 = vld [vmem:[#allocation3 + $0xf8] sm:$0xff]
    %v76 = vld [vmem:[#allocation3 + $0x100] sm:$0xff]
    %v77 = vld [vmem:[#allocation3 + $0x108] sm:$0xff]
    %v78 = vld [vmem:[#allocation3 + $0x110] sm:$0xff]
    %v79 = vld [vmem:[#allocation3 + $0x118] sm:$0xff]
    %v80 = vld [vmem:[#allocation3 + $0x120] sm:$0xff]
    %v81 = vld [vmem:[#allocation3 + $0x128] sm:$0xff]
    %v82 = vld [vmem:[#allocation3 + $0x130] sm:$0xff]
    %v83 = vld [vmem:[#allocation3 + $0x138] sm:$0xff]
    %v84 = vld [vmem:[#allocation3 + $0x140] sm:$0xff]
    %v85 = vld [vmem:[#allocation3 + $0x148] sm:$0xff]
    %v86 = vld [vmem:[#allocation3 + $0x150] sm:$0xff]
    %v87 = vld [vmem:[#allocation3 + $0x158] sm:$0xff]
    %v88 = vld [vmem:[#allocation3 + $0x160] sm:$0xff]
    %v89 = vld [vmem:[#allocation3 + $0x168] sm:$0xff]
    %v90 = vld [vmem:[#allocation3 + $0x170] sm:$0xff]
    %v91 = vld [vmem:[#allocation3 + $0x178] sm:$0xff]
    %v92 = vld [vmem:[#allocation3 + $0x180] sm:$0xff]
    %v93 = vld [vmem:[#allocation3 + $0x188] sm:$0xff]
    %v94 = vld [vmem:[#allocation3 + $0x190] sm:$0xff]
    %v95 = vld [vmem:[#allocation3 + $0x198] sm:$0xff]
    %v96 = vld [vmem:[#allocation3 + $0x1a0] sm:$0xff]
    %v97 = vld [vmem:[#allocation3 + $0x1a8] sm:$0xff]
    %v98 = vld [vmem:[#allocation3 + $0x1b0] sm:$0xff]
    %v99 = vld [vmem:[#allocation3 + $0x1b8] sm:$0xff]
    %v100 = vld [vmem:[#allocation3 + $0x1c0] sm:$0xff]
    %v101 = vld [vmem:[#allocation3 + $0x1c8] sm:$0xff]
    %v102 = vld [vmem:[#allocation3 + $0x1d0] sm:$0xff]
    %v103 = vld [vmem:[#allocation3 + $0x1d8] sm:$0xff]
    %v104 = vld [vmem:[#allocation3 + $0x1e0] sm:$0xff]
    %v105 = vld [vmem:[#allocation3 + $0x1e8] sm:$0xff]
    %v106 = vld [vmem:[#allocation3 + $0x1f0] sm:$0xff]
    %v107 = vld [vmem:[#allocation3 + $0x1f8] sm:$0xff]
    %v108 = vld [vmem:[#allocation3 + $0x200] sm:$0xff]
    %v109 = vld [vmem:[#allocation3 + $0x208] sm:$0xff]
    %v110 = vld [vmem:[#allocation3 + $0x210] sm:$0xff]
    %v111 = vld [vmem:[#allocation3 + $0x218] sm:$0xff]
    %v112 = vld [vmem:[#allocation3 + $0x220] sm:$0xff]
    %v113 = vld [vmem:[#allocation3 + $0x228] sm:$0xff]
    %v114 = vld [vmem:[#allocation3 + $0x230] sm:$0xff]
    %v115 = vld [vmem:[#allocation3 + $0x238] sm:$0xff]
    %v116 = vld [vmem:[#allocation3 + $0x240] sm:$0xff]
    %v117 = vld [vmem:[#allocation3 + $0x248] sm:$0xff]
    %v118 = vld [vmem:[#allocation3 + $0x250] sm:$0xff]
    %v119 = vld [vmem:[#allocation3 + $0x258] sm:$0xff]
    %v120 = vld [vmem:[#allocation3 + $0x260] sm:$0xff]
    %v121 = vld [vmem:[#allocation3 + $0x268] sm:$0xff]
    %v122 = vld [vmem:[#allocation3 + $0x270] sm:$0xff]
    %v123 = vld [vmem:[#allocation3 + $0x278] sm:$0xff]
    %v124 = vld [vmem:[#allocation3 + $0x280] sm:$0xff]
    %v125 = vld [vmem:[#allocation3 + $0x288] sm:$0xff]
    %v126 = vld [vmem:[#allocation3 + $0x290] sm:$0xff]
    %v127 = vld [vmem:[#allocation3 + $0x298] sm:$0xff]
    %v128 = vld [vmem:[#allocation3 + $0x2a0] sm:$0xff]
    %v129 = vld [vmem:[#allocation3 + $0x2a8] sm:$0xff]
    %v130 = vld [vmem:[#allocation3 + $0x2b0] sm:$0xff]
    %v131 = vld [vmem:[#allocation3 + $0x2b8] sm:$0xff]
    %v132 = vld [vmem:[#allocation3 + $0x2c0] sm:$0xff]
    %v133 = vld [vmem:[#allocation3 + $0x2c8] sm:$0xff]
    %v134 = vld [vmem:[#allocation3 + $0x2d0] sm:$0xff]
    %v135 = vld [vmem:[#allocation3 + $0x2d8] sm:$0xff]
    %v136 = vld [vmem:[#allocation3 + $0x2e0] sm:$0xff]
    %v137 = vld [vmem:[#allocation3 + $0x2e8] sm:$0xff]
    %v138 = vld [vmem:[#allocation3 + $0x2f0] sm:$0xff]
    %v139 = vld [vmem:[#allocation3 + $0x2f8] sm:$0xff]
    %v140 = vld [vmem:[#allocation3 + $0x300] sm:$0xff]
    %v141 = vld [vmem:[#allocation3 + $0x308] sm:$0xff]
    %v142 = vld [vmem:[#allocation3 + $0x310] sm:$0xff]
    %v143 = vld [vmem:[#allocation3 + $0x318] sm:$0xff]
    %v144 = vld [vmem:[#allocation3 + $0x320] sm:$0xff]
    %v145 = vld [vmem:[#allocation3 + $0x328] sm:$0xff]
    %v146 = vld [vmem:[#allocation3 + $0x330] sm:$0xff]
    %v147 = vld [vmem:[#allocation3 + $0x338] sm:$0xff]
    %v148 = vld [vmem:[#allocation3 + $0x340] sm:$0xff]
    %v149 = vld [vmem:[#allocation3 + $0x348] sm:$0xff]
    %v150 = vld [vmem:[#allocation3 + $0x350] sm:$0xff]
    %v151 = vld [vmem:[#allocation3 + $0x358] sm:$0xff]
    %v152 = vld [vmem:[#allocation3 + $0x360] sm:$0xff]
    %v153 = vld [vmem:[#allocation3 + $0x368] sm:$0xff]
    %v154 = vld [vmem:[#allocation3 + $0x370] sm:$0xff]
    %v155 = vld [vmem:[#allocation3 + $0x378] sm:$0xff]
    %v156 = vld [vmem:[#allocation3 + $0x380] sm:$0xff]
    %v157 = vld [vmem:[#allocation3 + $0x388] sm:$0xff]
    %v158 = vld [vmem:[#allocation3 + $0x390] sm:$0xff]
    %v159 = vld [vmem:[#allocation3 + $0x398] sm:$0xff]
    %v160 = vld [vmem:[#allocation3 + $0x3a0] sm:$0xff]
    %v161 = vld [vmem:[#allocation3 + $0x3a8] sm:$0xff]
    %v162 = vld [vmem:[#allocation3 + $0x3b0] sm:$0xff]
    %v163 = vld [vmem:[#allocation3 + $0x3b8] sm:$0xff]
    %v164 = vld [vmem:[#allocation3 + $0x3c0] sm:$0xff]
    %v165 = vld [vmem:[#allocation3 + $0x3c8] sm:$0xff]
    %v166 = vld [vmem:[#allocation3 + $0x3d0] sm:$0xff]
    %v167 = vld [vmem:[#allocation3 + $0x3d8] sm:$0xff]
    %v168 = vld [vmem:[#allocation3 + $0x3e0] sm:$0xff]
    %v169 = vld [vmem:[#allocation3 + $0x3e8] sm:$0xff]
    %v170 = vld [vmem:[#allocation3 + $0x3f0] sm:$0xff]
    %v171 = vld [vmem:[#allocation3 + $0x3f8] sm:$0xff]
    %v172 = vld [vmem:[#allocation3 + $0x400] sm:$0xff]
    %v173 = vld [vmem:[#allocation3 + $0x408] sm:$0xff]
    %v174 = vld [vmem:[#allocation3 + $0x410] sm:$0xff]
    %v175 = vld [vmem:[#allocation3 + $0x418] sm:$0xff]
    %v176 = vld [vmem:[#allocation3 + $0x420] sm:$0xff]
    %v177 = vld [vmem:[#allocation3 + $0x428] sm:$0xff]
    %v178 = vld [vmem:[#allocation3 + $0x430] sm:$0xff]
    %v179 = vld [vmem:[#allocation3 + $0x438] sm:$0xff]
    %v180 = vld [vmem:[#allocation3 + $0x440] sm:$0xff]
    %v181 = vld [vmem:[#allocation3 + $0x448] sm:$0xff]
    %v182 = vld [vmem:[#allocation3 + $0x450] sm:$0xff]
    %v183 = vld [vmem:[#allocation3 + $0x458] sm:$0xff]
    %v184 = vld [vmem:[#allocation3 + $0x460] sm:$0xff]
    %v185 = vld [vmem:[#allocation3 + $0x468] sm:$0xff]
    %v186 = vld [vmem:[#allocation3 + $0x470] sm:$0xff]
    %v187 = vld [vmem:[#allocation3 + $0x478] sm:$0xff]
    %v188 = vld [vmem:[#allocation3 + $0x480] sm:$0xff]
    %v189 = vld [vmem:[#allocation3 + $0x488] sm:$0xff]
    %v190 = vld [vmem:[#allocation3 + $0x490] sm:$0xff]
    %v191 = vld [vmem:[#allocation3 + $0x498] sm:$0xff]
    %v192 = vld [vmem:[#allocation3 + $0x4a0] sm:$0xff]
    %v193 = vld [vmem:[#allocation3 + $0x4a8] sm:$0xff]
    %v194 = vld [vmem:[#allocation3 + $0x4b0] sm:$0xff]
    %v195 = vld [vmem:[#allocation3 + $0x4b8] sm:$0xff]
    %v196 = vld [vmem:[#allocation3 + $0x4c0] sm:$0xff]
    %v197 = vld [vmem:[#allocation3 + $0x4c8] sm:$0xff]
    %v198 = vld [vmem:[#allocation3 + $0x4d0] sm:$0xff]
    %v199 = vld [vmem:[#allocation3 + $0x4d8] sm:$0xff]
    %v200 = vld [vmem:[#allocation3 + $0x4e0] sm:$0xff]
    %v201 = vld [vmem:[#allocation3 + $0x4e8] sm:$0xff]
    %v202 = vld [vmem:[#allocation3 + $0x4f0] sm:$0xff]
    %v203 = vld [vmem:[#allocation3 + $0x4f8] sm:$0xff]
    %v204 = vld [vmem:[#allocation3 + $0x500] sm:$0xff]
    %v205 = vld [vmem:[#allocation3 + $0x508] sm:$0xff]
    %v206 = vld [vmem:[#allocation3 + $0x510] sm:$0xff]
    %v207 = vld [vmem:[#allocation3 + $0x518] sm:$0xff]
    %v208 = vld [vmem:[#allocation3 + $0x520] sm:$0xff]
    %v209 = vld [vmem:[#allocation3 + $0x528] sm:$0xff]
    %v210 = vld [vmem:[#allocation3 + $0x530] sm:$0xff]
    %v211 = vld [vmem:[#allocation3 + $0x538] sm:$0xff]
    %v212 = vld [vmem:[#allocation3 + $0x540] sm:$0xf]
    %v213 = vld [vmem:[#allocation3 + $0x548] sm:$0xf]
    %v214 = vld [vmem:[#allocation6] sm:$0xff]
    %v215 = vld [vmem:[#allocation6 + $0x8] sm:$0xff]
    %v216 = vld [vmem:[#allocation6 + $0x10] sm:$0xff]
    %v217 = vld [vmem:[#allocation6 + $0x18] sm:$0xff]
    %v218 = vld [vmem:[#allocation6 + $0x20] sm:$0xff]
    %v219 = vld [vmem:[#allocation6 + $0x28] sm:$0xff]
    %v220 = vld [vmem:[#allocation6 + $0x30] sm:$0xff]
    %v221 = vld [vmem:[#allocation6 + $0x38] sm:$0xff]
    %v222 = vld [vmem:[#allocation6 + $0x40] sm:$0xff]
    %v223 = vld [vmem:[#allocation6 + $0x48] sm:$0xff]
    %v224 = vld [vmem:[#allocation6 + $0x50] sm:$0xff]
    %v225 = vld [vmem:[#allocation6 + $0x58] sm:$0xff]
    %v226 = vld [vmem:[#allocation6 + $0x60] sm:$0xff]
    %v227 = vld [vmem:[#allocation6 + $0x68] sm:$0xff]
    %v228 = vld [vmem:[#allocation6 + $0x70] sm:$0xff]
    %v229 = vld [vmem:[#allocation6 + $0x78] sm:$0xff]
    %v230 = vld [vmem:[#allocation6 + $0x80] sm:$0xff]
    %v231 = vld [vmem:[#allocation6 + $0x88] sm:$0xff]
    %v232 = vld [vmem:[#allocation6 + $0x90] sm:$0xff]
    %v233 = vld [vmem:[#allocation6 + $0x98] sm:$0xff]
    %v234 = vld [vmem:[#allocation6 + $0xa0] sm:$0xff]
    %v235 = vld [vmem:[#allocation6 + $0xa8] sm:$0xff]
    %v236 = vld [vmem:[#allocation6 + $0xb0] sm:$0xff]
    %v237 = vld [vmem:[#allocation6 + $0xb8] sm:$0xff]
    %v238 = vld [vmem:[#allocation6 + $0xc0] sm:$0xff]
    %v239 = vld [vmem:[#allocation6 + $0xc8] sm:$0xff]
    %v240 = vld [vmem:[#allocation6 + $0xd0] sm:$0xff]
    %v241 = vld [vmem:[#allocation6 + $0xd8] sm:$0xff]
    %v242 = vld [vmem:[#allocation6 + $0xe0] sm:$0xff]
    %v243 = vld [vmem:[#allocation6 + $0xe8] sm:$0xff]
    %v244 = vld [vmem:[#allocation6 + $0xf0] sm:$0xff]
    %v245 = vld [vmem:[#allocation6 + $0xf8] sm:$0xff]
    %246 = vmatprep.subr.mxu0 0.0
    %v247 = vand.u32 %v229, 4294901760
    %248 = vmatpush1.msra.mxu0 %v247
    %249 = vmatprep.subr.mxu0 0.0
    %v250 = vand.u32 %v228, 4294901760
    %251 = vmatpush1.msra.mxu0 %v250
    %252 = vmatprep.subr.mxu0 0.0
    %v253 = vand.u32 %v227, 4294901760
    %254 = vmatpush1.msra.mxu0 %v253
    %255 = vmatprep.subr.mxu0 0.0
    %v256 = vand.u32 %v226, 4294901760
    %257 = vmatpush1.msra.mxu0 %v256
    %258 = vmatprep.subr.mxu0 0.0
    %v259 = vand.u32 %v225, 4294901760
    %260 = vmatpush1.msra.mxu0 %v259
    %261 = vmatprep.subr.mxu0 0.0
    %v262 = vand.u32 %v224, 4294901760
    %263 = vmatpush1.msra.mxu0 %v262
    %264 = vmatprep.subr.mxu0 0.0
    %v265 = vand.u32 %v223, 4294901760
    %266 = vmatpush1.msra.mxu0 %v265
    %267 = vmatprep.subr.mxu0 0.0
    %v268 = vand.u32 %v222, 4294901760
    %269 = vmatpush1.msra.mxu0 %v268
    %270 = vmatprep.subr.mxu0 0.0
    %v271 = vand.u32 %v221, 4294901760
    %272 = vmatpush1.msra.mxu0 %v271
    %273 = vmatprep.subr.mxu0 0.0
    %v274 = vand.u32 %v220, 4294901760
    %275 = vmatpush1.msra.mxu0 %v274
    %276 = vmatprep.subr.mxu0 0.0
    %v277 = vand.u32 %v219, 4294901760
    %278 = vmatpush1.msra.mxu0 %v277
    %279 = vmatprep.subr.mxu0 0.0
    %v280 = vand.u32 %v218, 4294901760
    %281 = vmatpush1.msra.mxu0 %v280
    %282 = vmatprep.subr.mxu0 0.0
    %v283 = vand.u32 %v217, 4294901760
    %284 = vmatpush1.msra.mxu0 %v283
    %285 = vmatprep.subr.mxu0 0.0
    %v286 = vand.u32 %v216, 4294901760
    %287 = vmatpush1.msra.mxu0 %v286
    %288 = vmatprep.subr.mxu0 0.0
    %v289 = vand.u32 %v215, 4294901760
    %290 = vmatpush1.msra.mxu0 %v289
    %291 = vmatprep.subr.mxu0 0.0
    %v292 = vand.u32 %v214, 4294901760
    %293 = vmatpush1.msra.mxu0 %v292
    %294 = vmatprep.subr.mxu0 0.0
    %v295 = vand.u32 %v245, 4294901760
    %296 = vmatpush2.msra.mxu0 %v295
    %297 = vmatprep.subr.mxu0 0.0
    %v298 = vand.u32 %v244, 4294901760
    %299 = vmatpush2.msra.mxu0 %v298
    %300 = vmatprep.subr.mxu0 0.0
    %v301 = vand.u32 %v243, 4294901760
    %302 = vmatpush2.msra.mxu0 %v301
    %303 = vmatprep.subr.mxu0 0.0
    %v304 = vand.u32 %v242, 4294901760
    %305 = vmatpush2.msra.mxu0 %v304
    %306 = vmatprep.subr.mxu0 0.0
    %v307 = vand.u32 %v241, 4294901760
    %308 = vmatpush2.msra.mxu0 %v307
    %309 = vmatprep.subr.mxu0 0.0
    %v310 = vand.u32 %v240, 4294901760
    %311 = vmatpush2.msra.mxu0 %v310
    %312 = vmatprep.subr.mxu0 0.0
    %v313 = vand.u32 %v239, 4294901760
    %314 = vmatpush2.msra.mxu0 %v313
    %315 = vmatprep.subr.mxu0 0.0
    %v316 = vand.u32 %v238, 4294901760
    %317 = vmatpush2.msra.mxu0 %v316
    %318 = vmatprep.subr.mxu0 0.0
    %v319 = vand.u32 %v237, 4294901760
    %320 = vmatpush2.msra.mxu0 %v319
    %321 = vmatprep.subr.mxu0 0.0
    %v322 = vand.u32 %v236, 4294901760
    %323 = vmatpush2.msra.mxu0 %v322
    %324 = vmatprep.subr.mxu0 0.0
    %v325 = vand.u32 %v235, 4294901760
    %326 = vmatpush2.msra.mxu0 %v325
    %327 = vmatprep.subr.mxu0 0.0
    %v328 = vand.u32 %v234, 4294901760
    %329 = vmatpush2.msra.mxu0 %v328
    %330 = vmatprep.subr.mxu0 0.0
    %v331 = vand.u32 %v233, 4294901760
    %332 = vmatpush2.msra.mxu0 %v331
    %333 = vmatprep.subr.mxu0 0.0
    %v334 = vand.u32 %v232, 4294901760
    %335 = vmatpush2.msra.mxu0 %v334
    %336 = vmatprep.subr.mxu0 0.0
    %v337 = vand.u32 %v231, 4294901760
    %338 = vmatpush2.msra.mxu0 %v337
    %339 = vmatprep.subr.mxu0 0.0
    %v340 = vand.u32 %v230, 4294901760
    %341 = vmatpush2.msra.mxu0 %v340
    %v342 = vand.u32 %v45, 4294901760
    %v343 = vsub.f32 %v45, %v342
    %v344 = vand.u32 %v343, 4294901760
    %v345 = vsub.f32 %v343, %v344
    %v346 = vand.u32 %v345, 4294901760
    %347 = vmatprep.mubr.f32.mxu0 %v346
    %v348 = vand.u32 %v44, 4294901760
    %v349 = vsub.f32 %v44, %v348
    %v350 = vand.u32 %v349, 4294901760
    %v351 = vsub.f32 %v349, %v350
    %v352 = vand.u32 %v351, 4294901760
    %353 = vmatmul.mubr.f32.gmra.mxu0 %v352
    %v354 = vpop.f32.mrf.mxu0
    %v355 = vadd.f32 0.0, %v354
    %v356 = vpop.f32.mrf.mxu0
    %v357 = vand.u32 %v47, 4294901760
    %v358 = vsub.f32 %v47, %v357
    %v359 = vand.u32 %v358, 4294901760
    %v360 = vsub.f32 %v358, %v359
    %v361 = vand.u32 %v360, 4294901760
    %362 = vmatprep.mubr.f32.mxu0 %v361
    %v363 = vand.u32 %v46, 4294901760
    %v364 = vsub.f32 %v46, %v363
    %v365 = vand.u32 %v364, 4294901760
    %v366 = vsub.f32 %v364, %v365
    %v367 = vand.u32 %v366, 4294901760
    %368 = vmatmul.mubr.f32.gmra.mxu0 %v367
    %v369 = vpop.f32.mrf.mxu0
    %v370 = vadd.f32 0.0, %v369
    %v371 = vpop.f32.mrf.mxu0
    %v372 = vand.u32 %v49, 4294901760
    %v373 = vsub.f32 %v49, %v372
    %v374 = vand.u32 %v373, 4294901760
    %v375 = vsub.f32 %v373, %v374
    %v376 = vand.u32 %v375, 4294901760
    %377 = vmatprep.mubr.f32.mxu0 %v376
    %v378 = vand.u32 %v48, 4294901760
    %v379 = vsub.f32 %v48, %v378
    %v380 = vand.u32 %v379, 4294901760
    %v381 = vsub.f32 %v379, %v380
    %v382 = vand.u32 %v381, 4294901760
    %383 = vmatmul.mubr.f32.gmra.mxu0 %v382
    %v384 = vpop.f32.mrf.mxu0
    %v385 = vadd.f32 0.0, %v384
    %v386 = vpop.f32.mrf.mxu0
    %v387 = vand.u32 %v51, 4294901760
    %v388 = vsub.f32 %v51, %v387
    %v389 = vand.u32 %v388, 4294901760
    %v390 = vsub.f32 %v388, %v389
    %v391 = vand.u32 %v390, 4294901760
    %392 = vmatprep.mubr.f32.mxu0 %v391
    %v393 = vand.u32 %v50, 4294901760
    %v394 = vsub.f32 %v50, %v393
    %v395 = vand.u32 %v394, 4294901760
    %v396 = vsub.f32 %v394, %v395
    %v397 = vand.u32 %v396, 4294901760
    %398 = vmatmul.mubr.f32.gmra.mxu0 %v397
    %v399 = vpop.f32.mrf.mxu0
    %v400 = vadd.f32 0.0, %v399
    %v401 = vpop.f32.mrf.mxu0
    %v402 = vand.u32 %v53, 4294901760
    %v403 = vsub.f32 %v53, %v402
    %v404 = vand.u32 %v403, 4294901760
    %v405 = vsub.f32 %v403, %v404
    %v406 = vand.u32 %v405, 4294901760
    %407 = vmatprep.mubr.f32.mxu0 %v406
    %v408 = vand.u32 %v52, 4294901760
    %v409 = vsub.f32 %v52, %v408
    %v410 = vand.u32 %v409, 4294901760
    %v411 = vsub.f32 %v409, %v410
    %v412 = vand.u32 %v411, 4294901760
    %413 = vmatmul.mubr.f32.gmra.mxu0 %v412
    %v414 = vpop.f32.mrf.mxu0
    %v415 = vadd.f32 0.0, %v414
    %v416 = vpop.f32.mrf.mxu0
    %v417 = vand.u32 %v55, 4294901760
    %v418 = vsub.f32 %v55, %v417
    %v419 = vand.u32 %v418, 4294901760
    %v420 = vsub.f32 %v418, %v419
    %v421 = vand.u32 %v420, 4294901760
    %422 = vmatprep.mubr.f32.mxu0 %v421
    %v423 = vand.u32 %v54, 4294901760
    %v424 = vsub.f32 %v54, %v423
    %v425 = vand.u32 %v424, 4294901760
    %v426 = vsub.f32 %v424, %v425
    %v427 = vand.u32 %v426, 4294901760
    %428 = vmatmul.mubr.f32.gmra.mxu0 %v427
    %v429 = vpop.f32.mrf.mxu0
    %v430 = vadd.f32 0.0, %v429
    %v431 = vpop.f32.mrf.mxu0
    %v432 = vand.u32 %v57, 4294901760
    %v433 = vsub.f32 %v57, %v432
    %v434 = vand.u32 %v433, 4294901760
    %v435 = vsub.f32 %v433, %v434
    %v436 = vand.u32 %v435, 4294901760
    %437 = vmatprep.mubr.f32.mxu0 %v436
    %v438 = vand.u32 %v56, 4294901760
    %v439 = vsub.f32 %v56, %v438
    %v440 = vand.u32 %v439, 4294901760
    %v441 = vsub.f32 %v439, %v440
    %v442 = vand.u32 %v441, 4294901760
    %443 = vmatmul.mubr.f32.gmra.mxu0 %v442
    %v444 = vpop.f32.mrf.mxu0
    %v445 = vadd.f32 0.0, %v444
    %v446 = vpop.f32.mrf.mxu0
    %v447 = vand.u32 %v59, 4294901760
    %v448 = vsub.f32 %v59, %v447
    %v449 = vand.u32 %v448, 4294901760
    %v450 = vsub.f32 %v448, %v449
    %v451 = vand.u32 %v450, 4294901760
    %452 = vmatprep.mubr.f32.mxu0 %v451
    %v453 = vand.u32 %v58, 4294901760
    %v454 = vsub.f32 %v58, %v453
    %v455 = vand.u32 %v454, 4294901760
    %v456 = vsub.f32 %v454, %v455
    %v457 = vand.u32 %v456, 4294901760
    %458 = vmatmul.mubr.f32.gmra.mxu0 %v457
    %v459 = vpop.f32.mrf.mxu0
    %v460 = vadd.f32 0.0, %v459
    %v461 = vpop.f32.mrf.mxu0
    %v462 = vand.u32 %v61, 4294901760
    %v463 = vsub.f32 %v61, %v462
    %v464 = vand.u32 %v463, 4294901760
    %v465 = vsub.f32 %v463, %v464
    %v466 = vand.u32 %v465, 4294901760
    %467 = vmatprep.mubr.f32.mxu0 %v466
    %v468 = vand.u32 %v60, 4294901760
    %v469 = vsub.f32 %v60, %v468
    %v470 = vand.u32 %v469, 4294901760
    %v471 = vsub.f32 %v469, %v470
    %v472 = vand.u32 %v471, 4294901760
    %473 = vmatmul.mubr.f32.gmra.mxu0 %v472
    %v474 = vpop.f32.mrf.mxu0
    %v475 = vadd.f32 0.0, %v474
    %v476 = vpop.f32.mrf.mxu0
    %v477 = vand.u32 %v63, 4294901760
    %v478 = vsub.f32 %v63, %v477
    %v479 = vand.u32 %v478, 4294901760
    %v480 = vsub.f32 %v478, %v479
    %v481 = vand.u32 %v480, 4294901760
    %482 = vmatprep.mubr.f32.mxu0 %v481
    %v483 = vand.u32 %v62, 4294901760
    %v484 = vsub.f32 %v62, %v483
    %v485 = vand.u32 %v484, 4294901760
    %v486 = vsub.f32 %v484, %v485
    %v487 = vand.u32 %v486, 4294901760
    %488 = vmatmul.mubr.f32.gmra.mxu0 %v487
    %v489 = vpop.f32.mrf.mxu0
    %v490 = vadd.f32 0.0, %v489
    %v491 = vpop.f32.mrf.mxu0
    %v492 = vand.u32 %v65, 4294901760
    %v493 = vsub.f32 %v65, %v492
    %v494 = vand.u32 %v493, 4294901760
    %v495 = vsub.f32 %v493, %v494
    %v496 = vand.u32 %v495, 4294901760
    %497 = vmatprep.mubr.f32.mxu0 %v496
    %v498 = vand.u32 %v64, 4294901760
    %v499 = vsub.f32 %v64, %v498
    %v500 = vand.u32 %v499, 4294901760
    %v501 = vsub.f32 %v499, %v500
    %v502 = vand.u32 %v501, 4294901760
    %503 = vmatmul.mubr.f32.gmra.mxu0 %v502
    %v504 = vpop.f32.mrf.mxu0
    %v505 = vadd.f32 0.0, %v504
    %v506 = vpop.f32.mrf.mxu0
    %v507 = vand.u32 %v67, 4294901760
    %v508 = vsub.f32 %v67, %v507
    %v509 = vand.u32 %v508, 4294901760
    %v510 = vsub.f32 %v508, %v509
    %v511 = vand.u32 %v510, 4294901760
    %512 = vmatprep.mubr.f32.mxu0 %v511
    %v513 = vand.u32 %v66, 4294901760
    %v514 = vsub.f32 %v66, %v513
    %v515 = vand.u32 %v514, 4294901760
    %v516 = vsub.f32 %v514, %v515
    %v517 = vand.u32 %v516, 4294901760
    %518 = vmatmul.mubr.f32.gmra.mxu0 %v517
    %v519 = vpop.f32.mrf.mxu0
    %v520 = vadd.f32 0.0, %v519
    %v521 = vpop.f32.mrf.mxu0
    %v522 = vand.u32 %v69, 4294901760
    %v523 = vsub.f32 %v69, %v522
    %v524 = vand.u32 %v523, 4294901760
    %v525 = vsub.f32 %v523, %v524
    %v526 = vand.u32 %v525, 4294901760
    %527 = vmatprep.mubr.f32.mxu0 %v526
    %v528 = vand.u32 %v68, 4294901760
    %v529 = vsub.f32 %v68, %v528
    %v530 = vand.u32 %v529, 4294901760
    %v531 = vsub.f32 %v529, %v530
    %v532 = vand.u32 %v531, 4294901760
    %533 = vmatmul.mubr.f32.gmra.mxu0 %v532
    %v534 = vpop.f32.mrf.mxu0
    %v535 = vadd.f32 0.0, %v534
    %v536 = vpop.f32.mrf.mxu0
    %v537 = vand.u32 %v71, 4294901760
    %v538 = vsub.f32 %v71, %v537
    %v539 = vand.u32 %v538, 4294901760
    %v540 = vsub.f32 %v538, %v539
    %v541 = vand.u32 %v540, 4294901760
    %542 = vmatprep.mubr.f32.mxu0 %v541
    %v543 = vand.u32 %v70, 4294901760
    %v544 = vsub.f32 %v70, %v543
    %v545 = vand.u32 %v544, 4294901760
    %v546 = vsub.f32 %v544, %v545
    %v547 = vand.u32 %v546, 4294901760
    %548 = vmatmul.mubr.f32.gmra.mxu0 %v547
    %v549 = vpop.f32.mrf.mxu0
    %v550 = vadd.f32 0.0, %v549
    %v551 = vpop.f32.mrf.mxu0
    %v552 = vand.u32 %v73, 4294901760
    %v553 = vsub.f32 %v73, %v552
    %v554 = vand.u32 %v553, 4294901760
    %v555 = vsub.f32 %v553, %v554
    %v556 = vand.u32 %v555, 4294901760
    %557 = vmatprep.mubr.f32.mxu0 %v556
    %v558 = vand.u32 %v72, 4294901760
    %v559 = vsub.f32 %v72, %v558
    %v560 = vand.u32 %v559, 4294901760
    %v561 = vsub.f32 %v559, %v560
    %v562 = vand.u32 %v561, 4294901760
    %563 = vmatmul.mubr.f32.gmra.mxu0 %v562
    %v564 = vpop.f32.mrf.mxu0
    %v565 = vadd.f32 0.0, %v564
    %v566 = vpop.f32.mrf.mxu0
    %v567 = vand.u32 %v75, 4294901760
    %v568 = vsub.f32 %v75, %v567
    %v569 = vand.u32 %v568, 4294901760
    %v570 = vsub.f32 %v568, %v569
    %v571 = vand.u32 %v570, 4294901760
    %572 = vmatprep.mubr.f32.mxu0 %v571
    %v573 = vand.u32 %v74, 4294901760
    %v574 = vsub.f32 %v74, %v573
    %v575 = vand.u32 %v574, 4294901760
    %v576 = vsub.f32 %v574, %v575
    %v577 = vand.u32 %v576, 4294901760
    %578 = vmatmul.mubr.f32.gmra.mxu0 %v577
    %v579 = vpop.f32.mrf.mxu0
    %v580 = vadd.f32 0.0, %v579
    %v581 = vpop.f32.mrf.mxu0
    %v582 = vand.u32 %v77, 4294901760
    %v583 = vsub.f32 %v77, %v582
    %v584 = vand.u32 %v583, 4294901760
    %v585 = vsub.f32 %v583, %v584
    %v586 = vand.u32 %v585, 4294901760
    %587 = vmatprep.mubr.f32.mxu0 %v586
    %v588 = vand.u32 %v76, 4294901760
    %v589 = vsub.f32 %v76, %v588
    %v590 = vand.u32 %v589, 4294901760
    %v591 = vsub.f32 %v589, %v590
    %v592 = vand.u32 %v591, 4294901760
    %593 = vmatmul.mubr.f32.gmra.mxu0 %v592
    %v594 = vpop.f32.mrf.mxu0
    %v595 = vadd.f32 0.0, %v594
    %v596 = vpop.f32.mrf.mxu0
    %v597 = vand.u32 %v79, 4294901760
    %v598 = vsub.f32 %v79, %v597
    %v599 = vand.u32 %v598, 4294901760
    %v600 = vsub.f32 %v598, %v599
    %v601 = vand.u32 %v600, 4294901760
    %602 = vmatprep.mubr.f32.mxu0 %v601
    %v603 = vand.u32 %v78, 4294901760
    %v604 = vsub.f32 %v78, %v603
    %v605 = vand.u32 %v604, 4294901760
    %v606 = vsub.f32 %v604, %v605
    %v607 = vand.u32 %v606, 4294901760
    %608 = vmatmul.mubr.f32.gmra.mxu0 %v607
    %v609 = vpop.f32.mrf.mxu0
    %v610 = vadd.f32 0.0, %v609
    %v611 = vpop.f32.mrf.mxu0
    %v612 = vand.u32 %v81, 4294901760
    %v613 = vsub.f32 %v81, %v612
    %v614 = vand.u32 %v613, 4294901760
    %v615 = vsub.f32 %v613, %v614
    %v616 = vand.u32 %v615, 4294901760
    %617 = vmatprep.mubr.f32.mxu0 %v616
    %v618 = vand.u32 %v80, 4294901760
    %v619 = vsub.f32 %v80, %v618
    %v620 = vand.u32 %v619, 4294901760
    %v621 = vsub.f32 %v619, %v620
    %v622 = vand.u32 %v621, 4294901760
    %623 = vmatmul.mubr.f32.gmra.mxu0 %v622
    %v624 = vpop.f32.mrf.mxu0
    %v625 = vadd.f32 0.0, %v624
    %v626 = vpop.f32.mrf.mxu0
    %v627 = vand.u32 %v83, 4294901760
    %v628 = vsub.f32 %v83, %v627
    %v629 = vand.u32 %v628, 4294901760
    %v630 = vsub.f32 %v628, %v629
    %v631 = vand.u32 %v630, 4294901760
    %632 = vmatprep.mubr.f32.mxu0 %v631
    %v633 = vand.u32 %v82, 4294901760
    %v634 = vsub.f32 %v82, %v633
    %v635 = vand.u32 %v634, 4294901760
    %v636 = vsub.f32 %v634, %v635
    %v637 = vand.u32 %v636, 4294901760
    %638 = vmatmul.mubr.f32.gmra.mxu0 %v637
    %v639 = vpop.f32.mrf.mxu0
    %v640 = vadd.f32 0.0, %v639
    %v641 = vpop.f32.mrf.mxu0
    %v642 = vand.u32 %v85, 4294901760
    %v643 = vsub.f32 %v85, %v642
    %v644 = vand.u32 %v643, 4294901760
    %v645 = vsub.f32 %v643, %v644
    %v646 = vand.u32 %v645, 4294901760
    %647 = vmatprep.mubr.f32.mxu0 %v646
    %v648 = vand.u32 %v84, 4294901760
    %v649 = vsub.f32 %v84, %v648
    %v650 = vand.u32 %v649, 4294901760
    %v651 = vsub.f32 %v649, %v650
    %v652 = vand.u32 %v651, 4294901760
    %653 = vmatmul.mubr.f32.gmra.mxu0 %v652
    %v654 = vpop.f32.mrf.mxu0
    %v655 = vadd.f32 0.0, %v654
    %v656 = vpop.f32.mrf.mxu0
    %v657 = vand.u32 %v87, 4294901760
    %v658 = vsub.f32 %v87, %v657
    %v659 = vand.u32 %v658, 4294901760
    %v660 = vsub.f32 %v658, %v659
    %v661 = vand.u32 %v660, 4294901760
    %662 = vmatprep.mubr.f32.mxu0 %v661
    %v663 = vand.u32 %v86, 4294901760
    %v664 = vsub.f32 %v86, %v663
    %v665 = vand.u32 %v664, 4294901760
    %v666 = vsub.f32 %v664, %v665
    %v667 = vand.u32 %v666, 4294901760
    %668 = vmatmul.mubr.f32.gmra.mxu0 %v667
    %v669 = vpop.f32.mrf.mxu0
    %v670 = vadd.f32 0.0, %v669
    %v671 = vpop.f32.mrf.mxu0
    %v672 = vand.u32 %v89, 4294901760
    %v673 = vsub.f32 %v89, %v672
    %v674 = vand.u32 %v673, 4294901760
    %v675 = vsub.f32 %v673, %v674
    %v676 = vand.u32 %v675, 4294901760
    %677 = vmatprep.mubr.f32.mxu0 %v676
    %v678 = vand.u32 %v88, 4294901760
    %v679 = vsub.f32 %v88, %v678
    %v680 = vand.u32 %v679, 4294901760
    %v681 = vsub.f32 %v679, %v680
    %v682 = vand.u32 %v681, 4294901760
    %683 = vmatmul.mubr.f32.gmra.mxu0 %v682
    %v684 = vpop.f32.mrf.mxu0
    %v685 = vadd.f32 0.0, %v684
    %v686 = vpop.f32.mrf.mxu0
    %v687 = vand.u32 %v91, 4294901760
    %v688 = vsub.f32 %v91, %v687
    %v689 = vand.u32 %v688, 4294901760
    %v690 = vsub.f32 %v688, %v689
    %v691 = vand.u32 %v690, 4294901760
    %692 = vmatprep.mubr.f32.mxu0 %v691
    %v693 = vand.u32 %v90, 4294901760
    %v694 = vsub.f32 %v90, %v693
    %v695 = vand.u32 %v694, 4294901760
    %v696 = vsub.f32 %v694, %v695
    %v697 = vand.u32 %v696, 4294901760
    %698 = vmatmul.mubr.f32.gmra.mxu0 %v697
    %v699 = vpop.f32.mrf.mxu0
    %v700 = vadd.f32 0.0, %v699
    %v701 = vpop.f32.mrf.mxu0
    %v702 = vand.u32 %v93, 4294901760
    %v703 = vsub.f32 %v93, %v702
    %v704 = vand.u32 %v703, 4294901760
    %v705 = vsub.f32 %v703, %v704
    %v706 = vand.u32 %v705, 4294901760
    %707 = vmatprep.mubr.f32.mxu0 %v706
    %v708 = vand.u32 %v92, 4294901760
    %v709 = vsub.f32 %v92, %v708
    %v710 = vand.u32 %v709, 4294901760
    %v711 = vsub.f32 %v709, %v710
    %v712 = vand.u32 %v711, 4294901760
    %713 = vmatmul.mubr.f32.gmra.mxu0 %v712
    %v714 = vpop.f32.mrf.mxu0
    %v715 = vadd.f32 0.0, %v714
    %v716 = vpop.f32.mrf.mxu0
    %v717 = vand.u32 %v95, 4294901760
    %v718 = vsub.f32 %v95, %v717
    %v719 = vand.u32 %v718, 4294901760
    %v720 = vsub.f32 %v718, %v719
    %v721 = vand.u32 %v720, 4294901760
    %722 = vmatprep.mubr.f32.mxu0 %v721
    %v723 = vand.u32 %v94, 4294901760
    %v724 = vsub.f32 %v94, %v723
    %v725 = vand.u32 %v724, 4294901760
    %v726 = vsub.f32 %v724, %v725
    %v727 = vand.u32 %v726, 4294901760
    %728 = vmatmul.mubr.f32.gmra.mxu0 %v727
    %v729 = vpop.f32.mrf.mxu0
    %v730 = vadd.f32 0.0, %v729
    %v731 = vpop.f32.mrf.mxu0
    %v732 = vand.u32 %v97, 4294901760
    %v733 = vsub.f32 %v97, %v732
    %v734 = vand.u32 %v733, 4294901760
    %v735 = vsub.f32 %v733, %v734
    %v736 = vand.u32 %v735, 4294901760
    %737 = vmatprep.mubr.f32.mxu0 %v736
    %v738 = vand.u32 %v96, 4294901760
    %v739 = vsub.f32 %v96, %v738
    %v740 = vand.u32 %v739, 4294901760
    %v741 = vsub.f32 %v739, %v740
    %v742 = vand.u32 %v741, 4294901760
    %743 = vmatmul.mubr.f32.gmra.mxu0 %v742
    %v744 = vpop.f32.mrf.mxu0
    %v745 = vadd.f32 0.0, %v744
    %v746 = vpop.f32.mrf.mxu0
    %v747 = vand.u32 %v99, 4294901760
    %v748 = vsub.f32 %v99, %v747
    %v749 = vand.u32 %v748, 4294901760
    %v750 = vsub.f32 %v748, %v749
    %v751 = vand.u32 %v750, 4294901760
    %752 = vmatprep.mubr.f32.mxu0 %v751
    %v753 = vand.u32 %v98, 4294901760
    %v754 = vsub.f32 %v98, %v753
    %v755 = vand.u32 %v754, 4294901760
    %v756 = vsub.f32 %v754, %v755
    %v757 = vand.u32 %v756, 4294901760
    %758 = vmatmul.mubr.f32.gmra.mxu0 %v757
    %v759 = vpop.f32.mrf.mxu0
    %v760 = vadd.f32 0.0, %v759
    %v761 = vpop.f32.mrf.mxu0
    %v762 = vand.u32 %v101, 4294901760
    %v763 = vsub.f32 %v101, %v762
    %v764 = vand.u32 %v763, 4294901760
    %v765 = vsub.f32 %v763, %v764
    %v766 = vand.u32 %v765, 4294901760
    %767 = vmatprep.mubr.f32.mxu0 %v766
    %v768 = vand.u32 %v100, 4294901760
    %v769 = vsub.f32 %v100, %v768
    %v770 = vand.u32 %v769, 4294901760
    %v771 = vsub.f32 %v769, %v770
    %v772 = vand.u32 %v771, 4294901760
    %773 = vmatmul.mubr.f32.gmra.mxu0 %v772
    %v774 = vpop.f32.mrf.mxu0
    %v775 = vadd.f32 0.0, %v774
    %v776 = vpop.f32.mrf.mxu0
    %v777 = vand.u32 %v103, 4294901760
    %v778 = vsub.f32 %v103, %v777
    %v779 = vand.u32 %v778, 4294901760
    %v780 = vsub.f32 %v778, %v779
    %v781 = vand.u32 %v780, 4294901760
    %782 = vmatprep.mubr.f32.mxu0 %v781
    %v783 = vand.u32 %v102, 4294901760
    %v784 = vsub.f32 %v102, %v783
    %v785 = vand.u32 %v784, 4294901760
    %v786 = vsub.f32 %v784, %v785
    %v787 = vand.u32 %v786, 4294901760
    %788 = vmatmul.mubr.f32.gmra.mxu0 %v787
    %v789 = vpop.f32.mrf.mxu0
    %v790 = vadd.f32 0.0, %v789
    %v791 = vpop.f32.mrf.mxu0
    %v792 = vand.u32 %v105, 4294901760
    %v793 = vsub.f32 %v105, %v792
    %v794 = vand.u32 %v793, 4294901760
    %v795 = vsub.f32 %v793, %v794
    %v796 = vand.u32 %v795, 4294901760
    %797 = vmatprep.mubr.f32.mxu0 %v796
    %v798 = vand.u32 %v104, 4294901760
    %v799 = vsub.f32 %v104, %v798
    %v800 = vand.u32 %v799, 4294901760
    %v801 = vsub.f32 %v799, %v800
    %v802 = vand.u32 %v801, 4294901760
    %803 = vmatmul.mubr.f32.gmra.mxu0 %v802
    %v804 = vpop.f32.mrf.mxu0
    %v805 = vadd.f32 0.0, %v804
    %v806 = vpop.f32.mrf.mxu0
    %v807 = vand.u32 %v107, 4294901760
    %v808 = vsub.f32 %v107, %v807
    %v809 = vand.u32 %v808, 4294901760
    %v810 = vsub.f32 %v808, %v809
    %v811 = vand.u32 %v810, 4294901760
    %812 = vmatprep.mubr.f32.mxu0 %v811
    %v813 = vand.u32 %v106, 4294901760
    %v814 = vsub.f32 %v106, %v813
    %v815 = vand.u32 %v814, 4294901760
    %v816 = vsub.f32 %v814, %v815
    %v817 = vand.u32 %v816, 4294901760
    %818 = vmatmul.mubr.f32.gmra.mxu0 %v817
    %v819 = vpop.f32.mrf.mxu0
    %v820 = vadd.f32 0.0, %v819
    %v821 = vpop.f32.mrf.mxu0
    %v822 = vand.u32 %v109, 4294901760
    %v823 = vsub.f32 %v109, %v822
    %v824 = vand.u32 %v823, 4294901760
    %v825 = vsub.f32 %v823, %v824
    %v826 = vand.u32 %v825, 4294901760
    %827 = vmatprep.mubr.f32.mxu0 %v826
    %v828 = vand.u32 %v108, 4294901760
    %v829 = vsub.f32 %v108, %v828
    %v830 = vand.u32 %v829, 4294901760
    %v831 = vsub.f32 %v829, %v830
    %v832 = vand.u32 %v831, 4294901760
    %833 = vmatmul.mubr.f32.gmra.mxu0 %v832
    %v834 = vpop.f32.mrf.mxu0
    %v835 = vadd.f32 0.0, %v834
    %v836 = vpop.f32.mrf.mxu0
    %v837 = vand.u32 %v111, 4294901760
    %v838 = vsub.f32 %v111, %v837
    %v839 = vand.u32 %v838, 4294901760
    %v840 = vsub.f32 %v838, %v839
    %v841 = vand.u32 %v840, 4294901760
    %842 = vmatprep.mubr.f32.mxu0 %v841
    %v843 = vand.u32 %v110, 4294901760
    %v844 = vsub.f32 %v110, %v843
    %v845 = vand.u32 %v844, 4294901760
    %v846 = vsub.f32 %v844, %v845
    %v847 = vand.u32 %v846, 4294901760
    %848 = vmatmul.mubr.f32.gmra.mxu0 %v847
    %v849 = vpop.f32.mrf.mxu0
    %v850 = vadd.f32 0.0, %v849
    %v851 = vpop.f32.mrf.mxu0
    %v852 = vand.u32 %v113, 4294901760
    %v853 = vsub.f32 %v113, %v852
    %v854 = vand.u32 %v853, 4294901760
    %v855 = vsub.f32 %v853, %v854
    %v856 = vand.u32 %v855, 4294901760
    %857 = vmatprep.mubr.f32.mxu0 %v856
    %v858 = vand.u32 %v112, 4294901760
    %v859 = vsub.f32 %v112, %v858
    %v860 = vand.u32 %v859, 4294901760
    %v861 = vsub.f32 %v859, %v860
    %v862 = vand.u32 %v861, 4294901760
    %863 = vmatmul.mubr.f32.gmra.mxu0 %v862
    %v864 = vpop.f32.mrf.mxu0
    %v865 = vadd.f32 0.0, %v864
    %v866 = vpop.f32.mrf.mxu0
    %v867 = vand.u32 %v115, 4294901760
    %v868 = vsub.f32 %v115, %v867
    %v869 = vand.u32 %v868, 4294901760
    %v870 = vsub.f32 %v868, %v869
    %v871 = vand.u32 %v870, 4294901760
    %872 = vmatprep.mubr.f32.mxu0 %v871
    %v873 = vand.u32 %v114, 4294901760
    %v874 = vsub.f32 %v114, %v873
    %v875 = vand.u32 %v874, 4294901760
    %v876 = vsub.f32 %v874, %v875
    %v877 = vand.u32 %v876, 4294901760
    %878 = vmatmul.mubr.f32.gmra.mxu0 %v877
    %v879 = vpop.f32.mrf.mxu0
    %v880 = vadd.f32 0.0, %v879
    %v881 = vpop.f32.mrf.mxu0
    %v882 = vand.u32 %v117, 4294901760
    %v883 = vsub.f32 %v117, %v882
    %v884 = vand.u32 %v883, 4294901760
    %v885 = vsub.f32 %v883, %v884
    %v886 = vand.u32 %v885, 4294901760
    %887 = vmatprep.mubr.f32.mxu0 %v886
    %v888 = vand.u32 %v116, 4294901760
    %v889 = vsub.f32 %v116, %v888
    %v890 = vand.u32 %v889, 4294901760
    %v891 = vsub.f32 %v889, %v890
    %v892 = vand.u32 %v891, 4294901760
    %893 = vmatmul.mubr.f32.gmra.mxu0 %v892
    %v894 = vpop.f32.mrf.mxu0
    %v895 = vadd.f32 0.0, %v894
    %v896 = vpop.f32.mrf.mxu0
    %v897 = vand.u32 %v119, 4294901760
    %v898 = vsub.f32 %v119, %v897
    %v899 = vand.u32 %v898, 4294901760
    %v900 = vsub.f32 %v898, %v899
    %v901 = vand.u32 %v900, 4294901760
    %902 = vmatprep.mubr.f32.mxu0 %v901
    %v903 = vand.u32 %v118, 4294901760
    %v904 = vsub.f32 %v118, %v903
    %v905 = vand.u32 %v904, 4294901760
    %v906 = vsub.f32 %v904, %v905
    %v907 = vand.u32 %v906, 4294901760
    %908 = vmatmul.mubr.f32.gmra.mxu0 %v907
    %v909 = vpop.f32.mrf.mxu0
    %v910 = vadd.f32 0.0, %v909
    %v911 = vpop.f32.mrf.mxu0
    %v912 = vand.u32 %v121, 4294901760
    %v913 = vsub.f32 %v121, %v912
    %v914 = vand.u32 %v913, 4294901760
    %v915 = vsub.f32 %v913, %v914
    %v916 = vand.u32 %v915, 4294901760
    %917 = vmatprep.mubr.f32.mxu0 %v916
    %v918 = vand.u32 %v120, 4294901760
    %v919 = vsub.f32 %v120, %v918
    %v920 = vand.u32 %v919, 4294901760
    %v921 = vsub.f32 %v919, %v920
    %v922 = vand.u32 %v921, 4294901760
    %923 = vmatmul.mubr.f32.gmra.mxu0 %v922
    %v924 = vpop.f32.mrf.mxu0
    %v925 = vadd.f32 0.0, %v924
    %v926 = vpop.f32.mrf.mxu0
    %v927 = vand.u32 %v123, 4294901760
    %v928 = vsub.f32 %v123, %v927
    %v929 = vand.u32 %v928, 4294901760
    %v930 = vsub.f32 %v928, %v929
    %v931 = vand.u32 %v930, 4294901760
    %932 = vmatprep.mubr.f32.mxu0 %v931
    %v933 = vand.u32 %v122, 4294901760
    %v934 = vsub.f32 %v122, %v933
    %v935 = vand.u32 %v934, 4294901760
    %v936 = vsub.f32 %v934, %v935
    %v937 = vand.u32 %v936, 4294901760
    %938 = vmatmul.mubr.f32.gmra.mxu0 %v937
    %v939 = vpop.f32.mrf.mxu0
    %v940 = vadd.f32 0.0, %v939
    %v941 = vpop.f32.mrf.mxu0
    %v942 = vand.u32 %v125, 4294901760
    %v943 = vsub.f32 %v125, %v942
    %v944 = vand.u32 %v943, 4294901760
    %v945 = vsub.f32 %v943, %v944
    %v946 = vand.u32 %v945, 4294901760
    %947 = vmatprep.mubr.f32.mxu0 %v946
    %v948 = vand.u32 %v124, 4294901760
    %v949 = vsub.f32 %v124, %v948
    %v950 = vand.u32 %v949, 4294901760
    %v951 = vsub.f32 %v949, %v950
    %v952 = vand.u32 %v951, 4294901760
    %953 = vmatmul.mubr.f32.gmra.mxu0 %v952
    %v954 = vpop.f32.mrf.mxu0
    %v955 = vadd.f32 0.0, %v954
    %v956 = vpop.f32.mrf.mxu0
    %v957 = vand.u32 %v127, 4294901760
    %v958 = vsub.f32 %v127, %v957
    %v959 = vand.u32 %v958, 4294901760
    %v960 = vsub.f32 %v958, %v959
    %v961 = vand.u32 %v960, 4294901760
    %962 = vmatprep.mubr.f32.mxu0 %v961
    %v963 = vand.u32 %v126, 4294901760
    %v964 = vsub.f32 %v126, %v963
    %v965 = vand.u32 %v964, 4294901760
    %v966 = vsub.f32 %v964, %v965
    %v967 = vand.u32 %v966, 4294901760
    %968 = vmatmul.mubr.f32.gmra.mxu0 %v967
    %v969 = vpop.f32.mrf.mxu0
    %v970 = vadd.f32 0.0, %v969
    %v971 = vpop.f32.mrf.mxu0
    %v972 = vand.u32 %v129, 4294901760
    %v973 = vsub.f32 %v129, %v972
    %v974 = vand.u32 %v973, 4294901760
    %v975 = vsub.f32 %v973, %v974
    %v976 = vand.u32 %v975, 4294901760
    %977 = vmatprep.mubr.f32.mxu0 %v976
    %v978 = vand.u32 %v128, 4294901760
    %v979 = vsub.f32 %v128, %v978
    %v980 = vand.u32 %v979, 4294901760
    %v981 = vsub.f32 %v979, %v980
    %v982 = vand.u32 %v981, 4294901760
    %983 = vmatmul.mubr.f32.gmra.mxu0 %v982
    %v984 = vpop.f32.mrf.mxu0
    %v985 = vadd.f32 0.0, %v984
    %v986 = vpop.f32.mrf.mxu0
    %v987 = vand.u32 %v131, 4294901760
    %v988 = vsub.f32 %v131, %v987
    %v989 = vand.u32 %v988, 4294901760
    %v990 = vsub.f32 %v988, %v989
    %v991 = vand.u32 %v990, 4294901760
    %992 = vmatprep.mubr.f32.mxu0 %v991
    %v993 = vand.u32 %v130, 4294901760
    %v994 = vsub.f32 %v130, %v993
    %v995 = vand.u32 %v994, 4294901760
    %v996 = vsub.f32 %v994, %v995
    %v997 = vand.u32 %v996, 4294901760
    %998 = vmatmul.mubr.f32.gmra.mxu0 %v997
    %v999 = vpop.f32.mrf.mxu0
    %v1000 = vadd.f32 0.0, %v999
    %v1001 = vpop.f32.mrf.mxu0
    %v1002 = vand.u32 %v133, 4294901760
    %v1003 = vsub.f32 %v133, %v1002
    %v1004 = vand.u32 %v1003, 4294901760
    %v1005 = vsub.f32 %v1003, %v1004
    %v1006 = vand.u32 %v1005, 4294901760
    %1007 = vmatprep.mubr.f32.mxu0 %v1006
    %v1008 = vand.u32 %v132, 4294901760
    %v1009 = vsub.f32 %v132, %v1008
    %v1010 = vand.u32 %v1009, 4294901760
    %v1011 = vsub.f32 %v1009, %v1010
    %v1012 = vand.u32 %v1011, 4294901760
    %1013 = vmatmul.mubr.f32.gmra.mxu0 %v1012
    %v1014 = vpop.f32.mrf.mxu0
    %v1015 = vadd.f32 0.0, %v1014
    %v1016 = vpop.f32.mrf.mxu0
    %v1017 = vand.u32 %v135, 4294901760
    %v1018 = vsub.f32 %v135, %v1017
    %v1019 = vand.u32 %v1018, 4294901760
    %v1020 = vsub.f32 %v1018, %v1019
    %v1021 = vand.u32 %v1020, 4294901760
    %1022 = vmatprep.mubr.f32.mxu0 %v1021
    %v1023 = vand.u32 %v134, 4294901760
    %v1024 = vsub.f32 %v134, %v1023
    %v1025 = vand.u32 %v1024, 4294901760
    %v1026 = vsub.f32 %v1024, %v1025
    %v1027 = vand.u32 %v1026, 4294901760
    %1028 = vmatmul.mubr.f32.gmra.mxu0 %v1027
    %v1029 = vpop.f32.mrf.mxu0
    %v1030 = vadd.f32 0.0, %v1029
    %v1031 = vpop.f32.mrf.mxu0
    %v1032 = vand.u32 %v137, 4294901760
    %v1033 = vsub.f32 %v137, %v1032
    %v1034 = vand.u32 %v1033, 4294901760
    %v1035 = vsub.f32 %v1033, %v1034
    %v1036 = vand.u32 %v1035, 4294901760
    %1037 = vmatprep.mubr.f32.mxu0 %v1036
    %v1038 = vand.u32 %v136, 4294901760
    %v1039 = vsub.f32 %v136, %v1038
    %v1040 = vand.u32 %v1039, 4294901760
    %v1041 = vsub.f32 %v1039, %v1040
    %v1042 = vand.u32 %v1041, 4294901760
    %1043 = vmatmul.mubr.f32.gmra.mxu0 %v1042
    %v1044 = vpop.f32.mrf.mxu0
    %v1045 = vadd.f32 0.0, %v1044
    %v1046 = vpop.f32.mrf.mxu0
    %v1047 = vand.u32 %v139, 4294901760
    %v1048 = vsub.f32 %v139, %v1047
    %v1049 = vand.u32 %v1048, 4294901760
    %v1050 = vsub.f32 %v1048, %v1049
    %v1051 = vand.u32 %v1050, 4294901760
    %1052 = vmatprep.mubr.f32.mxu0 %v1051
    %v1053 = vand.u32 %v138, 4294901760
    %v1054 = vsub.f32 %v138, %v1053
    %v1055 = vand.u32 %v1054, 4294901760
    %v1056 = vsub.f32 %v1054, %v1055
    %v1057 = vand.u32 %v1056, 4294901760
    %1058 = vmatmul.mubr.f32.gmra.mxu0 %v1057
    %v1059 = vpop.f32.mrf.mxu0
    %v1060 = vadd.f32 0.0, %v1059
    %v1061 = vpop.f32.mrf.mxu0
    %v1062 = vand.u32 %v141, 4294901760
    %v1063 = vsub.f32 %v141, %v1062
    %v1064 = vand.u32 %v1063, 4294901760
    %v1065 = vsub.f32 %v1063, %v1064
    %v1066 = vand.u32 %v1065, 4294901760
    %1067 = vmatprep.mubr.f32.mxu0 %v1066
    %v1068 = vand.u32 %v140, 4294901760
    %v1069 = vsub.f32 %v140, %v1068
    %v1070 = vand.u32 %v1069, 4294901760
    %v1071 = vsub.f32 %v1069, %v1070
    %v1072 = vand.u32 %v1071, 4294901760
    %1073 = vmatmul.mubr.f32.gmra.mxu0 %v1072
    %v1074 = vpop.f32.mrf.mxu0
    %v1075 = vadd.f32 0.0, %v1074
    %v1076 = vpop.f32.mrf.mxu0
    %v1077 = vand.u32 %v143, 4294901760
    %v1078 = vsub.f32 %v143, %v1077
    %v1079 = vand.u32 %v1078, 4294901760
    %v1080 = vsub.f32 %v1078, %v1079
    %v1081 = vand.u32 %v1080, 4294901760
    %1082 = vmatprep.mubr.f32.mxu0 %v1081
    %v1083 = vand.u32 %v142, 4294901760
    %v1084 = vsub.f32 %v142, %v1083
    %v1085 = vand.u32 %v1084, 4294901760
    %v1086 = vsub.f32 %v1084, %v1085
    %v1087 = vand.u32 %v1086, 4294901760
    %1088 = vmatmul.mubr.f32.gmra.mxu0 %v1087
    %v1089 = vpop.f32.mrf.mxu0
    %v1090 = vadd.f32 0.0, %v1089
    %v1091 = vpop.f32.mrf.mxu0
    %v1092 = vand.u32 %v145, 4294901760
    %v1093 = vsub.f32 %v145, %v1092
    %v1094 = vand.u32 %v1093, 4294901760
    %v1095 = vsub.f32 %v1093, %v1094
    %v1096 = vand.u32 %v1095, 4294901760
    %1097 = vmatprep.mubr.f32.mxu0 %v1096
    %v1098 = vand.u32 %v144, 4294901760
    %v1099 = vsub.f32 %v144, %v1098
    %v1100 = vand.u32 %v1099, 4294901760
    %v1101 = vsub.f32 %v1099, %v1100
    %v1102 = vand.u32 %v1101, 4294901760
    %1103 = vmatmul.mubr.f32.gmra.mxu0 %v1102
    %v1104 = vpop.f32.mrf.mxu0
    %v1105 = vadd.f32 0.0, %v1104
    %v1106 = vpop.f32.mrf.mxu0
    %v1107 = vand.u32 %v147, 4294901760
    %v1108 = vsub.f32 %v147, %v1107
    %v1109 = vand.u32 %v1108, 4294901760
    %v1110 = vsub.f32 %v1108, %v1109
    %v1111 = vand.u32 %v1110, 4294901760
    %1112 = vmatprep.mubr.f32.mxu0 %v1111
    %v1113 = vand.u32 %v146, 4294901760
    %v1114 = vsub.f32 %v146, %v1113
    %v1115 = vand.u32 %v1114, 4294901760
    %v1116 = vsub.f32 %v1114, %v1115
    %v1117 = vand.u32 %v1116, 4294901760
    %1118 = vmatmul.mubr.f32.gmra.mxu0 %v1117
    %v1119 = vpop.f32.mrf.mxu0
    %v1120 = vadd.f32 0.0, %v1119
    %v1121 = vpop.f32.mrf.mxu0
    %v1122 = vand.u32 %v149, 4294901760
    %v1123 = vsub.f32 %v149, %v1122
    %v1124 = vand.u32 %v1123, 4294901760
    %v1125 = vsub.f32 %v1123, %v1124
    %v1126 = vand.u32 %v1125, 4294901760
    %1127 = vmatprep.mubr.f32.mxu0 %v1126
    %v1128 = vand.u32 %v148, 4294901760
    %v1129 = vsub.f32 %v148, %v1128
    %v1130 = vand.u32 %v1129, 4294901760
    %v1131 = vsub.f32 %v1129, %v1130
    %v1132 = vand.u32 %v1131, 4294901760
    %1133 = vmatmul.mubr.f32.gmra.mxu0 %v1132
    %v1134 = vpop.f32.mrf.mxu0
    %v1135 = vadd.f32 0.0, %v1134
    %v1136 = vpop.f32.mrf.mxu0
    %v1137 = vand.u32 %v151, 4294901760
    %v1138 = vsub.f32 %v151, %v1137
    %v1139 = vand.u32 %v1138, 4294901760
    %v1140 = vsub.f32 %v1138, %v1139
    %v1141 = vand.u32 %v1140, 4294901760
    %1142 = vmatprep.mubr.f32.mxu0 %v1141
    %v1143 = vand.u32 %v150, 4294901760
    %v1144 = vsub.f32 %v150, %v1143
    %v1145 = vand.u32 %v1144, 4294901760
    %v1146 = vsub.f32 %v1144, %v1145
    %v1147 = vand.u32 %v1146, 4294901760
    %1148 = vmatmul.mubr.f32.gmra.mxu0 %v1147
    %v1149 = vpop.f32.mrf.mxu0
    %v1150 = vadd.f32 0.0, %v1149
    %v1151 = vpop.f32.mrf.mxu0
    %v1152 = vand.u32 %v153, 4294901760
    %v1153 = vsub.f32 %v153, %v1152
    %v1154 = vand.u32 %v1153, 4294901760
    %v1155 = vsub.f32 %v1153, %v1154
    %v1156 = vand.u32 %v1155, 4294901760
    %1157 = vmatprep.mubr.f32.mxu0 %v1156
    %v1158 = vand.u32 %v152, 4294901760
    %v1159 = vsub.f32 %v152, %v1158
    %v1160 = vand.u32 %v1159, 4294901760
    %v1161 = vsub.f32 %v1159, %v1160
    %v1162 = vand.u32 %v1161, 4294901760
    %1163 = vmatmul.mubr.f32.gmra.mxu0 %v1162
    %v1164 = vpop.f32.mrf.mxu0
    %v1165 = vadd.f32 0.0, %v1164
    %v1166 = vpop.f32.mrf.mxu0
    %v1167 = vand.u32 %v155, 4294901760
    %v1168 = vsub.f32 %v155, %v1167
    %v1169 = vand.u32 %v1168, 4294901760
    %v1170 = vsub.f32 %v1168, %v1169
    %v1171 = vand.u32 %v1170, 4294901760
    %1172 = vmatprep.mubr.f32.mxu0 %v1171
    %v1173 = vand.u32 %v154, 4294901760
    %v1174 = vsub.f32 %v154, %v1173
    %v1175 = vand.u32 %v1174, 4294901760
    %v1176 = vsub.f32 %v1174, %v1175
    %v1177 = vand.u32 %v1176, 4294901760
    %1178 = vmatmul.mubr.f32.gmra.mxu0 %v1177
    %v1179 = vpop.f32.mrf.mxu0
    %v1180 = vadd.f32 0.0, %v1179
    %v1181 = vpop.f32.mrf.mxu0
    %v1182 = vand.u32 %v157, 4294901760
    %v1183 = vsub.f32 %v157, %v1182
    %v1184 = vand.u32 %v1183, 4294901760
    %v1185 = vsub.f32 %v1183, %v1184
    %v1186 = vand.u32 %v1185, 4294901760
    %1187 = vmatprep.mubr.f32.mxu0 %v1186
    %v1188 = vand.u32 %v156, 4294901760
    %v1189 = vsub.f32 %v156, %v1188
    %v1190 = vand.u32 %v1189, 4294901760
    %v1191 = vsub.f32 %v1189, %v1190
    %v1192 = vand.u32 %v1191, 4294901760
    %1193 = vmatmul.mubr.f32.gmra.mxu0 %v1192
    %v1194 = vpop.f32.mrf.mxu0
    %v1195 = vadd.f32 0.0, %v1194
    %v1196 = vpop.f32.mrf.mxu0
    %v1197 = vand.u32 %v159, 4294901760
    %v1198 = vsub.f32 %v159, %v1197
    %v1199 = vand.u32 %v1198, 4294901760
    %v1200 = vsub.f32 %v1198, %v1199
    %v1201 = vand.u32 %v1200, 4294901760
    %1202 = vmatprep.mubr.f32.mxu0 %v1201
    %v1203 = vand.u32 %v158, 4294901760
    %v1204 = vsub.f32 %v158, %v1203
    %v1205 = vand.u32 %v1204, 4294901760
    %v1206 = vsub.f32 %v1204, %v1205
    %v1207 = vand.u32 %v1206, 4294901760
    %1208 = vmatmul.mubr.f32.gmra.mxu0 %v1207
    %v1209 = vpop.f32.mrf.mxu0
    %v1210 = vadd.f32 0.0, %v1209
    %v1211 = vpop.f32.mrf.mxu0
    %v1212 = vand.u32 %v161, 4294901760
    %v1213 = vsub.f32 %v161, %v1212
    %v1214 = vand.u32 %v1213, 4294901760
    %v1215 = vsub.f32 %v1213, %v1214
    %v1216 = vand.u32 %v1215, 4294901760
    %1217 = vmatprep.mubr.f32.mxu0 %v1216
    %v1218 = vand.u32 %v160, 4294901760
    %v1219 = vsub.f32 %v160, %v1218
    %v1220 = vand.u32 %v1219, 4294901760
    %v1221 = vsub.f32 %v1219, %v1220
    %v1222 = vand.u32 %v1221, 4294901760
    %1223 = vmatmul.mubr.f32.gmra.mxu0 %v1222
    %v1224 = vpop.f32.mrf.mxu0
    %v1225 = vadd.f32 0.0, %v1224
    %v1226 = vpop.f32.mrf.mxu0
    %v1227 = vand.u32 %v163, 4294901760
    %v1228 = vsub.f32 %v163, %v1227
    %v1229 = vand.u32 %v1228, 4294901760
    %v1230 = vsub.f32 %v1228, %v1229
    %v1231 = vand.u32 %v1230, 4294901760
    %1232 = vmatprep.mubr.f32.mxu0 %v1231
    %v1233 = vand.u32 %v162, 4294901760
    %v1234 = vsub.f32 %v162, %v1233
    %v1235 = vand.u32 %v1234, 4294901760
    %v1236 = vsub.f32 %v1234, %v1235
    %v1237 = vand.u32 %v1236, 4294901760
    %1238 = vmatmul.mubr.f32.gmra.mxu0 %v1237
    %v1239 = vpop.f32.mrf.mxu0
    %v1240 = vadd.f32 0.0, %v1239
    %v1241 = vpop.f32.mrf.mxu0
    %v1242 = vand.u32 %v165, 4294901760
    %v1243 = vsub.f32 %v165, %v1242
    %v1244 = vand.u32 %v1243, 4294901760
    %v1245 = vsub.f32 %v1243, %v1244
    %v1246 = vand.u32 %v1245, 4294901760
    %1247 = vmatprep.mubr.f32.mxu0 %v1246
    %v1248 = vand.u32 %v164, 4294901760
    %v1249 = vsub.f32 %v164, %v1248
    %v1250 = vand.u32 %v1249, 4294901760
    %v1251 = vsub.f32 %v1249, %v1250
    %v1252 = vand.u32 %v1251, 4294901760
    %1253 = vmatmul.mubr.f32.gmra.mxu0 %v1252
    %v1254 = vpop.f32.mrf.mxu0
    %v1255 = vadd.f32 0.0, %v1254
    %v1256 = vpop.f32.mrf.mxu0
    %v1257 = vand.u32 %v167, 4294901760
    %v1258 = vsub.f32 %v167, %v1257
    %v1259 = vand.u32 %v1258, 4294901760
    %v1260 = vsub.f32 %v1258, %v1259
    %v1261 = vand.u32 %v1260, 4294901760
    %1262 = vmatprep.mubr.f32.mxu0 %v1261
    %v1263 = vand.u32 %v166, 4294901760
    %v1264 = vsub.f32 %v166, %v1263
    %v1265 = vand.u32 %v1264, 4294901760
    %v1266 = vsub.f32 %v1264, %v1265
    %v1267 = vand.u32 %v1266, 4294901760
    %1268 = vmatmul.mubr.f32.gmra.mxu0 %v1267
    %v1269 = vpop.f32.mrf.mxu0
    %v1270 = vadd.f32 0.0, %v1269
    %v1271 = vpop.f32.mrf.mxu0
    %v1272 = vand.u32 %v169, 4294901760
    %v1273 = vsub.f32 %v169, %v1272
    %v1274 = vand.u32 %v1273, 4294901760
    %v1275 = vsub.f32 %v1273, %v1274
    %v1276 = vand.u32 %v1275, 4294901760
    %1277 = vmatprep.mubr.f32.mxu0 %v1276
    %v1278 = vand.u32 %v168, 4294901760
    %v1279 = vsub.f32 %v168, %v1278
    %v1280 = vand.u32 %v1279, 4294901760
    %v1281 = vsub.f32 %v1279, %v1280
    %v1282 = vand.u32 %v1281, 4294901760
    %1283 = vmatmul.mubr.f32.gmra.mxu0 %v1282
    %v1284 = vpop.f32.mrf.mxu0
    %v1285 = vadd.f32 0.0, %v1284
    %v1286 = vpop.f32.mrf.mxu0
    %v1287 = vand.u32 %v171, 4294901760
    %v1288 = vsub.f32 %v171, %v1287
    %v1289 = vand.u32 %v1288, 4294901760
    %v1290 = vsub.f32 %v1288, %v1289
    %v1291 = vand.u32 %v1290, 4294901760
    %1292 = vmatprep.mubr.f32.mxu0 %v1291
    %v1293 = vand.u32 %v170, 4294901760
    %v1294 = vsub.f32 %v170, %v1293
    %v1295 = vand.u32 %v1294, 4294901760
    %v1296 = vsub.f32 %v1294, %v1295
    %v1297 = vand.u32 %v1296, 4294901760
    %1298 = vmatmul.mubr.f32.gmra.mxu0 %v1297
    %v1299 = vpop.f32.mrf.mxu0
    %v1300 = vadd.f32 0.0, %v1299
    %v1301 = vpop.f32.mrf.mxu0
    %v1302 = vand.u32 %v173, 4294901760
    %v1303 = vsub.f32 %v173, %v1302
    %v1304 = vand.u32 %v1303, 4294901760
    %v1305 = vsub.f32 %v1303, %v1304
    %v1306 = vand.u32 %v1305, 4294901760
    %1307 = vmatprep.mubr.f32.mxu0 %v1306
    %v1308 = vand.u32 %v172, 4294901760
    %v1309 = vsub.f32 %v172, %v1308
    %v1310 = vand.u32 %v1309, 4294901760
    %v1311 = vsub.f32 %v1309, %v1310
    %v1312 = vand.u32 %v1311, 4294901760
    %1313 = vmatmul.mubr.f32.gmra.mxu0 %v1312
    %v1314 = vpop.f32.mrf.mxu0
    %v1315 = vadd.f32 0.0, %v1314
    %v1316 = vpop.f32.mrf.mxu0
    %v1317 = vand.u32 %v175, 4294901760
    %v1318 = vsub.f32 %v175, %v1317
    %v1319 = vand.u32 %v1318, 4294901760
    %v1320 = vsub.f32 %v1318, %v1319
    %v1321 = vand.u32 %v1320, 4294901760
    %1322 = vmatprep.mubr.f32.mxu0 %v1321
    %v1323 = vand.u32 %v174, 4294901760
    %v1324 = vsub.f32 %v174, %v1323
    %v1325 = vand.u32 %v1324, 4294901760
    %v1326 = vsub.f32 %v1324, %v1325
    %v1327 = vand.u32 %v1326, 4294901760
    %1328 = vmatmul.mubr.f32.gmra.mxu0 %v1327
    %v1329 = vpop.f32.mrf.mxu0
    %v1330 = vadd.f32 0.0, %v1329
    %v1331 = vpop.f32.mrf.mxu0
    %v1332 = vand.u32 %v177, 4294901760
    %v1333 = vsub.f32 %v177, %v1332
    %v1334 = vand.u32 %v1333, 4294901760
    %v1335 = vsub.f32 %v1333, %v1334
    %v1336 = vand.u32 %v1335, 4294901760
    %1337 = vmatprep.mubr.f32.mxu0 %v1336
    %v1338 = vand.u32 %v176, 4294901760
    %v1339 = vsub.f32 %v176, %v1338
    %v1340 = vand.u32 %v1339, 4294901760
    %v1341 = vsub.f32 %v1339, %v1340
    %v1342 = vand.u32 %v1341, 4294901760
    %1343 = vmatmul.mubr.f32.gmra.mxu0 %v1342
    %v1344 = vpop.f32.mrf.mxu0
    %v1345 = vadd.f32 0.0, %v1344
    %v1346 = vpop.f32.mrf.mxu0
    %v1347 = vand.u32 %v179, 4294901760
    %v1348 = vsub.f32 %v179, %v1347
    %v1349 = vand.u32 %v1348, 4294901760
    %v1350 = vsub.f32 %v1348, %v1349
    %v1351 = vand.u32 %v1350, 4294901760
    %1352 = vmatprep.mubr.f32.mxu0 %v1351
    %v1353 = vand.u32 %v178, 4294901760
    %v1354 = vsub.f32 %v178, %v1353
    %v1355 = vand.u32 %v1354, 4294901760
    %v1356 = vsub.f32 %v1354, %v1355
    %v1357 = vand.u32 %v1356, 4294901760
    %1358 = vmatmul.mubr.f32.gmra.mxu0 %v1357
    %v1359 = vpop.f32.mrf.mxu0
    %v1360 = vadd.f32 0.0, %v1359
    %v1361 = vpop.f32.mrf.mxu0
    %v1362 = vand.u32 %v181, 4294901760
    %v1363 = vsub.f32 %v181, %v1362
    %v1364 = vand.u32 %v1363, 4294901760
    %v1365 = vsub.f32 %v1363, %v1364
    %v1366 = vand.u32 %v1365, 4294901760
    %1367 = vmatprep.mubr.f32.mxu0 %v1366
    %v1368 = vand.u32 %v180, 4294901760
    %v1369 = vsub.f32 %v180, %v1368
    %v1370 = vand.u32 %v1369, 4294901760
    %v1371 = vsub.f32 %v1369, %v1370
    %v1372 = vand.u32 %v1371, 4294901760
    %1373 = vmatmul.mubr.f32.gmra.mxu0 %v1372
    %v1374 = vpop.f32.mrf.mxu0
    %v1375 = vadd.f32 0.0, %v1374
    %v1376 = vpop.f32.mrf.mxu0
    %v1377 = vand.u32 %v183, 4294901760
    %v1378 = vsub.f32 %v183, %v1377
    %v1379 = vand.u32 %v1378, 4294901760
    %v1380 = vsub.f32 %v1378, %v1379
    %v1381 = vand.u32 %v1380, 4294901760
    %1382 = vmatprep.mubr.f32.mxu0 %v1381
    %v1383 = vand.u32 %v182, 4294901760
    %v1384 = vsub.f32 %v182, %v1383
    %v1385 = vand.u32 %v1384, 4294901760
    %v1386 = vsub.f32 %v1384, %v1385
    %v1387 = vand.u32 %v1386, 4294901760
    %1388 = vmatmul.mubr.f32.gmra.mxu0 %v1387
    %v1389 = vpop.f32.mrf.mxu0
    %v1390 = vadd.f32 0.0, %v1389
    %v1391 = vpop.f32.mrf.mxu0
    %v1392 = vand.u32 %v185, 4294901760
    %v1393 = vsub.f32 %v185, %v1392
    %v1394 = vand.u32 %v1393, 4294901760
    %v1395 = vsub.f32 %v1393, %v1394
    %v1396 = vand.u32 %v1395, 4294901760
    %1397 = vmatprep.mubr.f32.mxu0 %v1396
    %v1398 = vand.u32 %v184, 4294901760
    %v1399 = vsub.f32 %v184, %v1398
    %v1400 = vand.u32 %v1399, 4294901760
    %v1401 = vsub.f32 %v1399, %v1400
    %v1402 = vand.u32 %v1401, 4294901760
    %1403 = vmatmul.mubr.f32.gmra.mxu0 %v1402
    %v1404 = vpop.f32.mrf.mxu0
    %v1405 = vadd.f32 0.0, %v1404
    %v1406 = vpop.f32.mrf.mxu0
    %v1407 = vand.u32 %v187, 4294901760
    %v1408 = vsub.f32 %v187, %v1407
    %v1409 = vand.u32 %v1408, 4294901760
    %v1410 = vsub.f32 %v1408, %v1409
    %v1411 = vand.u32 %v1410, 4294901760
    %1412 = vmatprep.mubr.f32.mxu0 %v1411
    %v1413 = vand.u32 %v186, 4294901760
    %v1414 = vsub.f32 %v186, %v1413
    %v1415 = vand.u32 %v1414, 4294901760
    %v1416 = vsub.f32 %v1414, %v1415
    %v1417 = vand.u32 %v1416, 4294901760
    %1418 = vmatmul.mubr.f32.gmra.mxu0 %v1417
    %v1419 = vpop.f32.mrf.mxu0
    %v1420 = vadd.f32 0.0, %v1419
    %v1421 = vpop.f32.mrf.mxu0
    %v1422 = vand.u32 %v189, 4294901760
    %v1423 = vsub.f32 %v189, %v1422
    %v1424 = vand.u32 %v1423, 4294901760
    %v1425 = vsub.f32 %v1423, %v1424
    %v1426 = vand.u32 %v1425, 4294901760
    %1427 = vmatprep.mubr.f32.mxu0 %v1426
    %v1428 = vand.u32 %v188, 4294901760
    %v1429 = vsub.f32 %v188, %v1428
    %v1430 = vand.u32 %v1429, 4294901760
    %v1431 = vsub.f32 %v1429, %v1430
    %v1432 = vand.u32 %v1431, 4294901760
    %1433 = vmatmul.mubr.f32.gmra.mxu0 %v1432
    %v1434 = vpop.f32.mrf.mxu0
    %v1435 = vadd.f32 0.0, %v1434
    %v1436 = vpop.f32.mrf.mxu0
    %v1437 = vand.u32 %v191, 4294901760
    %v1438 = vsub.f32 %v191, %v1437
    %v1439 = vand.u32 %v1438, 4294901760
    %v1440 = vsub.f32 %v1438, %v1439
    %v1441 = vand.u32 %v1440, 4294901760
    %1442 = vmatprep.mubr.f32.mxu0 %v1441
    %v1443 = vand.u32 %v190, 4294901760
    %v1444 = vsub.f32 %v190, %v1443
    %v1445 = vand.u32 %v1444, 4294901760
    %v1446 = vsub.f32 %v1444, %v1445
    %v1447 = vand.u32 %v1446, 4294901760
    %1448 = vmatmul.mubr.f32.gmra.mxu0 %v1447
    %v1449 = vpop.f32.mrf.mxu0
    %v1450 = vadd.f32 0.0, %v1449
    %v1451 = vpop.f32.mrf.mxu0
    %v1452 = vand.u32 %v193, 4294901760
    %v1453 = vsub.f32 %v193, %v1452
    %v1454 = vand.u32 %v1453, 4294901760
    %v1455 = vsub.f32 %v1453, %v1454
    %v1456 = vand.u32 %v1455, 4294901760
    %1457 = vmatprep.mubr.f32.mxu0 %v1456
    %v1458 = vand.u32 %v192, 4294901760
    %v1459 = vsub.f32 %v192, %v1458
    %v1460 = vand.u32 %v1459, 4294901760
    %v1461 = vsub.f32 %v1459, %v1460
    %v1462 = vand.u32 %v1461, 4294901760
    %1463 = vmatmul.mubr.f32.gmra.mxu0 %v1462
    %v1464 = vpop.f32.mrf.mxu0
    %v1465 = vadd.f32 0.0, %v1464
    %v1466 = vpop.f32.mrf.mxu0
    %v1467 = vand.u32 %v195, 4294901760
    %v1468 = vsub.f32 %v195, %v1467
    %v1469 = vand.u32 %v1468, 4294901760
    %v1470 = vsub.f32 %v1468, %v1469
    %v1471 = vand.u32 %v1470, 4294901760
    %1472 = vmatprep.mubr.f32.mxu0 %v1471
    %v1473 = vand.u32 %v194, 4294901760
    %v1474 = vsub.f32 %v194, %v1473
    %v1475 = vand.u32 %v1474, 4294901760
    %v1476 = vsub.f32 %v1474, %v1475
    %v1477 = vand.u32 %v1476, 4294901760
    %1478 = vmatmul.mubr.f32.gmra.mxu0 %v1477
    %v1479 = vpop.f32.mrf.mxu0
    %v1480 = vadd.f32 0.0, %v1479
    %v1481 = vpop.f32.mrf.mxu0
    %v1482 = vand.u32 %v197, 4294901760
    %v1483 = vsub.f32 %v197, %v1482
    %v1484 = vand.u32 %v1483, 4294901760
    %v1485 = vsub.f32 %v1483, %v1484
    %v1486 = vand.u32 %v1485, 4294901760
    %1487 = vmatprep.mubr.f32.mxu0 %v1486
    %v1488 = vand.u32 %v196, 4294901760
    %v1489 = vsub.f32 %v196, %v1488
    %v1490 = vand.u32 %v1489, 4294901760
    %v1491 = vsub.f32 %v1489, %v1490
    %v1492 = vand.u32 %v1491, 4294901760
    %1493 = vmatmul.mubr.f32.gmra.mxu0 %v1492
    %v1494 = vpop.f32.mrf.mxu0
    %v1495 = vadd.f32 0.0, %v1494
    %v1496 = vpop.f32.mrf.mxu0
    %v1497 = vand.u32 %v199, 4294901760
    %v1498 = vsub.f32 %v199, %v1497
    %v1499 = vand.u32 %v1498, 4294901760
    %v1500 = vsub.f32 %v1498, %v1499
    %v1501 = vand.u32 %v1500, 4294901760
    %1502 = vmatprep.mubr.f32.mxu0 %v1501
    %v1503 = vand.u32 %v198, 4294901760
    %v1504 = vsub.f32 %v198, %v1503
    %v1505 = vand.u32 %v1504, 4294901760
    %v1506 = vsub.f32 %v1504, %v1505
    %v1507 = vand.u32 %v1506, 4294901760
    %1508 = vmatmul.mubr.f32.gmra.mxu0 %v1507
    %v1509 = vpop.f32.mrf.mxu0
    %v1510 = vadd.f32 0.0, %v1509
    %v1511 = vpop.f32.mrf.mxu0
    %v1512 = vand.u32 %v201, 4294901760
    %v1513 = vsub.f32 %v201, %v1512
    %v1514 = vand.u32 %v1513, 4294901760
    %v1515 = vsub.f32 %v1513, %v1514
    %v1516 = vand.u32 %v1515, 4294901760
    %1517 = vmatprep.mubr.f32.mxu0 %v1516
    %v1518 = vand.u32 %v200, 4294901760
    %v1519 = vsub.f32 %v200, %v1518
    %v1520 = vand.u32 %v1519, 4294901760
    %v1521 = vsub.f32 %v1519, %v1520
    %v1522 = vand.u32 %v1521, 4294901760
    %1523 = vmatmul.mubr.f32.gmra.mxu0 %v1522
    %v1524 = vpop.f32.mrf.mxu0
    %v1525 = vadd.f32 0.0, %v1524
    %v1526 = vpop.f32.mrf.mxu0
    %v1527 = vand.u32 %v203, 4294901760
    %v1528 = vsub.f32 %v203, %v1527
    %v1529 = vand.u32 %v1528, 4294901760
    %v1530 = vsub.f32 %v1528, %v1529
    %v1531 = vand.u32 %v1530, 4294901760
    %1532 = vmatprep.mubr.f32.mxu0 %v1531
    %v1533 = vand.u32 %v202, 4294901760
    %v1534 = vsub.f32 %v202, %v1533
    %v1535 = vand.u32 %v1534, 4294901760
    %v1536 = vsub.f32 %v1534, %v1535
    %v1537 = vand.u32 %v1536, 4294901760
    %1538 = vmatmul.mubr.f32.gmra.mxu0 %v1537
    %v1539 = vpop.f32.mrf.mxu0
    %v1540 = vadd.f32 0.0, %v1539
    %v1541 = vpop.f32.mrf.mxu0
    %v1542 = vand.u32 %v205, 4294901760
    %v1543 = vsub.f32 %v205, %v1542
    %v1544 = vand.u32 %v1543, 4294901760
    %v1545 = vsub.f32 %v1543, %v1544
    %v1546 = vand.u32 %v1545, 4294901760
    %1547 = vmatprep.mubr.f32.mxu0 %v1546
    %v1548 = vand.u32 %v204, 4294901760
    %v1549 = vsub.f32 %v204, %v1548
    %v1550 = vand.u32 %v1549, 4294901760
    %v1551 = vsub.f32 %v1549, %v1550
    %v1552 = vand.u32 %v1551, 4294901760
    %1553 = vmatmul.mubr.f32.gmra.mxu0 %v1552
    %v1554 = vpop.f32.mrf.mxu0
    %v1555 = vadd.f32 0.0, %v1554
    %v1556 = vpop.f32.mrf.mxu0
    %v1557 = vand.u32 %v207, 4294901760
    %v1558 = vsub.f32 %v207, %v1557
    %v1559 = vand.u32 %v1558, 4294901760
    %v1560 = vsub.f32 %v1558, %v1559
    %v1561 = vand.u32 %v1560, 4294901760
    %1562 = vmatprep.mubr.f32.mxu0 %v1561
    %v1563 = vand.u32 %v206, 4294901760
    %v1564 = vsub.f32 %v206, %v1563
    %v1565 = vand.u32 %v1564, 4294901760
    %v1566 = vsub.f32 %v1564, %v1565
    %v1567 = vand.u32 %v1566, 4294901760
    %1568 = vmatmul.mubr.f32.gmra.mxu0 %v1567
    %v1569 = vpop.f32.mrf.mxu0
    %v1570 = vadd.f32 0.0, %v1569
    %v1571 = vpop.f32.mrf.mxu0
    %v1572 = vand.u32 %v209, 4294901760
    %v1573 = vsub.f32 %v209, %v1572
    %v1574 = vand.u32 %v1573, 4294901760
    %v1575 = vsub.f32 %v1573, %v1574
    %v1576 = vand.u32 %v1575, 4294901760
    %1577 = vmatprep.mubr.f32.mxu0 %v1576
    %v1578 = vand.u32 %v208, 4294901760
    %v1579 = vsub.f32 %v208, %v1578
    %v1580 = vand.u32 %v1579, 4294901760
    %v1581 = vsub.f32 %v1579, %v1580
    %v1582 = vand.u32 %v1581, 4294901760
    %1583 = vmatmul.mubr.f32.gmra.mxu0 %v1582
    %v1584 = vpop.f32.mrf.mxu0
    %v1585 = vadd.f32 0.0, %v1584
    %v1586 = vpop.f32.mrf.mxu0
    %v1587 = vand.u32 %v211, 4294901760
    %v1588 = vsub.f32 %v211, %v1587
    %v1589 = vand.u32 %v1588, 4294901760
    %v1590 = vsub.f32 %v1588, %v1589
    %v1591 = vand.u32 %v1590, 4294901760
    %1592 = vmatprep.mubr.f32.mxu0 %v1591
    %v1593 = vand.u32 %v210, 4294901760
    %v1594 = vsub.f32 %v210, %v1593
    %v1595 = vand.u32 %v1594, 4294901760
    %v1596 = vsub.f32 %v1594, %v1595
    %v1597 = vand.u32 %v1596, 4294901760
    %1598 = vmatmul.mubr.f32.gmra.mxu0 %v1597
    %v1599 = vpop.f32.mrf.mxu0
    %v1600 = vadd.f32 0.0, %v1599
    %v1601 = vpop.f32.mrf.mxu0
    %v1602 = vand.u32 %v213, 4294901760
    %v1603 = vsub.f32 %v213, %v1602
    %v1604 = vand.u32 %v1603, 4294901760
    %v1605 = vsub.f32 %v1603, %v1604
    %v1606 = vand.u32 %v1605, 4294901760
    %1607 = vmatprep.mubr.f32.mxu0 %v1606
    %v1608 = vand.u32 %v212, 4294901760
    %v1609 = vsub.f32 %v212, %v1608
    %v1610 = vand.u32 %v1609, 4294901760
    %v1611 = vsub.f32 %v1609, %v1610
    %v1612 = vand.u32 %v1611, 4294901760
    %1613 = vmatmul.mubr.f32.gmra.mxu0 %v1612
    %v1614 = vpop.f32.mrf.mxu0
    %v1615 = vadd.f32 0.0, %v1614
    %v1616 = vpop.f32.mrf.mxu0
    %1617 = vdwg.mxu0
    %1618 = vmatprep.subr.mxu0 0.0
    %v1619 = vand.u32 %v229, 4294901760
    %v1620 = vsub.f32 %v229, %v1619
    %v1621 = vand.u32 %v1620, 4294901760
    %v1622 = vsub.f32 %v1620, %v1621
    %v1623 = vand.u32 %v1622, 4294901760
    %1624 = vmatpush1.msra.mxu0 %v1623
    %1625 = vmatprep.subr.mxu0 0.0
    %v1626 = vand.u32 %v228, 4294901760
    %v1627 = vsub.f32 %v228, %v1626
    %v1628 = vand.u32 %v1627, 4294901760
    %v1629 = vsub.f32 %v1627, %v1628
    %v1630 = vand.u32 %v1629, 4294901760
    %1631 = vmatpush1.msra.mxu0 %v1630
    %1632 = vmatprep.subr.mxu0 0.0
    %v1633 = vand.u32 %v227, 4294901760
    %v1634 = vsub.f32 %v227, %v1633
    %v1635 = vand.u32 %v1634, 4294901760
    %v1636 = vsub.f32 %v1634, %v1635
    %v1637 = vand.u32 %v1636, 4294901760
    %1638 = vmatpush1.msra.mxu0 %v1637
    %1639 = vmatprep.subr.mxu0 0.0
    %v1640 = vand.u32 %v226, 4294901760
    %v1641 = vsub.f32 %v226, %v1640
    %v1642 = vand.u32 %v1641, 4294901760
    %v1643 = vsub.f32 %v1641, %v1642
    %v1644 = vand.u32 %v1643, 4294901760
    %1645 = vmatpush1.msra.mxu0 %v1644
    %1646 = vmatprep.subr.mxu0 0.0
    %v1647 = vand.u32 %v225, 4294901760
    %v1648 = vsub.f32 %v225, %v1647
    %v1649 = vand.u32 %v1648, 4294901760
    %v1650 = vsub.f32 %v1648, %v1649
    %v1651 = vand.u32 %v1650, 4294901760
    %1652 = vmatpush1.msra.mxu0 %v1651
    %1653 = vmatprep.subr.mxu0 0.0
    %v1654 = vand.u32 %v224, 4294901760
    %v1655 = vsub.f32 %v224, %v1654
    %v1656 = vand.u32 %v1655, 4294901760
    %v1657 = vsub.f32 %v1655, %v1656
    %v1658 = vand.u32 %v1657, 4294901760
    %1659 = vmatpush1.msra.mxu0 %v1658
    %1660 = vmatprep.subr.mxu0 0.0
    %v1661 = vand.u32 %v223, 4294901760
    %v1662 = vsub.f32 %v223, %v1661
    %v1663 = vand.u32 %v1662, 4294901760
    %v1664 = vsub.f32 %v1662, %v1663
    %v1665 = vand.u32 %v1664, 4294901760
    %1666 = vmatpush1.msra.mxu0 %v1665
    %1667 = vmatprep.subr.mxu0 0.0
    %v1668 = vand.u32 %v222, 4294901760
    %v1669 = vsub.f32 %v222, %v1668
    %v1670 = vand.u32 %v1669, 4294901760
    %v1671 = vsub.f32 %v1669, %v1670
    %v1672 = vand.u32 %v1671, 4294901760
    %1673 = vmatpush1.msra.mxu0 %v1672
    %1674 = vmatprep.subr.mxu0 0.0
    %v1675 = vand.u32 %v221, 4294901760
    %v1676 = vsub.f32 %v221, %v1675
    %v1677 = vand.u32 %v1676, 4294901760
    %v1678 = vsub.f32 %v1676, %v1677
    %v1679 = vand.u32 %v1678, 4294901760
    %1680 = vmatpush1.msra.mxu0 %v1679
    %1681 = vmatprep.subr.mxu0 0.0
    %v1682 = vand.u32 %v220, 4294901760
    %v1683 = vsub.f32 %v220, %v1682
    %v1684 = vand.u32 %v1683, 4294901760
    %v1685 = vsub.f32 %v1683, %v1684
    %v1686 = vand.u32 %v1685, 4294901760
    %1687 = vmatpush1.msra.mxu0 %v1686
    %1688 = vmatprep.subr.mxu0 0.0
    %v1689 = vand.u32 %v219, 4294901760
    %v1690 = vsub.f32 %v219, %v1689
    %v1691 = vand.u32 %v1690, 4294901760
    %v1692 = vsub.f32 %v1690, %v1691
    %v1693 = vand.u32 %v1692, 4294901760
    %1694 = vmatpush1.msra.mxu0 %v1693
    %1695 = vmatprep.subr.mxu0 0.0
    %v1696 = vand.u32 %v218, 4294901760
    %v1697 = vsub.f32 %v218, %v1696
    %v1698 = vand.u32 %v1697, 4294901760
    %v1699 = vsub.f32 %v1697, %v1698
    %v1700 = vand.u32 %v1699, 4294901760
    %1701 = vmatpush1.msra.mxu0 %v1700
    %1702 = vmatprep.subr.mxu0 0.0
    %v1703 = vand.u32 %v217, 4294901760
    %v1704 = vsub.f32 %v217, %v1703
    %v1705 = vand.u32 %v1704, 4294901760
    %v1706 = vsub.f32 %v1704, %v1705
    %v1707 = vand.u32 %v1706, 4294901760
    %1708 = vmatpush1.msra.mxu0 %v1707
    %1709 = vmatprep.subr.mxu0 0.0
    %v1710 = vand.u32 %v216, 4294901760
    %v1711 = vsub.f32 %v216, %v1710
    %v1712 = vand.u32 %v1711, 4294901760
    %v1713 = vsub.f32 %v1711, %v1712
    %v1714 = vand.u32 %v1713, 4294901760
    %1715 = vmatpush1.msra.mxu0 %v1714
    %1716 = vmatprep.subr.mxu0 0.0
    %v1717 = vand.u32 %v215, 4294901760
    %v1718 = vsub.f32 %v215, %v1717
    %v1719 = vand.u32 %v1718, 4294901760
    %v1720 = vsub.f32 %v1718, %v1719
    %v1721 = vand.u32 %v1720, 4294901760
    %1722 = vmatpush1.msra.mxu0 %v1721
    %1723 = vmatprep.subr.mxu0 0.0
    %v1724 = vand.u32 %v214, 4294901760
    %v1725 = vsub.f32 %v214, %v1724
    %v1726 = vand.u32 %v1725, 4294901760
    %v1727 = vsub.f32 %v1725, %v1726
    %v1728 = vand.u32 %v1727, 4294901760
    %1729 = vmatpush1.msra.mxu0 %v1728
    %1730 = vmatprep.subr.mxu0 0.0
    %v1731 = vand.u32 %v245, 4294901760
    %v1732 = vsub.f32 %v245, %v1731
    %v1733 = vand.u32 %v1732, 4294901760
    %v1734 = vsub.f32 %v1732, %v1733
    %v1735 = vand.u32 %v1734, 4294901760
    %1736 = vmatpush2.msra.mxu0 %v1735
    %1737 = vmatprep.subr.mxu0 0.0
    %v1738 = vand.u32 %v244, 4294901760
    %v1739 = vsub.f32 %v244, %v1738
    %v1740 = vand.u32 %v1739, 4294901760
    %v1741 = vsub.f32 %v1739, %v1740
    %v1742 = vand.u32 %v1741, 4294901760
    %1743 = vmatpush2.msra.mxu0 %v1742
    %1744 = vmatprep.subr.mxu0 0.0
    %v1745 = vand.u32 %v243, 4294901760
    %v1746 = vsub.f32 %v243, %v1745
    %v1747 = vand.u32 %v1746, 4294901760
    %v1748 = vsub.f32 %v1746, %v1747
    %v1749 = vand.u32 %v1748, 4294901760
    %1750 = vmatpush2.msra.mxu0 %v1749
    %1751 = vmatprep.subr.mxu0 0.0
    %v1752 = vand.u32 %v242, 4294901760
    %v1753 = vsub.f32 %v242, %v1752
    %v1754 = vand.u32 %v1753, 4294901760
    %v1755 = vsub.f32 %v1753, %v1754
    %v1756 = vand.u32 %v1755, 4294901760
    %1757 = vmatpush2.msra.mxu0 %v1756
    %1758 = vmatprep.subr.mxu0 0.0
    %v1759 = vand.u32 %v241, 4294901760
    %v1760 = vsub.f32 %v241, %v1759
    %v1761 = vand.u32 %v1760, 4294901760
    %v1762 = vsub.f32 %v1760, %v1761
    %v1763 = vand.u32 %v1762, 4294901760
    %1764 = vmatpush2.msra.mxu0 %v1763
    %1765 = vmatprep.subr.mxu0 0.0
    %v1766 = vand.u32 %v240, 4294901760
    %v1767 = vsub.f32 %v240, %v1766
    %v1768 = vand.u32 %v1767, 4294901760
    %v1769 = vsub.f32 %v1767, %v1768
    %v1770 = vand.u32 %v1769, 4294901760
    %1771 = vmatpush2.msra.mxu0 %v1770
    %1772 = vmatprep.subr.mxu0 0.0
    %v1773 = vand.u32 %v239, 4294901760
    %v1774 = vsub.f32 %v239, %v1773
    %v1775 = vand.u32 %v1774, 4294901760
    %v1776 = vsub.f32 %v1774, %v1775
    %v1777 = vand.u32 %v1776, 4294901760
    %1778 = vmatpush2.msra.mxu0 %v1777
    %1779 = vmatprep.subr.mxu0 0.0
    %v1780 = vand.u32 %v238, 4294901760
    %v1781 = vsub.f32 %v238, %v1780
    %v1782 = vand.u32 %v1781, 4294901760
    %v1783 = vsub.f32 %v1781, %v1782
    %v1784 = vand.u32 %v1783, 4294901760
    %1785 = vmatpush2.msra.mxu0 %v1784
    %1786 = vmatprep.subr.mxu0 0.0
    %v1787 = vand.u32 %v237, 4294901760
    %v1788 = vsub.f32 %v237, %v1787
    %v1789 = vand.u32 %v1788, 4294901760
    %v1790 = vsub.f32 %v1788, %v1789
    %v1791 = vand.u32 %v1790, 4294901760
    %1792 = vmatpush2.msra.mxu0 %v1791
    %1793 = vmatprep.subr.mxu0 0.0
    %v1794 = vand.u32 %v236, 4294901760
    %v1795 = vsub.f32 %v236, %v1794
    %v1796 = vand.u32 %v1795, 4294901760
    %v1797 = vsub.f32 %v1795, %v1796
    %v1798 = vand.u32 %v1797, 4294901760
    %1799 = vmatpush2.msra.mxu0 %v1798
    %1800 = vmatprep.subr.mxu0 0.0
    %v1801 = vand.u32 %v235, 4294901760
    %v1802 = vsub.f32 %v235, %v1801
    %v1803 = vand.u32 %v1802, 4294901760
    %v1804 = vsub.f32 %v1802, %v1803
    %v1805 = vand.u32 %v1804, 4294901760
    %1806 = vmatpush2.msra.mxu0 %v1805
    %1807 = vmatprep.subr.mxu0 0.0
    %v1808 = vand.u32 %v234, 4294901760
    %v1809 = vsub.f32 %v234, %v1808
    %v1810 = vand.u32 %v1809, 4294901760
    %v1811 = vsub.f32 %v1809, %v1810
    %v1812 = vand.u32 %v1811, 4294901760
    %1813 = vmatpush2.msra.mxu0 %v1812
    %1814 = vmatprep.subr.mxu0 0.0
    %v1815 = vand.u32 %v233, 4294901760
    %v1816 = vsub.f32 %v233, %v1815
    %v1817 = vand.u32 %v1816, 4294901760
    %v1818 = vsub.f32 %v1816, %v1817
    %v1819 = vand.u32 %v1818, 4294901760
    %1820 = vmatpush2.msra.mxu0 %v1819
    %1821 = vmatprep.subr.mxu0 0.0
    %v1822 = vand.u32 %v232, 4294901760
    %v1823 = vsub.f32 %v232, %v1822
    %v1824 = vand.u32 %v1823, 4294901760
    %v1825 = vsub.f32 %v1823, %v1824
    %v1826 = vand.u32 %v1825, 4294901760
    %1827 = vmatpush2.msra.mxu0 %v1826
    %1828 = vmatprep.subr.mxu0 0.0
    %v1829 = vand.u32 %v231, 4294901760
    %v1830 = vsub.f32 %v231, %v1829
    %v1831 = vand.u32 %v1830, 4294901760
    %v1832 = vsub.f32 %v1830, %v1831
    %v1833 = vand.u32 %v1832, 4294901760
    %1834 = vmatpush2.msra.mxu0 %v1833
    %1835 = vmatprep.subr.mxu0 0.0
    %v1836 = vand.u32 %v230, 4294901760
    %v1837 = vsub.f32 %v230, %v1836
    %v1838 = vand.u32 %v1837, 4294901760
    %v1839 = vsub.f32 %v1837, %v1838
    %v1840 = vand.u32 %v1839, 4294901760
    %1841 = vmatpush2.msra.mxu0 %v1840
    %v1842 = vand.u32 %v45, 4294901760
    %1843 = vmatprep.mubr.f32.mxu0 %v1842
    %v1844 = vand.u32 %v44, 4294901760
    %1845 = vmatmul.mubr.f32.gmra.mxu0 %v1844
    %v1846 = vpop.f32.mrf.mxu0
    %v1847 = vadd.f32 %v355, %v1846
    %v1848 = vpop.f32.mrf.mxu0
    %v1849 = vand.u32 %v47, 4294901760
    %1850 = vmatprep.mubr.f32.mxu0 %v1849
    %v1851 = vand.u32 %v46, 4294901760
    %1852 = vmatmul.mubr.f32.gmra.mxu0 %v1851
    %v1853 = vpop.f32.mrf.mxu0
    %v1854 = vadd.f32 %v370, %v1853
    %v1855 = vpop.f32.mrf.mxu0
    %v1856 = vand.u32 %v49, 4294901760
    %1857 = vmatprep.mubr.f32.mxu0 %v1856
    %v1858 = vand.u32 %v48, 4294901760
    %1859 = vmatmul.mubr.f32.gmra.mxu0 %v1858
    %v1860 = vpop.f32.mrf.mxu0
    %v1861 = vadd.f32 %v385, %v1860
    %v1862 = vpop.f32.mrf.mxu0
    %v1863 = vand.u32 %v51, 4294901760
    %1864 = vmatprep.mubr.f32.mxu0 %v1863
    %v1865 = vand.u32 %v50, 4294901760
    %1866 = vmatmul.mubr.f32.gmra.mxu0 %v1865
    %v1867 = vpop.f32.mrf.mxu0
    %v1868 = vadd.f32 %v400, %v1867
    %v1869 = vpop.f32.mrf.mxu0
    %v1870 = vand.u32 %v53, 4294901760
    %1871 = vmatprep.mubr.f32.mxu0 %v1870
    %v1872 = vand.u32 %v52, 4294901760
    %1873 = vmatmul.mubr.f32.gmra.mxu0 %v1872
    %v1874 = vpop.f32.mrf.mxu0
    %v1875 = vadd.f32 %v415, %v1874
    %v1876 = vpop.f32.mrf.mxu0
    %v1877 = vand.u32 %v55, 4294901760
    %1878 = vmatprep.mubr.f32.mxu0 %v1877
    %v1879 = vand.u32 %v54, 4294901760
    %1880 = vmatmul.mubr.f32.gmra.mxu0 %v1879
    %v1881 = vpop.f32.mrf.mxu0
    %v1882 = vadd.f32 %v430, %v1881
    %v1883 = vpop.f32.mrf.mxu0
    %v1884 = vand.u32 %v57, 4294901760
    %1885 = vmatprep.mubr.f32.mxu0 %v1884
    %v1886 = vand.u32 %v56, 4294901760
    %1887 = vmatmul.mubr.f32.gmra.mxu0 %v1886
    %v1888 = vpop.f32.mrf.mxu0
    %v1889 = vadd.f32 %v445, %v1888
    %v1890 = vpop.f32.mrf.mxu0
    %v1891 = vand.u32 %v59, 4294901760
    %1892 = vmatprep.mubr.f32.mxu0 %v1891
    %v1893 = vand.u32 %v58, 4294901760
    %1894 = vmatmul.mubr.f32.gmra.mxu0 %v1893
    %v1895 = vpop.f32.mrf.mxu0
    %v1896 = vadd.f32 %v460, %v1895
    %v1897 = vpop.f32.mrf.mxu0
    %v1898 = vand.u32 %v61, 4294901760
    %1899 = vmatprep.mubr.f32.mxu0 %v1898
    %v1900 = vand.u32 %v60, 4294901760
    %1901 = vmatmul.mubr.f32.gmra.mxu0 %v1900
    %v1902 = vpop.f32.mrf.mxu0
    %v1903 = vadd.f32 %v475, %v1902
    %v1904 = vpop.f32.mrf.mxu0
    %v1905 = vand.u32 %v63, 4294901760
    %1906 = vmatprep.mubr.f32.mxu0 %v1905
    %v1907 = vand.u32 %v62, 4294901760
    %1908 = vmatmul.mubr.f32.gmra.mxu0 %v1907
    %v1909 = vpop.f32.mrf.mxu0
    %v1910 = vadd.f32 %v490, %v1909
    %v1911 = vpop.f32.mrf.mxu0
    %v1912 = vand.u32 %v65, 4294901760
    %1913 = vmatprep.mubr.f32.mxu0 %v1912
    %v1914 = vand.u32 %v64, 4294901760
    %1915 = vmatmul.mubr.f32.gmra.mxu0 %v1914
    %v1916 = vpop.f32.mrf.mxu0
    %v1917 = vadd.f32 %v505, %v1916
    %v1918 = vpop.f32.mrf.mxu0
    %v1919 = vand.u32 %v67, 4294901760
    %1920 = vmatprep.mubr.f32.mxu0 %v1919
    %v1921 = vand.u32 %v66, 4294901760
    %1922 = vmatmul.mubr.f32.gmra.mxu0 %v1921
    %v1923 = vpop.f32.mrf.mxu0
    %v1924 = vadd.f32 %v520, %v1923
    %v1925 = vpop.f32.mrf.mxu0
    %v1926 = vand.u32 %v69, 4294901760
    %1927 = vmatprep.mubr.f32.mxu0 %v1926
    %v1928 = vand.u32 %v68, 4294901760
    %1929 = vmatmul.mubr.f32.gmra.mxu0 %v1928
    %v1930 = vpop.f32.mrf.mxu0
    %v1931 = vadd.f32 %v535, %v1930
    %v1932 = vpop.f32.mrf.mxu0
    %v1933 = vand.u32 %v71, 4294901760
    %1934 = vmatprep.mubr.f32.mxu0 %v1933
    %v1935 = vand.u32 %v70, 4294901760
    %1936 = vmatmul.mubr.f32.gmra.mxu0 %v1935
    %v1937 = vpop.f32.mrf.mxu0
    %v1938 = vadd.f32 %v550, %v1937
    %v1939 = vpop.f32.mrf.mxu0
    %v1940 = vand.u32 %v73, 4294901760
    %1941 = vmatprep.mubr.f32.mxu0 %v1940
    %v1942 = vand.u32 %v72, 4294901760
    %1943 = vmatmul.mubr.f32.gmra.mxu0 %v1942
    %v1944 = vpop.f32.mrf.mxu0
    %v1945 = vadd.f32 %v565, %v1944
    %v1946 = vpop.f32.mrf.mxu0
    %v1947 = vand.u32 %v75, 4294901760
    %1948 = vmatprep.mubr.f32.mxu0 %v1947
    %v1949 = vand.u32 %v74, 4294901760
    %1950 = vmatmul.mubr.f32.gmra.mxu0 %v1949
    %v1951 = vpop.f32.mrf.mxu0
    %v1952 = vadd.f32 %v580, %v1951
    %v1953 = vpop.f32.mrf.mxu0
    %v1954 = vand.u32 %v77, 4294901760
    %1955 = vmatprep.mubr.f32.mxu0 %v1954
    %v1956 = vand.u32 %v76, 4294901760
    %1957 = vmatmul.mubr.f32.gmra.mxu0 %v1956
    %v1958 = vpop.f32.mrf.mxu0
    %v1959 = vadd.f32 %v595, %v1958
    %v1960 = vpop.f32.mrf.mxu0
    %v1961 = vand.u32 %v79, 4294901760
    %1962 = vmatprep.mubr.f32.mxu0 %v1961
    %v1963 = vand.u32 %v78, 4294901760
    %1964 = vmatmul.mubr.f32.gmra.mxu0 %v1963
    %v1965 = vpop.f32.mrf.mxu0
    %v1966 = vadd.f32 %v610, %v1965
    %v1967 = vpop.f32.mrf.mxu0
    %v1968 = vand.u32 %v81, 4294901760
    %1969 = vmatprep.mubr.f32.mxu0 %v1968
    %v1970 = vand.u32 %v80, 4294901760
    %1971 = vmatmul.mubr.f32.gmra.mxu0 %v1970
    %v1972 = vpop.f32.mrf.mxu0
    %v1973 = vadd.f32 %v625, %v1972
    %v1974 = vpop.f32.mrf.mxu0
    %v1975 = vand.u32 %v83, 4294901760
    %1976 = vmatprep.mubr.f32.mxu0 %v1975
    %v1977 = vand.u32 %v82, 4294901760
    %1978 = vmatmul.mubr.f32.gmra.mxu0 %v1977
    %v1979 = vpop.f32.mrf.mxu0
    %v1980 = vadd.f32 %v640, %v1979
    %v1981 = vpop.f32.mrf.mxu0
    %v1982 = vand.u32 %v85, 4294901760
    %1983 = vmatprep.mubr.f32.mxu0 %v1982
    %v1984 = vand.u32 %v84, 4294901760
    %1985 = vmatmul.mubr.f32.gmra.mxu0 %v1984
    %v1986 = vpop.f32.mrf.mxu0
    %v1987 = vadd.f32 %v655, %v1986
    %v1988 = vpop.f32.mrf.mxu0
    %v1989 = vand.u32 %v87, 4294901760
    %1990 = vmatprep.mubr.f32.mxu0 %v1989
    %v1991 = vand.u32 %v86, 4294901760
    %1992 = vmatmul.mubr.f32.gmra.mxu0 %v1991
    %v1993 = vpop.f32.mrf.mxu0
    %v1994 = vadd.f32 %v670, %v1993
    %v1995 = vpop.f32.mrf.mxu0
    %v1996 = vand.u32 %v89, 4294901760
    %1997 = vmatprep.mubr.f32.mxu0 %v1996
    %v1998 = vand.u32 %v88, 4294901760
    %1999 = vmatmul.mubr.f32.gmra.mxu0 %v1998
    %v2000 = vpop.f32.mrf.mxu0
    %v2001 = vadd.f32 %v685, %v2000
    %v2002 = vpop.f32.mrf.mxu0
    %v2003 = vand.u32 %v91, 4294901760
    %2004 = vmatprep.mubr.f32.mxu0 %v2003
    %v2005 = vand.u32 %v90, 4294901760
    %2006 = vmatmul.mubr.f32.gmra.mxu0 %v2005
    %v2007 = vpop.f32.mrf.mxu0
    %v2008 = vadd.f32 %v700, %v2007
    %v2009 = vpop.f32.mrf.mxu0
    %v2010 = vand.u32 %v93, 4294901760
    %2011 = vmatprep.mubr.f32.mxu0 %v2010
    %v2012 = vand.u32 %v92, 4294901760
    %2013 = vmatmul.mubr.f32.gmra.mxu0 %v2012
    %v2014 = vpop.f32.mrf.mxu0
    %v2015 = vadd.f32 %v715, %v2014
    %v2016 = vpop.f32.mrf.mxu0
    %v2017 = vand.u32 %v95, 4294901760
    %2018 = vmatprep.mubr.f32.mxu0 %v2017
    %v2019 = vand.u32 %v94, 4294901760
    %2020 = vmatmul.mubr.f32.gmra.mxu0 %v2019
    %v2021 = vpop.f32.mrf.mxu0
    %v2022 = vadd.f32 %v730, %v2021
    %v2023 = vpop.f32.mrf.mxu0
    %v2024 = vand.u32 %v97, 4294901760
    %2025 = vmatprep.mubr.f32.mxu0 %v2024
    %v2026 = vand.u32 %v96, 4294901760
    %2027 = vmatmul.mubr.f32.gmra.mxu0 %v2026
    %v2028 = vpop.f32.mrf.mxu0
    %v2029 = vadd.f32 %v745, %v2028
    %v2030 = vpop.f32.mrf.mxu0
    %v2031 = vand.u32 %v99, 4294901760
    %2032 = vmatprep.mubr.f32.mxu0 %v2031
    %v2033 = vand.u32 %v98, 4294901760
    %2034 = vmatmul.mubr.f32.gmra.mxu0 %v2033
    %v2035 = vpop.f32.mrf.mxu0
    %v2036 = vadd.f32 %v760, %v2035
    %v2037 = vpop.f32.mrf.mxu0
    %v2038 = vand.u32 %v101, 4294901760
    %2039 = vmatprep.mubr.f32.mxu0 %v2038
    %v2040 = vand.u32 %v100, 4294901760
    %2041 = vmatmul.mubr.f32.gmra.mxu0 %v2040
    %v2042 = vpop.f32.mrf.mxu0
    %v2043 = vadd.f32 %v775, %v2042
    %v2044 = vpop.f32.mrf.mxu0
    %v2045 = vand.u32 %v103, 4294901760
    %2046 = vmatprep.mubr.f32.mxu0 %v2045
    %v2047 = vand.u32 %v102, 4294901760
    %2048 = vmatmul.mubr.f32.gmra.mxu0 %v2047
    %v2049 = vpop.f32.mrf.mxu0
    %v2050 = vadd.f32 %v790, %v2049
    %v2051 = vpop.f32.mrf.mxu0
    %v2052 = vand.u32 %v105, 4294901760
    %2053 = vmatprep.mubr.f32.mxu0 %v2052
    %v2054 = vand.u32 %v104, 4294901760
    %2055 = vmatmul.mubr.f32.gmra.mxu0 %v2054
    %v2056 = vpop.f32.mrf.mxu0
    %v2057 = vadd.f32 %v805, %v2056
    %v2058 = vpop.f32.mrf.mxu0
    %v2059 = vand.u32 %v107, 4294901760
    %2060 = vmatprep.mubr.f32.mxu0 %v2059
    %v2061 = vand.u32 %v106, 4294901760
    %2062 = vmatmul.mubr.f32.gmra.mxu0 %v2061
    %v2063 = vpop.f32.mrf.mxu0
    %v2064 = vadd.f32 %v820, %v2063
    %v2065 = vpop.f32.mrf.mxu0
    %v2066 = vand.u32 %v109, 4294901760
    %2067 = vmatprep.mubr.f32.mxu0 %v2066
    %v2068 = vand.u32 %v108, 4294901760
    %2069 = vmatmul.mubr.f32.gmra.mxu0 %v2068
    %v2070 = vpop.f32.mrf.mxu0
    %v2071 = vadd.f32 %v835, %v2070
    %v2072 = vpop.f32.mrf.mxu0
    %v2073 = vand.u32 %v111, 4294901760
    %2074 = vmatprep.mubr.f32.mxu0 %v2073
    %v2075 = vand.u32 %v110, 4294901760
    %2076 = vmatmul.mubr.f32.gmra.mxu0 %v2075
    %v2077 = vpop.f32.mrf.mxu0
    %v2078 = vadd.f32 %v850, %v2077
    %v2079 = vpop.f32.mrf.mxu0
    %v2080 = vand.u32 %v113, 4294901760
    %2081 = vmatprep.mubr.f32.mxu0 %v2080
    %v2082 = vand.u32 %v112, 4294901760
    %2083 = vmatmul.mubr.f32.gmra.mxu0 %v2082
    %v2084 = vpop.f32.mrf.mxu0
    %v2085 = vadd.f32 %v865, %v2084
    %v2086 = vpop.f32.mrf.mxu0
    %v2087 = vand.u32 %v115, 4294901760
    %2088 = vmatprep.mubr.f32.mxu0 %v2087
    %v2089 = vand.u32 %v114, 4294901760
    %2090 = vmatmul.mubr.f32.gmra.mxu0 %v2089
    %v2091 = vpop.f32.mrf.mxu0
    %v2092 = vadd.f32 %v880, %v2091
    %v2093 = vpop.f32.mrf.mxu0
    %v2094 = vand.u32 %v117, 4294901760
    %2095 = vmatprep.mubr.f32.mxu0 %v2094
    %v2096 = vand.u32 %v116, 4294901760
    %2097 = vmatmul.mubr.f32.gmra.mxu0 %v2096
    %v2098 = vpop.f32.mrf.mxu0
    %v2099 = vadd.f32 %v895, %v2098
    %v2100 = vpop.f32.mrf.mxu0
    %v2101 = vand.u32 %v119, 4294901760
    %2102 = vmatprep.mubr.f32.mxu0 %v2101
    %v2103 = vand.u32 %v118, 4294901760
    %2104 = vmatmul.mubr.f32.gmra.mxu0 %v2103
    %v2105 = vpop.f32.mrf.mxu0
    %v2106 = vadd.f32 %v910, %v2105
    %v2107 = vpop.f32.mrf.mxu0
    %v2108 = vand.u32 %v121, 4294901760
    %2109 = vmatprep.mubr.f32.mxu0 %v2108
    %v2110 = vand.u32 %v120, 4294901760
    %2111 = vmatmul.mubr.f32.gmra.mxu0 %v2110
    %v2112 = vpop.f32.mrf.mxu0
    %v2113 = vadd.f32 %v925, %v2112
    %v2114 = vpop.f32.mrf.mxu0
    %v2115 = vand.u32 %v123, 4294901760
    %2116 = vmatprep.mubr.f32.mxu0 %v2115
    %v2117 = vand.u32 %v122, 4294901760
    %2118 = vmatmul.mubr.f32.gmra.mxu0 %v2117
    %v2119 = vpop.f32.mrf.mxu0
    %v2120 = vadd.f32 %v940, %v2119
    %v2121 = vpop.f32.mrf.mxu0
    %v2122 = vand.u32 %v125, 4294901760
    %2123 = vmatprep.mubr.f32.mxu0 %v2122
    %v2124 = vand.u32 %v124, 4294901760
    %2125 = vmatmul.mubr.f32.gmra.mxu0 %v2124
    %v2126 = vpop.f32.mrf.mxu0
    %v2127 = vadd.f32 %v955, %v2126
    %v2128 = vpop.f32.mrf.mxu0
    %v2129 = vand.u32 %v127, 4294901760
    %2130 = vmatprep.mubr.f32.mxu0 %v2129
    %v2131 = vand.u32 %v126, 4294901760
    %2132 = vmatmul.mubr.f32.gmra.mxu0 %v2131
    %v2133 = vpop.f32.mrf.mxu0
    %v2134 = vadd.f32 %v970, %v2133
    %v2135 = vpop.f32.mrf.mxu0
    %v2136 = vand.u32 %v129, 4294901760
    %2137 = vmatprep.mubr.f32.mxu0 %v2136
    %v2138 = vand.u32 %v128, 4294901760
    %2139 = vmatmul.mubr.f32.gmra.mxu0 %v2138
    %v2140 = vpop.f32.mrf.mxu0
    %v2141 = vadd.f32 %v985, %v2140
    %v2142 = vpop.f32.mrf.mxu0
    %v2143 = vand.u32 %v131, 4294901760
    %2144 = vmatprep.mubr.f32.mxu0 %v2143
    %v2145 = vand.u32 %v130, 4294901760
    %2146 = vmatmul.mubr.f32.gmra.mxu0 %v2145
    %v2147 = vpop.f32.mrf.mxu0
    %v2148 = vadd.f32 %v1000, %v2147
    %v2149 = vpop.f32.mrf.mxu0
    %v2150 = vand.u32 %v133, 4294901760
    %2151 = vmatprep.mubr.f32.mxu0 %v2150
    %v2152 = vand.u32 %v132, 4294901760
    %2153 = vmatmul.mubr.f32.gmra.mxu0 %v2152
    %v2154 = vpop.f32.mrf.mxu0
    %v2155 = vadd.f32 %v1015, %v2154
    %v2156 = vpop.f32.mrf.mxu0
    %v2157 = vand.u32 %v135, 4294901760
    %2158 = vmatprep.mubr.f32.mxu0 %v2157
    %v2159 = vand.u32 %v134, 4294901760
    %2160 = vmatmul.mubr.f32.gmra.mxu0 %v2159
    %v2161 = vpop.f32.mrf.mxu0
    %v2162 = vadd.f32 %v1030, %v2161
    %v2163 = vpop.f32.mrf.mxu0
    %v2164 = vand.u32 %v137, 4294901760
    %2165 = vmatprep.mubr.f32.mxu0 %v2164
    %v2166 = vand.u32 %v136, 4294901760
    %2167 = vmatmul.mubr.f32.gmra.mxu0 %v2166
    %v2168 = vpop.f32.mrf.mxu0
    %v2169 = vadd.f32 %v1045, %v2168
    %v2170 = vpop.f32.mrf.mxu0
    %v2171 = vand.u32 %v139, 4294901760
    %2172 = vmatprep.mubr.f32.mxu0 %v2171
    %v2173 = vand.u32 %v138, 4294901760
    %2174 = vmatmul.mubr.f32.gmra.mxu0 %v2173
    %v2175 = vpop.f32.mrf.mxu0
    %v2176 = vadd.f32 %v1060, %v2175
    %v2177 = vpop.f32.mrf.mxu0
    %v2178 = vand.u32 %v141, 4294901760
    %2179 = vmatprep.mubr.f32.mxu0 %v2178
    %v2180 = vand.u32 %v140, 4294901760
    %2181 = vmatmul.mubr.f32.gmra.mxu0 %v2180
    %v2182 = vpop.f32.mrf.mxu0
    %v2183 = vadd.f32 %v1075, %v2182
    %v2184 = vpop.f32.mrf.mxu0
    %v2185 = vand.u32 %v143, 4294901760
    %2186 = vmatprep.mubr.f32.mxu0 %v2185
    %v2187 = vand.u32 %v142, 4294901760
    %2188 = vmatmul.mubr.f32.gmra.mxu0 %v2187
    %v2189 = vpop.f32.mrf.mxu0
    %v2190 = vadd.f32 %v1090, %v2189
    %v2191 = vpop.f32.mrf.mxu0
    %v2192 = vand.u32 %v145, 4294901760
    %2193 = vmatprep.mubr.f32.mxu0 %v2192
    %v2194 = vand.u32 %v144, 4294901760
    %2195 = vmatmul.mubr.f32.gmra.mxu0 %v2194
    %v2196 = vpop.f32.mrf.mxu0
    %v2197 = vadd.f32 %v1105, %v2196
    %v2198 = vpop.f32.mrf.mxu0
    %v2199 = vand.u32 %v147, 4294901760
    %2200 = vmatprep.mubr.f32.mxu0 %v2199
    %v2201 = vand.u32 %v146, 4294901760
    %2202 = vmatmul.mubr.f32.gmra.mxu0 %v2201
    %v2203 = vpop.f32.mrf.mxu0
    %v2204 = vadd.f32 %v1120, %v2203
    %v2205 = vpop.f32.mrf.mxu0
    %v2206 = vand.u32 %v149, 4294901760
    %2207 = vmatprep.mubr.f32.mxu0 %v2206
    %v2208 = vand.u32 %v148, 4294901760
    %2209 = vmatmul.mubr.f32.gmra.mxu0 %v2208
    %v2210 = vpop.f32.mrf.mxu0
    %v2211 = vadd.f32 %v1135, %v2210
    %v2212 = vpop.f32.mrf.mxu0
    %v2213 = vand.u32 %v151, 4294901760
    %2214 = vmatprep.mubr.f32.mxu0 %v2213
    %v2215 = vand.u32 %v150, 4294901760
    %2216 = vmatmul.mubr.f32.gmra.mxu0 %v2215
    %v2217 = vpop.f32.mrf.mxu0
    %v2218 = vadd.f32 %v1150, %v2217
    %v2219 = vpop.f32.mrf.mxu0
    %v2220 = vand.u32 %v153, 4294901760
    %2221 = vmatprep.mubr.f32.mxu0 %v2220
    %v2222 = vand.u32 %v152, 4294901760
    %2223 = vmatmul.mubr.f32.gmra.mxu0 %v2222
    %v2224 = vpop.f32.mrf.mxu0
    %v2225 = vadd.f32 %v1165, %v2224
    %v2226 = vpop.f32.mrf.mxu0
    %v2227 = vand.u32 %v155, 4294901760
    %2228 = vmatprep.mubr.f32.mxu0 %v2227
    %v2229 = vand.u32 %v154, 4294901760
    %2230 = vmatmul.mubr.f32.gmra.mxu0 %v2229
    %v2231 = vpop.f32.mrf.mxu0
    %v2232 = vadd.f32 %v1180, %v2231
    %v2233 = vpop.f32.mrf.mxu0
    %v2234 = vand.u32 %v157, 4294901760
    %2235 = vmatprep.mubr.f32.mxu0 %v2234
    %v2236 = vand.u32 %v156, 4294901760
    %2237 = vmatmul.mubr.f32.gmra.mxu0 %v2236
    %v2238 = vpop.f32.mrf.mxu0
    %v2239 = vadd.f32 %v1195, %v2238
    %v2240 = vpop.f32.mrf.mxu0
    %v2241 = vand.u32 %v159, 4294901760
    %2242 = vmatprep.mubr.f32.mxu0 %v2241
    %v2243 = vand.u32 %v158, 4294901760
    %2244 = vmatmul.mubr.f32.gmra.mxu0 %v2243
    %v2245 = vpop.f32.mrf.mxu0
    %v2246 = vadd.f32 %v1210, %v2245
    %v2247 = vpop.f32.mrf.mxu0
    %v2248 = vand.u32 %v161, 4294901760
    %2249 = vmatprep.mubr.f32.mxu0 %v2248
    %v2250 = vand.u32 %v160, 4294901760
    %2251 = vmatmul.mubr.f32.gmra.mxu0 %v2250
    %v2252 = vpop.f32.mrf.mxu0
    %v2253 = vadd.f32 %v1225, %v2252
    %v2254 = vpop.f32.mrf.mxu0
    %v2255 = vand.u32 %v163, 4294901760
    %2256 = vmatprep.mubr.f32.mxu0 %v2255
    %v2257 = vand.u32 %v162, 4294901760
    %2258 = vmatmul.mubr.f32.gmra.mxu0 %v2257
    %v2259 = vpop.f32.mrf.mxu0
    %v2260 = vadd.f32 %v1240, %v2259
    %v2261 = vpop.f32.mrf.mxu0
    %v2262 = vand.u32 %v165, 4294901760
    %2263 = vmatprep.mubr.f32.mxu0 %v2262
    %v2264 = vand.u32 %v164, 4294901760
    %2265 = vmatmul.mubr.f32.gmra.mxu0 %v2264
    %v2266 = vpop.f32.mrf.mxu0
    %v2267 = vadd.f32 %v1255, %v2266
    %v2268 = vpop.f32.mrf.mxu0
    %v2269 = vand.u32 %v167, 4294901760
    %2270 = vmatprep.mubr.f32.mxu0 %v2269
    %v2271 = vand.u32 %v166, 4294901760
    %2272 = vmatmul.mubr.f32.gmra.mxu0 %v2271
    %v2273 = vpop.f32.mrf.mxu0
    %v2274 = vadd.f32 %v1270, %v2273
    %v2275 = vpop.f32.mrf.mxu0
    %v2276 = vand.u32 %v169, 4294901760
    %2277 = vmatprep.mubr.f32.mxu0 %v2276
    %v2278 = vand.u32 %v168, 4294901760
    %2279 = vmatmul.mubr.f32.gmra.mxu0 %v2278
    %v2280 = vpop.f32.mrf.mxu0
    %v2281 = vadd.f32 %v1285, %v2280
    %v2282 = vpop.f32.mrf.mxu0
    %v2283 = vand.u32 %v171, 4294901760
    %2284 = vmatprep.mubr.f32.mxu0 %v2283
    %v2285 = vand.u32 %v170, 4294901760
    %2286 = vmatmul.mubr.f32.gmra.mxu0 %v2285
    %v2287 = vpop.f32.mrf.mxu0
    %v2288 = vadd.f32 %v1300, %v2287
    %v2289 = vpop.f32.mrf.mxu0
    %v2290 = vand.u32 %v173, 4294901760
    %2291 = vmatprep.mubr.f32.mxu0 %v2290
    %v2292 = vand.u32 %v172, 4294901760
    %2293 = vmatmul.mubr.f32.gmra.mxu0 %v2292
    %v2294 = vpop.f32.mrf.mxu0
    %v2295 = vadd.f32 %v1315, %v2294
    %v2296 = vpop.f32.mrf.mxu0
    %v2297 = vand.u32 %v175, 4294901760
    %2298 = vmatprep.mubr.f32.mxu0 %v2297
    %v2299 = vand.u32 %v174, 4294901760
    %2300 = vmatmul.mubr.f32.gmra.mxu0 %v2299
    %v2301 = vpop.f32.mrf.mxu0
    %v2302 = vadd.f32 %v1330, %v2301
    %v2303 = vpop.f32.mrf.mxu0
    %v2304 = vand.u32 %v177, 4294901760
    %2305 = vmatprep.mubr.f32.mxu0 %v2304
    %v2306 = vand.u32 %v176, 4294901760
    %2307 = vmatmul.mubr.f32.gmra.mxu0 %v2306
    %v2308 = vpop.f32.mrf.mxu0
    %v2309 = vadd.f32 %v1345, %v2308
    %v2310 = vpop.f32.mrf.mxu0
    %v2311 = vand.u32 %v179, 4294901760
    %2312 = vmatprep.mubr.f32.mxu0 %v2311
    %v2313 = vand.u32 %v178, 4294901760
    %2314 = vmatmul.mubr.f32.gmra.mxu0 %v2313
    %v2315 = vpop.f32.mrf.mxu0
    %v2316 = vadd.f32 %v1360, %v2315
    %v2317 = vpop.f32.mrf.mxu0
    %v2318 = vand.u32 %v181, 4294901760
    %2319 = vmatprep.mubr.f32.mxu0 %v2318
    %v2320 = vand.u32 %v180, 4294901760
    %2321 = vmatmul.mubr.f32.gmra.mxu0 %v2320
    %v2322 = vpop.f32.mrf.mxu0
    %v2323 = vadd.f32 %v1375, %v2322
    %v2324 = vpop.f32.mrf.mxu0
    %v2325 = vand.u32 %v183, 4294901760
    %2326 = vmatprep.mubr.f32.mxu0 %v2325
    %v2327 = vand.u32 %v182, 4294901760
    %2328 = vmatmul.mubr.f32.gmra.mxu0 %v2327
    %v2329 = vpop.f32.mrf.mxu0
    %v2330 = vadd.f32 %v1390, %v2329
    %v2331 = vpop.f32.mrf.mxu0
    %v2332 = vand.u32 %v185, 4294901760
    %2333 = vmatprep.mubr.f32.mxu0 %v2332
    %v2334 = vand.u32 %v184, 4294901760
    %2335 = vmatmul.mubr.f32.gmra.mxu0 %v2334
    %v2336 = vpop.f32.mrf.mxu0
    %v2337 = vadd.f32 %v1405, %v2336
    %v2338 = vpop.f32.mrf.mxu0
    %v2339 = vand.u32 %v187, 4294901760
    %2340 = vmatprep.mubr.f32.mxu0 %v2339
    %v2341 = vand.u32 %v186, 4294901760
    %2342 = vmatmul.mubr.f32.gmra.mxu0 %v2341
    %v2343 = vpop.f32.mrf.mxu0
    %v2344 = vadd.f32 %v1420, %v2343
    %v2345 = vpop.f32.mrf.mxu0
    %v2346 = vand.u32 %v189, 4294901760
    %2347 = vmatprep.mubr.f32.mxu0 %v2346
    %v2348 = vand.u32 %v188, 4294901760
    %2349 = vmatmul.mubr.f32.gmra.mxu0 %v2348
    %v2350 = vpop.f32.mrf.mxu0
    %v2351 = vadd.f32 %v1435, %v2350
    %v2352 = vpop.f32.mrf.mxu0
    %v2353 = vand.u32 %v191, 4294901760
    %2354 = vmatprep.mubr.f32.mxu0 %v2353
    %v2355 = vand.u32 %v190, 4294901760
    %2356 = vmatmul.mubr.f32.gmra.mxu0 %v2355
    %v2357 = vpop.f32.mrf.mxu0
    %v2358 = vadd.f32 %v1450, %v2357
    %v2359 = vpop.f32.mrf.mxu0
    %v2360 = vand.u32 %v193, 4294901760
    %2361 = vmatprep.mubr.f32.mxu0 %v2360
    %v2362 = vand.u32 %v192, 4294901760
    %2363 = vmatmul.mubr.f32.gmra.mxu0 %v2362
    %v2364 = vpop.f32.mrf.mxu0
    %v2365 = vadd.f32 %v1465, %v2364
    %v2366 = vpop.f32.mrf.mxu0
    %v2367 = vand.u32 %v195, 4294901760
    %2368 = vmatprep.mubr.f32.mxu0 %v2367
    %v2369 = vand.u32 %v194, 4294901760
    %2370 = vmatmul.mubr.f32.gmra.mxu0 %v2369
    %v2371 = vpop.f32.mrf.mxu0
    %v2372 = vadd.f32 %v1480, %v2371
    %v2373 = vpop.f32.mrf.mxu0
    %v2374 = vand.u32 %v197, 4294901760
    %2375 = vmatprep.mubr.f32.mxu0 %v2374
    %v2376 = vand.u32 %v196, 4294901760
    %2377 = vmatmul.mubr.f32.gmra.mxu0 %v2376
    %v2378 = vpop.f32.mrf.mxu0
    %v2379 = vadd.f32 %v1495, %v2378
    %v2380 = vpop.f32.mrf.mxu0
    %v2381 = vand.u32 %v199, 4294901760
    %2382 = vmatprep.mubr.f32.mxu0 %v2381
    %v2383 = vand.u32 %v198, 4294901760
    %2384 = vmatmul.mubr.f32.gmra.mxu0 %v2383
    %v2385 = vpop.f32.mrf.mxu0
    %v2386 = vadd.f32 %v1510, %v2385
    %v2387 = vpop.f32.mrf.mxu0
    %v2388 = vand.u32 %v201, 4294901760
    %2389 = vmatprep.mubr.f32.mxu0 %v2388
    %v2390 = vand.u32 %v200, 4294901760
    %2391 = vmatmul.mubr.f32.gmra.mxu0 %v2390
    %v2392 = vpop.f32.mrf.mxu0
    %v2393 = vadd.f32 %v1525, %v2392
    %v2394 = vpop.f32.mrf.mxu0
    %v2395 = vand.u32 %v203, 4294901760
    %2396 = vmatprep.mubr.f32.mxu0 %v2395
    %v2397 = vand.u32 %v202, 4294901760
    %2398 = vmatmul.mubr.f32.gmra.mxu0 %v2397
    %v2399 = vpop.f32.mrf.mxu0
    %v2400 = vadd.f32 %v1540, %v2399
    %v2401 = vpop.f32.mrf.mxu0
    %v2402 = vand.u32 %v205, 4294901760
    %2403 = vmatprep.mubr.f32.mxu0 %v2402
    %v2404 = vand.u32 %v204, 4294901760
    %2405 = vmatmul.mubr.f32.gmra.mxu0 %v2404
    %v2406 = vpop.f32.mrf.mxu0
    %v2407 = vadd.f32 %v1555, %v2406
    %v2408 = vpop.f32.mrf.mxu0
    %v2409 = vand.u32 %v207, 4294901760
    %2410 = vmatprep.mubr.f32.mxu0 %v2409
    %v2411 = vand.u32 %v206, 4294901760
    %2412 = vmatmul.mubr.f32.gmra.mxu0 %v2411
    %v2413 = vpop.f32.mrf.mxu0
    %v2414 = vadd.f32 %v1570, %v2413
    %v2415 = vpop.f32.mrf.mxu0
    %v2416 = vand.u32 %v209, 4294901760
    %2417 = vmatprep.mubr.f32.mxu0 %v2416
    %v2418 = vand.u32 %v208, 4294901760
    %2419 = vmatmul.mubr.f32.gmra.mxu0 %v2418
    %v2420 = vpop.f32.mrf.mxu0
    %v2421 = vadd.f32 %v1585, %v2420
    %v2422 = vpop.f32.mrf.mxu0
    %v2423 = vand.u32 %v211, 4294901760
    %2424 = vmatprep.mubr.f32.mxu0 %v2423
    %v2425 = vand.u32 %v210, 4294901760
    %2426 = vmatmul.mubr.f32.gmra.mxu0 %v2425
    %v2427 = vpop.f32.mrf.mxu0
    %v2428 = vadd.f32 %v1600, %v2427
    %v2429 = vpop.f32.mrf.mxu0
    %v2430 = vand.u32 %v213, 4294901760
    %2431 = vmatprep.mubr.f32.mxu0 %v2430
    %v2432 = vand.u32 %v212, 4294901760
    %2433 = vmatmul.mubr.f32.gmra.mxu0 %v2432
    %v2434 = vpop.f32.mrf.mxu0
    %v2435 = vadd.f32 %v1615, %v2434
    %v2436 = vpop.f32.mrf.mxu0
    %2437 = vdwg.mxu0
    %2438 = vmatprep.subr.mxu0 0.0
    %v2439 = vand.u32 %v229, 4294901760
    %v2440 = vsub.f32 %v229, %v2439
    %2441 = vmatpush1.msra.mxu0 %v2440
    %2442 = vmatprep.subr.mxu0 0.0
    %v2443 = vand.u32 %v228, 4294901760
    %v2444 = vsub.f32 %v228, %v2443
    %2445 = vmatpush1.msra.mxu0 %v2444
    %2446 = vmatprep.subr.mxu0 0.0
    %v2447 = vand.u32 %v227, 4294901760
    %v2448 = vsub.f32 %v227, %v2447
    %2449 = vmatpush1.msra.mxu0 %v2448
    %2450 = vmatprep.subr.mxu0 0.0
    %v2451 = vand.u32 %v226, 4294901760
    %v2452 = vsub.f32 %v226, %v2451
    %2453 = vmatpush1.msra.mxu0 %v2452
    %2454 = vmatprep.subr.mxu0 0.0
    %v2455 = vand.u32 %v225, 4294901760
    %v2456 = vsub.f32 %v225, %v2455
    %2457 = vmatpush1.msra.mxu0 %v2456
    %2458 = vmatprep.subr.mxu0 0.0
    %v2459 = vand.u32 %v224, 4294901760
    %v2460 = vsub.f32 %v224, %v2459
    %2461 = vmatpush1.msra.mxu0 %v2460
    %2462 = vmatprep.subr.mxu0 0.0
    %v2463 = vand.u32 %v223, 4294901760
    %v2464 = vsub.f32 %v223, %v2463
    %2465 = vmatpush1.msra.mxu0 %v2464
    %2466 = vmatprep.subr.mxu0 0.0
    %v2467 = vand.u32 %v222, 4294901760
    %v2468 = vsub.f32 %v222, %v2467
    %2469 = vmatpush1.msra.mxu0 %v2468
    %2470 = vmatprep.subr.mxu0 0.0
    %v2471 = vand.u32 %v221, 4294901760
    %v2472 = vsub.f32 %v221, %v2471
    %2473 = vmatpush1.msra.mxu0 %v2472
    %2474 = vmatprep.subr.mxu0 0.0
    %v2475 = vand.u32 %v220, 4294901760
    %v2476 = vsub.f32 %v220, %v2475
    %2477 = vmatpush1.msra.mxu0 %v2476
    %2478 = vmatprep.subr.mxu0 0.0
    %v2479 = vand.u32 %v219, 4294901760
    %v2480 = vsub.f32 %v219, %v2479
    %2481 = vmatpush1.msra.mxu0 %v2480
    %2482 = vmatprep.subr.mxu0 0.0
    %v2483 = vand.u32 %v218, 4294901760
    %v2484 = vsub.f32 %v218, %v2483
    %2485 = vmatpush1.msra.mxu0 %v2484
    %2486 = vmatprep.subr.mxu0 0.0
    %v2487 = vand.u32 %v217, 4294901760
    %v2488 = vsub.f32 %v217, %v2487
    %2489 = vmatpush1.msra.mxu0 %v2488
    %2490 = vmatprep.subr.mxu0 0.0
    %v2491 = vand.u32 %v216, 4294901760
    %v2492 = vsub.f32 %v216, %v2491
    %2493 = vmatpush1.msra.mxu0 %v2492
    %2494 = vmatprep.subr.mxu0 0.0
    %v2495 = vand.u32 %v215, 4294901760
    %v2496 = vsub.f32 %v215, %v2495
    %2497 = vmatpush1.msra.mxu0 %v2496
    %2498 = vmatprep.subr.mxu0 0.0
    %v2499 = vand.u32 %v214, 4294901760
    %v2500 = vsub.f32 %v214, %v2499
    %2501 = vmatpush1.msra.mxu0 %v2500
    %2502 = vmatprep.subr.mxu0 0.0
    %v2503 = vand.u32 %v245, 4294901760
    %v2504 = vsub.f32 %v245, %v2503
    %2505 = vmatpush2.msra.mxu0 %v2504
    %2506 = vmatprep.subr.mxu0 0.0
    %v2507 = vand.u32 %v244, 4294901760
    %v2508 = vsub.f32 %v244, %v2507
    %2509 = vmatpush2.msra.mxu0 %v2508
    %2510 = vmatprep.subr.mxu0 0.0
    %v2511 = vand.u32 %v243, 4294901760
    %v2512 = vsub.f32 %v243, %v2511
    %2513 = vmatpush2.msra.mxu0 %v2512
    %2514 = vmatprep.subr.mxu0 0.0
    %v2515 = vand.u32 %v242, 4294901760
    %v2516 = vsub.f32 %v242, %v2515
    %2517 = vmatpush2.msra.mxu0 %v2516
    %2518 = vmatprep.subr.mxu0 0.0
    %v2519 = vand.u32 %v241, 4294901760
    %v2520 = vsub.f32 %v241, %v2519
    %2521 = vmatpush2.msra.mxu0 %v2520
    %2522 = vmatprep.subr.mxu0 0.0
    %v2523 = vand.u32 %v240, 4294901760
    %v2524 = vsub.f32 %v240, %v2523
    %2525 = vmatpush2.msra.mxu0 %v2524
    %2526 = vmatprep.subr.mxu0 0.0
    %v2527 = vand.u32 %v239, 4294901760
    %v2528 = vsub.f32 %v239, %v2527
    %2529 = vmatpush2.msra.mxu0 %v2528
    %2530 = vmatprep.subr.mxu0 0.0
    %v2531 = vand.u32 %v238, 4294901760
    %v2532 = vsub.f32 %v238, %v2531
    %2533 = vmatpush2.msra.mxu0 %v2532
    %2534 = vmatprep.subr.mxu0 0.0
    %v2535 = vand.u32 %v237, 4294901760
    %v2536 = vsub.f32 %v237, %v2535
    %2537 = vmatpush2.msra.mxu0 %v2536
    %2538 = vmatprep.subr.mxu0 0.0
    %v2539 = vand.u32 %v236, 4294901760
    %v2540 = vsub.f32 %v236, %v2539
    %2541 = vmatpush2.msra.mxu0 %v2540
    %2542 = vmatprep.subr.mxu0 0.0
    %v2543 = vand.u32 %v235, 4294901760
    %v2544 = vsub.f32 %v235, %v2543
    %2545 = vmatpush2.msra.mxu0 %v2544
    %2546 = vmatprep.subr.mxu0 0.0
    %v2547 = vand.u32 %v234, 4294901760
    %v2548 = vsub.f32 %v234, %v2547
    %2549 = vmatpush2.msra.mxu0 %v2548
    %2550 = vmatprep.subr.mxu0 0.0
    %v2551 = vand.u32 %v233, 4294901760
    %v2552 = vsub.f32 %v233, %v2551
    %2553 = vmatpush2.msra.mxu0 %v2552
    %2554 = vmatprep.subr.mxu0 0.0
    %v2555 = vand.u32 %v232, 4294901760
    %v2556 = vsub.f32 %v232, %v2555
    %2557 = vmatpush2.msra.mxu0 %v2556
    %2558 = vmatprep.subr.mxu0 0.0
    %v2559 = vand.u32 %v231, 4294901760
    %v2560 = vsub.f32 %v231, %v2559
    %2561 = vmatpush2.msra.mxu0 %v2560
    %2562 = vmatprep.subr.mxu0 0.0
    %v2563 = vand.u32 %v230, 4294901760
    %v2564 = vsub.f32 %v230, %v2563
    %2565 = vmatpush2.msra.mxu0 %v2564
    %v2566 = vand.u32 %v45, 4294901760
    %v2567 = vsub.f32 %v45, %v2566
    %2568 = vmatprep.mubr.f32.mxu0 %v2567
    %v2569 = vand.u32 %v44, 4294901760
    %v2570 = vsub.f32 %v44, %v2569
    %2571 = vmatmul.mubr.f32.gmra.mxu0 %v2570
    %v2572 = vpop.f32.mrf.mxu0
    %v2573 = vadd.f32 %v1847, %v2572
    %v2574 = vpop.f32.mrf.mxu0
    %v2575 = vand.u32 %v47, 4294901760
    %v2576 = vsub.f32 %v47, %v2575
    %2577 = vmatprep.mubr.f32.mxu0 %v2576
    %v2578 = vand.u32 %v46, 4294901760
    %v2579 = vsub.f32 %v46, %v2578
    %2580 = vmatmul.mubr.f32.gmra.mxu0 %v2579
    %v2581 = vpop.f32.mrf.mxu0
    %v2582 = vadd.f32 %v1854, %v2581
    %v2583 = vpop.f32.mrf.mxu0
    %v2584 = vand.u32 %v49, 4294901760
    %v2585 = vsub.f32 %v49, %v2584
    %2586 = vmatprep.mubr.f32.mxu0 %v2585
    %v2587 = vand.u32 %v48, 4294901760
    %v2588 = vsub.f32 %v48, %v2587
    %2589 = vmatmul.mubr.f32.gmra.mxu0 %v2588
    %v2590 = vpop.f32.mrf.mxu0
    %v2591 = vadd.f32 %v1861, %v2590
    %v2592 = vpop.f32.mrf.mxu0
    %v2593 = vand.u32 %v51, 4294901760
    %v2594 = vsub.f32 %v51, %v2593
    %2595 = vmatprep.mubr.f32.mxu0 %v2594
    %v2596 = vand.u32 %v50, 4294901760
    %v2597 = vsub.f32 %v50, %v2596
    %2598 = vmatmul.mubr.f32.gmra.mxu0 %v2597
    %v2599 = vpop.f32.mrf.mxu0
    %v2600 = vadd.f32 %v1868, %v2599
    %v2601 = vpop.f32.mrf.mxu0
    %v2602 = vand.u32 %v53, 4294901760
    %v2603 = vsub.f32 %v53, %v2602
    %2604 = vmatprep.mubr.f32.mxu0 %v2603
    %v2605 = vand.u32 %v52, 4294901760
    %v2606 = vsub.f32 %v52, %v2605
    %2607 = vmatmul.mubr.f32.gmra.mxu0 %v2606
    %v2608 = vpop.f32.mrf.mxu0
    %v2609 = vadd.f32 %v1875, %v2608
    %v2610 = vpop.f32.mrf.mxu0
    %v2611 = vand.u32 %v55, 4294901760
    %v2612 = vsub.f32 %v55, %v2611
    %2613 = vmatprep.mubr.f32.mxu0 %v2612
    %v2614 = vand.u32 %v54, 4294901760
    %v2615 = vsub.f32 %v54, %v2614
    %2616 = vmatmul.mubr.f32.gmra.mxu0 %v2615
    %v2617 = vpop.f32.mrf.mxu0
    %v2618 = vadd.f32 %v1882, %v2617
    %v2619 = vpop.f32.mrf.mxu0
    %v2620 = vand.u32 %v57, 4294901760
    %v2621 = vsub.f32 %v57, %v2620
    %2622 = vmatprep.mubr.f32.mxu0 %v2621
    %v2623 = vand.u32 %v56, 4294901760
    %v2624 = vsub.f32 %v56, %v2623
    %2625 = vmatmul.mubr.f32.gmra.mxu0 %v2624
    %v2626 = vpop.f32.mrf.mxu0
    %v2627 = vadd.f32 %v1889, %v2626
    %v2628 = vpop.f32.mrf.mxu0
    %v2629 = vand.u32 %v59, 4294901760
    %v2630 = vsub.f32 %v59, %v2629
    %2631 = vmatprep.mubr.f32.mxu0 %v2630
    %v2632 = vand.u32 %v58, 4294901760
    %v2633 = vsub.f32 %v58, %v2632
    %2634 = vmatmul.mubr.f32.gmra.mxu0 %v2633
    %v2635 = vpop.f32.mrf.mxu0
    %v2636 = vadd.f32 %v1896, %v2635
    %v2637 = vpop.f32.mrf.mxu0
    %v2638 = vand.u32 %v61, 4294901760
    %v2639 = vsub.f32 %v61, %v2638
    %2640 = vmatprep.mubr.f32.mxu0 %v2639
    %v2641 = vand.u32 %v60, 4294901760
    %v2642 = vsub.f32 %v60, %v2641
    %2643 = vmatmul.mubr.f32.gmra.mxu0 %v2642
    %v2644 = vpop.f32.mrf.mxu0
    %v2645 = vadd.f32 %v1903, %v2644
    %v2646 = vpop.f32.mrf.mxu0
    %v2647 = vand.u32 %v63, 4294901760
    %v2648 = vsub.f32 %v63, %v2647
    %2649 = vmatprep.mubr.f32.mxu0 %v2648
    %v2650 = vand.u32 %v62, 4294901760
    %v2651 = vsub.f32 %v62, %v2650
    %2652 = vmatmul.mubr.f32.gmra.mxu0 %v2651
    %v2653 = vpop.f32.mrf.mxu0
    %v2654 = vadd.f32 %v1910, %v2653
    %v2655 = vpop.f32.mrf.mxu0
    %v2656 = vand.u32 %v65, 4294901760
    %v2657 = vsub.f32 %v65, %v2656
    %2658 = vmatprep.mubr.f32.mxu0 %v2657
    %v2659 = vand.u32 %v64, 4294901760
    %v2660 = vsub.f32 %v64, %v2659
    %2661 = vmatmul.mubr.f32.gmra.mxu0 %v2660
    %v2662 = vpop.f32.mrf.mxu0
    %v2663 = vadd.f32 %v1917, %v2662
    %v2664 = vpop.f32.mrf.mxu0
    %v2665 = vand.u32 %v67, 4294901760
    %v2666 = vsub.f32 %v67, %v2665
    %2667 = vmatprep.mubr.f32.mxu0 %v2666
    %v2668 = vand.u32 %v66, 4294901760
    %v2669 = vsub.f32 %v66, %v2668
    %2670 = vmatmul.mubr.f32.gmra.mxu0 %v2669
    %v2671 = vpop.f32.mrf.mxu0
    %v2672 = vadd.f32 %v1924, %v2671
    %v2673 = vpop.f32.mrf.mxu0
    %v2674 = vand.u32 %v69, 4294901760
    %v2675 = vsub.f32 %v69, %v2674
    %2676 = vmatprep.mubr.f32.mxu0 %v2675
    %v2677 = vand.u32 %v68, 4294901760
    %v2678 = vsub.f32 %v68, %v2677
    %2679 = vmatmul.mubr.f32.gmra.mxu0 %v2678
    %v2680 = vpop.f32.mrf.mxu0
    %v2681 = vadd.f32 %v1931, %v2680
    %v2682 = vpop.f32.mrf.mxu0
    %v2683 = vand.u32 %v71, 4294901760
    %v2684 = vsub.f32 %v71, %v2683
    %2685 = vmatprep.mubr.f32.mxu0 %v2684
    %v2686 = vand.u32 %v70, 4294901760
    %v2687 = vsub.f32 %v70, %v2686
    %2688 = vmatmul.mubr.f32.gmra.mxu0 %v2687
    %v2689 = vpop.f32.mrf.mxu0
    %v2690 = vadd.f32 %v1938, %v2689
    %v2691 = vpop.f32.mrf.mxu0
    %v2692 = vand.u32 %v73, 4294901760
    %v2693 = vsub.f32 %v73, %v2692
    %2694 = vmatprep.mubr.f32.mxu0 %v2693
    %v2695 = vand.u32 %v72, 4294901760
    %v2696 = vsub.f32 %v72, %v2695
    %2697 = vmatmul.mubr.f32.gmra.mxu0 %v2696
    %v2698 = vpop.f32.mrf.mxu0
    %v2699 = vadd.f32 %v1945, %v2698
    %v2700 = vpop.f32.mrf.mxu0
    %v2701 = vand.u32 %v75, 4294901760
    %v2702 = vsub.f32 %v75, %v2701
    %2703 = vmatprep.mubr.f32.mxu0 %v2702
    %v2704 = vand.u32 %v74, 4294901760
    %v2705 = vsub.f32 %v74, %v2704
    %2706 = vmatmul.mubr.f32.gmra.mxu0 %v2705
    %v2707 = vpop.f32.mrf.mxu0
    %v2708 = vadd.f32 %v1952, %v2707
    %v2709 = vpop.f32.mrf.mxu0
    %v2710 = vand.u32 %v77, 4294901760
    %v2711 = vsub.f32 %v77, %v2710
    %2712 = vmatprep.mubr.f32.mxu0 %v2711
    %v2713 = vand.u32 %v76, 4294901760
    %v2714 = vsub.f32 %v76, %v2713
    %2715 = vmatmul.mubr.f32.gmra.mxu0 %v2714
    %v2716 = vpop.f32.mrf.mxu0
    %v2717 = vadd.f32 %v1959, %v2716
    %v2718 = vpop.f32.mrf.mxu0
    %v2719 = vand.u32 %v79, 4294901760
    %v2720 = vsub.f32 %v79, %v2719
    %2721 = vmatprep.mubr.f32.mxu0 %v2720
    %v2722 = vand.u32 %v78, 4294901760
    %v2723 = vsub.f32 %v78, %v2722
    %2724 = vmatmul.mubr.f32.gmra.mxu0 %v2723
    %v2725 = vpop.f32.mrf.mxu0
    %v2726 = vadd.f32 %v1966, %v2725
    %v2727 = vpop.f32.mrf.mxu0
    %v2728 = vand.u32 %v81, 4294901760
    %v2729 = vsub.f32 %v81, %v2728
    %2730 = vmatprep.mubr.f32.mxu0 %v2729
    %v2731 = vand.u32 %v80, 4294901760
    %v2732 = vsub.f32 %v80, %v2731
    %2733 = vmatmul.mubr.f32.gmra.mxu0 %v2732
    %v2734 = vpop.f32.mrf.mxu0
    %v2735 = vadd.f32 %v1973, %v2734
    %v2736 = vpop.f32.mrf.mxu0
    %v2737 = vand.u32 %v83, 4294901760
    %v2738 = vsub.f32 %v83, %v2737
    %2739 = vmatprep.mubr.f32.mxu0 %v2738
    %v2740 = vand.u32 %v82, 4294901760
    %v2741 = vsub.f32 %v82, %v2740
    %2742 = vmatmul.mubr.f32.gmra.mxu0 %v2741
    %v2743 = vpop.f32.mrf.mxu0
    %v2744 = vadd.f32 %v1980, %v2743
    %v2745 = vpop.f32.mrf.mxu0
    %v2746 = vand.u32 %v85, 4294901760
    %v2747 = vsub.f32 %v85, %v2746
    %2748 = vmatprep.mubr.f32.mxu0 %v2747
    %v2749 = vand.u32 %v84, 4294901760
    %v2750 = vsub.f32 %v84, %v2749
    %2751 = vmatmul.mubr.f32.gmra.mxu0 %v2750
    %v2752 = vpop.f32.mrf.mxu0
    %v2753 = vadd.f32 %v1987, %v2752
    %v2754 = vpop.f32.mrf.mxu0
    %v2755 = vand.u32 %v87, 4294901760
    %v2756 = vsub.f32 %v87, %v2755
    %2757 = vmatprep.mubr.f32.mxu0 %v2756
    %v2758 = vand.u32 %v86, 4294901760
    %v2759 = vsub.f32 %v86, %v2758
    %2760 = vmatmul.mubr.f32.gmra.mxu0 %v2759
    %v2761 = vpop.f32.mrf.mxu0
    %v2762 = vadd.f32 %v1994, %v2761
    %v2763 = vpop.f32.mrf.mxu0
    %v2764 = vand.u32 %v89, 4294901760
    %v2765 = vsub.f32 %v89, %v2764
    %2766 = vmatprep.mubr.f32.mxu0 %v2765
    %v2767 = vand.u32 %v88, 4294901760
    %v2768 = vsub.f32 %v88, %v2767
    %2769 = vmatmul.mubr.f32.gmra.mxu0 %v2768
    %v2770 = vpop.f32.mrf.mxu0
    %v2771 = vadd.f32 %v2001, %v2770
    %v2772 = vpop.f32.mrf.mxu0
    %v2773 = vand.u32 %v91, 4294901760
    %v2774 = vsub.f32 %v91, %v2773
    %2775 = vmatprep.mubr.f32.mxu0 %v2774
    %v2776 = vand.u32 %v90, 4294901760
    %v2777 = vsub.f32 %v90, %v2776
    %2778 = vmatmul.mubr.f32.gmra.mxu0 %v2777
    %v2779 = vpop.f32.mrf.mxu0
    %v2780 = vadd.f32 %v2008, %v2779
    %v2781 = vpop.f32.mrf.mxu0
    %v2782 = vand.u32 %v93, 4294901760
    %v2783 = vsub.f32 %v93, %v2782
    %2784 = vmatprep.mubr.f32.mxu0 %v2783
    %v2785 = vand.u32 %v92, 4294901760
    %v2786 = vsub.f32 %v92, %v2785
    %2787 = vmatmul.mubr.f32.gmra.mxu0 %v2786
    %v2788 = vpop.f32.mrf.mxu0
    %v2789 = vadd.f32 %v2015, %v2788
    %v2790 = vpop.f32.mrf.mxu0
    %v2791 = vand.u32 %v95, 4294901760
    %v2792 = vsub.f32 %v95, %v2791
    %2793 = vmatprep.mubr.f32.mxu0 %v2792
    %v2794 = vand.u32 %v94, 4294901760
    %v2795 = vsub.f32 %v94, %v2794
    %2796 = vmatmul.mubr.f32.gmra.mxu0 %v2795
    %v2797 = vpop.f32.mrf.mxu0
    %v2798 = vadd.f32 %v2022, %v2797
    %v2799 = vpop.f32.mrf.mxu0
    %v2800 = vand.u32 %v97, 4294901760
    %v2801 = vsub.f32 %v97, %v2800
    %2802 = vmatprep.mubr.f32.mxu0 %v2801
    %v2803 = vand.u32 %v96, 4294901760
    %v2804 = vsub.f32 %v96, %v2803
    %2805 = vmatmul.mubr.f32.gmra.mxu0 %v2804
    %v2806 = vpop.f32.mrf.mxu0
    %v2807 = vadd.f32 %v2029, %v2806
    %v2808 = vpop.f32.mrf.mxu0
    %v2809 = vand.u32 %v99, 4294901760
    %v2810 = vsub.f32 %v99, %v2809
    %2811 = vmatprep.mubr.f32.mxu0 %v2810
    %v2812 = vand.u32 %v98, 4294901760
    %v2813 = vsub.f32 %v98, %v2812
    %2814 = vmatmul.mubr.f32.gmra.mxu0 %v2813
    %v2815 = vpop.f32.mrf.mxu0
    %v2816 = vadd.f32 %v2036, %v2815
    %v2817 = vpop.f32.mrf.mxu0
    %v2818 = vand.u32 %v101, 4294901760
    %v2819 = vsub.f32 %v101, %v2818
    %2820 = vmatprep.mubr.f32.mxu0 %v2819
    %v2821 = vand.u32 %v100, 4294901760
    %v2822 = vsub.f32 %v100, %v2821
    %2823 = vmatmul.mubr.f32.gmra.mxu0 %v2822
    %v2824 = vpop.f32.mrf.mxu0
    %v2825 = vadd.f32 %v2043, %v2824
    %v2826 = vpop.f32.mrf.mxu0
    %v2827 = vand.u32 %v103, 4294901760
    %v2828 = vsub.f32 %v103, %v2827
    %2829 = vmatprep.mubr.f32.mxu0 %v2828
    %v2830 = vand.u32 %v102, 4294901760
    %v2831 = vsub.f32 %v102, %v2830
    %2832 = vmatmul.mubr.f32.gmra.mxu0 %v2831
    %v2833 = vpop.f32.mrf.mxu0
    %v2834 = vadd.f32 %v2050, %v2833
    %v2835 = vpop.f32.mrf.mxu0
    %v2836 = vand.u32 %v105, 4294901760
    %v2837 = vsub.f32 %v105, %v2836
    %2838 = vmatprep.mubr.f32.mxu0 %v2837
    %v2839 = vand.u32 %v104, 4294901760
    %v2840 = vsub.f32 %v104, %v2839
    %2841 = vmatmul.mubr.f32.gmra.mxu0 %v2840
    %v2842 = vpop.f32.mrf.mxu0
    %v2843 = vadd.f32 %v2057, %v2842
    %v2844 = vpop.f32.mrf.mxu0
    %v2845 = vand.u32 %v107, 4294901760
    %v2846 = vsub.f32 %v107, %v2845
    %2847 = vmatprep.mubr.f32.mxu0 %v2846
    %v2848 = vand.u32 %v106, 4294901760
    %v2849 = vsub.f32 %v106, %v2848
    %2850 = vmatmul.mubr.f32.gmra.mxu0 %v2849
    %v2851 = vpop.f32.mrf.mxu0
    %v2852 = vadd.f32 %v2064, %v2851
    %v2853 = vpop.f32.mrf.mxu0
    %v2854 = vand.u32 %v109, 4294901760
    %v2855 = vsub.f32 %v109, %v2854
    %2856 = vmatprep.mubr.f32.mxu0 %v2855
    %v2857 = vand.u32 %v108, 4294901760
    %v2858 = vsub.f32 %v108, %v2857
    %2859 = vmatmul.mubr.f32.gmra.mxu0 %v2858
    %v2860 = vpop.f32.mrf.mxu0
    %v2861 = vadd.f32 %v2071, %v2860
    %v2862 = vpop.f32.mrf.mxu0
    %v2863 = vand.u32 %v111, 4294901760
    %v2864 = vsub.f32 %v111, %v2863
    %2865 = vmatprep.mubr.f32.mxu0 %v2864
    %v2866 = vand.u32 %v110, 4294901760
    %v2867 = vsub.f32 %v110, %v2866
    %2868 = vmatmul.mubr.f32.gmra.mxu0 %v2867
    %v2869 = vpop.f32.mrf.mxu0
    %v2870 = vadd.f32 %v2078, %v2869
    %v2871 = vpop.f32.mrf.mxu0
    %v2872 = vand.u32 %v113, 4294901760
    %v2873 = vsub.f32 %v113, %v2872
    %2874 = vmatprep.mubr.f32.mxu0 %v2873
    %v2875 = vand.u32 %v112, 4294901760
    %v2876 = vsub.f32 %v112, %v2875
    %2877 = vmatmul.mubr.f32.gmra.mxu0 %v2876
    %v2878 = vpop.f32.mrf.mxu0
    %v2879 = vadd.f32 %v2085, %v2878
    %v2880 = vpop.f32.mrf.mxu0
    %v2881 = vand.u32 %v115, 4294901760
    %v2882 = vsub.f32 %v115, %v2881
    %2883 = vmatprep.mubr.f32.mxu0 %v2882
    %v2884 = vand.u32 %v114, 4294901760
    %v2885 = vsub.f32 %v114, %v2884
    %2886 = vmatmul.mubr.f32.gmra.mxu0 %v2885
    %v2887 = vpop.f32.mrf.mxu0
    %v2888 = vadd.f32 %v2092, %v2887
    %v2889 = vpop.f32.mrf.mxu0
    %v2890 = vand.u32 %v117, 4294901760
    %v2891 = vsub.f32 %v117, %v2890
    %2892 = vmatprep.mubr.f32.mxu0 %v2891
    %v2893 = vand.u32 %v116, 4294901760
    %v2894 = vsub.f32 %v116, %v2893
    %2895 = vmatmul.mubr.f32.gmra.mxu0 %v2894
    %v2896 = vpop.f32.mrf.mxu0
    %v2897 = vadd.f32 %v2099, %v2896
    %v2898 = vpop.f32.mrf.mxu0
    %v2899 = vand.u32 %v119, 4294901760
    %v2900 = vsub.f32 %v119, %v2899
    %2901 = vmatprep.mubr.f32.mxu0 %v2900
    %v2902 = vand.u32 %v118, 4294901760
    %v2903 = vsub.f32 %v118, %v2902
    %2904 = vmatmul.mubr.f32.gmra.mxu0 %v2903
    %v2905 = vpop.f32.mrf.mxu0
    %v2906 = vadd.f32 %v2106, %v2905
    %v2907 = vpop.f32.mrf.mxu0
    %v2908 = vand.u32 %v121, 4294901760
    %v2909 = vsub.f32 %v121, %v2908
    %2910 = vmatprep.mubr.f32.mxu0 %v2909
    %v2911 = vand.u32 %v120, 4294901760
    %v2912 = vsub.f32 %v120, %v2911
    %2913 = vmatmul.mubr.f32.gmra.mxu0 %v2912
    %v2914 = vpop.f32.mrf.mxu0
    %v2915 = vadd.f32 %v2113, %v2914
    %v2916 = vpop.f32.mrf.mxu0
    %v2917 = vand.u32 %v123, 4294901760
    %v2918 = vsub.f32 %v123, %v2917
    %2919 = vmatprep.mubr.f32.mxu0 %v2918
    %v2920 = vand.u32 %v122, 4294901760
    %v2921 = vsub.f32 %v122, %v2920
    %2922 = vmatmul.mubr.f32.gmra.mxu0 %v2921
    %v2923 = vpop.f32.mrf.mxu0
    %v2924 = vadd.f32 %v2120, %v2923
    %v2925 = vpop.f32.mrf.mxu0
    %v2926 = vand.u32 %v125, 4294901760
    %v2927 = vsub.f32 %v125, %v2926
    %2928 = vmatprep.mubr.f32.mxu0 %v2927
    %v2929 = vand.u32 %v124, 4294901760
    %v2930 = vsub.f32 %v124, %v2929
    %2931 = vmatmul.mubr.f32.gmra.mxu0 %v2930
    %v2932 = vpop.f32.mrf.mxu0
    %v2933 = vadd.f32 %v2127, %v2932
    %v2934 = vpop.f32.mrf.mxu0
    %v2935 = vand.u32 %v127, 4294901760
    %v2936 = vsub.f32 %v127, %v2935
    %2937 = vmatprep.mubr.f32.mxu0 %v2936
    %v2938 = vand.u32 %v126, 4294901760
    %v2939 = vsub.f32 %v126, %v2938
    %2940 = vmatmul.mubr.f32.gmra.mxu0 %v2939
    %v2941 = vpop.f32.mrf.mxu0
    %v2942 = vadd.f32 %v2134, %v2941
    %v2943 = vpop.f32.mrf.mxu0
    %v2944 = vand.u32 %v129, 4294901760
    %v2945 = vsub.f32 %v129, %v2944
    %2946 = vmatprep.mubr.f32.mxu0 %v2945
    %v2947 = vand.u32 %v128, 4294901760
    %v2948 = vsub.f32 %v128, %v2947
    %2949 = vmatmul.mubr.f32.gmra.mxu0 %v2948
    %v2950 = vpop.f32.mrf.mxu0
    %v2951 = vadd.f32 %v2141, %v2950
    %v2952 = vpop.f32.mrf.mxu0
    %v2953 = vand.u32 %v131, 4294901760
    %v2954 = vsub.f32 %v131, %v2953
    %2955 = vmatprep.mubr.f32.mxu0 %v2954
    %v2956 = vand.u32 %v130, 4294901760
    %v2957 = vsub.f32 %v130, %v2956
    %2958 = vmatmul.mubr.f32.gmra.mxu0 %v2957
    %v2959 = vpop.f32.mrf.mxu0
    %v2960 = vadd.f32 %v2148, %v2959
    %v2961 = vpop.f32.mrf.mxu0
    %v2962 = vand.u32 %v133, 4294901760
    %v2963 = vsub.f32 %v133, %v2962
    %2964 = vmatprep.mubr.f32.mxu0 %v2963
    %v2965 = vand.u32 %v132, 4294901760
    %v2966 = vsub.f32 %v132, %v2965
    %2967 = vmatmul.mubr.f32.gmra.mxu0 %v2966
    %v2968 = vpop.f32.mrf.mxu0
    %v2969 = vadd.f32 %v2155, %v2968
    %v2970 = vpop.f32.mrf.mxu0
    %v2971 = vand.u32 %v135, 4294901760
    %v2972 = vsub.f32 %v135, %v2971
    %2973 = vmatprep.mubr.f32.mxu0 %v2972
    %v2974 = vand.u32 %v134, 4294901760
    %v2975 = vsub.f32 %v134, %v2974
    %2976 = vmatmul.mubr.f32.gmra.mxu0 %v2975
    %v2977 = vpop.f32.mrf.mxu0
    %v2978 = vadd.f32 %v2162, %v2977
    %v2979 = vpop.f32.mrf.mxu0
    %v2980 = vand.u32 %v137, 4294901760
    %v2981 = vsub.f32 %v137, %v2980
    %2982 = vmatprep.mubr.f32.mxu0 %v2981
    %v2983 = vand.u32 %v136, 4294901760
    %v2984 = vsub.f32 %v136, %v2983
    %2985 = vmatmul.mubr.f32.gmra.mxu0 %v2984
    %v2986 = vpop.f32.mrf.mxu0
    %v2987 = vadd.f32 %v2169, %v2986
    %v2988 = vpop.f32.mrf.mxu0
    %v2989 = vand.u32 %v139, 4294901760
    %v2990 = vsub.f32 %v139, %v2989
    %2991 = vmatprep.mubr.f32.mxu0 %v2990
    %v2992 = vand.u32 %v138, 4294901760
    %v2993 = vsub.f32 %v138, %v2992
    %2994 = vmatmul.mubr.f32.gmra.mxu0 %v2993
    %v2995 = vpop.f32.mrf.mxu0
    %v2996 = vadd.f32 %v2176, %v2995
    %v2997 = vpop.f32.mrf.mxu0
    %v2998 = vand.u32 %v141, 4294901760
    %v2999 = vsub.f32 %v141, %v2998
    %3000 = vmatprep.mubr.f32.mxu0 %v2999
    %v3001 = vand.u32 %v140, 4294901760
    %v3002 = vsub.f32 %v140, %v3001
    %3003 = vmatmul.mubr.f32.gmra.mxu0 %v3002
    %v3004 = vpop.f32.mrf.mxu0
    %v3005 = vadd.f32 %v2183, %v3004
    %v3006 = vpop.f32.mrf.mxu0
    %v3007 = vand.u32 %v143, 4294901760
    %v3008 = vsub.f32 %v143, %v3007
    %3009 = vmatprep.mubr.f32.mxu0 %v3008
    %v3010 = vand.u32 %v142, 4294901760
    %v3011 = vsub.f32 %v142, %v3010
    %3012 = vmatmul.mubr.f32.gmra.mxu0 %v3011
    %v3013 = vpop.f32.mrf.mxu0
    %v3014 = vadd.f32 %v2190, %v3013
    %v3015 = vpop.f32.mrf.mxu0
    %v3016 = vand.u32 %v145, 4294901760
    %v3017 = vsub.f32 %v145, %v3016
    %3018 = vmatprep.mubr.f32.mxu0 %v3017
    %v3019 = vand.u32 %v144, 4294901760
    %v3020 = vsub.f32 %v144, %v3019
    %3021 = vmatmul.mubr.f32.gmra.mxu0 %v3020
    %v3022 = vpop.f32.mrf.mxu0
    %v3023 = vadd.f32 %v2197, %v3022
    %v3024 = vpop.f32.mrf.mxu0
    %v3025 = vand.u32 %v147, 4294901760
    %v3026 = vsub.f32 %v147, %v3025
    %3027 = vmatprep.mubr.f32.mxu0 %v3026
    %v3028 = vand.u32 %v146, 4294901760
    %v3029 = vsub.f32 %v146, %v3028
    %3030 = vmatmul.mubr.f32.gmra.mxu0 %v3029
    %v3031 = vpop.f32.mrf.mxu0
    %v3032 = vadd.f32 %v2204, %v3031
    %v3033 = vpop.f32.mrf.mxu0
    %v3034 = vand.u32 %v149, 4294901760
    %v3035 = vsub.f32 %v149, %v3034
    %3036 = vmatprep.mubr.f32.mxu0 %v3035
    %v3037 = vand.u32 %v148, 4294901760
    %v3038 = vsub.f32 %v148, %v3037
    %3039 = vmatmul.mubr.f32.gmra.mxu0 %v3038
    %v3040 = vpop.f32.mrf.mxu0
    %v3041 = vadd.f32 %v2211, %v3040
    %v3042 = vpop.f32.mrf.mxu0
    %v3043 = vand.u32 %v151, 4294901760
    %v3044 = vsub.f32 %v151, %v3043
    %3045 = vmatprep.mubr.f32.mxu0 %v3044
    %v3046 = vand.u32 %v150, 4294901760
    %v3047 = vsub.f32 %v150, %v3046
    %3048 = vmatmul.mubr.f32.gmra.mxu0 %v3047
    %v3049 = vpop.f32.mrf.mxu0
    %v3050 = vadd.f32 %v2218, %v3049
    %v3051 = vpop.f32.mrf.mxu0
    %v3052 = vand.u32 %v153, 4294901760
    %v3053 = vsub.f32 %v153, %v3052
    %3054 = vmatprep.mubr.f32.mxu0 %v3053
    %v3055 = vand.u32 %v152, 4294901760
    %v3056 = vsub.f32 %v152, %v3055
    %3057 = vmatmul.mubr.f32.gmra.mxu0 %v3056
    %v3058 = vpop.f32.mrf.mxu0
    %v3059 = vadd.f32 %v2225, %v3058
    %v3060 = vpop.f32.mrf.mxu0
    %v3061 = vand.u32 %v155, 4294901760
    %v3062 = vsub.f32 %v155, %v3061
    %3063 = vmatprep.mubr.f32.mxu0 %v3062
    %v3064 = vand.u32 %v154, 4294901760
    %v3065 = vsub.f32 %v154, %v3064
    %3066 = vmatmul.mubr.f32.gmra.mxu0 %v3065
    %v3067 = vpop.f32.mrf.mxu0
    %v3068 = vadd.f32 %v2232, %v3067
    %v3069 = vpop.f32.mrf.mxu0
    %v3070 = vand.u32 %v157, 4294901760
    %v3071 = vsub.f32 %v157, %v3070
    %3072 = vmatprep.mubr.f32.mxu0 %v3071
    %v3073 = vand.u32 %v156, 4294901760
    %v3074 = vsub.f32 %v156, %v3073
    %3075 = vmatmul.mubr.f32.gmra.mxu0 %v3074
    %v3076 = vpop.f32.mrf.mxu0
    %v3077 = vadd.f32 %v2239, %v3076
    %v3078 = vpop.f32.mrf.mxu0
    %v3079 = vand.u32 %v159, 4294901760
    %v3080 = vsub.f32 %v159, %v3079
    %3081 = vmatprep.mubr.f32.mxu0 %v3080
    %v3082 = vand.u32 %v158, 4294901760
    %v3083 = vsub.f32 %v158, %v3082
    %3084 = vmatmul.mubr.f32.gmra.mxu0 %v3083
    %v3085 = vpop.f32.mrf.mxu0
    %v3086 = vadd.f32 %v2246, %v3085
    %v3087 = vpop.f32.mrf.mxu0
    %v3088 = vand.u32 %v161, 4294901760
    %v3089 = vsub.f32 %v161, %v3088
    %3090 = vmatprep.mubr.f32.mxu0 %v3089
    %v3091 = vand.u32 %v160, 4294901760
    %v3092 = vsub.f32 %v160, %v3091
    %3093 = vmatmul.mubr.f32.gmra.mxu0 %v3092
    %v3094 = vpop.f32.mrf.mxu0
    %v3095 = vadd.f32 %v2253, %v3094
    %v3096 = vpop.f32.mrf.mxu0
    %v3097 = vand.u32 %v163, 4294901760
    %v3098 = vsub.f32 %v163, %v3097
    %3099 = vmatprep.mubr.f32.mxu0 %v3098
    %v3100 = vand.u32 %v162, 4294901760
    %v3101 = vsub.f32 %v162, %v3100
    %3102 = vmatmul.mubr.f32.gmra.mxu0 %v3101
    %v3103 = vpop.f32.mrf.mxu0
    %v3104 = vadd.f32 %v2260, %v3103
    %v3105 = vpop.f32.mrf.mxu0
    %v3106 = vand.u32 %v165, 4294901760
    %v3107 = vsub.f32 %v165, %v3106
    %3108 = vmatprep.mubr.f32.mxu0 %v3107
    %v3109 = vand.u32 %v164, 4294901760
    %v3110 = vsub.f32 %v164, %v3109
    %3111 = vmatmul.mubr.f32.gmra.mxu0 %v3110
    %v3112 = vpop.f32.mrf.mxu0
    %v3113 = vadd.f32 %v2267, %v3112
    %v3114 = vpop.f32.mrf.mxu0
    %v3115 = vand.u32 %v167, 4294901760
    %v3116 = vsub.f32 %v167, %v3115
    %3117 = vmatprep.mubr.f32.mxu0 %v3116
    %v3118 = vand.u32 %v166, 4294901760
    %v3119 = vsub.f32 %v166, %v3118
    %3120 = vmatmul.mubr.f32.gmra.mxu0 %v3119
    %v3121 = vpop.f32.mrf.mxu0
    %v3122 = vadd.f32 %v2274, %v3121
    %v3123 = vpop.f32.mrf.mxu0
    %v3124 = vand.u32 %v169, 4294901760
    %v3125 = vsub.f32 %v169, %v3124
    %3126 = vmatprep.mubr.f32.mxu0 %v3125
    %v3127 = vand.u32 %v168, 4294901760
    %v3128 = vsub.f32 %v168, %v3127
    %3129 = vmatmul.mubr.f32.gmra.mxu0 %v3128
    %v3130 = vpop.f32.mrf.mxu0
    %v3131 = vadd.f32 %v2281, %v3130
    %v3132 = vpop.f32.mrf.mxu0
    %v3133 = vand.u32 %v171, 4294901760
    %v3134 = vsub.f32 %v171, %v3133
    %3135 = vmatprep.mubr.f32.mxu0 %v3134
    %v3136 = vand.u32 %v170, 4294901760
    %v3137 = vsub.f32 %v170, %v3136
    %3138 = vmatmul.mubr.f32.gmra.mxu0 %v3137
    %v3139 = vpop.f32.mrf.mxu0
    %v3140 = vadd.f32 %v2288, %v3139
    %v3141 = vpop.f32.mrf.mxu0
    %v3142 = vand.u32 %v173, 4294901760
    %v3143 = vsub.f32 %v173, %v3142
    %3144 = vmatprep.mubr.f32.mxu0 %v3143
    %v3145 = vand.u32 %v172, 4294901760
    %v3146 = vsub.f32 %v172, %v3145
    %3147 = vmatmul.mubr.f32.gmra.mxu0 %v3146
    %v3148 = vpop.f32.mrf.mxu0
    %v3149 = vadd.f32 %v2295, %v3148
    %v3150 = vpop.f32.mrf.mxu0
    %v3151 = vand.u32 %v175, 4294901760
    %v3152 = vsub.f32 %v175, %v3151
    %3153 = vmatprep.mubr.f32.mxu0 %v3152
    %v3154 = vand.u32 %v174, 4294901760
    %v3155 = vsub.f32 %v174, %v3154
    %3156 = vmatmul.mubr.f32.gmra.mxu0 %v3155
    %v3157 = vpop.f32.mrf.mxu0
    %v3158 = vadd.f32 %v2302, %v3157
    %v3159 = vpop.f32.mrf.mxu0
    %v3160 = vand.u32 %v177, 4294901760
    %v3161 = vsub.f32 %v177, %v3160
    %3162 = vmatprep.mubr.f32.mxu0 %v3161
    %v3163 = vand.u32 %v176, 4294901760
    %v3164 = vsub.f32 %v176, %v3163
    %3165 = vmatmul.mubr.f32.gmra.mxu0 %v3164
    %v3166 = vpop.f32.mrf.mxu0
    %v3167 = vadd.f32 %v2309, %v3166
    %v3168 = vpop.f32.mrf.mxu0
    %v3169 = vand.u32 %v179, 4294901760
    %v3170 = vsub.f32 %v179, %v3169
    %3171 = vmatprep.mubr.f32.mxu0 %v3170
    %v3172 = vand.u32 %v178, 4294901760
    %v3173 = vsub.f32 %v178, %v3172
    %3174 = vmatmul.mubr.f32.gmra.mxu0 %v3173
    %v3175 = vpop.f32.mrf.mxu0
    %v3176 = vadd.f32 %v2316, %v3175
    %v3177 = vpop.f32.mrf.mxu0
    %v3178 = vand.u32 %v181, 4294901760
    %v3179 = vsub.f32 %v181, %v3178
    %3180 = vmatprep.mubr.f32.mxu0 %v3179
    %v3181 = vand.u32 %v180, 4294901760
    %v3182 = vsub.f32 %v180, %v3181
    %3183 = vmatmul.mubr.f32.gmra.mxu0 %v3182
    %v3184 = vpop.f32.mrf.mxu0
    %v3185 = vadd.f32 %v2323, %v3184
    %v3186 = vpop.f32.mrf.mxu0
    %v3187 = vand.u32 %v183, 4294901760
    %v3188 = vsub.f32 %v183, %v3187
    %3189 = vmatprep.mubr.f32.mxu0 %v3188
    %v3190 = vand.u32 %v182, 4294901760
    %v3191 = vsub.f32 %v182, %v3190
    %3192 = vmatmul.mubr.f32.gmra.mxu0 %v3191
    %v3193 = vpop.f32.mrf.mxu0
    %v3194 = vadd.f32 %v2330, %v3193
    %v3195 = vpop.f32.mrf.mxu0
    %v3196 = vand.u32 %v185, 4294901760
    %v3197 = vsub.f32 %v185, %v3196
    %3198 = vmatprep.mubr.f32.mxu0 %v3197
    %v3199 = vand.u32 %v184, 4294901760
    %v3200 = vsub.f32 %v184, %v3199
    %3201 = vmatmul.mubr.f32.gmra.mxu0 %v3200
    %v3202 = vpop.f32.mrf.mxu0
    %v3203 = vadd.f32 %v2337, %v3202
    %v3204 = vpop.f32.mrf.mxu0
    %v3205 = vand.u32 %v187, 4294901760
    %v3206 = vsub.f32 %v187, %v3205
    %3207 = vmatprep.mubr.f32.mxu0 %v3206
    %v3208 = vand.u32 %v186, 4294901760
    %v3209 = vsub.f32 %v186, %v3208
    %3210 = vmatmul.mubr.f32.gmra.mxu0 %v3209
    %v3211 = vpop.f32.mrf.mxu0
    %v3212 = vadd.f32 %v2344, %v3211
    %v3213 = vpop.f32.mrf.mxu0
    %v3214 = vand.u32 %v189, 4294901760
    %v3215 = vsub.f32 %v189, %v3214
    %3216 = vmatprep.mubr.f32.mxu0 %v3215
    %v3217 = vand.u32 %v188, 4294901760
    %v3218 = vsub.f32 %v188, %v3217
    %3219 = vmatmul.mubr.f32.gmra.mxu0 %v3218
    %v3220 = vpop.f32.mrf.mxu0
    %v3221 = vadd.f32 %v2351, %v3220
    %v3222 = vpop.f32.mrf.mxu0
    %v3223 = vand.u32 %v191, 4294901760
    %v3224 = vsub.f32 %v191, %v3223
    %3225 = vmatprep.mubr.f32.mxu0 %v3224
    %v3226 = vand.u32 %v190, 4294901760
    %v3227 = vsub.f32 %v190, %v3226
    %3228 = vmatmul.mubr.f32.gmra.mxu0 %v3227
    %v3229 = vpop.f32.mrf.mxu0
    %v3230 = vadd.f32 %v2358, %v3229
    %v3231 = vpop.f32.mrf.mxu0
    %v3232 = vand.u32 %v193, 4294901760
    %v3233 = vsub.f32 %v193, %v3232
    %3234 = vmatprep.mubr.f32.mxu0 %v3233
    %v3235 = vand.u32 %v192, 4294901760
    %v3236 = vsub.f32 %v192, %v3235
    %3237 = vmatmul.mubr.f32.gmra.mxu0 %v3236
    %v3238 = vpop.f32.mrf.mxu0
    %v3239 = vadd.f32 %v2365, %v3238
    %v3240 = vpop.f32.mrf.mxu0
    %v3241 = vand.u32 %v195, 4294901760
    %v3242 = vsub.f32 %v195, %v3241
    %3243 = vmatprep.mubr.f32.mxu0 %v3242
    %v3244 = vand.u32 %v194, 4294901760
    %v3245 = vsub.f32 %v194, %v3244
    %3246 = vmatmul.mubr.f32.gmra.mxu0 %v3245
    %v3247 = vpop.f32.mrf.mxu0
    %v3248 = vadd.f32 %v2372, %v3247
    %v3249 = vpop.f32.mrf.mxu0
    %v3250 = vand.u32 %v197, 4294901760
    %v3251 = vsub.f32 %v197, %v3250
    %3252 = vmatprep.mubr.f32.mxu0 %v3251
    %v3253 = vand.u32 %v196, 4294901760
    %v3254 = vsub.f32 %v196, %v3253
    %3255 = vmatmul.mubr.f32.gmra.mxu0 %v3254
    %v3256 = vpop.f32.mrf.mxu0
    %v3257 = vadd.f32 %v2379, %v3256
    %v3258 = vpop.f32.mrf.mxu0
    %v3259 = vand.u32 %v199, 4294901760
    %v3260 = vsub.f32 %v199, %v3259
    %3261 = vmatprep.mubr.f32.mxu0 %v3260
    %v3262 = vand.u32 %v198, 4294901760
    %v3263 = vsub.f32 %v198, %v3262
    %3264 = vmatmul.mubr.f32.gmra.mxu0 %v3263
    %v3265 = vpop.f32.mrf.mxu0
    %v3266 = vadd.f32 %v2386, %v3265
    %v3267 = vpop.f32.mrf.mxu0
    %v3268 = vand.u32 %v201, 4294901760
    %v3269 = vsub.f32 %v201, %v3268
    %3270 = vmatprep.mubr.f32.mxu0 %v3269
    %v3271 = vand.u32 %v200, 4294901760
    %v3272 = vsub.f32 %v200, %v3271
    %3273 = vmatmul.mubr.f32.gmra.mxu0 %v3272
    %v3274 = vpop.f32.mrf.mxu0
    %v3275 = vadd.f32 %v2393, %v3274
    %v3276 = vpop.f32.mrf.mxu0
    %v3277 = vand.u32 %v203, 4294901760
    %v3278 = vsub.f32 %v203, %v3277
    %3279 = vmatprep.mubr.f32.mxu0 %v3278
    %v3280 = vand.u32 %v202, 4294901760
    %v3281 = vsub.f32 %v202, %v3280
    %3282 = vmatmul.mubr.f32.gmra.mxu0 %v3281
    %v3283 = vpop.f32.mrf.mxu0
    %v3284 = vadd.f32 %v2400, %v3283
    %v3285 = vpop.f32.mrf.mxu0
    %v3286 = vand.u32 %v205, 4294901760
    %v3287 = vsub.f32 %v205, %v3286
    %3288 = vmatprep.mubr.f32.mxu0 %v3287
    %v3289 = vand.u32 %v204, 4294901760
    %v3290 = vsub.f32 %v204, %v3289
    %3291 = vmatmul.mubr.f32.gmra.mxu0 %v3290
    %v3292 = vpop.f32.mrf.mxu0
    %v3293 = vadd.f32 %v2407, %v3292
    %v3294 = vpop.f32.mrf.mxu0
    %v3295 = vand.u32 %v207, 4294901760
    %v3296 = vsub.f32 %v207, %v3295
    %3297 = vmatprep.mubr.f32.mxu0 %v3296
    %v3298 = vand.u32 %v206, 4294901760
    %v3299 = vsub.f32 %v206, %v3298
    %3300 = vmatmul.mubr.f32.gmra.mxu0 %v3299
    %v3301 = vpop.f32.mrf.mxu0
    %v3302 = vadd.f32 %v2414, %v3301
    %v3303 = vpop.f32.mrf.mxu0
    %v3304 = vand.u32 %v209, 4294901760
    %v3305 = vsub.f32 %v209, %v3304
    %3306 = vmatprep.mubr.f32.mxu0 %v3305
    %v3307 = vand.u32 %v208, 4294901760
    %v3308 = vsub.f32 %v208, %v3307
    %3309 = vmatmul.mubr.f32.gmra.mxu0 %v3308
    %v3310 = vpop.f32.mrf.mxu0
    %v3311 = vadd.f32 %v2421, %v3310
    %v3312 = vpop.f32.mrf.mxu0
    %v3313 = vand.u32 %v211, 4294901760
    %v3314 = vsub.f32 %v211, %v3313
    %3315 = vmatprep.mubr.f32.mxu0 %v3314
    %v3316 = vand.u32 %v210, 4294901760
    %v3317 = vsub.f32 %v210, %v3316
    %3318 = vmatmul.mubr.f32.gmra.mxu0 %v3317
    %v3319 = vpop.f32.mrf.mxu0
    %v3320 = vadd.f32 %v2428, %v3319
    %v3321 = vpop.f32.mrf.mxu0
    %v3322 = vand.u32 %v213, 4294901760
    %v3323 = vsub.f32 %v213, %v3322
    %3324 = vmatprep.mubr.f32.mxu0 %v3323
    %v3325 = vand.u32 %v212, 4294901760
    %v3326 = vsub.f32 %v212, %v3325
    %3327 = vmatmul.mubr.f32.gmra.mxu0 %v3326
    %v3328 = vpop.f32.mrf.mxu0
    %v3329 = vadd.f32 %v2435, %v3328
    %v3330 = vpop.f32.mrf.mxu0
    %3331 = vdwg.mxu0
    %3332 = vmatprep.subr.mxu0 0.0
    %v3333 = vand.u32 %v229, 4294901760
    %3334 = vmatpush1.msra.mxu0 %v3333
    %3335 = vmatprep.subr.mxu0 0.0
    %v3336 = vand.u32 %v228, 4294901760
    %3337 = vmatpush1.msra.mxu0 %v3336
    %3338 = vmatprep.subr.mxu0 0.0
    %v3339 = vand.u32 %v227, 4294901760
    %3340 = vmatpush1.msra.mxu0 %v3339
    %3341 = vmatprep.subr.mxu0 0.0
    %v3342 = vand.u32 %v226, 4294901760
    %3343 = vmatpush1.msra.mxu0 %v3342
    %3344 = vmatprep.subr.mxu0 0.0
    %v3345 = vand.u32 %v225, 4294901760
    %3346 = vmatpush1.msra.mxu0 %v3345
    %3347 = vmatprep.subr.mxu0 0.0
    %v3348 = vand.u32 %v224, 4294901760
    %3349 = vmatpush1.msra.mxu0 %v3348
    %3350 = vmatprep.subr.mxu0 0.0
    %v3351 = vand.u32 %v223, 4294901760
    %3352 = vmatpush1.msra.mxu0 %v3351
    %3353 = vmatprep.subr.mxu0 0.0
    %v3354 = vand.u32 %v222, 4294901760
    %3355 = vmatpush1.msra.mxu0 %v3354
    %3356 = vmatprep.subr.mxu0 0.0
    %v3357 = vand.u32 %v221, 4294901760
    %3358 = vmatpush1.msra.mxu0 %v3357
    %3359 = vmatprep.subr.mxu0 0.0
    %v3360 = vand.u32 %v220, 4294901760
    %3361 = vmatpush1.msra.mxu0 %v3360
    %3362 = vmatprep.subr.mxu0 0.0
    %v3363 = vand.u32 %v219, 4294901760
    %3364 = vmatpush1.msra.mxu0 %v3363
    %3365 = vmatprep.subr.mxu0 0.0
    %v3366 = vand.u32 %v218, 4294901760
    %3367 = vmatpush1.msra.mxu0 %v3366
    %3368 = vmatprep.subr.mxu0 0.0
    %v3369 = vand.u32 %v217, 4294901760
    %3370 = vmatpush1.msra.mxu0 %v3369
    %3371 = vmatprep.subr.mxu0 0.0
    %v3372 = vand.u32 %v216, 4294901760
    %3373 = vmatpush1.msra.mxu0 %v3372
    %3374 = vmatprep.subr.mxu0 0.0
    %v3375 = vand.u32 %v215, 4294901760
    %3376 = vmatpush1.msra.mxu0 %v3375
    %3377 = vmatprep.subr.mxu0 0.0
    %v3378 = vand.u32 %v214, 4294901760
    %3379 = vmatpush1.msra.mxu0 %v3378
    %3380 = vmatprep.subr.mxu0 0.0
    %v3381 = vand.u32 %v245, 4294901760
    %3382 = vmatpush2.msra.mxu0 %v3381
    %3383 = vmatprep.subr.mxu0 0.0
    %v3384 = vand.u32 %v244, 4294901760
    %3385 = vmatpush2.msra.mxu0 %v3384
    %3386 = vmatprep.subr.mxu0 0.0
    %v3387 = vand.u32 %v243, 4294901760
    %3388 = vmatpush2.msra.mxu0 %v3387
    %3389 = vmatprep.subr.mxu0 0.0
    %v3390 = vand.u32 %v242, 4294901760
    %3391 = vmatpush2.msra.mxu0 %v3390
    %3392 = vmatprep.subr.mxu0 0.0
    %v3393 = vand.u32 %v241, 4294901760
    %3394 = vmatpush2.msra.mxu0 %v3393
    %3395 = vmatprep.subr.mxu0 0.0
    %v3396 = vand.u32 %v240, 4294901760
    %3397 = vmatpush2.msra.mxu0 %v3396
    %3398 = vmatprep.subr.mxu0 0.0
    %v3399 = vand.u32 %v239, 4294901760
    %3400 = vmatpush2.msra.mxu0 %v3399
    %3401 = vmatprep.subr.mxu0 0.0
    %v3402 = vand.u32 %v238, 4294901760
    %3403 = vmatpush2.msra.mxu0 %v3402
    %3404 = vmatprep.subr.mxu0 0.0
    %v3405 = vand.u32 %v237, 4294901760
    %3406 = vmatpush2.msra.mxu0 %v3405
    %3407 = vmatprep.subr.mxu0 0.0
    %v3408 = vand.u32 %v236, 4294901760
    %3409 = vmatpush2.msra.mxu0 %v3408
    %3410 = vmatprep.subr.mxu0 0.0
    %v3411 = vand.u32 %v235, 4294901760
    %3412 = vmatpush2.msra.mxu0 %v3411
    %3413 = vmatprep.subr.mxu0 0.0
    %v3414 = vand.u32 %v234, 4294901760
    %3415 = vmatpush2.msra.mxu0 %v3414
    %3416 = vmatprep.subr.mxu0 0.0
    %v3417 = vand.u32 %v233, 4294901760
    %3418 = vmatpush2.msra.mxu0 %v3417
    %3419 = vmatprep.subr.mxu0 0.0
    %v3420 = vand.u32 %v232, 4294901760
    %3421 = vmatpush2.msra.mxu0 %v3420
    %3422 = vmatprep.subr.mxu0 0.0
    %v3423 = vand.u32 %v231, 4294901760
    %3424 = vmatpush2.msra.mxu0 %v3423
    %3425 = vmatprep.subr.mxu0 0.0
    %v3426 = vand.u32 %v230, 4294901760
    %3427 = vmatpush2.msra.mxu0 %v3426
    %v3428 = vand.u32 %v45, 4294901760
    %v3429 = vsub.f32 %v45, %v3428
    %v3430 = vand.u32 %v3429, 4294901760
    %3431 = vmatprep.mubr.f32.mxu0 %v3430
    %v3432 = vand.u32 %v44, 4294901760
    %v3433 = vsub.f32 %v44, %v3432
    %v3434 = vand.u32 %v3433, 4294901760
    %3435 = vmatmul.mubr.f32.gmra.mxu0 %v3434
    %v3436 = vpop.f32.mrf.mxu0
    %v3437 = vadd.f32 %v2573, %v3436
    %v3438 = vpop.f32.mrf.mxu0
    %v3439 = vand.u32 %v47, 4294901760
    %v3440 = vsub.f32 %v47, %v3439
    %v3441 = vand.u32 %v3440, 4294901760
    %3442 = vmatprep.mubr.f32.mxu0 %v3441
    %v3443 = vand.u32 %v46, 4294901760
    %v3444 = vsub.f32 %v46, %v3443
    %v3445 = vand.u32 %v3444, 4294901760
    %3446 = vmatmul.mubr.f32.gmra.mxu0 %v3445
    %v3447 = vpop.f32.mrf.mxu0
    %v3448 = vadd.f32 %v2582, %v3447
    %v3449 = vpop.f32.mrf.mxu0
    %v3450 = vand.u32 %v49, 4294901760
    %v3451 = vsub.f32 %v49, %v3450
    %v3452 = vand.u32 %v3451, 4294901760
    %3453 = vmatprep.mubr.f32.mxu0 %v3452
    %v3454 = vand.u32 %v48, 4294901760
    %v3455 = vsub.f32 %v48, %v3454
    %v3456 = vand.u32 %v3455, 4294901760
    %3457 = vmatmul.mubr.f32.gmra.mxu0 %v3456
    %v3458 = vpop.f32.mrf.mxu0
    %v3459 = vadd.f32 %v2591, %v3458
    %v3460 = vpop.f32.mrf.mxu0
    %v3461 = vand.u32 %v51, 4294901760
    %v3462 = vsub.f32 %v51, %v3461
    %v3463 = vand.u32 %v3462, 4294901760
    %3464 = vmatprep.mubr.f32.mxu0 %v3463
    %v3465 = vand.u32 %v50, 4294901760
    %v3466 = vsub.f32 %v50, %v3465
    %v3467 = vand.u32 %v3466, 4294901760
    %3468 = vmatmul.mubr.f32.gmra.mxu0 %v3467
    %v3469 = vpop.f32.mrf.mxu0
    %v3470 = vadd.f32 %v2600, %v3469
    %v3471 = vpop.f32.mrf.mxu0
    %v3472 = vand.u32 %v53, 4294901760
    %v3473 = vsub.f32 %v53, %v3472
    %v3474 = vand.u32 %v3473, 4294901760
    %3475 = vmatprep.mubr.f32.mxu0 %v3474
    %v3476 = vand.u32 %v52, 4294901760
    %v3477 = vsub.f32 %v52, %v3476
    %v3478 = vand.u32 %v3477, 4294901760
    %3479 = vmatmul.mubr.f32.gmra.mxu0 %v3478
    %v3480 = vpop.f32.mrf.mxu0
    %v3481 = vadd.f32 %v2609, %v3480
    %v3482 = vpop.f32.mrf.mxu0
    %v3483 = vand.u32 %v55, 4294901760
    %v3484 = vsub.f32 %v55, %v3483
    %v3485 = vand.u32 %v3484, 4294901760
    %3486 = vmatprep.mubr.f32.mxu0 %v3485
    %v3487 = vand.u32 %v54, 4294901760
    %v3488 = vsub.f32 %v54, %v3487
    %v3489 = vand.u32 %v3488, 4294901760
    %3490 = vmatmul.mubr.f32.gmra.mxu0 %v3489
    %v3491 = vpop.f32.mrf.mxu0
    %v3492 = vadd.f32 %v2618, %v3491
    %v3493 = vpop.f32.mrf.mxu0
    %v3494 = vand.u32 %v57, 4294901760
    %v3495 = vsub.f32 %v57, %v3494
    %v3496 = vand.u32 %v3495, 4294901760
    %3497 = vmatprep.mubr.f32.mxu0 %v3496
    %v3498 = vand.u32 %v56, 4294901760
    %v3499 = vsub.f32 %v56, %v3498
    %v3500 = vand.u32 %v3499, 4294901760
    %3501 = vmatmul.mubr.f32.gmra.mxu0 %v3500
    %v3502 = vpop.f32.mrf.mxu0
    %v3503 = vadd.f32 %v2627, %v3502
    %v3504 = vpop.f32.mrf.mxu0
    %v3505 = vand.u32 %v59, 4294901760
    %v3506 = vsub.f32 %v59, %v3505
    %v3507 = vand.u32 %v3506, 4294901760
    %3508 = vmatprep.mubr.f32.mxu0 %v3507
    %v3509 = vand.u32 %v58, 4294901760
    %v3510 = vsub.f32 %v58, %v3509
    %v3511 = vand.u32 %v3510, 4294901760
    %3512 = vmatmul.mubr.f32.gmra.mxu0 %v3511
    %v3513 = vpop.f32.mrf.mxu0
    %v3514 = vadd.f32 %v2636, %v3513
    %v3515 = vpop.f32.mrf.mxu0
    %v3516 = vand.u32 %v61, 4294901760
    %v3517 = vsub.f32 %v61, %v3516
    %v3518 = vand.u32 %v3517, 4294901760
    %3519 = vmatprep.mubr.f32.mxu0 %v3518
    %v3520 = vand.u32 %v60, 4294901760
    %v3521 = vsub.f32 %v60, %v3520
    %v3522 = vand.u32 %v3521, 4294901760
    %3523 = vmatmul.mubr.f32.gmra.mxu0 %v3522
    %v3524 = vpop.f32.mrf.mxu0
    %v3525 = vadd.f32 %v2645, %v3524
    %v3526 = vpop.f32.mrf.mxu0
    %v3527 = vand.u32 %v63, 4294901760
    %v3528 = vsub.f32 %v63, %v3527
    %v3529 = vand.u32 %v3528, 4294901760
    %3530 = vmatprep.mubr.f32.mxu0 %v3529
    %v3531 = vand.u32 %v62, 4294901760
    %v3532 = vsub.f32 %v62, %v3531
    %v3533 = vand.u32 %v3532, 4294901760
    %3534 = vmatmul.mubr.f32.gmra.mxu0 %v3533
    %v3535 = vpop.f32.mrf.mxu0
    %v3536 = vadd.f32 %v2654, %v3535
    %v3537 = vpop.f32.mrf.mxu0
    %v3538 = vand.u32 %v65, 4294901760
    %v3539 = vsub.f32 %v65, %v3538
    %v3540 = vand.u32 %v3539, 4294901760
    %3541 = vmatprep.mubr.f32.mxu0 %v3540
    %v3542 = vand.u32 %v64, 4294901760
    %v3543 = vsub.f32 %v64, %v3542
    %v3544 = vand.u32 %v3543, 4294901760
    %3545 = vmatmul.mubr.f32.gmra.mxu0 %v3544
    %v3546 = vpop.f32.mrf.mxu0
    %v3547 = vadd.f32 %v2663, %v3546
    %v3548 = vpop.f32.mrf.mxu0
    %v3549 = vand.u32 %v67, 4294901760
    %v3550 = vsub.f32 %v67, %v3549
    %v3551 = vand.u32 %v3550, 4294901760
    %3552 = vmatprep.mubr.f32.mxu0 %v3551
    %v3553 = vand.u32 %v66, 4294901760
    %v3554 = vsub.f32 %v66, %v3553
    %v3555 = vand.u32 %v3554, 4294901760
    %3556 = vmatmul.mubr.f32.gmra.mxu0 %v3555
    %v3557 = vpop.f32.mrf.mxu0
    %v3558 = vadd.f32 %v2672, %v3557
    %v3559 = vpop.f32.mrf.mxu0
    %v3560 = vand.u32 %v69, 4294901760
    %v3561 = vsub.f32 %v69, %v3560
    %v3562 = vand.u32 %v3561, 4294901760
    %3563 = vmatprep.mubr.f32.mxu0 %v3562
    %v3564 = vand.u32 %v68, 4294901760
    %v3565 = vsub.f32 %v68, %v3564
    %v3566 = vand.u32 %v3565, 4294901760
    %3567 = vmatmul.mubr.f32.gmra.mxu0 %v3566
    %v3568 = vpop.f32.mrf.mxu0
    %v3569 = vadd.f32 %v2681, %v3568
    %v3570 = vpop.f32.mrf.mxu0
    %v3571 = vand.u32 %v71, 4294901760
    %v3572 = vsub.f32 %v71, %v3571
    %v3573 = vand.u32 %v3572, 4294901760
    %3574 = vmatprep.mubr.f32.mxu0 %v3573
    %v3575 = vand.u32 %v70, 4294901760
    %v3576 = vsub.f32 %v70, %v3575
    %v3577 = vand.u32 %v3576, 4294901760
    %3578 = vmatmul.mubr.f32.gmra.mxu0 %v3577
    %v3579 = vpop.f32.mrf.mxu0
    %v3580 = vadd.f32 %v2690, %v3579
    %v3581 = vpop.f32.mrf.mxu0
    %v3582 = vand.u32 %v73, 4294901760
    %v3583 = vsub.f32 %v73, %v3582
    %v3584 = vand.u32 %v3583, 4294901760
    %3585 = vmatprep.mubr.f32.mxu0 %v3584
    %v3586 = vand.u32 %v72, 4294901760
    %v3587 = vsub.f32 %v72, %v3586
    %v3588 = vand.u32 %v3587, 4294901760
    %3589 = vmatmul.mubr.f32.gmra.mxu0 %v3588
    %v3590 = vpop.f32.mrf.mxu0
    %v3591 = vadd.f32 %v2699, %v3590
    %v3592 = vpop.f32.mrf.mxu0
    %v3593 = vand.u32 %v75, 4294901760
    %v3594 = vsub.f32 %v75, %v3593
    %v3595 = vand.u32 %v3594, 4294901760
    %3596 = vmatprep.mubr.f32.mxu0 %v3595
    %v3597 = vand.u32 %v74, 4294901760
    %v3598 = vsub.f32 %v74, %v3597
    %v3599 = vand.u32 %v3598, 4294901760
    %3600 = vmatmul.mubr.f32.gmra.mxu0 %v3599
    %v3601 = vpop.f32.mrf.mxu0
    %v3602 = vadd.f32 %v2708, %v3601
    %v3603 = vpop.f32.mrf.mxu0
    %v3604 = vand.u32 %v77, 4294901760
    %v3605 = vsub.f32 %v77, %v3604
    %v3606 = vand.u32 %v3605, 4294901760
    %3607 = vmatprep.mubr.f32.mxu0 %v3606
    %v3608 = vand.u32 %v76, 4294901760
    %v3609 = vsub.f32 %v76, %v3608
    %v3610 = vand.u32 %v3609, 4294901760
    %3611 = vmatmul.mubr.f32.gmra.mxu0 %v3610
    %v3612 = vpop.f32.mrf.mxu0
    %v3613 = vadd.f32 %v2717, %v3612
    %v3614 = vpop.f32.mrf.mxu0
    %v3615 = vand.u32 %v79, 4294901760
    %v3616 = vsub.f32 %v79, %v3615
    %v3617 = vand.u32 %v3616, 4294901760
    %3618 = vmatprep.mubr.f32.mxu0 %v3617
    %v3619 = vand.u32 %v78, 4294901760
    %v3620 = vsub.f32 %v78, %v3619
    %v3621 = vand.u32 %v3620, 4294901760
    %3622 = vmatmul.mubr.f32.gmra.mxu0 %v3621
    %v3623 = vpop.f32.mrf.mxu0
    %v3624 = vadd.f32 %v2726, %v3623
    %v3625 = vpop.f32.mrf.mxu0
    %v3626 = vand.u32 %v81, 4294901760
    %v3627 = vsub.f32 %v81, %v3626
    %v3628 = vand.u32 %v3627, 4294901760
    %3629 = vmatprep.mubr.f32.mxu0 %v3628
    %v3630 = vand.u32 %v80, 4294901760
    %v3631 = vsub.f32 %v80, %v3630
    %v3632 = vand.u32 %v3631, 4294901760
    %3633 = vmatmul.mubr.f32.gmra.mxu0 %v3632
    %v3634 = vpop.f32.mrf.mxu0
    %v3635 = vadd.f32 %v2735, %v3634
    %v3636 = vpop.f32.mrf.mxu0
    %v3637 = vand.u32 %v83, 4294901760
    %v3638 = vsub.f32 %v83, %v3637
    %v3639 = vand.u32 %v3638, 4294901760
    %3640 = vmatprep.mubr.f32.mxu0 %v3639
    %v3641 = vand.u32 %v82, 4294901760
    %v3642 = vsub.f32 %v82, %v3641
    %v3643 = vand.u32 %v3642, 4294901760
    %3644 = vmatmul.mubr.f32.gmra.mxu0 %v3643
    %v3645 = vpop.f32.mrf.mxu0
    %v3646 = vadd.f32 %v2744, %v3645
    %v3647 = vpop.f32.mrf.mxu0
    %v3648 = vand.u32 %v85, 4294901760
    %v3649 = vsub.f32 %v85, %v3648
    %v3650 = vand.u32 %v3649, 4294901760
    %3651 = vmatprep.mubr.f32.mxu0 %v3650
    %v3652 = vand.u32 %v84, 4294901760
    %v3653 = vsub.f32 %v84, %v3652
    %v3654 = vand.u32 %v3653, 4294901760
    %3655 = vmatmul.mubr.f32.gmra.mxu0 %v3654
    %v3656 = vpop.f32.mrf.mxu0
    %v3657 = vadd.f32 %v2753, %v3656
    %v3658 = vpop.f32.mrf.mxu0
    %v3659 = vand.u32 %v87, 4294901760
    %v3660 = vsub.f32 %v87, %v3659
    %v3661 = vand.u32 %v3660, 4294901760
    %3662 = vmatprep.mubr.f32.mxu0 %v3661
    %v3663 = vand.u32 %v86, 4294901760
    %v3664 = vsub.f32 %v86, %v3663
    %v3665 = vand.u32 %v3664, 4294901760
    %3666 = vmatmul.mubr.f32.gmra.mxu0 %v3665
    %v3667 = vpop.f32.mrf.mxu0
    %v3668 = vadd.f32 %v2762, %v3667
    %v3669 = vpop.f32.mrf.mxu0
    %v3670 = vand.u32 %v89, 4294901760
    %v3671 = vsub.f32 %v89, %v3670
    %v3672 = vand.u32 %v3671, 4294901760
    %3673 = vmatprep.mubr.f32.mxu0 %v3672
    %v3674 = vand.u32 %v88, 4294901760
    %v3675 = vsub.f32 %v88, %v3674
    %v3676 = vand.u32 %v3675, 4294901760
    %3677 = vmatmul.mubr.f32.gmra.mxu0 %v3676
    %v3678 = vpop.f32.mrf.mxu0
    %v3679 = vadd.f32 %v2771, %v3678
    %v3680 = vpop.f32.mrf.mxu0
    %v3681 = vand.u32 %v91, 4294901760
    %v3682 = vsub.f32 %v91, %v3681
    %v3683 = vand.u32 %v3682, 4294901760
    %3684 = vmatprep.mubr.f32.mxu0 %v3683
    %v3685 = vand.u32 %v90, 4294901760
    %v3686 = vsub.f32 %v90, %v3685
    %v3687 = vand.u32 %v3686, 4294901760
    %3688 = vmatmul.mubr.f32.gmra.mxu0 %v3687
    %v3689 = vpop.f32.mrf.mxu0
    %v3690 = vadd.f32 %v2780, %v3689
    %v3691 = vpop.f32.mrf.mxu0
    %v3692 = vand.u32 %v93, 4294901760
    %v3693 = vsub.f32 %v93, %v3692
    %v3694 = vand.u32 %v3693, 4294901760
    %3695 = vmatprep.mubr.f32.mxu0 %v3694
    %v3696 = vand.u32 %v92, 4294901760
    %v3697 = vsub.f32 %v92, %v3696
    %v3698 = vand.u32 %v3697, 4294901760
    %3699 = vmatmul.mubr.f32.gmra.mxu0 %v3698
    %v3700 = vpop.f32.mrf.mxu0
    %v3701 = vadd.f32 %v2789, %v3700
    %v3702 = vpop.f32.mrf.mxu0
    %v3703 = vand.u32 %v95, 4294901760
    %v3704 = vsub.f32 %v95, %v3703
    %v3705 = vand.u32 %v3704, 4294901760
    %3706 = vmatprep.mubr.f32.mxu0 %v3705
    %v3707 = vand.u32 %v94, 4294901760
    %v3708 = vsub.f32 %v94, %v3707
    %v3709 = vand.u32 %v3708, 4294901760
    %3710 = vmatmul.mubr.f32.gmra.mxu0 %v3709
    %v3711 = vpop.f32.mrf.mxu0
    %v3712 = vadd.f32 %v2798, %v3711
    %v3713 = vpop.f32.mrf.mxu0
    %v3714 = vand.u32 %v97, 4294901760
    %v3715 = vsub.f32 %v97, %v3714
    %v3716 = vand.u32 %v3715, 4294901760
    %3717 = vmatprep.mubr.f32.mxu0 %v3716
    %v3718 = vand.u32 %v96, 4294901760
    %v3719 = vsub.f32 %v96, %v3718
    %v3720 = vand.u32 %v3719, 4294901760
    %3721 = vmatmul.mubr.f32.gmra.mxu0 %v3720
    %v3722 = vpop.f32.mrf.mxu0
    %v3723 = vadd.f32 %v2807, %v3722
    %v3724 = vpop.f32.mrf.mxu0
    %v3725 = vand.u32 %v99, 4294901760
    %v3726 = vsub.f32 %v99, %v3725
    %v3727 = vand.u32 %v3726, 4294901760
    %3728 = vmatprep.mubr.f32.mxu0 %v3727
    %v3729 = vand.u32 %v98, 4294901760
    %v3730 = vsub.f32 %v98, %v3729
    %v3731 = vand.u32 %v3730, 4294901760
    %3732 = vmatmul.mubr.f32.gmra.mxu0 %v3731
    %v3733 = vpop.f32.mrf.mxu0
    %v3734 = vadd.f32 %v2816, %v3733
    %v3735 = vpop.f32.mrf.mxu0
    %v3736 = vand.u32 %v101, 4294901760
    %v3737 = vsub.f32 %v101, %v3736
    %v3738 = vand.u32 %v3737, 4294901760
    %3739 = vmatprep.mubr.f32.mxu0 %v3738
    %v3740 = vand.u32 %v100, 4294901760
    %v3741 = vsub.f32 %v100, %v3740
    %v3742 = vand.u32 %v3741, 4294901760
    %3743 = vmatmul.mubr.f32.gmra.mxu0 %v3742
    %v3744 = vpop.f32.mrf.mxu0
    %v3745 = vadd.f32 %v2825, %v3744
    %v3746 = vpop.f32.mrf.mxu0
    %v3747 = vand.u32 %v103, 4294901760
    %v3748 = vsub.f32 %v103, %v3747
    %v3749 = vand.u32 %v3748, 4294901760
    %3750 = vmatprep.mubr.f32.mxu0 %v3749
    %v3751 = vand.u32 %v102, 4294901760
    %v3752 = vsub.f32 %v102, %v3751
    %v3753 = vand.u32 %v3752, 4294901760
    %3754 = vmatmul.mubr.f32.gmra.mxu0 %v3753
    %v3755 = vpop.f32.mrf.mxu0
    %v3756 = vadd.f32 %v2834, %v3755
    %v3757 = vpop.f32.mrf.mxu0
    %v3758 = vand.u32 %v105, 4294901760
    %v3759 = vsub.f32 %v105, %v3758
    %v3760 = vand.u32 %v3759, 4294901760
    %3761 = vmatprep.mubr.f32.mxu0 %v3760
    %v3762 = vand.u32 %v104, 4294901760
    %v3763 = vsub.f32 %v104, %v3762
    %v3764 = vand.u32 %v3763, 4294901760
    %3765 = vmatmul.mubr.f32.gmra.mxu0 %v3764
    %v3766 = vpop.f32.mrf.mxu0
    %v3767 = vadd.f32 %v2843, %v3766
    %v3768 = vpop.f32.mrf.mxu0
    %v3769 = vand.u32 %v107, 4294901760
    %v3770 = vsub.f32 %v107, %v3769
    %v3771 = vand.u32 %v3770, 4294901760
    %3772 = vmatprep.mubr.f32.mxu0 %v3771
    %v3773 = vand.u32 %v106, 4294901760
    %v3774 = vsub.f32 %v106, %v3773
    %v3775 = vand.u32 %v3774, 4294901760
    %3776 = vmatmul.mubr.f32.gmra.mxu0 %v3775
    %v3777 = vpop.f32.mrf.mxu0
    %v3778 = vadd.f32 %v2852, %v3777
    %v3779 = vpop.f32.mrf.mxu0
    %v3780 = vand.u32 %v109, 4294901760
    %v3781 = vsub.f32 %v109, %v3780
    %v3782 = vand.u32 %v3781, 4294901760
    %3783 = vmatprep.mubr.f32.mxu0 %v3782
    %v3784 = vand.u32 %v108, 4294901760
    %v3785 = vsub.f32 %v108, %v3784
    %v3786 = vand.u32 %v3785, 4294901760
    %3787 = vmatmul.mubr.f32.gmra.mxu0 %v3786
    %v3788 = vpop.f32.mrf.mxu0
    %v3789 = vadd.f32 %v2861, %v3788
    %v3790 = vpop.f32.mrf.mxu0
    %v3791 = vand.u32 %v111, 4294901760
    %v3792 = vsub.f32 %v111, %v3791
    %v3793 = vand.u32 %v3792, 4294901760
    %3794 = vmatprep.mubr.f32.mxu0 %v3793
    %v3795 = vand.u32 %v110, 4294901760
    %v3796 = vsub.f32 %v110, %v3795
    %v3797 = vand.u32 %v3796, 4294901760
    %3798 = vmatmul.mubr.f32.gmra.mxu0 %v3797
    %v3799 = vpop.f32.mrf.mxu0
    %v3800 = vadd.f32 %v2870, %v3799
    %v3801 = vpop.f32.mrf.mxu0
    %v3802 = vand.u32 %v113, 4294901760
    %v3803 = vsub.f32 %v113, %v3802
    %v3804 = vand.u32 %v3803, 4294901760
    %3805 = vmatprep.mubr.f32.mxu0 %v3804
    %v3806 = vand.u32 %v112, 4294901760
    %v3807 = vsub.f32 %v112, %v3806
    %v3808 = vand.u32 %v3807, 4294901760
    %3809 = vmatmul.mubr.f32.gmra.mxu0 %v3808
    %v3810 = vpop.f32.mrf.mxu0
    %v3811 = vadd.f32 %v2879, %v3810
    %v3812 = vpop.f32.mrf.mxu0
    %v3813 = vand.u32 %v115, 4294901760
    %v3814 = vsub.f32 %v115, %v3813
    %v3815 = vand.u32 %v3814, 4294901760
    %3816 = vmatprep.mubr.f32.mxu0 %v3815
    %v3817 = vand.u32 %v114, 4294901760
    %v3818 = vsub.f32 %v114, %v3817
    %v3819 = vand.u32 %v3818, 4294901760
    %3820 = vmatmul.mubr.f32.gmra.mxu0 %v3819
    %v3821 = vpop.f32.mrf.mxu0
    %v3822 = vadd.f32 %v2888, %v3821
    %v3823 = vpop.f32.mrf.mxu0
    %v3824 = vand.u32 %v117, 4294901760
    %v3825 = vsub.f32 %v117, %v3824
    %v3826 = vand.u32 %v3825, 4294901760
    %3827 = vmatprep.mubr.f32.mxu0 %v3826
    %v3828 = vand.u32 %v116, 4294901760
    %v3829 = vsub.f32 %v116, %v3828
    %v3830 = vand.u32 %v3829, 4294901760
    %3831 = vmatmul.mubr.f32.gmra.mxu0 %v3830
    %v3832 = vpop.f32.mrf.mxu0
    %v3833 = vadd.f32 %v2897, %v3832
    %v3834 = vpop.f32.mrf.mxu0
    %v3835 = vand.u32 %v119, 4294901760
    %v3836 = vsub.f32 %v119, %v3835
    %v3837 = vand.u32 %v3836, 4294901760
    %3838 = vmatprep.mubr.f32.mxu0 %v3837
    %v3839 = vand.u32 %v118, 4294901760
    %v3840 = vsub.f32 %v118, %v3839
    %v3841 = vand.u32 %v3840, 4294901760
    %3842 = vmatmul.mubr.f32.gmra.mxu0 %v3841
    %v3843 = vpop.f32.mrf.mxu0
    %v3844 = vadd.f32 %v2906, %v3843
    %v3845 = vpop.f32.mrf.mxu0
    %v3846 = vand.u32 %v121, 4294901760
    %v3847 = vsub.f32 %v121, %v3846
    %v3848 = vand.u32 %v3847, 4294901760
    %3849 = vmatprep.mubr.f32.mxu0 %v3848
    %v3850 = vand.u32 %v120, 4294901760
    %v3851 = vsub.f32 %v120, %v3850
    %v3852 = vand.u32 %v3851, 4294901760
    %3853 = vmatmul.mubr.f32.gmra.mxu0 %v3852
    %v3854 = vpop.f32.mrf.mxu0
    %v3855 = vadd.f32 %v2915, %v3854
    %v3856 = vpop.f32.mrf.mxu0
    %v3857 = vand.u32 %v123, 4294901760
    %v3858 = vsub.f32 %v123, %v3857
    %v3859 = vand.u32 %v3858, 4294901760
    %3860 = vmatprep.mubr.f32.mxu0 %v3859
    %v3861 = vand.u32 %v122, 4294901760
    %v3862 = vsub.f32 %v122, %v3861
    %v3863 = vand.u32 %v3862, 4294901760
    %3864 = vmatmul.mubr.f32.gmra.mxu0 %v3863
    %v3865 = vpop.f32.mrf.mxu0
    %v3866 = vadd.f32 %v2924, %v3865
    %v3867 = vpop.f32.mrf.mxu0
    %v3868 = vand.u32 %v125, 4294901760
    %v3869 = vsub.f32 %v125, %v3868
    %v3870 = vand.u32 %v3869, 4294901760
    %3871 = vmatprep.mubr.f32.mxu0 %v3870
    %v3872 = vand.u32 %v124, 4294901760
    %v3873 = vsub.f32 %v124, %v3872
    %v3874 = vand.u32 %v3873, 4294901760
    %3875 = vmatmul.mubr.f32.gmra.mxu0 %v3874
    %v3876 = vpop.f32.mrf.mxu0
    %v3877 = vadd.f32 %v2933, %v3876
    %v3878 = vpop.f32.mrf.mxu0
    %v3879 = vand.u32 %v127, 4294901760
    %v3880 = vsub.f32 %v127, %v3879
    %v3881 = vand.u32 %v3880, 4294901760
    %3882 = vmatprep.mubr.f32.mxu0 %v3881
    %v3883 = vand.u32 %v126, 4294901760
    %v3884 = vsub.f32 %v126, %v3883
    %v3885 = vand.u32 %v3884, 4294901760
    %3886 = vmatmul.mubr.f32.gmra.mxu0 %v3885
    %v3887 = vpop.f32.mrf.mxu0
    %v3888 = vadd.f32 %v2942, %v3887
    %v3889 = vpop.f32.mrf.mxu0
    %v3890 = vand.u32 %v129, 4294901760
    %v3891 = vsub.f32 %v129, %v3890
    %v3892 = vand.u32 %v3891, 4294901760
    %3893 = vmatprep.mubr.f32.mxu0 %v3892
    %v3894 = vand.u32 %v128, 4294901760
    %v3895 = vsub.f32 %v128, %v3894
    %v3896 = vand.u32 %v3895, 4294901760
    %3897 = vmatmul.mubr.f32.gmra.mxu0 %v3896
    %v3898 = vpop.f32.mrf.mxu0
    %v3899 = vadd.f32 %v2951, %v3898
    %v3900 = vpop.f32.mrf.mxu0
    %v3901 = vand.u32 %v131, 4294901760
    %v3902 = vsub.f32 %v131, %v3901
    %v3903 = vand.u32 %v3902, 4294901760
    %3904 = vmatprep.mubr.f32.mxu0 %v3903
    %v3905 = vand.u32 %v130, 4294901760
    %v3906 = vsub.f32 %v130, %v3905
    %v3907 = vand.u32 %v3906, 4294901760
    %3908 = vmatmul.mubr.f32.gmra.mxu0 %v3907
    %v3909 = vpop.f32.mrf.mxu0
    %v3910 = vadd.f32 %v2960, %v3909
    %v3911 = vpop.f32.mrf.mxu0
    %v3912 = vand.u32 %v133, 4294901760
    %v3913 = vsub.f32 %v133, %v3912
    %v3914 = vand.u32 %v3913, 4294901760
    %3915 = vmatprep.mubr.f32.mxu0 %v3914
    %v3916 = vand.u32 %v132, 4294901760
    %v3917 = vsub.f32 %v132, %v3916
    %v3918 = vand.u32 %v3917, 4294901760
    %3919 = vmatmul.mubr.f32.gmra.mxu0 %v3918
    %v3920 = vpop.f32.mrf.mxu0
    %v3921 = vadd.f32 %v2969, %v3920
    %v3922 = vpop.f32.mrf.mxu0
    %v3923 = vand.u32 %v135, 4294901760
    %v3924 = vsub.f32 %v135, %v3923
    %v3925 = vand.u32 %v3924, 4294901760
    %3926 = vmatprep.mubr.f32.mxu0 %v3925
    %v3927 = vand.u32 %v134, 4294901760
    %v3928 = vsub.f32 %v134, %v3927
    %v3929 = vand.u32 %v3928, 4294901760
    %3930 = vmatmul.mubr.f32.gmra.mxu0 %v3929
    %v3931 = vpop.f32.mrf.mxu0
    %v3932 = vadd.f32 %v2978, %v3931
    %v3933 = vpop.f32.mrf.mxu0
    %v3934 = vand.u32 %v137, 4294901760
    %v3935 = vsub.f32 %v137, %v3934
    %v3936 = vand.u32 %v3935, 4294901760
    %3937 = vmatprep.mubr.f32.mxu0 %v3936
    %v3938 = vand.u32 %v136, 4294901760
    %v3939 = vsub.f32 %v136, %v3938
    %v3940 = vand.u32 %v3939, 4294901760
    %3941 = vmatmul.mubr.f32.gmra.mxu0 %v3940
    %v3942 = vpop.f32.mrf.mxu0
    %v3943 = vadd.f32 %v2987, %v3942
    %v3944 = vpop.f32.mrf.mxu0
    %v3945 = vand.u32 %v139, 4294901760
    %v3946 = vsub.f32 %v139, %v3945
    %v3947 = vand.u32 %v3946, 4294901760
    %3948 = vmatprep.mubr.f32.mxu0 %v3947
    %v3949 = vand.u32 %v138, 4294901760
    %v3950 = vsub.f32 %v138, %v3949
    %v3951 = vand.u32 %v3950, 4294901760
    %3952 = vmatmul.mubr.f32.gmra.mxu0 %v3951
    %v3953 = vpop.f32.mrf.mxu0
    %v3954 = vadd.f32 %v2996, %v3953
    %v3955 = vpop.f32.mrf.mxu0
    %v3956 = vand.u32 %v141, 4294901760
    %v3957 = vsub.f32 %v141, %v3956
    %v3958 = vand.u32 %v3957, 4294901760
    %3959 = vmatprep.mubr.f32.mxu0 %v3958
    %v3960 = vand.u32 %v140, 4294901760
    %v3961 = vsub.f32 %v140, %v3960
    %v3962 = vand.u32 %v3961, 4294901760
    %3963 = vmatmul.mubr.f32.gmra.mxu0 %v3962
    %v3964 = vpop.f32.mrf.mxu0
    %v3965 = vadd.f32 %v3005, %v3964
    %v3966 = vpop.f32.mrf.mxu0
    %v3967 = vand.u32 %v143, 4294901760
    %v3968 = vsub.f32 %v143, %v3967
    %v3969 = vand.u32 %v3968, 4294901760
    %3970 = vmatprep.mubr.f32.mxu0 %v3969
    %v3971 = vand.u32 %v142, 4294901760
    %v3972 = vsub.f32 %v142, %v3971
    %v3973 = vand.u32 %v3972, 4294901760
    %3974 = vmatmul.mubr.f32.gmra.mxu0 %v3973
    %v3975 = vpop.f32.mrf.mxu0
    %v3976 = vadd.f32 %v3014, %v3975
    %v3977 = vpop.f32.mrf.mxu0
    %v3978 = vand.u32 %v145, 4294901760
    %v3979 = vsub.f32 %v145, %v3978
    %v3980 = vand.u32 %v3979, 4294901760
    %3981 = vmatprep.mubr.f32.mxu0 %v3980
    %v3982 = vand.u32 %v144, 4294901760
    %v3983 = vsub.f32 %v144, %v3982
    %v3984 = vand.u32 %v3983, 4294901760
    %3985 = vmatmul.mubr.f32.gmra.mxu0 %v3984
    %v3986 = vpop.f32.mrf.mxu0
    %v3987 = vadd.f32 %v3023, %v3986
    %v3988 = vpop.f32.mrf.mxu0
    %v3989 = vand.u32 %v147, 4294901760
    %v3990 = vsub.f32 %v147, %v3989
    %v3991 = vand.u32 %v3990, 4294901760
    %3992 = vmatprep.mubr.f32.mxu0 %v3991
    %v3993 = vand.u32 %v146, 4294901760
    %v3994 = vsub.f32 %v146, %v3993
    %v3995 = vand.u32 %v3994, 4294901760
    %3996 = vmatmul.mubr.f32.gmra.mxu0 %v3995
    %v3997 = vpop.f32.mrf.mxu0
    %v3998 = vadd.f32 %v3032, %v3997
    %v3999 = vpop.f32.mrf.mxu0
    %v4000 = vand.u32 %v149, 4294901760
    %v4001 = vsub.f32 %v149, %v4000
    %v4002 = vand.u32 %v4001, 4294901760
    %4003 = vmatprep.mubr.f32.mxu0 %v4002
    %v4004 = vand.u32 %v148, 4294901760
    %v4005 = vsub.f32 %v148, %v4004
    %v4006 = vand.u32 %v4005, 4294901760
    %4007 = vmatmul.mubr.f32.gmra.mxu0 %v4006
    %v4008 = vpop.f32.mrf.mxu0
    %v4009 = vadd.f32 %v3041, %v4008
    %v4010 = vpop.f32.mrf.mxu0
    %v4011 = vand.u32 %v151, 4294901760
    %v4012 = vsub.f32 %v151, %v4011
    %v4013 = vand.u32 %v4012, 4294901760
    %4014 = vmatprep.mubr.f32.mxu0 %v4013
    %v4015 = vand.u32 %v150, 4294901760
    %v4016 = vsub.f32 %v150, %v4015
    %v4017 = vand.u32 %v4016, 4294901760
    %4018 = vmatmul.mubr.f32.gmra.mxu0 %v4017
    %v4019 = vpop.f32.mrf.mxu0
    %v4020 = vadd.f32 %v3050, %v4019
    %v4021 = vpop.f32.mrf.mxu0
    %v4022 = vand.u32 %v153, 4294901760
    %v4023 = vsub.f32 %v153, %v4022
    %v4024 = vand.u32 %v4023, 4294901760
    %4025 = vmatprep.mubr.f32.mxu0 %v4024
    %v4026 = vand.u32 %v152, 4294901760
    %v4027 = vsub.f32 %v152, %v4026
    %v4028 = vand.u32 %v4027, 4294901760
    %4029 = vmatmul.mubr.f32.gmra.mxu0 %v4028
    %v4030 = vpop.f32.mrf.mxu0
    %v4031 = vadd.f32 %v3059, %v4030
    %v4032 = vpop.f32.mrf.mxu0
    %v4033 = vand.u32 %v155, 4294901760
    %v4034 = vsub.f32 %v155, %v4033
    %v4035 = vand.u32 %v4034, 4294901760
    %4036 = vmatprep.mubr.f32.mxu0 %v4035
    %v4037 = vand.u32 %v154, 4294901760
    %v4038 = vsub.f32 %v154, %v4037
    %v4039 = vand.u32 %v4038, 4294901760
    %4040 = vmatmul.mubr.f32.gmra.mxu0 %v4039
    %v4041 = vpop.f32.mrf.mxu0
    %v4042 = vadd.f32 %v3068, %v4041
    %v4043 = vpop.f32.mrf.mxu0
    %v4044 = vand.u32 %v157, 4294901760
    %v4045 = vsub.f32 %v157, %v4044
    %v4046 = vand.u32 %v4045, 4294901760
    %4047 = vmatprep.mubr.f32.mxu0 %v4046
    %v4048 = vand.u32 %v156, 4294901760
    %v4049 = vsub.f32 %v156, %v4048
    %v4050 = vand.u32 %v4049, 4294901760
    %4051 = vmatmul.mubr.f32.gmra.mxu0 %v4050
    %v4052 = vpop.f32.mrf.mxu0
    %v4053 = vadd.f32 %v3077, %v4052
    %v4054 = vpop.f32.mrf.mxu0
    %v4055 = vand.u32 %v159, 4294901760
    %v4056 = vsub.f32 %v159, %v4055
    %v4057 = vand.u32 %v4056, 4294901760
    %4058 = vmatprep.mubr.f32.mxu0 %v4057
    %v4059 = vand.u32 %v158, 4294901760
    %v4060 = vsub.f32 %v158, %v4059
    %v4061 = vand.u32 %v4060, 4294901760
    %4062 = vmatmul.mubr.f32.gmra.mxu0 %v4061
    %v4063 = vpop.f32.mrf.mxu0
    %v4064 = vadd.f32 %v3086, %v4063
    %v4065 = vpop.f32.mrf.mxu0
    %v4066 = vand.u32 %v161, 4294901760
    %v4067 = vsub.f32 %v161, %v4066
    %v4068 = vand.u32 %v4067, 4294901760
    %4069 = vmatprep.mubr.f32.mxu0 %v4068
    %v4070 = vand.u32 %v160, 4294901760
    %v4071 = vsub.f32 %v160, %v4070
    %v4072 = vand.u32 %v4071, 4294901760
    %4073 = vmatmul.mubr.f32.gmra.mxu0 %v4072
    %v4074 = vpop.f32.mrf.mxu0
    %v4075 = vadd.f32 %v3095, %v4074
    %v4076 = vpop.f32.mrf.mxu0
    %v4077 = vand.u32 %v163, 4294901760
    %v4078 = vsub.f32 %v163, %v4077
    %v4079 = vand.u32 %v4078, 4294901760
    %4080 = vmatprep.mubr.f32.mxu0 %v4079
    %v4081 = vand.u32 %v162, 4294901760
    %v4082 = vsub.f32 %v162, %v4081
    %v4083 = vand.u32 %v4082, 4294901760
    %4084 = vmatmul.mubr.f32.gmra.mxu0 %v4083
    %v4085 = vpop.f32.mrf.mxu0
    %v4086 = vadd.f32 %v3104, %v4085
    %v4087 = vpop.f32.mrf.mxu0
    %v4088 = vand.u32 %v165, 4294901760
    %v4089 = vsub.f32 %v165, %v4088
    %v4090 = vand.u32 %v4089, 4294901760
    %4091 = vmatprep.mubr.f32.mxu0 %v4090
    %v4092 = vand.u32 %v164, 4294901760
    %v4093 = vsub.f32 %v164, %v4092
    %v4094 = vand.u32 %v4093, 4294901760
    %4095 = vmatmul.mubr.f32.gmra.mxu0 %v4094
    %v4096 = vpop.f32.mrf.mxu0
    %v4097 = vadd.f32 %v3113, %v4096
    %v4098 = vpop.f32.mrf.mxu0
    %v4099 = vand.u32 %v167, 4294901760
    %v4100 = vsub.f32 %v167, %v4099
    %v4101 = vand.u32 %v4100, 4294901760
    %4102 = vmatprep.mubr.f32.mxu0 %v4101
    %v4103 = vand.u32 %v166, 4294901760
    %v4104 = vsub.f32 %v166, %v4103
    %v4105 = vand.u32 %v4104, 4294901760
    %4106 = vmatmul.mubr.f32.gmra.mxu0 %v4105
    %v4107 = vpop.f32.mrf.mxu0
    %v4108 = vadd.f32 %v3122, %v4107
    %v4109 = vpop.f32.mrf.mxu0
    %v4110 = vand.u32 %v169, 4294901760
    %v4111 = vsub.f32 %v169, %v4110
    %v4112 = vand.u32 %v4111, 4294901760
    %4113 = vmatprep.mubr.f32.mxu0 %v4112
    %v4114 = vand.u32 %v168, 4294901760
    %v4115 = vsub.f32 %v168, %v4114
    %v4116 = vand.u32 %v4115, 4294901760
    %4117 = vmatmul.mubr.f32.gmra.mxu0 %v4116
    %v4118 = vpop.f32.mrf.mxu0
    %v4119 = vadd.f32 %v3131, %v4118
    %v4120 = vpop.f32.mrf.mxu0
    %v4121 = vand.u32 %v171, 4294901760
    %v4122 = vsub.f32 %v171, %v4121
    %v4123 = vand.u32 %v4122, 4294901760
    %4124 = vmatprep.mubr.f32.mxu0 %v4123
    %v4125 = vand.u32 %v170, 4294901760
    %v4126 = vsub.f32 %v170, %v4125
    %v4127 = vand.u32 %v4126, 4294901760
    %4128 = vmatmul.mubr.f32.gmra.mxu0 %v4127
    %v4129 = vpop.f32.mrf.mxu0
    %v4130 = vadd.f32 %v3140, %v4129
    %v4131 = vpop.f32.mrf.mxu0
    %v4132 = vand.u32 %v173, 4294901760
    %v4133 = vsub.f32 %v173, %v4132
    %v4134 = vand.u32 %v4133, 4294901760
    %4135 = vmatprep.mubr.f32.mxu0 %v4134
    %v4136 = vand.u32 %v172, 4294901760
    %v4137 = vsub.f32 %v172, %v4136
    %v4138 = vand.u32 %v4137, 4294901760
    %4139 = vmatmul.mubr.f32.gmra.mxu0 %v4138
    %v4140 = vpop.f32.mrf.mxu0
    %v4141 = vadd.f32 %v3149, %v4140
    %v4142 = vpop.f32.mrf.mxu0
    %v4143 = vand.u32 %v175, 4294901760
    %v4144 = vsub.f32 %v175, %v4143
    %v4145 = vand.u32 %v4144, 4294901760
    %4146 = vmatprep.mubr.f32.mxu0 %v4145
    %v4147 = vand.u32 %v174, 4294901760
    %v4148 = vsub.f32 %v174, %v4147
    %v4149 = vand.u32 %v4148, 4294901760
    %4150 = vmatmul.mubr.f32.gmra.mxu0 %v4149
    %v4151 = vpop.f32.mrf.mxu0
    %v4152 = vadd.f32 %v3158, %v4151
    %v4153 = vpop.f32.mrf.mxu0
    %v4154 = vand.u32 %v177, 4294901760
    %v4155 = vsub.f32 %v177, %v4154
    %v4156 = vand.u32 %v4155, 4294901760
    %4157 = vmatprep.mubr.f32.mxu0 %v4156
    %v4158 = vand.u32 %v176, 4294901760
    %v4159 = vsub.f32 %v176, %v4158
    %v4160 = vand.u32 %v4159, 4294901760
    %4161 = vmatmul.mubr.f32.gmra.mxu0 %v4160
    %v4162 = vpop.f32.mrf.mxu0
    %v4163 = vadd.f32 %v3167, %v4162
    %v4164 = vpop.f32.mrf.mxu0
    %v4165 = vand.u32 %v179, 4294901760
    %v4166 = vsub.f32 %v179, %v4165
    %v4167 = vand.u32 %v4166, 4294901760
    %4168 = vmatprep.mubr.f32.mxu0 %v4167
    %v4169 = vand.u32 %v178, 4294901760
    %v4170 = vsub.f32 %v178, %v4169
    %v4171 = vand.u32 %v4170, 4294901760
    %4172 = vmatmul.mubr.f32.gmra.mxu0 %v4171
    %v4173 = vpop.f32.mrf.mxu0
    %v4174 = vadd.f32 %v3176, %v4173
    %v4175 = vpop.f32.mrf.mxu0
    %v4176 = vand.u32 %v181, 4294901760
    %v4177 = vsub.f32 %v181, %v4176
    %v4178 = vand.u32 %v4177, 4294901760
    %4179 = vmatprep.mubr.f32.mxu0 %v4178
    %v4180 = vand.u32 %v180, 4294901760
    %v4181 = vsub.f32 %v180, %v4180
    %v4182 = vand.u32 %v4181, 4294901760
    %4183 = vmatmul.mubr.f32.gmra.mxu0 %v4182
    %v4184 = vpop.f32.mrf.mxu0
    %v4185 = vadd.f32 %v3185, %v4184
    %v4186 = vpop.f32.mrf.mxu0
    %v4187 = vand.u32 %v183, 4294901760
    %v4188 = vsub.f32 %v183, %v4187
    %v4189 = vand.u32 %v4188, 4294901760
    %4190 = vmatprep.mubr.f32.mxu0 %v4189
    %v4191 = vand.u32 %v182, 4294901760
    %v4192 = vsub.f32 %v182, %v4191
    %v4193 = vand.u32 %v4192, 4294901760
    %4194 = vmatmul.mubr.f32.gmra.mxu0 %v4193
    %v4195 = vpop.f32.mrf.mxu0
    %v4196 = vadd.f32 %v3194, %v4195
    %v4197 = vpop.f32.mrf.mxu0
    %v4198 = vand.u32 %v185, 4294901760
    %v4199 = vsub.f32 %v185, %v4198
    %v4200 = vand.u32 %v4199, 4294901760
    %4201 = vmatprep.mubr.f32.mxu0 %v4200
    %v4202 = vand.u32 %v184, 4294901760
    %v4203 = vsub.f32 %v184, %v4202
    %v4204 = vand.u32 %v4203, 4294901760
    %4205 = vmatmul.mubr.f32.gmra.mxu0 %v4204
    %v4206 = vpop.f32.mrf.mxu0
    %v4207 = vadd.f32 %v3203, %v4206
    %v4208 = vpop.f32.mrf.mxu0
    %v4209 = vand.u32 %v187, 4294901760
    %v4210 = vsub.f32 %v187, %v4209
    %v4211 = vand.u32 %v4210, 4294901760
    %4212 = vmatprep.mubr.f32.mxu0 %v4211
    %v4213 = vand.u32 %v186, 4294901760
    %v4214 = vsub.f32 %v186, %v4213
    %v4215 = vand.u32 %v4214, 4294901760
    %4216 = vmatmul.mubr.f32.gmra.mxu0 %v4215
    %v4217 = vpop.f32.mrf.mxu0
    %v4218 = vadd.f32 %v3212, %v4217
    %v4219 = vpop.f32.mrf.mxu0
    %v4220 = vand.u32 %v189, 4294901760
    %v4221 = vsub.f32 %v189, %v4220
    %v4222 = vand.u32 %v4221, 4294901760
    %4223 = vmatprep.mubr.f32.mxu0 %v4222
    %v4224 = vand.u32 %v188, 4294901760
    %v4225 = vsub.f32 %v188, %v4224
    %v4226 = vand.u32 %v4225, 4294901760
    %4227 = vmatmul.mubr.f32.gmra.mxu0 %v4226
    %v4228 = vpop.f32.mrf.mxu0
    %v4229 = vadd.f32 %v3221, %v4228
    %v4230 = vpop.f32.mrf.mxu0
    %v4231 = vand.u32 %v191, 4294901760
    %v4232 = vsub.f32 %v191, %v4231
    %v4233 = vand.u32 %v4232, 4294901760
    %4234 = vmatprep.mubr.f32.mxu0 %v4233
    %v4235 = vand.u32 %v190, 4294901760
    %v4236 = vsub.f32 %v190, %v4235
    %v4237 = vand.u32 %v4236, 4294901760
    %4238 = vmatmul.mubr.f32.gmra.mxu0 %v4237
    %v4239 = vpop.f32.mrf.mxu0
    %v4240 = vadd.f32 %v3230, %v4239
    %v4241 = vpop.f32.mrf.mxu0
    %v4242 = vand.u32 %v193, 4294901760
    %v4243 = vsub.f32 %v193, %v4242
    %v4244 = vand.u32 %v4243, 4294901760
    %4245 = vmatprep.mubr.f32.mxu0 %v4244
    %v4246 = vand.u32 %v192, 4294901760
    %v4247 = vsub.f32 %v192, %v4246
    %v4248 = vand.u32 %v4247, 4294901760
    %4249 = vmatmul.mubr.f32.gmra.mxu0 %v4248
    %v4250 = vpop.f32.mrf.mxu0
    %v4251 = vadd.f32 %v3239, %v4250
    %v4252 = vpop.f32.mrf.mxu0
    %v4253 = vand.u32 %v195, 4294901760
    %v4254 = vsub.f32 %v195, %v4253
    %v4255 = vand.u32 %v4254, 4294901760
    %4256 = vmatprep.mubr.f32.mxu0 %v4255
    %v4257 = vand.u32 %v194, 4294901760
    %v4258 = vsub.f32 %v194, %v4257
    %v4259 = vand.u32 %v4258, 4294901760
    %4260 = vmatmul.mubr.f32.gmra.mxu0 %v4259
    %v4261 = vpop.f32.mrf.mxu0
    %v4262 = vadd.f32 %v3248, %v4261
    %v4263 = vpop.f32.mrf.mxu0
    %v4264 = vand.u32 %v197, 4294901760
    %v4265 = vsub.f32 %v197, %v4264
    %v4266 = vand.u32 %v4265, 4294901760
    %4267 = vmatprep.mubr.f32.mxu0 %v4266
    %v4268 = vand.u32 %v196, 4294901760
    %v4269 = vsub.f32 %v196, %v4268
    %v4270 = vand.u32 %v4269, 4294901760
    %4271 = vmatmul.mubr.f32.gmra.mxu0 %v4270
    %v4272 = vpop.f32.mrf.mxu0
    %v4273 = vadd.f32 %v3257, %v4272
    %v4274 = vpop.f32.mrf.mxu0
    %v4275 = vand.u32 %v199, 4294901760
    %v4276 = vsub.f32 %v199, %v4275
    %v4277 = vand.u32 %v4276, 4294901760
    %4278 = vmatprep.mubr.f32.mxu0 %v4277
    %v4279 = vand.u32 %v198, 4294901760
    %v4280 = vsub.f32 %v198, %v4279
    %v4281 = vand.u32 %v4280, 4294901760
    %4282 = vmatmul.mubr.f32.gmra.mxu0 %v4281
    %v4283 = vpop.f32.mrf.mxu0
    %v4284 = vadd.f32 %v3266, %v4283
    %v4285 = vpop.f32.mrf.mxu0
    %v4286 = vand.u32 %v201, 4294901760
    %v4287 = vsub.f32 %v201, %v4286
    %v4288 = vand.u32 %v4287, 4294901760
    %4289 = vmatprep.mubr.f32.mxu0 %v4288
    %v4290 = vand.u32 %v200, 4294901760
    %v4291 = vsub.f32 %v200, %v4290
    %v4292 = vand.u32 %v4291, 4294901760
    %4293 = vmatmul.mubr.f32.gmra.mxu0 %v4292
    %v4294 = vpop.f32.mrf.mxu0
    %v4295 = vadd.f32 %v3275, %v4294
    %v4296 = vpop.f32.mrf.mxu0
    %v4297 = vand.u32 %v203, 4294901760
    %v4298 = vsub.f32 %v203, %v4297
    %v4299 = vand.u32 %v4298, 4294901760
    %4300 = vmatprep.mubr.f32.mxu0 %v4299
    %v4301 = vand.u32 %v202, 4294901760
    %v4302 = vsub.f32 %v202, %v4301
    %v4303 = vand.u32 %v4302, 4294901760
    %4304 = vmatmul.mubr.f32.gmra.mxu0 %v4303
    %v4305 = vpop.f32.mrf.mxu0
    %v4306 = vadd.f32 %v3284, %v4305
    %v4307 = vpop.f32.mrf.mxu0
    %v4308 = vand.u32 %v205, 4294901760
    %v4309 = vsub.f32 %v205, %v4308
    %v4310 = vand.u32 %v4309, 4294901760
    %4311 = vmatprep.mubr.f32.mxu0 %v4310
    %v4312 = vand.u32 %v204, 4294901760
    %v4313 = vsub.f32 %v204, %v4312
    %v4314 = vand.u32 %v4313, 4294901760
    %4315 = vmatmul.mubr.f32.gmra.mxu0 %v4314
    %v4316 = vpop.f32.mrf.mxu0
    %v4317 = vadd.f32 %v3293, %v4316
    %v4318 = vpop.f32.mrf.mxu0
    %v4319 = vand.u32 %v207, 4294901760
    %v4320 = vsub.f32 %v207, %v4319
    %v4321 = vand.u32 %v4320, 4294901760
    %4322 = vmatprep.mubr.f32.mxu0 %v4321
    %v4323 = vand.u32 %v206, 4294901760
    %v4324 = vsub.f32 %v206, %v4323
    %v4325 = vand.u32 %v4324, 4294901760
    %4326 = vmatmul.mubr.f32.gmra.mxu0 %v4325
    %v4327 = vpop.f32.mrf.mxu0
    %v4328 = vadd.f32 %v3302, %v4327
    %v4329 = vpop.f32.mrf.mxu0
    %v4330 = vand.u32 %v209, 4294901760
    %v4331 = vsub.f32 %v209, %v4330
    %v4332 = vand.u32 %v4331, 4294901760
    %4333 = vmatprep.mubr.f32.mxu0 %v4332
    %v4334 = vand.u32 %v208, 4294901760
    %v4335 = vsub.f32 %v208, %v4334
    %v4336 = vand.u32 %v4335, 4294901760
    %4337 = vmatmul.mubr.f32.gmra.mxu0 %v4336
    %v4338 = vpop.f32.mrf.mxu0
    %v4339 = vadd.f32 %v3311, %v4338
    %v4340 = vpop.f32.mrf.mxu0
    %v4341 = vand.u32 %v211, 4294901760
    %v4342 = vsub.f32 %v211, %v4341
    %v4343 = vand.u32 %v4342, 4294901760
    %4344 = vmatprep.mubr.f32.mxu0 %v4343
    %v4345 = vand.u32 %v210, 4294901760
    %v4346 = vsub.f32 %v210, %v4345
    %v4347 = vand.u32 %v4346, 4294901760
    %4348 = vmatmul.mubr.f32.gmra.mxu0 %v4347
    %v4349 = vpop.f32.mrf.mxu0
    %v4350 = vadd.f32 %v3320, %v4349
    %v4351 = vpop.f32.mrf.mxu0
    %v4352 = vand.u32 %v213, 4294901760
    %v4353 = vsub.f32 %v213, %v4352
    %v4354 = vand.u32 %v4353, 4294901760
    %4355 = vmatprep.mubr.f32.mxu0 %v4354
    %v4356 = vand.u32 %v212, 4294901760
    %v4357 = vsub.f32 %v212, %v4356
    %v4358 = vand.u32 %v4357, 4294901760
    %4359 = vmatmul.mubr.f32.gmra.mxu0 %v4358
    %v4360 = vpop.f32.mrf.mxu0
    %v4361 = vadd.f32 %v3329, %v4360
    %v4362 = vpop.f32.mrf.mxu0
    %4363 = vdwg.mxu0
    %4364 = vmatprep.subr.mxu0 0.0
    %v4365 = vand.u32 %v229, 4294901760
    %v4366 = vsub.f32 %v229, %v4365
    %v4367 = vand.u32 %v4366, 4294901760
    %4368 = vmatpush1.msra.mxu0 %v4367
    %4369 = vmatprep.subr.mxu0 0.0
    %v4370 = vand.u32 %v228, 4294901760
    %v4371 = vsub.f32 %v228, %v4370
    %v4372 = vand.u32 %v4371, 4294901760
    %4373 = vmatpush1.msra.mxu0 %v4372
    %4374 = vmatprep.subr.mxu0 0.0
    %v4375 = vand.u32 %v227, 4294901760
    %v4376 = vsub.f32 %v227, %v4375
    %v4377 = vand.u32 %v4376, 4294901760
    %4378 = vmatpush1.msra.mxu0 %v4377
    %4379 = vmatprep.subr.mxu0 0.0
    %v4380 = vand.u32 %v226, 4294901760
    %v4381 = vsub.f32 %v226, %v4380
    %v4382 = vand.u32 %v4381, 4294901760
    %4383 = vmatpush1.msra.mxu0 %v4382
    %4384 = vmatprep.subr.mxu0 0.0
    %v4385 = vand.u32 %v225, 4294901760
    %v4386 = vsub.f32 %v225, %v4385
    %v4387 = vand.u32 %v4386, 4294901760
    %4388 = vmatpush1.msra.mxu0 %v4387
    %4389 = vmatprep.subr.mxu0 0.0
    %v4390 = vand.u32 %v224, 4294901760
    %v4391 = vsub.f32 %v224, %v4390
    %v4392 = vand.u32 %v4391, 4294901760
    %4393 = vmatpush1.msra.mxu0 %v4392
    %4394 = vmatprep.subr.mxu0 0.0
    %v4395 = vand.u32 %v223, 4294901760
    %v4396 = vsub.f32 %v223, %v4395
    %v4397 = vand.u32 %v4396, 4294901760
    %4398 = vmatpush1.msra.mxu0 %v4397
    %4399 = vmatprep.subr.mxu0 0.0
    %v4400 = vand.u32 %v222, 4294901760
    %v4401 = vsub.f32 %v222, %v4400
    %v4402 = vand.u32 %v4401, 4294901760
    %4403 = vmatpush1.msra.mxu0 %v4402
    %4404 = vmatprep.subr.mxu0 0.0
    %v4405 = vand.u32 %v221, 4294901760
    %v4406 = vsub.f32 %v221, %v4405
    %v4407 = vand.u32 %v4406, 4294901760
    %4408 = vmatpush1.msra.mxu0 %v4407
    %4409 = vmatprep.subr.mxu0 0.0
    %v4410 = vand.u32 %v220, 4294901760
    %v4411 = vsub.f32 %v220, %v4410
    %v4412 = vand.u32 %v4411, 4294901760
    %4413 = vmatpush1.msra.mxu0 %v4412
    %4414 = vmatprep.subr.mxu0 0.0
    %v4415 = vand.u32 %v219, 4294901760
    %v4416 = vsub.f32 %v219, %v4415
    %v4417 = vand.u32 %v4416, 4294901760
    %4418 = vmatpush1.msra.mxu0 %v4417
    %4419 = vmatprep.subr.mxu0 0.0
    %v4420 = vand.u32 %v218, 4294901760
    %v4421 = vsub.f32 %v218, %v4420
    %v4422 = vand.u32 %v4421, 4294901760
    %4423 = vmatpush1.msra.mxu0 %v4422
    %4424 = vmatprep.subr.mxu0 0.0
    %v4425 = vand.u32 %v217, 4294901760
    %v4426 = vsub.f32 %v217, %v4425
    %v4427 = vand.u32 %v4426, 4294901760
    %4428 = vmatpush1.msra.mxu0 %v4427
    %4429 = vmatprep.subr.mxu0 0.0
    %v4430 = vand.u32 %v216, 4294901760
    %v4431 = vsub.f32 %v216, %v4430
    %v4432 = vand.u32 %v4431, 4294901760
    %4433 = vmatpush1.msra.mxu0 %v4432
    %4434 = vmatprep.subr.mxu0 0.0
    %v4435 = vand.u32 %v215, 4294901760
    %v4436 = vsub.f32 %v215, %v4435
    %v4437 = vand.u32 %v4436, 4294901760
    %4438 = vmatpush1.msra.mxu0 %v4437
    %4439 = vmatprep.subr.mxu0 0.0
    %v4440 = vand.u32 %v214, 4294901760
    %v4441 = vsub.f32 %v214, %v4440
    %v4442 = vand.u32 %v4441, 4294901760
    %4443 = vmatpush1.msra.mxu0 %v4442
    %4444 = vmatprep.subr.mxu0 0.0
    %v4445 = vand.u32 %v245, 4294901760
    %v4446 = vsub.f32 %v245, %v4445
    %v4447 = vand.u32 %v4446, 4294901760
    %4448 = vmatpush2.msra.mxu0 %v4447
    %4449 = vmatprep.subr.mxu0 0.0
    %v4450 = vand.u32 %v244, 4294901760
    %v4451 = vsub.f32 %v244, %v4450
    %v4452 = vand.u32 %v4451, 4294901760
    %4453 = vmatpush2.msra.mxu0 %v4452
    %4454 = vmatprep.subr.mxu0 0.0
    %v4455 = vand.u32 %v243, 4294901760
    %v4456 = vsub.f32 %v243, %v4455
    %v4457 = vand.u32 %v4456, 4294901760
    %4458 = vmatpush2.msra.mxu0 %v4457
    %4459 = vmatprep.subr.mxu0 0.0
    %v4460 = vand.u32 %v242, 4294901760
    %v4461 = vsub.f32 %v242, %v4460
    %v4462 = vand.u32 %v4461, 4294901760
    %4463 = vmatpush2.msra.mxu0 %v4462
    %4464 = vmatprep.subr.mxu0 0.0
    %v4465 = vand.u32 %v241, 4294901760
    %v4466 = vsub.f32 %v241, %v4465
    %v4467 = vand.u32 %v4466, 4294901760
    %4468 = vmatpush2.msra.mxu0 %v4467
    %4469 = vmatprep.subr.mxu0 0.0
    %v4470 = vand.u32 %v240, 4294901760
    %v4471 = vsub.f32 %v240, %v4470
    %v4472 = vand.u32 %v4471, 4294901760
    %4473 = vmatpush2.msra.mxu0 %v4472
    %4474 = vmatprep.subr.mxu0 0.0
    %v4475 = vand.u32 %v239, 4294901760
    %v4476 = vsub.f32 %v239, %v4475
    %v4477 = vand.u32 %v4476, 4294901760
    %4478 = vmatpush2.msra.mxu0 %v4477
    %4479 = vmatprep.subr.mxu0 0.0
    %v4480 = vand.u32 %v238, 4294901760
    %v4481 = vsub.f32 %v238, %v4480
    %v4482 = vand.u32 %v4481, 4294901760
    %4483 = vmatpush2.msra.mxu0 %v4482
    %4484 = vmatprep.subr.mxu0 0.0
    %v4485 = vand.u32 %v237, 4294901760
    %v4486 = vsub.f32 %v237, %v4485
    %v4487 = vand.u32 %v4486, 4294901760
    %4488 = vmatpush2.msra.mxu0 %v4487
    %4489 = vmatprep.subr.mxu0 0.0
    %v4490 = vand.u32 %v236, 4294901760
    %v4491 = vsub.f32 %v236, %v4490
    %v4492 = vand.u32 %v4491, 4294901760
    %4493 = vmatpush2.msra.mxu0 %v4492
    %4494 = vmatprep.subr.mxu0 0.0
    %v4495 = vand.u32 %v235, 4294901760
    %v4496 = vsub.f32 %v235, %v4495
    %v4497 = vand.u32 %v4496, 4294901760
    %4498 = vmatpush2.msra.mxu0 %v4497
    %4499 = vmatprep.subr.mxu0 0.0
    %v4500 = vand.u32 %v234, 4294901760
    %v4501 = vsub.f32 %v234, %v4500
    %v4502 = vand.u32 %v4501, 4294901760
    %4503 = vmatpush2.msra.mxu0 %v4502
    %4504 = vmatprep.subr.mxu0 0.0
    %v4505 = vand.u32 %v233, 4294901760
    %v4506 = vsub.f32 %v233, %v4505
    %v4507 = vand.u32 %v4506, 4294901760
    %4508 = vmatpush2.msra.mxu0 %v4507
    %4509 = vmatprep.subr.mxu0 0.0
    %v4510 = vand.u32 %v232, 4294901760
    %v4511 = vsub.f32 %v232, %v4510
    %v4512 = vand.u32 %v4511, 4294901760
    %4513 = vmatpush2.msra.mxu0 %v4512
    %4514 = vmatprep.subr.mxu0 0.0
    %v4515 = vand.u32 %v231, 4294901760
    %v4516 = vsub.f32 %v231, %v4515
    %v4517 = vand.u32 %v4516, 4294901760
    %4518 = vmatpush2.msra.mxu0 %v4517
    %4519 = vmatprep.subr.mxu0 0.0
    %v4520 = vand.u32 %v230, 4294901760
    %v4521 = vsub.f32 %v230, %v4520
    %v4522 = vand.u32 %v4521, 4294901760
    %4523 = vmatpush2.msra.mxu0 %v4522
    %v4524 = vand.u32 %v45, 4294901760
    %4525 = vmatprep.mubr.f32.mxu0 %v4524
    %v4526 = vand.u32 %v44, 4294901760
    %4527 = vmatmul.mubr.f32.gmra.mxu0 %v4526
    %v4528 = vpop.f32.mrf.mxu0
    %v4529 = vadd.f32 %v3437, %v4528
    %v4530 = vpop.f32.mrf.mxu0
    %v4531 = vand.u32 %v47, 4294901760
    %4532 = vmatprep.mubr.f32.mxu0 %v4531
    %v4533 = vand.u32 %v46, 4294901760
    %4534 = vmatmul.mubr.f32.gmra.mxu0 %v4533
    %v4535 = vpop.f32.mrf.mxu0
    %v4536 = vadd.f32 %v3448, %v4535
    %v4537 = vpop.f32.mrf.mxu0
    %v4538 = vand.u32 %v49, 4294901760
    %4539 = vmatprep.mubr.f32.mxu0 %v4538
    %v4540 = vand.u32 %v48, 4294901760
    %4541 = vmatmul.mubr.f32.gmra.mxu0 %v4540
    %v4542 = vpop.f32.mrf.mxu0
    %v4543 = vadd.f32 %v3459, %v4542
    %v4544 = vpop.f32.mrf.mxu0
    %v4545 = vand.u32 %v51, 4294901760
    %4546 = vmatprep.mubr.f32.mxu0 %v4545
    %v4547 = vand.u32 %v50, 4294901760
    %4548 = vmatmul.mubr.f32.gmra.mxu0 %v4547
    %v4549 = vpop.f32.mrf.mxu0
    %v4550 = vadd.f32 %v3470, %v4549
    %v4551 = vpop.f32.mrf.mxu0
    %v4552 = vand.u32 %v53, 4294901760
    %4553 = vmatprep.mubr.f32.mxu0 %v4552
    %v4554 = vand.u32 %v52, 4294901760
    %4555 = vmatmul.mubr.f32.gmra.mxu0 %v4554
    %v4556 = vpop.f32.mrf.mxu0
    %v4557 = vadd.f32 %v3481, %v4556
    %v4558 = vpop.f32.mrf.mxu0
    %v4559 = vand.u32 %v55, 4294901760
    %4560 = vmatprep.mubr.f32.mxu0 %v4559
    %v4561 = vand.u32 %v54, 4294901760
    %4562 = vmatmul.mubr.f32.gmra.mxu0 %v4561
    %v4563 = vpop.f32.mrf.mxu0
    %v4564 = vadd.f32 %v3492, %v4563
    %v4565 = vpop.f32.mrf.mxu0
    %v4566 = vand.u32 %v57, 4294901760
    %4567 = vmatprep.mubr.f32.mxu0 %v4566
    %v4568 = vand.u32 %v56, 4294901760
    %4569 = vmatmul.mubr.f32.gmra.mxu0 %v4568
    %v4570 = vpop.f32.mrf.mxu0
    %v4571 = vadd.f32 %v3503, %v4570
    %v4572 = vpop.f32.mrf.mxu0
    %v4573 = vand.u32 %v59, 4294901760
    %4574 = vmatprep.mubr.f32.mxu0 %v4573
    %v4575 = vand.u32 %v58, 4294901760
    %4576 = vmatmul.mubr.f32.gmra.mxu0 %v4575
    %v4577 = vpop.f32.mrf.mxu0
    %v4578 = vadd.f32 %v3514, %v4577
    %v4579 = vpop.f32.mrf.mxu0
    %v4580 = vand.u32 %v61, 4294901760
    %4581 = vmatprep.mubr.f32.mxu0 %v4580
    %v4582 = vand.u32 %v60, 4294901760
    %4583 = vmatmul.mubr.f32.gmra.mxu0 %v4582
    %v4584 = vpop.f32.mrf.mxu0
    %v4585 = vadd.f32 %v3525, %v4584
    %v4586 = vpop.f32.mrf.mxu0
    %v4587 = vand.u32 %v63, 4294901760
    %4588 = vmatprep.mubr.f32.mxu0 %v4587
    %v4589 = vand.u32 %v62, 4294901760
    %4590 = vmatmul.mubr.f32.gmra.mxu0 %v4589
    %v4591 = vpop.f32.mrf.mxu0
    %v4592 = vadd.f32 %v3536, %v4591
    %v4593 = vpop.f32.mrf.mxu0
    %v4594 = vand.u32 %v65, 4294901760
    %4595 = vmatprep.mubr.f32.mxu0 %v4594
    %v4596 = vand.u32 %v64, 4294901760
    %4597 = vmatmul.mubr.f32.gmra.mxu0 %v4596
    %v4598 = vpop.f32.mrf.mxu0
    %v4599 = vadd.f32 %v3547, %v4598
    %v4600 = vpop.f32.mrf.mxu0
    %v4601 = vand.u32 %v67, 4294901760
    %4602 = vmatprep.mubr.f32.mxu0 %v4601
    %v4603 = vand.u32 %v66, 4294901760
    %4604 = vmatmul.mubr.f32.gmra.mxu0 %v4603
    %v4605 = vpop.f32.mrf.mxu0
    %v4606 = vadd.f32 %v3558, %v4605
    %v4607 = vpop.f32.mrf.mxu0
    %v4608 = vand.u32 %v69, 4294901760
    %4609 = vmatprep.mubr.f32.mxu0 %v4608
    %v4610 = vand.u32 %v68, 4294901760
    %4611 = vmatmul.mubr.f32.gmra.mxu0 %v4610
    %v4612 = vpop.f32.mrf.mxu0
    %v4613 = vadd.f32 %v3569, %v4612
    %v4614 = vpop.f32.mrf.mxu0
    %v4615 = vand.u32 %v71, 4294901760
    %4616 = vmatprep.mubr.f32.mxu0 %v4615
    %v4617 = vand.u32 %v70, 4294901760
    %4618 = vmatmul.mubr.f32.gmra.mxu0 %v4617
    %v4619 = vpop.f32.mrf.mxu0
    %v4620 = vadd.f32 %v3580, %v4619
    %v4621 = vpop.f32.mrf.mxu0
    %v4622 = vand.u32 %v73, 4294901760
    %4623 = vmatprep.mubr.f32.mxu0 %v4622
    %v4624 = vand.u32 %v72, 4294901760
    %4625 = vmatmul.mubr.f32.gmra.mxu0 %v4624
    %v4626 = vpop.f32.mrf.mxu0
    %v4627 = vadd.f32 %v3591, %v4626
    %v4628 = vpop.f32.mrf.mxu0
    %v4629 = vand.u32 %v75, 4294901760
    %4630 = vmatprep.mubr.f32.mxu0 %v4629
    %v4631 = vand.u32 %v74, 4294901760
    %4632 = vmatmul.mubr.f32.gmra.mxu0 %v4631
    %v4633 = vpop.f32.mrf.mxu0
    %v4634 = vadd.f32 %v3602, %v4633
    %v4635 = vpop.f32.mrf.mxu0
    %v4636 = vand.u32 %v77, 4294901760
    %4637 = vmatprep.mubr.f32.mxu0 %v4636
    %v4638 = vand.u32 %v76, 4294901760
    %4639 = vmatmul.mubr.f32.gmra.mxu0 %v4638
    %v4640 = vpop.f32.mrf.mxu0
    %v4641 = vadd.f32 %v3613, %v4640
    %v4642 = vpop.f32.mrf.mxu0
    %v4643 = vand.u32 %v79, 4294901760
    %4644 = vmatprep.mubr.f32.mxu0 %v4643
    %v4645 = vand.u32 %v78, 4294901760
    %4646 = vmatmul.mubr.f32.gmra.mxu0 %v4645
    %v4647 = vpop.f32.mrf.mxu0
    %v4648 = vadd.f32 %v3624, %v4647
    %v4649 = vpop.f32.mrf.mxu0
    %v4650 = vand.u32 %v81, 4294901760
    %4651 = vmatprep.mubr.f32.mxu0 %v4650
    %v4652 = vand.u32 %v80, 4294901760
    %4653 = vmatmul.mubr.f32.gmra.mxu0 %v4652
    %v4654 = vpop.f32.mrf.mxu0
    %v4655 = vadd.f32 %v3635, %v4654
    %v4656 = vpop.f32.mrf.mxu0
    %v4657 = vand.u32 %v83, 4294901760
    %4658 = vmatprep.mubr.f32.mxu0 %v4657
    %v4659 = vand.u32 %v82, 4294901760
    %4660 = vmatmul.mubr.f32.gmra.mxu0 %v4659
    %v4661 = vpop.f32.mrf.mxu0
    %v4662 = vadd.f32 %v3646, %v4661
    %v4663 = vpop.f32.mrf.mxu0
    %v4664 = vand.u32 %v85, 4294901760
    %4665 = vmatprep.mubr.f32.mxu0 %v4664
    %v4666 = vand.u32 %v84, 4294901760
    %4667 = vmatmul.mubr.f32.gmra.mxu0 %v4666
    %v4668 = vpop.f32.mrf.mxu0
    %v4669 = vadd.f32 %v3657, %v4668
    %v4670 = vpop.f32.mrf.mxu0
    %v4671 = vand.u32 %v87, 4294901760
    %4672 = vmatprep.mubr.f32.mxu0 %v4671
    %v4673 = vand.u32 %v86, 4294901760
    %4674 = vmatmul.mubr.f32.gmra.mxu0 %v4673
    %v4675 = vpop.f32.mrf.mxu0
    %v4676 = vadd.f32 %v3668, %v4675
    %v4677 = vpop.f32.mrf.mxu0
    %v4678 = vand.u32 %v89, 4294901760
    %4679 = vmatprep.mubr.f32.mxu0 %v4678
    %v4680 = vand.u32 %v88, 4294901760
    %4681 = vmatmul.mubr.f32.gmra.mxu0 %v4680
    %v4682 = vpop.f32.mrf.mxu0
    %v4683 = vadd.f32 %v3679, %v4682
    %v4684 = vpop.f32.mrf.mxu0
    %v4685 = vand.u32 %v91, 4294901760
    %4686 = vmatprep.mubr.f32.mxu0 %v4685
    %v4687 = vand.u32 %v90, 4294901760
    %4688 = vmatmul.mubr.f32.gmra.mxu0 %v4687
    %v4689 = vpop.f32.mrf.mxu0
    %v4690 = vadd.f32 %v3690, %v4689
    %v4691 = vpop.f32.mrf.mxu0
    %v4692 = vand.u32 %v93, 4294901760
    %4693 = vmatprep.mubr.f32.mxu0 %v4692
    %v4694 = vand.u32 %v92, 4294901760
    %4695 = vmatmul.mubr.f32.gmra.mxu0 %v4694
    %v4696 = vpop.f32.mrf.mxu0
    %v4697 = vadd.f32 %v3701, %v4696
    %v4698 = vpop.f32.mrf.mxu0
    %v4699 = vand.u32 %v95, 4294901760
    %4700 = vmatprep.mubr.f32.mxu0 %v4699
    %v4701 = vand.u32 %v94, 4294901760
    %4702 = vmatmul.mubr.f32.gmra.mxu0 %v4701
    %v4703 = vpop.f32.mrf.mxu0
    %v4704 = vadd.f32 %v3712, %v4703
    %v4705 = vpop.f32.mrf.mxu0
    %v4706 = vand.u32 %v97, 4294901760
    %4707 = vmatprep.mubr.f32.mxu0 %v4706
    %v4708 = vand.u32 %v96, 4294901760
    %4709 = vmatmul.mubr.f32.gmra.mxu0 %v4708
    %v4710 = vpop.f32.mrf.mxu0
    %v4711 = vadd.f32 %v3723, %v4710
    %v4712 = vpop.f32.mrf.mxu0
    %v4713 = vand.u32 %v99, 4294901760
    %4714 = vmatprep.mubr.f32.mxu0 %v4713
    %v4715 = vand.u32 %v98, 4294901760
    %4716 = vmatmul.mubr.f32.gmra.mxu0 %v4715
    %v4717 = vpop.f32.mrf.mxu0
    %v4718 = vadd.f32 %v3734, %v4717
    %v4719 = vpop.f32.mrf.mxu0
    %v4720 = vand.u32 %v101, 4294901760
    %4721 = vmatprep.mubr.f32.mxu0 %v4720
    %v4722 = vand.u32 %v100, 4294901760
    %4723 = vmatmul.mubr.f32.gmra.mxu0 %v4722
    %v4724 = vpop.f32.mrf.mxu0
    %v4725 = vadd.f32 %v3745, %v4724
    %v4726 = vpop.f32.mrf.mxu0
    %v4727 = vand.u32 %v103, 4294901760
    %4728 = vmatprep.mubr.f32.mxu0 %v4727
    %v4729 = vand.u32 %v102, 4294901760
    %4730 = vmatmul.mubr.f32.gmra.mxu0 %v4729
    %v4731 = vpop.f32.mrf.mxu0
    %v4732 = vadd.f32 %v3756, %v4731
    %v4733 = vpop.f32.mrf.mxu0
    %v4734 = vand.u32 %v105, 4294901760
    %4735 = vmatprep.mubr.f32.mxu0 %v4734
    %v4736 = vand.u32 %v104, 4294901760
    %4737 = vmatmul.mubr.f32.gmra.mxu0 %v4736
    %v4738 = vpop.f32.mrf.mxu0
    %v4739 = vadd.f32 %v3767, %v4738
    %v4740 = vpop.f32.mrf.mxu0
    %v4741 = vand.u32 %v107, 4294901760
    %4742 = vmatprep.mubr.f32.mxu0 %v4741
    %v4743 = vand.u32 %v106, 4294901760
    %4744 = vmatmul.mubr.f32.gmra.mxu0 %v4743
    %v4745 = vpop.f32.mrf.mxu0
    %v4746 = vadd.f32 %v3778, %v4745
    %v4747 = vpop.f32.mrf.mxu0
    %v4748 = vand.u32 %v109, 4294901760
    %4749 = vmatprep.mubr.f32.mxu0 %v4748
    %v4750 = vand.u32 %v108, 4294901760
    %4751 = vmatmul.mubr.f32.gmra.mxu0 %v4750
    %v4752 = vpop.f32.mrf.mxu0
    %v4753 = vadd.f32 %v3789, %v4752
    %v4754 = vpop.f32.mrf.mxu0
    %v4755 = vand.u32 %v111, 4294901760
    %4756 = vmatprep.mubr.f32.mxu0 %v4755
    %v4757 = vand.u32 %v110, 4294901760
    %4758 = vmatmul.mubr.f32.gmra.mxu0 %v4757
    %v4759 = vpop.f32.mrf.mxu0
    %v4760 = vadd.f32 %v3800, %v4759
    %v4761 = vpop.f32.mrf.mxu0
    %v4762 = vand.u32 %v113, 4294901760
    %4763 = vmatprep.mubr.f32.mxu0 %v4762
    %v4764 = vand.u32 %v112, 4294901760
    %4765 = vmatmul.mubr.f32.gmra.mxu0 %v4764
    %v4766 = vpop.f32.mrf.mxu0
    %v4767 = vadd.f32 %v3811, %v4766
    %v4768 = vpop.f32.mrf.mxu0
    %v4769 = vand.u32 %v115, 4294901760
    %4770 = vmatprep.mubr.f32.mxu0 %v4769
    %v4771 = vand.u32 %v114, 4294901760
    %4772 = vmatmul.mubr.f32.gmra.mxu0 %v4771
    %v4773 = vpop.f32.mrf.mxu0
    %v4774 = vadd.f32 %v3822, %v4773
    %v4775 = vpop.f32.mrf.mxu0
    %v4776 = vand.u32 %v117, 4294901760
    %4777 = vmatprep.mubr.f32.mxu0 %v4776
    %v4778 = vand.u32 %v116, 4294901760
    %4779 = vmatmul.mubr.f32.gmra.mxu0 %v4778
    %v4780 = vpop.f32.mrf.mxu0
    %v4781 = vadd.f32 %v3833, %v4780
    %v4782 = vpop.f32.mrf.mxu0
    %v4783 = vand.u32 %v119, 4294901760
    %4784 = vmatprep.mubr.f32.mxu0 %v4783
    %v4785 = vand.u32 %v118, 4294901760
    %4786 = vmatmul.mubr.f32.gmra.mxu0 %v4785
    %v4787 = vpop.f32.mrf.mxu0
    %v4788 = vadd.f32 %v3844, %v4787
    %v4789 = vpop.f32.mrf.mxu0
    %v4790 = vand.u32 %v121, 4294901760
    %4791 = vmatprep.mubr.f32.mxu0 %v4790
    %v4792 = vand.u32 %v120, 4294901760
    %4793 = vmatmul.mubr.f32.gmra.mxu0 %v4792
    %v4794 = vpop.f32.mrf.mxu0
    %v4795 = vadd.f32 %v3855, %v4794
    %v4796 = vpop.f32.mrf.mxu0
    %v4797 = vand.u32 %v123, 4294901760
    %4798 = vmatprep.mubr.f32.mxu0 %v4797
    %v4799 = vand.u32 %v122, 4294901760
    %4800 = vmatmul.mubr.f32.gmra.mxu0 %v4799
    %v4801 = vpop.f32.mrf.mxu0
    %v4802 = vadd.f32 %v3866, %v4801
    %v4803 = vpop.f32.mrf.mxu0
    %v4804 = vand.u32 %v125, 4294901760
    %4805 = vmatprep.mubr.f32.mxu0 %v4804
    %v4806 = vand.u32 %v124, 4294901760
    %4807 = vmatmul.mubr.f32.gmra.mxu0 %v4806
    %v4808 = vpop.f32.mrf.mxu0
    %v4809 = vadd.f32 %v3877, %v4808
    %v4810 = vpop.f32.mrf.mxu0
    %v4811 = vand.u32 %v127, 4294901760
    %4812 = vmatprep.mubr.f32.mxu0 %v4811
    %v4813 = vand.u32 %v126, 4294901760
    %4814 = vmatmul.mubr.f32.gmra.mxu0 %v4813
    %v4815 = vpop.f32.mrf.mxu0
    %v4816 = vadd.f32 %v3888, %v4815
    %v4817 = vpop.f32.mrf.mxu0
    %v4818 = vand.u32 %v129, 4294901760
    %4819 = vmatprep.mubr.f32.mxu0 %v4818
    %v4820 = vand.u32 %v128, 4294901760
    %4821 = vmatmul.mubr.f32.gmra.mxu0 %v4820
    %v4822 = vpop.f32.mrf.mxu0
    %v4823 = vadd.f32 %v3899, %v4822
    %v4824 = vpop.f32.mrf.mxu0
    %v4825 = vand.u32 %v131, 4294901760
    %4826 = vmatprep.mubr.f32.mxu0 %v4825
    %v4827 = vand.u32 %v130, 4294901760
    %4828 = vmatmul.mubr.f32.gmra.mxu0 %v4827
    %v4829 = vpop.f32.mrf.mxu0
    %v4830 = vadd.f32 %v3910, %v4829
    %v4831 = vpop.f32.mrf.mxu0
    %v4832 = vand.u32 %v133, 4294901760
    %4833 = vmatprep.mubr.f32.mxu0 %v4832
    %v4834 = vand.u32 %v132, 4294901760
    %4835 = vmatmul.mubr.f32.gmra.mxu0 %v4834
    %v4836 = vpop.f32.mrf.mxu0
    %v4837 = vadd.f32 %v3921, %v4836
    %v4838 = vpop.f32.mrf.mxu0
    %v4839 = vand.u32 %v135, 4294901760
    %4840 = vmatprep.mubr.f32.mxu0 %v4839
    %v4841 = vand.u32 %v134, 4294901760
    %4842 = vmatmul.mubr.f32.gmra.mxu0 %v4841
    %v4843 = vpop.f32.mrf.mxu0
    %v4844 = vadd.f32 %v3932, %v4843
    %v4845 = vpop.f32.mrf.mxu0
    %v4846 = vand.u32 %v137, 4294901760
    %4847 = vmatprep.mubr.f32.mxu0 %v4846
    %v4848 = vand.u32 %v136, 4294901760
    %4849 = vmatmul.mubr.f32.gmra.mxu0 %v4848
    %v4850 = vpop.f32.mrf.mxu0
    %v4851 = vadd.f32 %v3943, %v4850
    %v4852 = vpop.f32.mrf.mxu0
    %v4853 = vand.u32 %v139, 4294901760
    %4854 = vmatprep.mubr.f32.mxu0 %v4853
    %v4855 = vand.u32 %v138, 4294901760
    %4856 = vmatmul.mubr.f32.gmra.mxu0 %v4855
    %v4857 = vpop.f32.mrf.mxu0
    %v4858 = vadd.f32 %v3954, %v4857
    %v4859 = vpop.f32.mrf.mxu0
    %v4860 = vand.u32 %v141, 4294901760
    %4861 = vmatprep.mubr.f32.mxu0 %v4860
    %v4862 = vand.u32 %v140, 4294901760
    %4863 = vmatmul.mubr.f32.gmra.mxu0 %v4862
    %v4864 = vpop.f32.mrf.mxu0
    %v4865 = vadd.f32 %v3965, %v4864
    %v4866 = vpop.f32.mrf.mxu0
    %v4867 = vand.u32 %v143, 4294901760
    %4868 = vmatprep.mubr.f32.mxu0 %v4867
    %v4869 = vand.u32 %v142, 4294901760
    %4870 = vmatmul.mubr.f32.gmra.mxu0 %v4869
    %v4871 = vpop.f32.mrf.mxu0
    %v4872 = vadd.f32 %v3976, %v4871
    %v4873 = vpop.f32.mrf.mxu0
    %v4874 = vand.u32 %v145, 4294901760
    %4875 = vmatprep.mubr.f32.mxu0 %v4874
    %v4876 = vand.u32 %v144, 4294901760
    %4877 = vmatmul.mubr.f32.gmra.mxu0 %v4876
    %v4878 = vpop.f32.mrf.mxu0
    %v4879 = vadd.f32 %v3987, %v4878
    %v4880 = vpop.f32.mrf.mxu0
    %v4881 = vand.u32 %v147, 4294901760
    %4882 = vmatprep.mubr.f32.mxu0 %v4881
    %v4883 = vand.u32 %v146, 4294901760
    %4884 = vmatmul.mubr.f32.gmra.mxu0 %v4883
    %v4885 = vpop.f32.mrf.mxu0
    %v4886 = vadd.f32 %v3998, %v4885
    %v4887 = vpop.f32.mrf.mxu0
    %v4888 = vand.u32 %v149, 4294901760
    %4889 = vmatprep.mubr.f32.mxu0 %v4888
    %v4890 = vand.u32 %v148, 4294901760
    %4891 = vmatmul.mubr.f32.gmra.mxu0 %v4890
    %v4892 = vpop.f32.mrf.mxu0
    %v4893 = vadd.f32 %v4009, %v4892
    %v4894 = vpop.f32.mrf.mxu0
    %v4895 = vand.u32 %v151, 4294901760
    %4896 = vmatprep.mubr.f32.mxu0 %v4895
    %v4897 = vand.u32 %v150, 4294901760
    %4898 = vmatmul.mubr.f32.gmra.mxu0 %v4897
    %v4899 = vpop.f32.mrf.mxu0
    %v4900 = vadd.f32 %v4020, %v4899
    %v4901 = vpop.f32.mrf.mxu0
    %v4902 = vand.u32 %v153, 4294901760
    %4903 = vmatprep.mubr.f32.mxu0 %v4902
    %v4904 = vand.u32 %v152, 4294901760
    %4905 = vmatmul.mubr.f32.gmra.mxu0 %v4904
    %v4906 = vpop.f32.mrf.mxu0
    %v4907 = vadd.f32 %v4031, %v4906
    %v4908 = vpop.f32.mrf.mxu0
    %v4909 = vand.u32 %v155, 4294901760
    %4910 = vmatprep.mubr.f32.mxu0 %v4909
    %v4911 = vand.u32 %v154, 4294901760
    %4912 = vmatmul.mubr.f32.gmra.mxu0 %v4911
    %v4913 = vpop.f32.mrf.mxu0
    %v4914 = vadd.f32 %v4042, %v4913
    %v4915 = vpop.f32.mrf.mxu0
    %v4916 = vand.u32 %v157, 4294901760
    %4917 = vmatprep.mubr.f32.mxu0 %v4916
    %v4918 = vand.u32 %v156, 4294901760
    %4919 = vmatmul.mubr.f32.gmra.mxu0 %v4918
    %v4920 = vpop.f32.mrf.mxu0
    %v4921 = vadd.f32 %v4053, %v4920
    %v4922 = vpop.f32.mrf.mxu0
    %v4923 = vand.u32 %v159, 4294901760
    %4924 = vmatprep.mubr.f32.mxu0 %v4923
    %v4925 = vand.u32 %v158, 4294901760
    %4926 = vmatmul.mubr.f32.gmra.mxu0 %v4925
    %v4927 = vpop.f32.mrf.mxu0
    %v4928 = vadd.f32 %v4064, %v4927
    %v4929 = vpop.f32.mrf.mxu0
    %v4930 = vand.u32 %v161, 4294901760
    %4931 = vmatprep.mubr.f32.mxu0 %v4930
    %v4932 = vand.u32 %v160, 4294901760
    %4933 = vmatmul.mubr.f32.gmra.mxu0 %v4932
    %v4934 = vpop.f32.mrf.mxu0
    %v4935 = vadd.f32 %v4075, %v4934
    %v4936 = vpop.f32.mrf.mxu0
    %v4937 = vand.u32 %v163, 4294901760
    %4938 = vmatprep.mubr.f32.mxu0 %v4937
    %v4939 = vand.u32 %v162, 4294901760
    %4940 = vmatmul.mubr.f32.gmra.mxu0 %v4939
    %v4941 = vpop.f32.mrf.mxu0
    %v4942 = vadd.f32 %v4086, %v4941
    %v4943 = vpop.f32.mrf.mxu0
    %v4944 = vand.u32 %v165, 4294901760
    %4945 = vmatprep.mubr.f32.mxu0 %v4944
    %v4946 = vand.u32 %v164, 4294901760
    %4947 = vmatmul.mubr.f32.gmra.mxu0 %v4946
    %v4948 = vpop.f32.mrf.mxu0
    %v4949 = vadd.f32 %v4097, %v4948
    %v4950 = vpop.f32.mrf.mxu0
    %v4951 = vand.u32 %v167, 4294901760
    %4952 = vmatprep.mubr.f32.mxu0 %v4951
    %v4953 = vand.u32 %v166, 4294901760
    %4954 = vmatmul.mubr.f32.gmra.mxu0 %v4953
    %v4955 = vpop.f32.mrf.mxu0
    %v4956 = vadd.f32 %v4108, %v4955
    %v4957 = vpop.f32.mrf.mxu0
    %v4958 = vand.u32 %v169, 4294901760
    %4959 = vmatprep.mubr.f32.mxu0 %v4958
    %v4960 = vand.u32 %v168, 4294901760
    %4961 = vmatmul.mubr.f32.gmra.mxu0 %v4960
    %v4962 = vpop.f32.mrf.mxu0
    %v4963 = vadd.f32 %v4119, %v4962
    %v4964 = vpop.f32.mrf.mxu0
    %v4965 = vand.u32 %v171, 4294901760
    %4966 = vmatprep.mubr.f32.mxu0 %v4965
    %v4967 = vand.u32 %v170, 4294901760
    %4968 = vmatmul.mubr.f32.gmra.mxu0 %v4967
    %v4969 = vpop.f32.mrf.mxu0
    %v4970 = vadd.f32 %v4130, %v4969
    %v4971 = vpop.f32.mrf.mxu0
    %v4972 = vand.u32 %v173, 4294901760
    %4973 = vmatprep.mubr.f32.mxu0 %v4972
    %v4974 = vand.u32 %v172, 4294901760
    %4975 = vmatmul.mubr.f32.gmra.mxu0 %v4974
    %v4976 = vpop.f32.mrf.mxu0
    %v4977 = vadd.f32 %v4141, %v4976
    %v4978 = vpop.f32.mrf.mxu0
    %v4979 = vand.u32 %v175, 4294901760
    %4980 = vmatprep.mubr.f32.mxu0 %v4979
    %v4981 = vand.u32 %v174, 4294901760
    %4982 = vmatmul.mubr.f32.gmra.mxu0 %v4981
    %v4983 = vpop.f32.mrf.mxu0
    %v4984 = vadd.f32 %v4152, %v4983
    %v4985 = vpop.f32.mrf.mxu0
    %v4986 = vand.u32 %v177, 4294901760
    %4987 = vmatprep.mubr.f32.mxu0 %v4986
    %v4988 = vand.u32 %v176, 4294901760
    %4989 = vmatmul.mubr.f32.gmra.mxu0 %v4988
    %v4990 = vpop.f32.mrf.mxu0
    %v4991 = vadd.f32 %v4163, %v4990
    %v4992 = vpop.f32.mrf.mxu0
    %v4993 = vand.u32 %v179, 4294901760
    %4994 = vmatprep.mubr.f32.mxu0 %v4993
    %v4995 = vand.u32 %v178, 4294901760
    %4996 = vmatmul.mubr.f32.gmra.mxu0 %v4995
    %v4997 = vpop.f32.mrf.mxu0
    %v4998 = vadd.f32 %v4174, %v4997
    %v4999 = vpop.f32.mrf.mxu0
    %v5000 = vand.u32 %v181, 4294901760
    %5001 = vmatprep.mubr.f32.mxu0 %v5000
    %v5002 = vand.u32 %v180, 4294901760
    %5003 = vmatmul.mubr.f32.gmra.mxu0 %v5002
    %v5004 = vpop.f32.mrf.mxu0
    %v5005 = vadd.f32 %v4185, %v5004
    %v5006 = vpop.f32.mrf.mxu0
    %v5007 = vand.u32 %v183, 4294901760
    %5008 = vmatprep.mubr.f32.mxu0 %v5007
    %v5009 = vand.u32 %v182, 4294901760
    %5010 = vmatmul.mubr.f32.gmra.mxu0 %v5009
    %v5011 = vpop.f32.mrf.mxu0
    %v5012 = vadd.f32 %v4196, %v5011
    %v5013 = vpop.f32.mrf.mxu0
    %v5014 = vand.u32 %v185, 4294901760
    %5015 = vmatprep.mubr.f32.mxu0 %v5014
    %v5016 = vand.u32 %v184, 4294901760
    %5017 = vmatmul.mubr.f32.gmra.mxu0 %v5016
    %v5018 = vpop.f32.mrf.mxu0
    %v5019 = vadd.f32 %v4207, %v5018
    %v5020 = vpop.f32.mrf.mxu0
    %v5021 = vand.u32 %v187, 4294901760
    %5022 = vmatprep.mubr.f32.mxu0 %v5021
    %v5023 = vand.u32 %v186, 4294901760
    %5024 = vmatmul.mubr.f32.gmra.mxu0 %v5023
    %v5025 = vpop.f32.mrf.mxu0
    %v5026 = vadd.f32 %v4218, %v5025
    %v5027 = vpop.f32.mrf.mxu0
    %v5028 = vand.u32 %v189, 4294901760
    %5029 = vmatprep.mubr.f32.mxu0 %v5028
    %v5030 = vand.u32 %v188, 4294901760
    %5031 = vmatmul.mubr.f32.gmra.mxu0 %v5030
    %v5032 = vpop.f32.mrf.mxu0
    %v5033 = vadd.f32 %v4229, %v5032
    %v5034 = vpop.f32.mrf.mxu0
    %v5035 = vand.u32 %v191, 4294901760
    %5036 = vmatprep.mubr.f32.mxu0 %v5035
    %v5037 = vand.u32 %v190, 4294901760
    %5038 = vmatmul.mubr.f32.gmra.mxu0 %v5037
    %v5039 = vpop.f32.mrf.mxu0
    %v5040 = vadd.f32 %v4240, %v5039
    %v5041 = vpop.f32.mrf.mxu0
    %v5042 = vand.u32 %v193, 4294901760
    %5043 = vmatprep.mubr.f32.mxu0 %v5042
    %v5044 = vand.u32 %v192, 4294901760
    %5045 = vmatmul.mubr.f32.gmra.mxu0 %v5044
    %v5046 = vpop.f32.mrf.mxu0
    %v5047 = vadd.f32 %v4251, %v5046
    %v5048 = vpop.f32.mrf.mxu0
    %v5049 = vand.u32 %v195, 4294901760
    %5050 = vmatprep.mubr.f32.mxu0 %v5049
    %v5051 = vand.u32 %v194, 4294901760
    %5052 = vmatmul.mubr.f32.gmra.mxu0 %v5051
    %v5053 = vpop.f32.mrf.mxu0
    %v5054 = vadd.f32 %v4262, %v5053
    %v5055 = vpop.f32.mrf.mxu0
    %v5056 = vand.u32 %v197, 4294901760
    %5057 = vmatprep.mubr.f32.mxu0 %v5056
    %v5058 = vand.u32 %v196, 4294901760
    %5059 = vmatmul.mubr.f32.gmra.mxu0 %v5058
    %v5060 = vpop.f32.mrf.mxu0
    %v5061 = vadd.f32 %v4273, %v5060
    %v5062 = vpop.f32.mrf.mxu0
    %v5063 = vand.u32 %v199, 4294901760
    %5064 = vmatprep.mubr.f32.mxu0 %v5063
    %v5065 = vand.u32 %v198, 4294901760
    %5066 = vmatmul.mubr.f32.gmra.mxu0 %v5065
    %v5067 = vpop.f32.mrf.mxu0
    %v5068 = vadd.f32 %v4284, %v5067
    %v5069 = vpop.f32.mrf.mxu0
    %v5070 = vand.u32 %v201, 4294901760
    %5071 = vmatprep.mubr.f32.mxu0 %v5070
    %v5072 = vand.u32 %v200, 4294901760
    %5073 = vmatmul.mubr.f32.gmra.mxu0 %v5072
    %v5074 = vpop.f32.mrf.mxu0
    %v5075 = vadd.f32 %v4295, %v5074
    %v5076 = vpop.f32.mrf.mxu0
    %v5077 = vand.u32 %v203, 4294901760
    %5078 = vmatprep.mubr.f32.mxu0 %v5077
    %v5079 = vand.u32 %v202, 4294901760
    %5080 = vmatmul.mubr.f32.gmra.mxu0 %v5079
    %v5081 = vpop.f32.mrf.mxu0
    %v5082 = vadd.f32 %v4306, %v5081
    %v5083 = vpop.f32.mrf.mxu0
    %v5084 = vand.u32 %v205, 4294901760
    %5085 = vmatprep.mubr.f32.mxu0 %v5084
    %v5086 = vand.u32 %v204, 4294901760
    %5087 = vmatmul.mubr.f32.gmra.mxu0 %v5086
    %v5088 = vpop.f32.mrf.mxu0
    %v5089 = vadd.f32 %v4317, %v5088
    %v5090 = vpop.f32.mrf.mxu0
    %v5091 = vand.u32 %v207, 4294901760
    %5092 = vmatprep.mubr.f32.mxu0 %v5091
    %v5093 = vand.u32 %v206, 4294901760
    %5094 = vmatmul.mubr.f32.gmra.mxu0 %v5093
    %v5095 = vpop.f32.mrf.mxu0
    %v5096 = vadd.f32 %v4328, %v5095
    %v5097 = vpop.f32.mrf.mxu0
    %v5098 = vand.u32 %v209, 4294901760
    %5099 = vmatprep.mubr.f32.mxu0 %v5098
    %v5100 = vand.u32 %v208, 4294901760
    %5101 = vmatmul.mubr.f32.gmra.mxu0 %v5100
    %v5102 = vpop.f32.mrf.mxu0
    %v5103 = vadd.f32 %v4339, %v5102
    %v5104 = vpop.f32.mrf.mxu0
    %v5105 = vand.u32 %v211, 4294901760
    %5106 = vmatprep.mubr.f32.mxu0 %v5105
    %v5107 = vand.u32 %v210, 4294901760
    %5108 = vmatmul.mubr.f32.gmra.mxu0 %v5107
    %v5109 = vpop.f32.mrf.mxu0
    %v5110 = vadd.f32 %v4350, %v5109
    %v5111 = vpop.f32.mrf.mxu0
    %v5112 = vand.u32 %v213, 4294901760
    %5113 = vmatprep.mubr.f32.mxu0 %v5112
    %v5114 = vand.u32 %v212, 4294901760
    %5115 = vmatmul.mubr.f32.gmra.mxu0 %v5114
    %v5116 = vpop.f32.mrf.mxu0
    %v5117 = vadd.f32 %v4361, %v5116
    %v5118 = vpop.f32.mrf.mxu0
    %5119 = vdwg.mxu0
    %5120 = vmatprep.subr.mxu0 0.0
    %v5121 = vand.u32 %v229, 4294901760
    %5122 = vmatpush1.msra.mxu0 %v5121
    %5123 = vmatprep.subr.mxu0 0.0
    %v5124 = vand.u32 %v228, 4294901760
    %5125 = vmatpush1.msra.mxu0 %v5124
    %5126 = vmatprep.subr.mxu0 0.0
    %v5127 = vand.u32 %v227, 4294901760
    %5128 = vmatpush1.msra.mxu0 %v5127
    %5129 = vmatprep.subr.mxu0 0.0
    %v5130 = vand.u32 %v226, 4294901760
    %5131 = vmatpush1.msra.mxu0 %v5130
    %5132 = vmatprep.subr.mxu0 0.0
    %v5133 = vand.u32 %v225, 4294901760
    %5134 = vmatpush1.msra.mxu0 %v5133
    %5135 = vmatprep.subr.mxu0 0.0
    %v5136 = vand.u32 %v224, 4294901760
    %5137 = vmatpush1.msra.mxu0 %v5136
    %5138 = vmatprep.subr.mxu0 0.0
    %v5139 = vand.u32 %v223, 4294901760
    %5140 = vmatpush1.msra.mxu0 %v5139
    %5141 = vmatprep.subr.mxu0 0.0
    %v5142 = vand.u32 %v222, 4294901760
    %5143 = vmatpush1.msra.mxu0 %v5142
    %5144 = vmatprep.subr.mxu0 0.0
    %v5145 = vand.u32 %v221, 4294901760
    %5146 = vmatpush1.msra.mxu0 %v5145
    %5147 = vmatprep.subr.mxu0 0.0
    %v5148 = vand.u32 %v220, 4294901760
    %5149 = vmatpush1.msra.mxu0 %v5148
    %5150 = vmatprep.subr.mxu0 0.0
    %v5151 = vand.u32 %v219, 4294901760
    %5152 = vmatpush1.msra.mxu0 %v5151
    %5153 = vmatprep.subr.mxu0 0.0
    %v5154 = vand.u32 %v218, 4294901760
    %5155 = vmatpush1.msra.mxu0 %v5154
    %5156 = vmatprep.subr.mxu0 0.0
    %v5157 = vand.u32 %v217, 4294901760
    %5158 = vmatpush1.msra.mxu0 %v5157
    %5159 = vmatprep.subr.mxu0 0.0
    %v5160 = vand.u32 %v216, 4294901760
    %5161 = vmatpush1.msra.mxu0 %v5160
    %5162 = vmatprep.subr.mxu0 0.0
    %v5163 = vand.u32 %v215, 4294901760
    %5164 = vmatpush1.msra.mxu0 %v5163
    %5165 = vmatprep.subr.mxu0 0.0
    %v5166 = vand.u32 %v214, 4294901760
    %5167 = vmatpush1.msra.mxu0 %v5166
    %5168 = vmatprep.subr.mxu0 0.0
    %v5169 = vand.u32 %v245, 4294901760
    %5170 = vmatpush2.msra.mxu0 %v5169
    %5171 = vmatprep.subr.mxu0 0.0
    %v5172 = vand.u32 %v244, 4294901760
    %5173 = vmatpush2.msra.mxu0 %v5172
    %5174 = vmatprep.subr.mxu0 0.0
    %v5175 = vand.u32 %v243, 4294901760
    %5176 = vmatpush2.msra.mxu0 %v5175
    %5177 = vmatprep.subr.mxu0 0.0
    %v5178 = vand.u32 %v242, 4294901760
    %5179 = vmatpush2.msra.mxu0 %v5178
    %5180 = vmatprep.subr.mxu0 0.0
    %v5181 = vand.u32 %v241, 4294901760
    %5182 = vmatpush2.msra.mxu0 %v5181
    %5183 = vmatprep.subr.mxu0 0.0
    %v5184 = vand.u32 %v240, 4294901760
    %5185 = vmatpush2.msra.mxu0 %v5184
    %5186 = vmatprep.subr.mxu0 0.0
    %v5187 = vand.u32 %v239, 4294901760
    %5188 = vmatpush2.msra.mxu0 %v5187
    %5189 = vmatprep.subr.mxu0 0.0
    %v5190 = vand.u32 %v238, 4294901760
    %5191 = vmatpush2.msra.mxu0 %v5190
    %5192 = vmatprep.subr.mxu0 0.0
    %v5193 = vand.u32 %v237, 4294901760
    %5194 = vmatpush2.msra.mxu0 %v5193
    %5195 = vmatprep.subr.mxu0 0.0
    %v5196 = vand.u32 %v236, 4294901760
    %5197 = vmatpush2.msra.mxu0 %v5196
    %5198 = vmatprep.subr.mxu0 0.0
    %v5199 = vand.u32 %v235, 4294901760
    %5200 = vmatpush2.msra.mxu0 %v5199
    %5201 = vmatprep.subr.mxu0 0.0
    %v5202 = vand.u32 %v234, 4294901760
    %5203 = vmatpush2.msra.mxu0 %v5202
    %5204 = vmatprep.subr.mxu0 0.0
    %v5205 = vand.u32 %v233, 4294901760
    %5206 = vmatpush2.msra.mxu0 %v5205
    %5207 = vmatprep.subr.mxu0 0.0
    %v5208 = vand.u32 %v232, 4294901760
    %5209 = vmatpush2.msra.mxu0 %v5208
    %5210 = vmatprep.subr.mxu0 0.0
    %v5211 = vand.u32 %v231, 4294901760
    %5212 = vmatpush2.msra.mxu0 %v5211
    %5213 = vmatprep.subr.mxu0 0.0
    %v5214 = vand.u32 %v230, 4294901760
    %5215 = vmatpush2.msra.mxu0 %v5214
    %v5216 = vand.u32 %v45, 4294901760
    %5217 = vmatprep.mubr.f32.mxu0 %v5216
    %v5218 = vand.u32 %v44, 4294901760
    %5219 = vmatmul.mubr.f32.gmra.mxu0 %v5218
    %v5220 = vpop.f32.mrf.mxu0
    %v5221 = vadd.f32 %v4529, %v5220
    %v5222 = vpop.f32.mrf.mxu0
    %v5223 = vand.u32 %v47, 4294901760
    %5224 = vmatprep.mubr.f32.mxu0 %v5223
    %v5225 = vand.u32 %v46, 4294901760
    %5226 = vmatmul.mubr.f32.gmra.mxu0 %v5225
    %v5227 = vpop.f32.mrf.mxu0
    %v5228 = vadd.f32 %v4536, %v5227
    %v5229 = vpop.f32.mrf.mxu0
    %v5230 = vand.u32 %v49, 4294901760
    %5231 = vmatprep.mubr.f32.mxu0 %v5230
    %v5232 = vand.u32 %v48, 4294901760
    %5233 = vmatmul.mubr.f32.gmra.mxu0 %v5232
    %v5234 = vpop.f32.mrf.mxu0
    %v5235 = vadd.f32 %v4543, %v5234
    %v5236 = vpop.f32.mrf.mxu0
    %v5237 = vand.u32 %v51, 4294901760
    %5238 = vmatprep.mubr.f32.mxu0 %v5237
    %v5239 = vand.u32 %v50, 4294901760
    %5240 = vmatmul.mubr.f32.gmra.mxu0 %v5239
    %v5241 = vpop.f32.mrf.mxu0
    %v5242 = vadd.f32 %v4550, %v5241
    %v5243 = vpop.f32.mrf.mxu0
    %v5244 = vand.u32 %v53, 4294901760
    %5245 = vmatprep.mubr.f32.mxu0 %v5244
    %v5246 = vand.u32 %v52, 4294901760
    %5247 = vmatmul.mubr.f32.gmra.mxu0 %v5246
    %v5248 = vpop.f32.mrf.mxu0
    %v5249 = vadd.f32 %v4557, %v5248
    %v5250 = vpop.f32.mrf.mxu0
    %v5251 = vand.u32 %v55, 4294901760
    %5252 = vmatprep.mubr.f32.mxu0 %v5251
    %v5253 = vand.u32 %v54, 4294901760
    %5254 = vmatmul.mubr.f32.gmra.mxu0 %v5253
    %v5255 = vpop.f32.mrf.mxu0
    %v5256 = vadd.f32 %v4564, %v5255
    %v5257 = vpop.f32.mrf.mxu0
    %v5258 = vand.u32 %v57, 4294901760
    %5259 = vmatprep.mubr.f32.mxu0 %v5258
    %v5260 = vand.u32 %v56, 4294901760
    %5261 = vmatmul.mubr.f32.gmra.mxu0 %v5260
    %v5262 = vpop.f32.mrf.mxu0
    %v5263 = vadd.f32 %v4571, %v5262
    %v5264 = vpop.f32.mrf.mxu0
    %v5265 = vand.u32 %v59, 4294901760
    %5266 = vmatprep.mubr.f32.mxu0 %v5265
    %v5267 = vand.u32 %v58, 4294901760
    %5268 = vmatmul.mubr.f32.gmra.mxu0 %v5267
    %v5269 = vpop.f32.mrf.mxu0
    %v5270 = vadd.f32 %v4578, %v5269
    %v5271 = vpop.f32.mrf.mxu0
    %v5272 = vand.u32 %v61, 4294901760
    %5273 = vmatprep.mubr.f32.mxu0 %v5272
    %v5274 = vand.u32 %v60, 4294901760
    %5275 = vmatmul.mubr.f32.gmra.mxu0 %v5274
    %v5276 = vpop.f32.mrf.mxu0
    %v5277 = vadd.f32 %v4585, %v5276
    %v5278 = vpop.f32.mrf.mxu0
    %v5279 = vand.u32 %v63, 4294901760
    %5280 = vmatprep.mubr.f32.mxu0 %v5279
    %v5281 = vand.u32 %v62, 4294901760
    %5282 = vmatmul.mubr.f32.gmra.mxu0 %v5281
    %v5283 = vpop.f32.mrf.mxu0
    %v5284 = vadd.f32 %v4592, %v5283
    %v5285 = vpop.f32.mrf.mxu0
    %v5286 = vand.u32 %v65, 4294901760
    %5287 = vmatprep.mubr.f32.mxu0 %v5286
    %v5288 = vand.u32 %v64, 4294901760
    %5289 = vmatmul.mubr.f32.gmra.mxu0 %v5288
    %v5290 = vpop.f32.mrf.mxu0
    %v5291 = vadd.f32 %v4599, %v5290
    %v5292 = vpop.f32.mrf.mxu0
    %v5293 = vand.u32 %v67, 4294901760
    %5294 = vmatprep.mubr.f32.mxu0 %v5293
    %v5295 = vand.u32 %v66, 4294901760
    %5296 = vmatmul.mubr.f32.gmra.mxu0 %v5295
    %v5297 = vpop.f32.mrf.mxu0
    %v5298 = vadd.f32 %v4606, %v5297
    %v5299 = vpop.f32.mrf.mxu0
    %v5300 = vand.u32 %v69, 4294901760
    %5301 = vmatprep.mubr.f32.mxu0 %v5300
    %v5302 = vand.u32 %v68, 4294901760
    %5303 = vmatmul.mubr.f32.gmra.mxu0 %v5302
    %v5304 = vpop.f32.mrf.mxu0
    %v5305 = vadd.f32 %v4613, %v5304
    %v5306 = vpop.f32.mrf.mxu0
    %v5307 = vand.u32 %v71, 4294901760
    %5308 = vmatprep.mubr.f32.mxu0 %v5307
    %v5309 = vand.u32 %v70, 4294901760
    %5310 = vmatmul.mubr.f32.gmra.mxu0 %v5309
    %v5311 = vpop.f32.mrf.mxu0
    %v5312 = vadd.f32 %v4620, %v5311
    %v5313 = vpop.f32.mrf.mxu0
    %v5314 = vand.u32 %v73, 4294901760
    %5315 = vmatprep.mubr.f32.mxu0 %v5314
    %v5316 = vand.u32 %v72, 4294901760
    %5317 = vmatmul.mubr.f32.gmra.mxu0 %v5316
    %v5318 = vpop.f32.mrf.mxu0
    %v5319 = vadd.f32 %v4627, %v5318
    %v5320 = vpop.f32.mrf.mxu0
    %v5321 = vand.u32 %v75, 4294901760
    %5322 = vmatprep.mubr.f32.mxu0 %v5321
    %v5323 = vand.u32 %v74, 4294901760
    %5324 = vmatmul.mubr.f32.gmra.mxu0 %v5323
    %v5325 = vpop.f32.mrf.mxu0
    %v5326 = vadd.f32 %v4634, %v5325
    %v5327 = vpop.f32.mrf.mxu0
    %v5328 = vand.u32 %v77, 4294901760
    %5329 = vmatprep.mubr.f32.mxu0 %v5328
    %v5330 = vand.u32 %v76, 4294901760
    %5331 = vmatmul.mubr.f32.gmra.mxu0 %v5330
    %v5332 = vpop.f32.mrf.mxu0
    %v5333 = vadd.f32 %v4641, %v5332
    %v5334 = vpop.f32.mrf.mxu0
    %v5335 = vand.u32 %v79, 4294901760
    %5336 = vmatprep.mubr.f32.mxu0 %v5335
    %v5337 = vand.u32 %v78, 4294901760
    %5338 = vmatmul.mubr.f32.gmra.mxu0 %v5337
    %v5339 = vpop.f32.mrf.mxu0
    %v5340 = vadd.f32 %v4648, %v5339
    %v5341 = vpop.f32.mrf.mxu0
    %v5342 = vand.u32 %v81, 4294901760
    %5343 = vmatprep.mubr.f32.mxu0 %v5342
    %v5344 = vand.u32 %v80, 4294901760
    %5345 = vmatmul.mubr.f32.gmra.mxu0 %v5344
    %v5346 = vpop.f32.mrf.mxu0
    %v5347 = vadd.f32 %v4655, %v5346
    %v5348 = vpop.f32.mrf.mxu0
    %v5349 = vand.u32 %v83, 4294901760
    %5350 = vmatprep.mubr.f32.mxu0 %v5349
    %v5351 = vand.u32 %v82, 4294901760
    %5352 = vmatmul.mubr.f32.gmra.mxu0 %v5351
    %v5353 = vpop.f32.mrf.mxu0
    %v5354 = vadd.f32 %v4662, %v5353
    %v5355 = vpop.f32.mrf.mxu0
    %v5356 = vand.u32 %v85, 4294901760
    %5357 = vmatprep.mubr.f32.mxu0 %v5356
    %v5358 = vand.u32 %v84, 4294901760
    %5359 = vmatmul.mubr.f32.gmra.mxu0 %v5358
    %v5360 = vpop.f32.mrf.mxu0
    %v5361 = vadd.f32 %v4669, %v5360
    %v5362 = vpop.f32.mrf.mxu0
    %v5363 = vand.u32 %v87, 4294901760
    %5364 = vmatprep.mubr.f32.mxu0 %v5363
    %v5365 = vand.u32 %v86, 4294901760
    %5366 = vmatmul.mubr.f32.gmra.mxu0 %v5365
    %v5367 = vpop.f32.mrf.mxu0
    %v5368 = vadd.f32 %v4676, %v5367
    %v5369 = vpop.f32.mrf.mxu0
    %v5370 = vand.u32 %v89, 4294901760
    %5371 = vmatprep.mubr.f32.mxu0 %v5370
    %v5372 = vand.u32 %v88, 4294901760
    %5373 = vmatmul.mubr.f32.gmra.mxu0 %v5372
    %v5374 = vpop.f32.mrf.mxu0
    %v5375 = vadd.f32 %v4683, %v5374
    %v5376 = vpop.f32.mrf.mxu0
    %v5377 = vand.u32 %v91, 4294901760
    %5378 = vmatprep.mubr.f32.mxu0 %v5377
    %v5379 = vand.u32 %v90, 4294901760
    %5380 = vmatmul.mubr.f32.gmra.mxu0 %v5379
    %v5381 = vpop.f32.mrf.mxu0
    %v5382 = vadd.f32 %v4690, %v5381
    %v5383 = vpop.f32.mrf.mxu0
    %v5384 = vand.u32 %v93, 4294901760
    %5385 = vmatprep.mubr.f32.mxu0 %v5384
    %v5386 = vand.u32 %v92, 4294901760
    %5387 = vmatmul.mubr.f32.gmra.mxu0 %v5386
    %v5388 = vpop.f32.mrf.mxu0
    %v5389 = vadd.f32 %v4697, %v5388
    %v5390 = vpop.f32.mrf.mxu0
    %v5391 = vand.u32 %v95, 4294901760
    %5392 = vmatprep.mubr.f32.mxu0 %v5391
    %v5393 = vand.u32 %v94, 4294901760
    %5394 = vmatmul.mubr.f32.gmra.mxu0 %v5393
    %v5395 = vpop.f32.mrf.mxu0
    %v5396 = vadd.f32 %v4704, %v5395
    %v5397 = vpop.f32.mrf.mxu0
    %v5398 = vand.u32 %v97, 4294901760
    %5399 = vmatprep.mubr.f32.mxu0 %v5398
    %v5400 = vand.u32 %v96, 4294901760
    %5401 = vmatmul.mubr.f32.gmra.mxu0 %v5400
    %v5402 = vpop.f32.mrf.mxu0
    %v5403 = vadd.f32 %v4711, %v5402
    %v5404 = vpop.f32.mrf.mxu0
    %v5405 = vand.u32 %v99, 4294901760
    %5406 = vmatprep.mubr.f32.mxu0 %v5405
    %v5407 = vand.u32 %v98, 4294901760
    %5408 = vmatmul.mubr.f32.gmra.mxu0 %v5407
    %v5409 = vpop.f32.mrf.mxu0
    %v5410 = vadd.f32 %v4718, %v5409
    %v5411 = vpop.f32.mrf.mxu0
    %v5412 = vand.u32 %v101, 4294901760
    %5413 = vmatprep.mubr.f32.mxu0 %v5412
    %v5414 = vand.u32 %v100, 4294901760
    %5415 = vmatmul.mubr.f32.gmra.mxu0 %v5414
    %v5416 = vpop.f32.mrf.mxu0
    %v5417 = vadd.f32 %v4725, %v5416
    %v5418 = vpop.f32.mrf.mxu0
    %v5419 = vand.u32 %v103, 4294901760
    %5420 = vmatprep.mubr.f32.mxu0 %v5419
    %v5421 = vand.u32 %v102, 4294901760
    %5422 = vmatmul.mubr.f32.gmra.mxu0 %v5421
    %v5423 = vpop.f32.mrf.mxu0
    %v5424 = vadd.f32 %v4732, %v5423
    %v5425 = vpop.f32.mrf.mxu0
    %v5426 = vand.u32 %v105, 4294901760
    %5427 = vmatprep.mubr.f32.mxu0 %v5426
    %v5428 = vand.u32 %v104, 4294901760
    %5429 = vmatmul.mubr.f32.gmra.mxu0 %v5428
    %v5430 = vpop.f32.mrf.mxu0
    %v5431 = vadd.f32 %v4739, %v5430
    %v5432 = vpop.f32.mrf.mxu0
    %v5433 = vand.u32 %v107, 4294901760
    %5434 = vmatprep.mubr.f32.mxu0 %v5433
    %v5435 = vand.u32 %v106, 4294901760
    %5436 = vmatmul.mubr.f32.gmra.mxu0 %v5435
    %v5437 = vpop.f32.mrf.mxu0
    %v5438 = vadd.f32 %v4746, %v5437
    %v5439 = vpop.f32.mrf.mxu0
    %v5440 = vand.u32 %v109, 4294901760
    %5441 = vmatprep.mubr.f32.mxu0 %v5440
    %v5442 = vand.u32 %v108, 4294901760
    %5443 = vmatmul.mubr.f32.gmra.mxu0 %v5442
    %v5444 = vpop.f32.mrf.mxu0
    %v5445 = vadd.f32 %v4753, %v5444
    %v5446 = vpop.f32.mrf.mxu0
    %v5447 = vand.u32 %v111, 4294901760
    %5448 = vmatprep.mubr.f32.mxu0 %v5447
    %v5449 = vand.u32 %v110, 4294901760
    %5450 = vmatmul.mubr.f32.gmra.mxu0 %v5449
    %v5451 = vpop.f32.mrf.mxu0
    %v5452 = vadd.f32 %v4760, %v5451
    %v5453 = vpop.f32.mrf.mxu0
    %v5454 = vand.u32 %v113, 4294901760
    %5455 = vmatprep.mubr.f32.mxu0 %v5454
    %v5456 = vand.u32 %v112, 4294901760
    %5457 = vmatmul.mubr.f32.gmra.mxu0 %v5456
    %v5458 = vpop.f32.mrf.mxu0
    %v5459 = vadd.f32 %v4767, %v5458
    %v5460 = vpop.f32.mrf.mxu0
    %v5461 = vand.u32 %v115, 4294901760
    %5462 = vmatprep.mubr.f32.mxu0 %v5461
    %v5463 = vand.u32 %v114, 4294901760
    %5464 = vmatmul.mubr.f32.gmra.mxu0 %v5463
    %v5465 = vpop.f32.mrf.mxu0
    %v5466 = vadd.f32 %v4774, %v5465
    %v5467 = vpop.f32.mrf.mxu0
    %v5468 = vand.u32 %v117, 4294901760
    %5469 = vmatprep.mubr.f32.mxu0 %v5468
    %v5470 = vand.u32 %v116, 4294901760
    %5471 = vmatmul.mubr.f32.gmra.mxu0 %v5470
    %v5472 = vpop.f32.mrf.mxu0
    %v5473 = vadd.f32 %v4781, %v5472
    %v5474 = vpop.f32.mrf.mxu0
    %v5475 = vand.u32 %v119, 4294901760
    %5476 = vmatprep.mubr.f32.mxu0 %v5475
    %v5477 = vand.u32 %v118, 4294901760
    %5478 = vmatmul.mubr.f32.gmra.mxu0 %v5477
    %v5479 = vpop.f32.mrf.mxu0
    %v5480 = vadd.f32 %v4788, %v5479
    %v5481 = vpop.f32.mrf.mxu0
    %v5482 = vand.u32 %v121, 4294901760
    %5483 = vmatprep.mubr.f32.mxu0 %v5482
    %v5484 = vand.u32 %v120, 4294901760
    %5485 = vmatmul.mubr.f32.gmra.mxu0 %v5484
    %v5486 = vpop.f32.mrf.mxu0
    %v5487 = vadd.f32 %v4795, %v5486
    %v5488 = vpop.f32.mrf.mxu0
    %v5489 = vand.u32 %v123, 4294901760
    %5490 = vmatprep.mubr.f32.mxu0 %v5489
    %v5491 = vand.u32 %v122, 4294901760
    %5492 = vmatmul.mubr.f32.gmra.mxu0 %v5491
    %v5493 = vpop.f32.mrf.mxu0
    %v5494 = vadd.f32 %v4802, %v5493
    %v5495 = vpop.f32.mrf.mxu0
    %v5496 = vand.u32 %v125, 4294901760
    %5497 = vmatprep.mubr.f32.mxu0 %v5496
    %v5498 = vand.u32 %v124, 4294901760
    %5499 = vmatmul.mubr.f32.gmra.mxu0 %v5498
    %v5500 = vpop.f32.mrf.mxu0
    %v5501 = vadd.f32 %v4809, %v5500
    %v5502 = vpop.f32.mrf.mxu0
    %v5503 = vand.u32 %v127, 4294901760
    %5504 = vmatprep.mubr.f32.mxu0 %v5503
    %v5505 = vand.u32 %v126, 4294901760
    %5506 = vmatmul.mubr.f32.gmra.mxu0 %v5505
    %v5507 = vpop.f32.mrf.mxu0
    %v5508 = vadd.f32 %v4816, %v5507
    %v5509 = vpop.f32.mrf.mxu0
    %v5510 = vand.u32 %v129, 4294901760
    %5511 = vmatprep.mubr.f32.mxu0 %v5510
    %v5512 = vand.u32 %v128, 4294901760
    %5513 = vmatmul.mubr.f32.gmra.mxu0 %v5512
    %v5514 = vpop.f32.mrf.mxu0
    %v5515 = vadd.f32 %v4823, %v5514
    %v5516 = vpop.f32.mrf.mxu0
    %v5517 = vand.u32 %v131, 4294901760
    %5518 = vmatprep.mubr.f32.mxu0 %v5517
    %v5519 = vand.u32 %v130, 4294901760
    %5520 = vmatmul.mubr.f32.gmra.mxu0 %v5519
    %v5521 = vpop.f32.mrf.mxu0
    %v5522 = vadd.f32 %v4830, %v5521
    %v5523 = vpop.f32.mrf.mxu0
    %v5524 = vand.u32 %v133, 4294901760
    %5525 = vmatprep.mubr.f32.mxu0 %v5524
    %v5526 = vand.u32 %v132, 4294901760
    %5527 = vmatmul.mubr.f32.gmra.mxu0 %v5526
    %v5528 = vpop.f32.mrf.mxu0
    %v5529 = vadd.f32 %v4837, %v5528
    %v5530 = vpop.f32.mrf.mxu0
    %v5531 = vand.u32 %v135, 4294901760
    %5532 = vmatprep.mubr.f32.mxu0 %v5531
    %v5533 = vand.u32 %v134, 4294901760
    %5534 = vmatmul.mubr.f32.gmra.mxu0 %v5533
    %v5535 = vpop.f32.mrf.mxu0
    %v5536 = vadd.f32 %v4844, %v5535
    %v5537 = vpop.f32.mrf.mxu0
    %v5538 = vand.u32 %v137, 4294901760
    %5539 = vmatprep.mubr.f32.mxu0 %v5538
    %v5540 = vand.u32 %v136, 4294901760
    %5541 = vmatmul.mubr.f32.gmra.mxu0 %v5540
    %v5542 = vpop.f32.mrf.mxu0
    %v5543 = vadd.f32 %v4851, %v5542
    %v5544 = vpop.f32.mrf.mxu0
    %v5545 = vand.u32 %v139, 4294901760
    %5546 = vmatprep.mubr.f32.mxu0 %v5545
    %v5547 = vand.u32 %v138, 4294901760
    %5548 = vmatmul.mubr.f32.gmra.mxu0 %v5547
    %v5549 = vpop.f32.mrf.mxu0
    %v5550 = vadd.f32 %v4858, %v5549
    %v5551 = vpop.f32.mrf.mxu0
    %v5552 = vand.u32 %v141, 4294901760
    %5553 = vmatprep.mubr.f32.mxu0 %v5552
    %v5554 = vand.u32 %v140, 4294901760
    %5555 = vmatmul.mubr.f32.gmra.mxu0 %v5554
    %v5556 = vpop.f32.mrf.mxu0
    %v5557 = vadd.f32 %v4865, %v5556
    %v5558 = vpop.f32.mrf.mxu0
    %v5559 = vand.u32 %v143, 4294901760
    %5560 = vmatprep.mubr.f32.mxu0 %v5559
    %v5561 = vand.u32 %v142, 4294901760
    %5562 = vmatmul.mubr.f32.gmra.mxu0 %v5561
    %v5563 = vpop.f32.mrf.mxu0
    %v5564 = vadd.f32 %v4872, %v5563
    %v5565 = vpop.f32.mrf.mxu0
    %v5566 = vand.u32 %v145, 4294901760
    %5567 = vmatprep.mubr.f32.mxu0 %v5566
    %v5568 = vand.u32 %v144, 4294901760
    %5569 = vmatmul.mubr.f32.gmra.mxu0 %v5568
    %v5570 = vpop.f32.mrf.mxu0
    %v5571 = vadd.f32 %v4879, %v5570
    %v5572 = vpop.f32.mrf.mxu0
    %v5573 = vand.u32 %v147, 4294901760
    %5574 = vmatprep.mubr.f32.mxu0 %v5573
    %v5575 = vand.u32 %v146, 4294901760
    %5576 = vmatmul.mubr.f32.gmra.mxu0 %v5575
    %v5577 = vpop.f32.mrf.mxu0
    %v5578 = vadd.f32 %v4886, %v5577
    %v5579 = vpop.f32.mrf.mxu0
    %v5580 = vand.u32 %v149, 4294901760
    %5581 = vmatprep.mubr.f32.mxu0 %v5580
    %v5582 = vand.u32 %v148, 4294901760
    %5583 = vmatmul.mubr.f32.gmra.mxu0 %v5582
    %v5584 = vpop.f32.mrf.mxu0
    %v5585 = vadd.f32 %v4893, %v5584
    %v5586 = vpop.f32.mrf.mxu0
    %v5587 = vand.u32 %v151, 4294901760
    %5588 = vmatprep.mubr.f32.mxu0 %v5587
    %v5589 = vand.u32 %v150, 4294901760
    %5590 = vmatmul.mubr.f32.gmra.mxu0 %v5589
    %v5591 = vpop.f32.mrf.mxu0
    %v5592 = vadd.f32 %v4900, %v5591
    %v5593 = vpop.f32.mrf.mxu0
    %v5594 = vand.u32 %v153, 4294901760
    %5595 = vmatprep.mubr.f32.mxu0 %v5594
    %v5596 = vand.u32 %v152, 4294901760
    %5597 = vmatmul.mubr.f32.gmra.mxu0 %v5596
    %v5598 = vpop.f32.mrf.mxu0
    %v5599 = vadd.f32 %v4907, %v5598
    %v5600 = vpop.f32.mrf.mxu0
    %v5601 = vand.u32 %v155, 4294901760
    %5602 = vmatprep.mubr.f32.mxu0 %v5601
    %v5603 = vand.u32 %v154, 4294901760
    %5604 = vmatmul.mubr.f32.gmra.mxu0 %v5603
    %v5605 = vpop.f32.mrf.mxu0
    %v5606 = vadd.f32 %v4914, %v5605
    %v5607 = vpop.f32.mrf.mxu0
    %v5608 = vand.u32 %v157, 4294901760
    %5609 = vmatprep.mubr.f32.mxu0 %v5608
    %v5610 = vand.u32 %v156, 4294901760
    %5611 = vmatmul.mubr.f32.gmra.mxu0 %v5610
    %v5612 = vpop.f32.mrf.mxu0
    %v5613 = vadd.f32 %v4921, %v5612
    %v5614 = vpop.f32.mrf.mxu0
    %v5615 = vand.u32 %v159, 4294901760
    %5616 = vmatprep.mubr.f32.mxu0 %v5615
    %v5617 = vand.u32 %v158, 4294901760
    %5618 = vmatmul.mubr.f32.gmra.mxu0 %v5617
    %v5619 = vpop.f32.mrf.mxu0
    %v5620 = vadd.f32 %v4928, %v5619
    %v5621 = vpop.f32.mrf.mxu0
    %v5622 = vand.u32 %v161, 4294901760
    %5623 = vmatprep.mubr.f32.mxu0 %v5622
    %v5624 = vand.u32 %v160, 4294901760
    %5625 = vmatmul.mubr.f32.gmra.mxu0 %v5624
    %v5626 = vpop.f32.mrf.mxu0
    %v5627 = vadd.f32 %v4935, %v5626
    %v5628 = vpop.f32.mrf.mxu0
    %v5629 = vand.u32 %v163, 4294901760
    %5630 = vmatprep.mubr.f32.mxu0 %v5629
    %v5631 = vand.u32 %v162, 4294901760
    %5632 = vmatmul.mubr.f32.gmra.mxu0 %v5631
    %v5633 = vpop.f32.mrf.mxu0
    %v5634 = vadd.f32 %v4942, %v5633
    %v5635 = vpop.f32.mrf.mxu0
    %v5636 = vand.u32 %v165, 4294901760
    %5637 = vmatprep.mubr.f32.mxu0 %v5636
    %v5638 = vand.u32 %v164, 4294901760
    %5639 = vmatmul.mubr.f32.gmra.mxu0 %v5638
    %v5640 = vpop.f32.mrf.mxu0
    %v5641 = vadd.f32 %v4949, %v5640
    %v5642 = vpop.f32.mrf.mxu0
    %v5643 = vand.u32 %v167, 4294901760
    %5644 = vmatprep.mubr.f32.mxu0 %v5643
    %v5645 = vand.u32 %v166, 4294901760
    %5646 = vmatmul.mubr.f32.gmra.mxu0 %v5645
    %v5647 = vpop.f32.mrf.mxu0
    %v5648 = vadd.f32 %v4956, %v5647
    %v5649 = vpop.f32.mrf.mxu0
    %v5650 = vand.u32 %v169, 4294901760
    %5651 = vmatprep.mubr.f32.mxu0 %v5650
    %v5652 = vand.u32 %v168, 4294901760
    %5653 = vmatmul.mubr.f32.gmra.mxu0 %v5652
    %v5654 = vpop.f32.mrf.mxu0
    %v5655 = vadd.f32 %v4963, %v5654
    %v5656 = vpop.f32.mrf.mxu0
    %v5657 = vand.u32 %v171, 4294901760
    %5658 = vmatprep.mubr.f32.mxu0 %v5657
    %v5659 = vand.u32 %v170, 4294901760
    %5660 = vmatmul.mubr.f32.gmra.mxu0 %v5659
    %v5661 = vpop.f32.mrf.mxu0
    %v5662 = vadd.f32 %v4970, %v5661
    %v5663 = vpop.f32.mrf.mxu0
    %v5664 = vand.u32 %v173, 4294901760
    %5665 = vmatprep.mubr.f32.mxu0 %v5664
    %v5666 = vand.u32 %v172, 4294901760
    %5667 = vmatmul.mubr.f32.gmra.mxu0 %v5666
    %v5668 = vpop.f32.mrf.mxu0
    %v5669 = vadd.f32 %v4977, %v5668
    %v5670 = vpop.f32.mrf.mxu0
    %v5671 = vand.u32 %v175, 4294901760
    %5672 = vmatprep.mubr.f32.mxu0 %v5671
    %v5673 = vand.u32 %v174, 4294901760
    %5674 = vmatmul.mubr.f32.gmra.mxu0 %v5673
    %v5675 = vpop.f32.mrf.mxu0
    %v5676 = vadd.f32 %v4984, %v5675
    %v5677 = vpop.f32.mrf.mxu0
    %v5678 = vand.u32 %v177, 4294901760
    %5679 = vmatprep.mubr.f32.mxu0 %v5678
    %v5680 = vand.u32 %v176, 4294901760
    %5681 = vmatmul.mubr.f32.gmra.mxu0 %v5680
    %v5682 = vpop.f32.mrf.mxu0
    %v5683 = vadd.f32 %v4991, %v5682
    %v5684 = vpop.f32.mrf.mxu0
    %v5685 = vand.u32 %v179, 4294901760
    %5686 = vmatprep.mubr.f32.mxu0 %v5685
    %v5687 = vand.u32 %v178, 4294901760
    %5688 = vmatmul.mubr.f32.gmra.mxu0 %v5687
    %v5689 = vpop.f32.mrf.mxu0
    %v5690 = vadd.f32 %v4998, %v5689
    %v5691 = vpop.f32.mrf.mxu0
    %v5692 = vand.u32 %v181, 4294901760
    %5693 = vmatprep.mubr.f32.mxu0 %v5692
    %v5694 = vand.u32 %v180, 4294901760
    %5695 = vmatmul.mubr.f32.gmra.mxu0 %v5694
    %v5696 = vpop.f32.mrf.mxu0
    %v5697 = vadd.f32 %v5005, %v5696
    %v5698 = vpop.f32.mrf.mxu0
    %v5699 = vand.u32 %v183, 4294901760
    %5700 = vmatprep.mubr.f32.mxu0 %v5699
    %v5701 = vand.u32 %v182, 4294901760
    %5702 = vmatmul.mubr.f32.gmra.mxu0 %v5701
    %v5703 = vpop.f32.mrf.mxu0
    %v5704 = vadd.f32 %v5012, %v5703
    %v5705 = vpop.f32.mrf.mxu0
    %v5706 = vand.u32 %v185, 4294901760
    %5707 = vmatprep.mubr.f32.mxu0 %v5706
    %v5708 = vand.u32 %v184, 4294901760
    %5709 = vmatmul.mubr.f32.gmra.mxu0 %v5708
    %v5710 = vpop.f32.mrf.mxu0
    %v5711 = vadd.f32 %v5019, %v5710
    %v5712 = vpop.f32.mrf.mxu0
    %v5713 = vand.u32 %v187, 4294901760
    %5714 = vmatprep.mubr.f32.mxu0 %v5713
    %v5715 = vand.u32 %v186, 4294901760
    %5716 = vmatmul.mubr.f32.gmra.mxu0 %v5715
    %v5717 = vpop.f32.mrf.mxu0
    %v5718 = vadd.f32 %v5026, %v5717
    %v5719 = vpop.f32.mrf.mxu0
    %v5720 = vand.u32 %v189, 4294901760
    %5721 = vmatprep.mubr.f32.mxu0 %v5720
    %v5722 = vand.u32 %v188, 4294901760
    %5723 = vmatmul.mubr.f32.gmra.mxu0 %v5722
    %v5724 = vpop.f32.mrf.mxu0
    %v5725 = vadd.f32 %v5033, %v5724
    %v5726 = vpop.f32.mrf.mxu0
    %v5727 = vand.u32 %v191, 4294901760
    %5728 = vmatprep.mubr.f32.mxu0 %v5727
    %v5729 = vand.u32 %v190, 4294901760
    %5730 = vmatmul.mubr.f32.gmra.mxu0 %v5729
    %v5731 = vpop.f32.mrf.mxu0
    %v5732 = vadd.f32 %v5040, %v5731
    %v5733 = vpop.f32.mrf.mxu0
    %v5734 = vand.u32 %v193, 4294901760
    %5735 = vmatprep.mubr.f32.mxu0 %v5734
    %v5736 = vand.u32 %v192, 4294901760
    %5737 = vmatmul.mubr.f32.gmra.mxu0 %v5736
    %v5738 = vpop.f32.mrf.mxu0
    %v5739 = vadd.f32 %v5047, %v5738
    %v5740 = vpop.f32.mrf.mxu0
    %v5741 = vand.u32 %v195, 4294901760
    %5742 = vmatprep.mubr.f32.mxu0 %v5741
    %v5743 = vand.u32 %v194, 4294901760
    %5744 = vmatmul.mubr.f32.gmra.mxu0 %v5743
    %v5745 = vpop.f32.mrf.mxu0
    %v5746 = vadd.f32 %v5054, %v5745
    %v5747 = vpop.f32.mrf.mxu0
    %v5748 = vand.u32 %v197, 4294901760
    %5749 = vmatprep.mubr.f32.mxu0 %v5748
    %v5750 = vand.u32 %v196, 4294901760
    %5751 = vmatmul.mubr.f32.gmra.mxu0 %v5750
    %v5752 = vpop.f32.mrf.mxu0
    %v5753 = vadd.f32 %v5061, %v5752
    %v5754 = vpop.f32.mrf.mxu0
    %v5755 = vand.u32 %v199, 4294901760
    %5756 = vmatprep.mubr.f32.mxu0 %v5755
    %v5757 = vand.u32 %v198, 4294901760
    %5758 = vmatmul.mubr.f32.gmra.mxu0 %v5757
    %v5759 = vpop.f32.mrf.mxu0
    %v5760 = vadd.f32 %v5068, %v5759
    %v5761 = vpop.f32.mrf.mxu0
    %v5762 = vand.u32 %v201, 4294901760
    %5763 = vmatprep.mubr.f32.mxu0 %v5762
    %v5764 = vand.u32 %v200, 4294901760
    %5765 = vmatmul.mubr.f32.gmra.mxu0 %v5764
    %v5766 = vpop.f32.mrf.mxu0
    %v5767 = vadd.f32 %v5075, %v5766
    %v5768 = vpop.f32.mrf.mxu0
    %v5769 = vand.u32 %v203, 4294901760
    %5770 = vmatprep.mubr.f32.mxu0 %v5769
    %v5771 = vand.u32 %v202, 4294901760
    %5772 = vmatmul.mubr.f32.gmra.mxu0 %v5771
    %v5773 = vpop.f32.mrf.mxu0
    %v5774 = vadd.f32 %v5082, %v5773
    %v5775 = vpop.f32.mrf.mxu0
    %v5776 = vand.u32 %v205, 4294901760
    %5777 = vmatprep.mubr.f32.mxu0 %v5776
    %v5778 = vand.u32 %v204, 4294901760
    %5779 = vmatmul.mubr.f32.gmra.mxu0 %v5778
    %v5780 = vpop.f32.mrf.mxu0
    %v5781 = vadd.f32 %v5089, %v5780
    %v5782 = vpop.f32.mrf.mxu0
    %v5783 = vand.u32 %v207, 4294901760
    %5784 = vmatprep.mubr.f32.mxu0 %v5783
    %v5785 = vand.u32 %v206, 4294901760
    %5786 = vmatmul.mubr.f32.gmra.mxu0 %v5785
    %v5787 = vpop.f32.mrf.mxu0
    %v5788 = vadd.f32 %v5096, %v5787
    %v5789 = vpop.f32.mrf.mxu0
    %v5790 = vand.u32 %v209, 4294901760
    %5791 = vmatprep.mubr.f32.mxu0 %v5790
    %v5792 = vand.u32 %v208, 4294901760
    %5793 = vmatmul.mubr.f32.gmra.mxu0 %v5792
    %v5794 = vpop.f32.mrf.mxu0
    %v5795 = vadd.f32 %v5103, %v5794
    %v5796 = vpop.f32.mrf.mxu0
    %v5797 = vand.u32 %v211, 4294901760
    %5798 = vmatprep.mubr.f32.mxu0 %v5797
    %v5799 = vand.u32 %v210, 4294901760
    %5800 = vmatmul.mubr.f32.gmra.mxu0 %v5799
    %v5801 = vpop.f32.mrf.mxu0
    %v5802 = vadd.f32 %v5110, %v5801
    %v5803 = vpop.f32.mrf.mxu0
    %v5804 = vand.u32 %v213, 4294901760
    %5805 = vmatprep.mubr.f32.mxu0 %v5804
    %v5806 = vand.u32 %v212, 4294901760
    %5807 = vmatmul.mubr.f32.gmra.mxu0 %v5806
    %v5808 = vpop.f32.mrf.mxu0
    %v5809 = vadd.f32 %v5117, %v5808
    %v5810 = vpop.f32.mrf.mxu0
    %5811 = vdwg.mxu0
    %5812 = vst [vmem:[#allocation8] sm:$0xff] %v5221
    %5813 = vst [vmem:[#allocation8 + $0x8] sm:$0xff] %v5228
    %5814 = vst [vmem:[#allocation8 + $0x10] sm:$0xff] %v5235
    %5815 = vst [vmem:[#allocation8 + $0x18] sm:$0xff] %v5242
    %5816 = vst [vmem:[#allocation8 + $0x20] sm:$0xff] %v5249
    %5817 = vst [vmem:[#allocation8 + $0x28] sm:$0xff] %v5256
    %5818 = vst [vmem:[#allocation8 + $0x30] sm:$0xff] %v5263
    %5819 = vst [vmem:[#allocation8 + $0x38] sm:$0xff] %v5270
    %5820 = vst [vmem:[#allocation8 + $0x40] sm:$0xff] %v5277
    %5821 = vst [vmem:[#allocation8 + $0x48] sm:$0xff] %v5284
    %5822 = vst [vmem:[#allocation8 + $0x50] sm:$0xff] %v5291
    %5823 = vst [vmem:[#allocation8 + $0x58] sm:$0xff] %v5298
    %5824 = vst [vmem:[#allocation8 + $0x60] sm:$0xff] %v5305
    %5825 = vst [vmem:[#allocation8 + $0x68] sm:$0xff] %v5312
    %5826 = vst [vmem:[#allocation8 + $0x70] sm:$0xff] %v5319
    %5827 = vst [vmem:[#allocation8 + $0x78] sm:$0xff] %v5326
    %5828 = vst [vmem:[#allocation8 + $0x80] sm:$0xff] %v5333
    %5829 = vst [vmem:[#allocation8 + $0x88] sm:$0xff] %v5340
    %5830 = vst [vmem:[#allocation8 + $0x90] sm:$0xff] %v5347
    %5831 = vst [vmem:[#allocation8 + $0x98] sm:$0xff] %v5354
    %5832 = vst [vmem:[#allocation8 + $0xa0] sm:$0xff] %v5361
    %5833 = vst [vmem:[#allocation8 + $0xa8] sm:$0xff] %v5368
    %5834 = vst [vmem:[#allocation8 + $0xb0] sm:$0xff] %v5375
    %5835 = vst [vmem:[#allocation8 + $0xb8] sm:$0xff] %v5382
    %5836 = vst [vmem:[#allocation8 + $0xc0] sm:$0xff] %v5389
    %5837 = vst [vmem:[#allocation8 + $0xc8] sm:$0xff] %v5396
    %5838 = vst [vmem:[#allocation8 + $0xd0] sm:$0xff] %v5403
    %5839 = vst [vmem:[#allocation8 + $0xd8] sm:$0xff] %v5410
    %5840 = vst [vmem:[#allocation8 + $0xe0] sm:$0xff] %v5417
    %5841 = vst [vmem:[#allocation8 + $0xe8] sm:$0xff] %v5424
    %5842 = vst [vmem:[#allocation8 + $0xf0] sm:$0xff] %v5431
    %5843 = vst [vmem:[#allocation8 + $0xf8] sm:$0xff] %v5438
    %5844 = vst [vmem:[#allocation8 + $0x100] sm:$0xff] %v5445
    %5845 = vst [vmem:[#allocation8 + $0x108] sm:$0xff] %v5452
    %5846 = vst [vmem:[#allocation8 + $0x110] sm:$0xff] %v5459
    %5847 = vst [vmem:[#allocation8 + $0x118] sm:$0xff] %v5466
    %5848 = vst [vmem:[#allocation8 + $0x120] sm:$0xff] %v5473
    %5849 = vst [vmem:[#allocation8 + $0x128] sm:$0xff] %v5480
    %5850 = vst [vmem:[#allocation8 + $0x130] sm:$0xff] %v5487
    %5851 = vst [vmem:[#allocation8 + $0x138] sm:$0xff] %v5494
    %5852 = vst [vmem:[#allocation8 + $0x140] sm:$0xff] %v5501
    %5853 = vst [vmem:[#allocation8 + $0x148] sm:$0xff] %v5508
    %5854 = vst [vmem:[#allocation8 + $0x150] sm:$0xff] %v5515
    %5855 = vst [vmem:[#allocation8 + $0x158] sm:$0xff] %v5522
    %5856 = vst [vmem:[#allocation8 + $0x160] sm:$0xff] %v5529
    %5857 = vst [vmem:[#allocation8 + $0x168] sm:$0xff] %v5536
    %5858 = vst [vmem:[#allocation8 + $0x170] sm:$0xff] %v5543
    %5859 = vst [vmem:[#allocation8 + $0x178] sm:$0xff] %v5550
    %5860 = vst [vmem:[#allocation8 + $0x180] sm:$0xff] %v5557
    %5861 = vst [vmem:[#allocation8 + $0x188] sm:$0xff] %v5564
    %5862 = vst [vmem:[#allocation8 + $0x190] sm:$0xff] %v5571
    %5863 = vst [vmem:[#allocation8 + $0x198] sm:$0xff] %v5578
    %5864 = vst [vmem:[#allocation8 + $0x1a0] sm:$0xff] %v5585
    %5865 = vst [vmem:[#allocation8 + $0x1a8] sm:$0xff] %v5592
    %5866 = vst [vmem:[#allocation8 + $0x1b0] sm:$0xff] %v5599
    %5867 = vst [vmem:[#allocation8 + $0x1b8] sm:$0xff] %v5606
    %5868 = vst [vmem:[#allocation8 + $0x1c0] sm:$0xff] %v5613
    %5869 = vst [vmem:[#allocation8 + $0x1c8] sm:$0xff] %v5620
    %5870 = vst [vmem:[#allocation8 + $0x1d0] sm:$0xff] %v5627
    %5871 = vst [vmem:[#allocation8 + $0x1d8] sm:$0xff] %v5634
    %5872 = vst [vmem:[#allocation8 + $0x1e0] sm:$0xff] %v5641
    %5873 = vst [vmem:[#allocation8 + $0x1e8] sm:$0xff] %v5648
    %5874 = vst [vmem:[#allocation8 + $0x1f0] sm:$0xff] %v5655
    %5875 = vst [vmem:[#allocation8 + $0x1f8] sm:$0xff] %v5662
    %5876 = vst [vmem:[#allocation8 + $0x200] sm:$0xff] %v5669
    %5877 = vst [vmem:[#allocation8 + $0x208] sm:$0xff] %v5676
    %5878 = vst [vmem:[#allocation8 + $0x210] sm:$0xff] %v5683
    %5879 = vst [vmem:[#allocation8 + $0x218] sm:$0xff] %v5690
    %5880 = vst [vmem:[#allocation8 + $0x220] sm:$0xff] %v5697
    %5881 = vst [vmem:[#allocation8 + $0x228] sm:$0xff] %v5704
    %5882 = vst [vmem:[#allocation8 + $0x230] sm:$0xff] %v5711
    %5883 = vst [vmem:[#allocation8 + $0x238] sm:$0xff] %v5718
    %5884 = vst [vmem:[#allocation8 + $0x240] sm:$0xff] %v5725
    %5885 = vst [vmem:[#allocation8 + $0x248] sm:$0xff] %v5732
    %5886 = vst [vmem:[#allocation8 + $0x250] sm:$0xff] %v5739
    %5887 = vst [vmem:[#allocation8 + $0x258] sm:$0xff] %v5746
    %5888 = vst [vmem:[#allocation8 + $0x260] sm:$0xff] %v5753
    %5889 = vst [vmem:[#allocation8 + $0x268] sm:$0xff] %v5760
    %5890 = vst [vmem:[#allocation8 + $0x270] sm:$0xff] %v5767
    %5891 = vst [vmem:[#allocation8 + $0x278] sm:$0xff] %v5774
    %5892 = vst [vmem:[#allocation8 + $0x280] sm:$0xff] %v5781
    %5893 = vst [vmem:[#allocation8 + $0x288] sm:$0xff] %v5788
    %5894 = vst [vmem:[#allocation8 + $0x290] sm:$0xff] %v5795
    %5895 = vst [vmem:[#allocation8 + $0x298] sm:$0xff] %v5802
    %5896 = vst [vmem:[#allocation8 + $0x2a0] sm:$0xf] %v5809
    %v5897 = vmax.f32 %v5221, 0.0
    %v5898 = vmax.f32 %v5228, 0.0
    %v5899 = vmax.f32 %v5235, 0.0
    %v5900 = vmax.f32 %v5242, 0.0
    %v5901 = vmax.f32 %v5249, 0.0
    %v5902 = vmax.f32 %v5256, 0.0
    %v5903 = vmax.f32 %v5263, 0.0
    %v5904 = vmax.f32 %v5270, 0.0
    %v5905 = vmax.f32 %v5277, 0.0
    %v5906 = vmax.f32 %v5284, 0.0
    %v5907 = vmax.f32 %v5291, 0.0
    %v5908 = vmax.f32 %v5298, 0.0
    %v5909 = vmax.f32 %v5305, 0.0
    %v5910 = vmax.f32 %v5312, 0.0
    %v5911 = vmax.f32 %v5319, 0.0
    %v5912 = vmax.f32 %v5326, 0.0
    %v5913 = vmax.f32 %v5333, 0.0
    %v5914 = vmax.f32 %v5340, 0.0
    %v5915 = vmax.f32 %v5347, 0.0
    %v5916 = vmax.f32 %v5354, 0.0
    %v5917 = vmax.f32 %v5361, 0.0
    %v5918 = vmax.f32 %v5368, 0.0
    %v5919 = vmax.f32 %v5375, 0.0
    %v5920 = vmax.f32 %v5382, 0.0
    %v5921 = vmax.f32 %v5389, 0.0
    %v5922 = vmax.f32 %v5396, 0.0
    %v5923 = vmax.f32 %v5403, 0.0
    %v5924 = vmax.f32 %v5410, 0.0
    %v5925 = vmax.f32 %v5417, 0.0
    %v5926 = vmax.f32 %v5424, 0.0
    %v5927 = vmax.f32 %v5431, 0.0
    %v5928 = vmax.f32 %v5438, 0.0
    %v5929 = vmax.f32 %v5445, 0.0
    %v5930 = vmax.f32 %v5452, 0.0
    %v5931 = vmax.f32 %v5459, 0.0
    %v5932 = vmax.f32 %v5466, 0.0
    %v5933 = vmax.f32 %v5473, 0.0
    %v5934 = vmax.f32 %v5480, 0.0
    %v5935 = vmax.f32 %v5487, 0.0
    %v5936 = vmax.f32 %v5494, 0.0
    %v5937 = vmax.f32 %v5501, 0.0
    %v5938 = vmax.f32 %v5508, 0.0
    %v5939 = vmax.f32 %v5515, 0.0
    %v5940 = vmax.f32 %v5522, 0.0
    %v5941 = vmax.f32 %v5529, 0.0
    %v5942 = vmax.f32 %v5536, 0.0
    %v5943 = vmax.f32 %v5543, 0.0
    %v5944 = vmax.f32 %v5550, 0.0
    %v5945 = vmax.f32 %v5557, 0.0
    %v5946 = vmax.f32 %v5564, 0.0
    %v5947 = vmax.f32 %v5571, 0.0
    %v5948 = vmax.f32 %v5578, 0.0
    %v5949 = vmax.f32 %v5585, 0.0
    %v5950 = vmax.f32 %v5592, 0.0
    %v5951 = vmax.f32 %v5599, 0.0
    %v5952 = vmax.f32 %v5606, 0.0
    %v5953 = vmax.f32 %v5613, 0.0
    %v5954 = vmax.f32 %v5620, 0.0
    %v5955 = vmax.f32 %v5627, 0.0
    %v5956 = vmax.f32 %v5634, 0.0
    %v5957 = vmax.f32 %v5641, 0.0
    %v5958 = vmax.f32 %v5648, 0.0
    %v5959 = vmax.f32 %v5655, 0.0
    %v5960 = vmax.f32 %v5662, 0.0
    %v5961 = vmax.f32 %v5669, 0.0
    %v5962 = vmax.f32 %v5676, 0.0
    %v5963 = vmax.f32 %v5683, 0.0
    %v5964 = vmax.f32 %v5690, 0.0
    %v5965 = vmax.f32 %v5697, 0.0
    %v5966 = vmax.f32 %v5704, 0.0
    %v5967 = vmax.f32 %v5711, 0.0
    %v5968 = vmax.f32 %v5718, 0.0
    %v5969 = vmax.f32 %v5725, 0.0
    %v5970 = vmax.f32 %v5732, 0.0
    %v5971 = vmax.f32 %v5739, 0.0
    %v5972 = vmax.f32 %v5746, 0.0
    %v5973 = vmax.f32 %v5753, 0.0
    %v5974 = vmax.f32 %v5760, 0.0
    %v5975 = vmax.f32 %v5767, 0.0
    %v5976 = vmax.f32 %v5774, 0.0
    %v5977 = vmax.f32 %v5781, 0.0
    %v5978 = vmax.f32 %v5788, 0.0
    %v5979 = vmax.f32 %v5795, 0.0
    %v5980 = vmax.f32 %v5802, 0.0
    %v5981 = vmax.f32 %v5809, 0.0
    %5982 = vst [vmem:[#allocation9] sm:$0xff] %v5897
    %5983 = vst [vmem:[#allocation9 + $0x8] sm:$0xff] %v5898
    %5984 = vst [vmem:[#allocation9 + $0x10] sm:$0xff] %v5899
    %5985 = vst [vmem:[#allocation9 + $0x18] sm:$0xff] %v5900
    %5986 = vst [vmem:[#allocation9 + $0x20] sm:$0xff] %v5901
    %5987 = vst [vmem:[#allocation9 + $0x28] sm:$0xff] %v5902
    %5988 = vst [vmem:[#allocation9 + $0x30] sm:$0xff] %v5903
    %5989 = vst [vmem:[#allocation9 + $0x38] sm:$0xff] %v5904
    %5990 = vst [vmem:[#allocation9 + $0x40] sm:$0xff] %v5905
    %5991 = vst [vmem:[#allocation9 + $0x48] sm:$0xff] %v5906
    %5992 = vst [vmem:[#allocation9 + $0x50] sm:$0xff] %v5907
    %5993 = vst [vmem:[#allocation9 + $0x58] sm:$0xff] %v5908
    %5994 = vst [vmem:[#allocation9 + $0x60] sm:$0xff] %v5909
    %5995 = vst [vmem:[#allocation9 + $0x68] sm:$0xff] %v5910
    %5996 = vst [vmem:[#allocation9 + $0x70] sm:$0xff] %v5911
    %5997 = vst [vmem:[#allocation9 + $0x78] sm:$0xff] %v5912
    %5998 = vst [vmem:[#allocation9 + $0x80] sm:$0xff] %v5913
    %5999 = vst [vmem:[#allocation9 + $0x88] sm:$0xff] %v5914
    %6000 = vst [vmem:[#allocation9 + $0x90] sm:$0xff] %v5915
    %6001 = vst [vmem:[#allocation9 + $0x98] sm:$0xff] %v5916
    %6002 = vst [vmem:[#allocation9 + $0xa0] sm:$0xff] %v5917
    %6003 = vst [vmem:[#allocation9 + $0xa8] sm:$0xff] %v5918
    %6004 = vst [vmem:[#allocation9 + $0xb0] sm:$0xff] %v5919
    %6005 = vst [vmem:[#allocation9 + $0xb8] sm:$0xff] %v5920
    %6006 = vst [vmem:[#allocation9 + $0xc0] sm:$0xff] %v5921
    %6007 = vst [vmem:[#allocation9 + $0xc8] sm:$0xff] %v5922
    %6008 = vst [vmem:[#allocation9 + $0xd0] sm:$0xff] %v5923
    %6009 = vst [vmem:[#allocation9 + $0xd8] sm:$0xff] %v5924
    %6010 = vst [vmem:[#allocation9 + $0xe0] sm:$0xff] %v5925
    %6011 = vst [vmem:[#allocation9 + $0xe8] sm:$0xff] %v5926
    %6012 = vst [vmem:[#allocation9 + $0xf0] sm:$0xff] %v5927
    %6013 = vst [vmem:[#allocation9 + $0xf8] sm:$0xff] %v5928
    %6014 = vst [vmem:[#allocation9 + $0x100] sm:$0xff] %v5929
    %6015 = vst [vmem:[#allocation9 + $0x108] sm:$0xff] %v5930
    %6016 = vst [vmem:[#allocation9 + $0x110] sm:$0xff] %v5931
    %6017 = vst [vmem:[#allocation9 + $0x118] sm:$0xff] %v5932
    %6018 = vst [vmem:[#allocation9 + $0x120] sm:$0xff] %v5933
    %6019 = vst [vmem:[#allocation9 + $0x128] sm:$0xff] %v5934
    %6020 = vst [vmem:[#allocation9 + $0x130] sm:$0xff] %v5935
    %6021 = vst [vmem:[#allocation9 + $0x138] sm:$0xff] %v5936
    %6022 = vst [vmem:[#allocation9 + $0x140] sm:$0xff] %v5937
    %6023 = vst [vmem:[#allocation9 + $0x148] sm:$0xff] %v5938
    %6024 = vst [vmem:[#allocation9 + $0x150] sm:$0xff] %v5939
    %6025 = vst [vmem:[#allocation9 + $0x158] sm:$0xff] %v5940
    %6026 = vst [vmem:[#allocation9 + $0x160] sm:$0xff] %v5941
    %6027 = vst [vmem:[#allocation9 + $0x168] sm:$0xff] %v5942
    %6028 = vst [vmem:[#allocation9 + $0x170] sm:$0xff] %v5943
    %6029 = vst [vmem:[#allocation9 + $0x178] sm:$0xff] %v5944
    %6030 = vst [vmem:[#allocation9 + $0x180] sm:$0xff] %v5945
    %6031 = vst [vmem:[#allocation9 + $0x188] sm:$0xff] %v5946
    %6032 = vst [vmem:[#allocation9 + $0x190] sm:$0xff] %v5947
    %6033 = vst [vmem:[#allocation9 + $0x198] sm:$0xff] %v5948
    %6034 = vst [vmem:[#allocation9 + $0x1a0] sm:$0xff] %v5949
    %6035 = vst [vmem:[#allocation9 + $0x1a8] sm:$0xff] %v5950
    %6036 = vst [vmem:[#allocation9 + $0x1b0] sm:$0xff] %v5951
    %6037 = vst [vmem:[#allocation9 + $0x1b8] sm:$0xff] %v5952
    %6038 = vst [vmem:[#allocation9 + $0x1c0] sm:$0xff] %v5953
    %6039 = vst [vmem:[#allocation9 + $0x1c8] sm:$0xff] %v5954
    %6040 = vst [vmem:[#allocation9 + $0x1d0] sm:$0xff] %v5955
    %6041 = vst [vmem:[#allocation9 + $0x1d8] sm:$0xff] %v5956
    %6042 = vst [vmem:[#allocation9 + $0x1e0] sm:$0xff] %v5957
    %6043 = vst [vmem:[#allocation9 + $0x1e8] sm:$0xff] %v5958
    %6044 = vst [vmem:[#allocation9 + $0x1f0] sm:$0xff] %v5959
    %6045 = vst [vmem:[#allocation9 + $0x1f8] sm:$0xff] %v5960
    %6046 = vst [vmem:[#allocation9 + $0x200] sm:$0xff] %v5961
    %6047 = vst [vmem:[#allocation9 + $0x208] sm:$0xff] %v5962
    %6048 = vst [vmem:[#allocation9 + $0x210] sm:$0xff] %v5963
    %6049 = vst [vmem:[#allocation9 + $0x218] sm:$0xff] %v5964
    %6050 = vst [vmem:[#allocation9 + $0x220] sm:$0xff] %v5965
    %6051 = vst [vmem:[#allocation9 + $0x228] sm:$0xff] %v5966
    %6052 = vst [vmem:[#allocation9 + $0x230] sm:$0xff] %v5967
    %6053 = vst [vmem:[#allocation9 + $0x238] sm:$0xff] %v5968
    %6054 = vst [vmem:[#allocation9 + $0x240] sm:$0xff] %v5969
    %6055 = vst [vmem:[#allocation9 + $0x248] sm:$0xff] %v5970
    %6056 = vst [vmem:[#allocation9 + $0x250] sm:$0xff] %v5971
    %6057 = vst [vmem:[#allocation9 + $0x258] sm:$0xff] %v5972
    %6058 = vst [vmem:[#allocation9 + $0x260] sm:$0xff] %v5973
    %6059 = vst [vmem:[#allocation9 + $0x268] sm:$0xff] %v5974
    %6060 = vst [vmem:[#allocation9 + $0x270] sm:$0xff] %v5975
    %6061 = vst [vmem:[#allocation9 + $0x278] sm:$0xff] %v5976
    %6062 = vst [vmem:[#allocation9 + $0x280] sm:$0xff] %v5977
    %6063 = vst [vmem:[#allocation9 + $0x288] sm:$0xff] %v5978
    %6064 = vst [vmem:[#allocation9 + $0x290] sm:$0xff] %v5979
    %6065 = vst [vmem:[#allocation9 + $0x298] sm:$0xff] %v5980
    %6066 = vst [vmem:[#allocation9 + $0x2a0] sm:$0xf] %v5981
    %v6067 = vld [vmem:[#allocation9] sm:$0xff]
    %v6068 = vld [vmem:[#allocation9 + $0x8] sm:$0x1f]
    %v6069 = vld [vmem:[#allocation9 + $0xd] sm:$0xff]
    %v6070 = vld [vmem:[#allocation9 + $0x15] sm:$0x1f]
    %v6071 = vmax.f32 %v6067, %v6069
    %v6072 = vmax.f32 %v6068, %v6070
    %6073 = vst [vmem:[#allocation2] sm:$0xff] %v6071
    %6074 = vst [vmem:[#allocation2 + $0x8] sm:$0x1f] %v6072
    %v6075 = vld [vmem:[#allocation9 + $0x1a] sm:$0xff]
    %v6076 = vld [vmem:[#allocation9 + $0x22] sm:$0x1f]
    %v6077 = vld [vmem:[#allocation9 + $0x27] sm:$0xff]
    %v6078 = vld [vmem:[#allocation9 + $0x2f] sm:$0x1f]
    %v6079 = vmax.f32 %v6075, %v6077
    %v6080 = vmax.f32 %v6076, %v6078
    %s6081 = scalar_lea.vmem [#allocation2], 16
    %6082 = vst [vmem:[%s6081] sm:$0xff] %v6079
    %6083 = vst [vmem:[%s6081 + $0x8] sm:$0x1f] %v6080
    %v6084 = vld [vmem:[#allocation9 + $0x34] sm:$0xff]
    %v6085 = vld [vmem:[#allocation9 + $0x3c] sm:$0x1f]
    %v6086 = vld [vmem:[#allocation9 + $0x41] sm:$0xff]
    %v6087 = vld [vmem:[#allocation9 + $0x49] sm:$0x1f]
    %v6088 = vmax.f32 %v6084, %v6086
    %v6089 = vmax.f32 %v6085, %v6087
    %s6090 = scalar_lea.vmem [#allocation2], 32
    %6091 = vst [vmem:[%s6090] sm:$0xff] %v6088
    %6092 = vst [vmem:[%s6090 + $0x8] sm:$0x1f] %v6089
    %v6093 = vld [vmem:[#allocation9 + $0x4e] sm:$0xff]
    %v6094 = vld [vmem:[#allocation9 + $0x56] sm:$0x1f]
    %v6095 = vld [vmem:[#allocation9 + $0x5b] sm:$0xff]
    %v6096 = vld [vmem:[#allocation9 + $0x63] sm:$0x1f]
    %v6097 = vmax.f32 %v6093, %v6095
    %v6098 = vmax.f32 %v6094, %v6096
    %s6099 = scalar_lea.vmem [#allocation2], 48
    %6100 = vst [vmem:[%s6099] sm:$0xff] %v6097
    %6101 = vst [vmem:[%s6099 + $0x8] sm:$0x1f] %v6098
    %v6102 = vld [vmem:[#allocation9 + $0x68] sm:$0xff]
    %v6103 = vld [vmem:[#allocation9 + $0x70] sm:$0x1f]
    %v6104 = vld [vmem:[#allocation9 + $0x75] sm:$0xff]
    %v6105 = vld [vmem:[#allocation9 + $0x7d] sm:$0x1f]
    %v6106 = vmax.f32 %v6102, %v6104
    %v6107 = vmax.f32 %v6103, %v6105
    %s6108 = scalar_lea.vmem [#allocation2], 64
    %6109 = vst [vmem:[%s6108] sm:$0xff] %v6106
    %6110 = vst [vmem:[%s6108 + $0x8] sm:$0x1f] %v6107
    %v6111 = vld [vmem:[#allocation9 + $0x82] sm:$0xff]
    %v6112 = vld [vmem:[#allocation9 + $0x8a] sm:$0x1f]
    %v6113 = vld [vmem:[#allocation9 + $0x8f] sm:$0xff]
    %v6114 = vld [vmem:[#allocation9 + $0x97] sm:$0x1f]
    %v6115 = vmax.f32 %v6111, %v6113
    %v6116 = vmax.f32 %v6112, %v6114
    %s6117 = scalar_lea.vmem [#allocation2], 80
    %6118 = vst [vmem:[%s6117] sm:$0xff] %v6115
    %6119 = vst [vmem:[%s6117 + $0x8] sm:$0x1f] %v6116
    %v6120 = vld [vmem:[#allocation9 + $0xa9] sm:$0xff]
    %v6121 = vld [vmem:[#allocation9 + $0xb1] sm:$0x1f]
    %v6122 = vld [vmem:[#allocation9 + $0xb6] sm:$0xff]
    %v6123 = vld [vmem:[#allocation9 + $0xbe] sm:$0x1f]
    %v6124 = vmax.f32 %v6120, %v6122
    %v6125 = vmax.f32 %v6121, %v6123
    %s6126 = scalar_lea.vmem [#allocation2], 96
    %6127 = vst [vmem:[%s6126] sm:$0xff] %v6124
    %6128 = vst [vmem:[%s6126 + $0x8] sm:$0x1f] %v6125
    %v6129 = vld [vmem:[#allocation9 + $0xc3] sm:$0xff]
    %v6130 = vld [vmem:[#allocation9 + $0xcb] sm:$0x1f]
    %v6131 = vld [vmem:[#allocation9 + $0xd0] sm:$0xff]
    %v6132 = vld [vmem:[#allocation9 + $0xd8] sm:$0x1f]
    %v6133 = vmax.f32 %v6129, %v6131
    %v6134 = vmax.f32 %v6130, %v6132
    %s6135 = scalar_lea.vmem [#allocation2], 112
    %6136 = vst [vmem:[%s6135] sm:$0xff] %v6133
    %6137 = vst [vmem:[%s6135 + $0x8] sm:$0x1f] %v6134
    %v6138 = vld [vmem:[#allocation9 + $0xdd] sm:$0xff]
    %v6139 = vld [vmem:[#allocation9 + $0xe5] sm:$0x1f]
    %v6140 = vld [vmem:[#allocation9 + $0xea] sm:$0xff]
    %v6141 = vld [vmem:[#allocation9 + $0xf2] sm:$0x1f]
    %v6142 = vmax.f32 %v6138, %v6140
    %v6143 = vmax.f32 %v6139, %v6141
    %s6144 = scalar_lea.vmem [#allocation2], 128
    %6145 = vst [vmem:[%s6144] sm:$0xff] %v6142
    %6146 = vst [vmem:[%s6144 + $0x8] sm:$0x1f] %v6143
    %v6147 = vld [vmem:[#allocation9 + $0xf7] sm:$0xff]
    %v6148 = vld [vmem:[#allocation9 + $0xff] sm:$0x1f]
    %v6149 = vld [vmem:[#allocation9 + $0x104] sm:$0xff]
    %v6150 = vld [vmem:[#allocation9 + $0x10c] sm:$0x1f]
    %v6151 = vmax.f32 %v6147, %v6149
    %v6152 = vmax.f32 %v6148, %v6150
    %s6153 = scalar_lea.vmem [#allocation2], 144
    %6154 = vst [vmem:[%s6153] sm:$0xff] %v6151
    %6155 = vst [vmem:[%s6153 + $0x8] sm:$0x1f] %v6152
    %v6156 = vld [vmem:[#allocation9 + $0x111] sm:$0xff]
    %v6157 = vld [vmem:[#allocation9 + $0x119] sm:$0x1f]
    %v6158 = vld [vmem:[#allocation9 + $0x11e] sm:$0xff]
    %v6159 = vld [vmem:[#allocation9 + $0x126] sm:$0x1f]
    %v6160 = vmax.f32 %v6156, %v6158
    %v6161 = vmax.f32 %v6157, %v6159
    %s6162 = scalar_lea.vmem [#allocation2], 160
    %6163 = vst [vmem:[%s6162] sm:$0xff] %v6160
    %6164 = vst [vmem:[%s6162 + $0x8] sm:$0x1f] %v6161
    %v6165 = vld [vmem:[#allocation9 + $0x12b] sm:$0xff]
    %v6166 = vld [vmem:[#allocation9 + $0x133] sm:$0x1f]
    %v6167 = vld [vmem:[#allocation9 + $0x138] sm:$0xff]
    %v6168 = vld [vmem:[#allocation9 + $0x140] sm:$0x1f]
    %v6169 = vmax.f32 %v6165, %v6167
    %v6170 = vmax.f32 %v6166, %v6168
    %s6171 = scalar_lea.vmem [#allocation2], 176
    %6172 = vst [vmem:[%s6171] sm:$0xff] %v6169
    %6173 = vst [vmem:[%s6171 + $0x8] sm:$0x1f] %v6170
    %v6174 = vld [vmem:[#allocation9 + $0x152] sm:$0xff]
    %v6175 = vld [vmem:[#allocation9 + $0x15a] sm:$0x1f]
    %v6176 = vld [vmem:[#allocation9 + $0x15f] sm:$0xff]
    %v6177 = vld [vmem:[#allocation9 + $0x167] sm:$0x1f]
    %v6178 = vmax.f32 %v6174, %v6176
    %v6179 = vmax.f32 %v6175, %v6177
    %s6180 = scalar_lea.vmem [#allocation2], 192
    %6181 = vst [vmem:[%s6180] sm:$0xff] %v6178
    %6182 = vst [vmem:[%s6180 + $0x8] sm:$0x1f] %v6179
    %v6183 = vld [vmem:[#allocation9 + $0x16c] sm:$0xff]
    %v6184 = vld [vmem:[#allocation9 + $0x174] sm:$0x1f]
    %v6185 = vld [vmem:[#allocation9 + $0x179] sm:$0xff]
    %v6186 = vld [vmem:[#allocation9 + $0x181] sm:$0x1f]
    %v6187 = vmax.f32 %v6183, %v6185
    %v6188 = vmax.f32 %v6184, %v6186
    %s6189 = scalar_lea.vmem [#allocation2], 208
    %6190 = vst [vmem:[%s6189] sm:$0xff] %v6187
    %6191 = vst [vmem:[%s6189 + $0x8] sm:$0x1f] %v6188
    %v6192 = vld [vmem:[#allocation9 + $0x186] sm:$0xff]
    %v6193 = vld [vmem:[#allocation9 + $0x18e] sm:$0x1f]
    %v6194 = vld [vmem:[#allocation9 + $0x193] sm:$0xff]
    %v6195 = vld [vmem:[#allocation9 + $0x19b] sm:$0x1f]
    %v6196 = vmax.f32 %v6192, %v6194
    %v6197 = vmax.f32 %v6193, %v6195
    %s6198 = scalar_lea.vmem [#allocation2], 224
    %6199 = vst [vmem:[%s6198] sm:$0xff] %v6196
    %6200 = vst [vmem:[%s6198 + $0x8] sm:$0x1f] %v6197
    %v6201 = vld [vmem:[#allocation9 + $0x1a0] sm:$0xff]
    %v6202 = vld [vmem:[#allocation9 + $0x1a8] sm:$0x1f]
    %v6203 = vld [vmem:[#allocation9 + $0x1ad] sm:$0xff]
    %v6204 = vld [vmem:[#allocation9 + $0x1b5] sm:$0x1f]
    %v6205 = vmax.f32 %v6201, %v6203
    %v6206 = vmax.f32 %v6202, %v6204
    %s6207 = scalar_lea.vmem [#allocation2], 240
    %6208 = vst [vmem:[%s6207] sm:$0xff] %v6205
    %6209 = vst [vmem:[%s6207 + $0x8] sm:$0x1f] %v6206
    %v6210 = vld [vmem:[#allocation9 + $0x1ba] sm:$0xff]
    %v6211 = vld [vmem:[#allocation9 + $0x1c2] sm:$0x1f]
    %v6212 = vld [vmem:[#allocation9 + $0x1c7] sm:$0xff]
    %v6213 = vld [vmem:[#allocation9 + $0x1cf] sm:$0x1f]
    %v6214 = vmax.f32 %v6210, %v6212
    %v6215 = vmax.f32 %v6211, %v6213
    %s6216 = scalar_lea.vmem [#allocation2], 256
    %6217 = vst [vmem:[%s6216] sm:$0xff] %v6214
    %6218 = vst [vmem:[%s6216 + $0x8] sm:$0x1f] %v6215
    %v6219 = vld [vmem:[#allocation9 + $0x1d4] sm:$0xff]
    %v6220 = vld [vmem:[#allocation9 + $0x1dc] sm:$0x1f]
    %v6221 = vld [vmem:[#allocation9 + $0x1e1] sm:$0xff]
    %v6222 = vld [vmem:[#allocation9 + $0x1e9] sm:$0x1f]
    %v6223 = vmax.f32 %v6219, %v6221
    %v6224 = vmax.f32 %v6220, %v6222
    %s6225 = scalar_lea.vmem [#allocation2], 272
    %6226 = vst [vmem:[%s6225] sm:$0xff] %v6223
    %6227 = vst [vmem:[%s6225 + $0x8] sm:$0x1f] %v6224
    %v6228 = vld [vmem:[#allocation9 + $0x1fb] sm:$0xff]
    %v6229 = vld [vmem:[#allocation9 + $0x203] sm:$0x1f]
    %v6230 = vld [vmem:[#allocation9 + $0x208] sm:$0xff]
    %v6231 = vld [vmem:[#allocation9 + $0x210] sm:$0x1f]
    %v6232 = vmax.f32 %v6228, %v6230
    %v6233 = vmax.f32 %v6229, %v6231
    %s6234 = scalar_lea.vmem [#allocation2], 288
    %6235 = vst [vmem:[%s6234] sm:$0xff] %v6232
    %6236 = vst [vmem:[%s6234 + $0x8] sm:$0x1f] %v6233
    %v6237 = vld [vmem:[#allocation9 + $0x215] sm:$0xff]
    %v6238 = vld [vmem:[#allocation9 + $0x21d] sm:$0x1f]
    %v6239 = vld [vmem:[#allocation9 + $0x222] sm:$0xff]
    %v6240 = vld [vmem:[#allocation9 + $0x22a] sm:$0x1f]
    %v6241 = vmax.f32 %v6237, %v6239
    %v6242 = vmax.f32 %v6238, %v6240
    %s6243 = scalar_lea.vmem [#allocation2], 304
    %6244 = vst [vmem:[%s6243] sm:$0xff] %v6241
    %6245 = vst [vmem:[%s6243 + $0x8] sm:$0x1f] %v6242
    %v6246 = vld [vmem:[#allocation9 + $0x22f] sm:$0xff]
    %v6247 = vld [vmem:[#allocation9 + $0x237] sm:$0x1f]
    %v6248 = vld [vmem:[#allocation9 + $0x23c] sm:$0xff]
    %v6249 = vld [vmem:[#allocation9 + $0x244] sm:$0x1f]
    %v6250 = vmax.f32 %v6246, %v6248
    %v6251 = vmax.f32 %v6247, %v6249
    %s6252 = scalar_lea.vmem [#allocation2], 320
    %6253 = vst [vmem:[%s6252] sm:$0xff] %v6250
    %6254 = vst [vmem:[%s6252 + $0x8] sm:$0x1f] %v6251
    %v6255 = vld [vmem:[#allocation9 + $0x249] sm:$0xff]
    %v6256 = vld [vmem:[#allocation9 + $0x251] sm:$0x1f]
    %v6257 = vld [vmem:[#allocation9 + $0x256] sm:$0xff]
    %v6258 = vld [vmem:[#allocation9 + $0x25e] sm:$0x1f]
    %v6259 = vmax.f32 %v6255, %v6257
    %v6260 = vmax.f32 %v6256, %v6258
    %s6261 = scalar_lea.vmem [#allocation2], 336
    %6262 = vst [vmem:[%s6261] sm:$0xff] %v6259
    %6263 = vst [vmem:[%s6261 + $0x8] sm:$0x1f] %v6260
    %v6264 = vld [vmem:[#allocation9 + $0x263] sm:$0xff]
    %v6265 = vld [vmem:[#allocation9 + $0x26b] sm:$0x1f]
    %v6266 = vld [vmem:[#allocation9 + $0x270] sm:$0xff]
    %v6267 = vld [vmem:[#allocation9 + $0x278] sm:$0x1f]
    %v6268 = vmax.f32 %v6264, %v6266
    %v6269 = vmax.f32 %v6265, %v6267
    %s6270 = scalar_lea.vmem [#allocation2], 352
    %6271 = vst [vmem:[%s6270] sm:$0xff] %v6268
    %6272 = vst [vmem:[%s6270 + $0x8] sm:$0x1f] %v6269
    %v6273 = vld [vmem:[#allocation9 + $0x27d] sm:$0xff]
    %v6274 = vld [vmem:[#allocation9 + $0x285] sm:$0x1f]
    %v6275 = vld [vmem:[#allocation9 + $0x28a] sm:$0xff]
    %v6276 = vld [vmem:[#allocation9 + $0x292] sm:$0x1f]
    %v6277 = vmax.f32 %v6273, %v6275
    %v6278 = vmax.f32 %v6274, %v6276
    %s6279 = scalar_lea.vmem [#allocation2], 368
    %6280 = vst [vmem:[%s6279] sm:$0xff] %v6277
    %6281 = vst [vmem:[%s6279 + $0x8] sm:$0x1f] %v6278
    %v6282 = vld [vmem:[#allocation2] ss:$2 sm:$0x3f]
    %s6283 = scalar_lea.vmem [#allocation2], 16
    %v6284 = vld [vmem:[%s6283] ss:$2 sm:$0x3f]
    %s6285 = scalar_lea.vmem [#allocation2], 32
    %v6286 = vld [vmem:[%s6285] ss:$2 sm:$0x3f]
    %s6287 = scalar_lea.vmem [#allocation2], 48
    %v6288 = vld [vmem:[%s6287] ss:$2 sm:$0x3f]
    %s6289 = scalar_lea.vmem [#allocation2], 64
    %v6290 = vld [vmem:[%s6289] ss:$2 sm:$0x3f]
    %s6291 = scalar_lea.vmem [#allocation2], 80
    %v6292 = vld [vmem:[%s6291] ss:$2 sm:$0x3f]
    %s6293 = scalar_lea.vmem [#allocation2], 96
    %v6294 = vld [vmem:[%s6293] ss:$2 sm:$0x3f]
    %s6295 = scalar_lea.vmem [#allocation2], 112
    %v6296 = vld [vmem:[%s6295] ss:$2 sm:$0x3f]
    %s6297 = scalar_lea.vmem [#allocation2], 128
    %v6298 = vld [vmem:[%s6297] ss:$2 sm:$0x3f]
    %s6299 = scalar_lea.vmem [#allocation2], 144
    %v6300 = vld [vmem:[%s6299] ss:$2 sm:$0x3f]
    %s6301 = scalar_lea.vmem [#allocation2], 160
    %v6302 = vld [vmem:[%s6301] ss:$2 sm:$0x3f]
    %s6303 = scalar_lea.vmem [#allocation2], 176
    %v6304 = vld [vmem:[%s6303] ss:$2 sm:$0x3f]
    %s6305 = scalar_lea.vmem [#allocation2], 192
    %v6306 = vld [vmem:[%s6305] ss:$2 sm:$0x3f]
    %s6307 = scalar_lea.vmem [#allocation2], 208
    %v6308 = vld [vmem:[%s6307] ss:$2 sm:$0x3f]
    %s6309 = scalar_lea.vmem [#allocation2], 224
    %v6310 = vld [vmem:[%s6309] ss:$2 sm:$0x3f]
    %s6311 = scalar_lea.vmem [#allocation2], 240
    %v6312 = vld [vmem:[%s6311] ss:$2 sm:$0x3f]
    %s6313 = scalar_lea.vmem [#allocation2], 256
    %v6314 = vld [vmem:[%s6313] ss:$2 sm:$0x3f]
    %s6315 = scalar_lea.vmem [#allocation2], 272
    %v6316 = vld [vmem:[%s6315] ss:$2 sm:$0x3f]
    %s6317 = scalar_lea.vmem [#allocation2], 288
    %v6318 = vld [vmem:[%s6317] ss:$2 sm:$0x3f]
    %s6319 = scalar_lea.vmem [#allocation2], 304
    %v6320 = vld [vmem:[%s6319] ss:$2 sm:$0x3f]
    %s6321 = scalar_lea.vmem [#allocation2], 320
    %v6322 = vld [vmem:[%s6321] ss:$2 sm:$0x3f]
    %s6323 = scalar_lea.vmem [#allocation2], 336
    %v6324 = vld [vmem:[%s6323] ss:$2 sm:$0x3f]
    %s6325 = scalar_lea.vmem [#allocation2], 352
    %v6326 = vld [vmem:[%s6325] ss:$2 sm:$0x3f]
    %s6327 = scalar_lea.vmem [#allocation2], 368
    %v6328 = vld [vmem:[%s6327] ss:$2 sm:$0x3f]
    %s6329 = scalar_lea.vmem [#allocation2], 1
    %v6330 = vld [vmem:[%s6329] ss:$2 sm:$0x3f]
    %s6331 = scalar_lea.vmem [#allocation2], 17
    %v6332 = vld [vmem:[%s6331] ss:$2 sm:$0x3f]
    %s6333 = scalar_lea.vmem [#allocation2], 33
    %v6334 = vld [vmem:[%s6333] ss:$2 sm:$0x3f]
    %s6335 = scalar_lea.vmem [#allocation2], 49
    %v6336 = vld [vmem:[%s6335] ss:$2 sm:$0x3f]
    %s6337 = scalar_lea.vmem [#allocation2], 65
    %v6338 = vld [vmem:[%s6337] ss:$2 sm:$0x3f]
    %s6339 = scalar_lea.vmem [#allocation2], 81
    %v6340 = vld [vmem:[%s6339] ss:$2 sm:$0x3f]
    %s6341 = scalar_lea.vmem [#allocation2], 97
    %v6342 = vld [vmem:[%s6341] ss:$2 sm:$0x3f]
    %s6343 = scalar_lea.vmem [#allocation2], 113
    %v6344 = vld [vmem:[%s6343] ss:$2 sm:$0x3f]
    %s6345 = scalar_lea.vmem [#allocation2], 129
    %v6346 = vld [vmem:[%s6345] ss:$2 sm:$0x3f]
    %s6347 = scalar_lea.vmem [#allocation2], 145
    %v6348 = vld [vmem:[%s6347] ss:$2 sm:$0x3f]
    %s6349 = scalar_lea.vmem [#allocation2], 161
    %v6350 = vld [vmem:[%s6349] ss:$2 sm:$0x3f]
    %s6351 = scalar_lea.vmem [#allocation2], 177
    %v6352 = vld [vmem:[%s6351] ss:$2 sm:$0x3f]
    %s6353 = scalar_lea.vmem [#allocation2], 193
    %v6354 = vld [vmem:[%s6353] ss:$2 sm:$0x3f]
    %s6355 = scalar_lea.vmem [#allocation2], 209
    %v6356 = vld [vmem:[%s6355] ss:$2 sm:$0x3f]
    %s6357 = scalar_lea.vmem [#allocation2], 225
    %v6358 = vld [vmem:[%s6357] ss:$2 sm:$0x3f]
    %s6359 = scalar_lea.vmem [#allocation2], 241
    %v6360 = vld [vmem:[%s6359] ss:$2 sm:$0x3f]
    %s6361 = scalar_lea.vmem [#allocation2], 257
    %v6362 = vld [vmem:[%s6361] ss:$2 sm:$0x3f]
    %s6363 = scalar_lea.vmem [#allocation2], 273
    %v6364 = vld [vmem:[%s6363] ss:$2 sm:$0x3f]
    %s6365 = scalar_lea.vmem [#allocation2], 289
    %v6366 = vld [vmem:[%s6365] ss:$2 sm:$0x3f]
    %s6367 = scalar_lea.vmem [#allocation2], 305
    %v6368 = vld [vmem:[%s6367] ss:$2 sm:$0x3f]
    %s6369 = scalar_lea.vmem [#allocation2], 321
    %v6370 = vld [vmem:[%s6369] ss:$2 sm:$0x3f]
    %s6371 = scalar_lea.vmem [#allocation2], 337
    %v6372 = vld [vmem:[%s6371] ss:$2 sm:$0x3f]
    %s6373 = scalar_lea.vmem [#allocation2], 353
    %v6374 = vld [vmem:[%s6373] ss:$2 sm:$0x3f]
    %s6375 = scalar_lea.vmem [#allocation2], 369
    %v6376 = vld [vmem:[%s6375] ss:$2 sm:$0x3f]
    %v6377 = vmax.f32 %v6282, %v6330
    %v6378 = vmax.f32 %v6284, %v6332
    %v6379 = vmax.f32 %v6286, %v6334
    %v6380 = vmax.f32 %v6288, %v6336
    %v6381 = vmax.f32 %v6290, %v6338
    %v6382 = vmax.f32 %v6292, %v6340
    %v6383 = vmax.f32 %v6294, %v6342
    %v6384 = vmax.f32 %v6296, %v6344
    %v6385 = vmax.f32 %v6298, %v6346
    %v6386 = vmax.f32 %v6300, %v6348
    %v6387 = vmax.f32 %v6302, %v6350
    %v6388 = vmax.f32 %v6304, %v6352
    %v6389 = vmax.f32 %v6306, %v6354
    %v6390 = vmax.f32 %v6308, %v6356
    %v6391 = vmax.f32 %v6310, %v6358
    %v6392 = vmax.f32 %v6312, %v6360
    %v6393 = vmax.f32 %v6314, %v6362
    %v6394 = vmax.f32 %v6316, %v6364
    %v6395 = vmax.f32 %v6318, %v6366
    %v6396 = vmax.f32 %v6320, %v6368
    %v6397 = vmax.f32 %v6322, %v6370
    %v6398 = vmax.f32 %v6324, %v6372
    %v6399 = vmax.f32 %v6326, %v6374
    %v6400 = vmax.f32 %v6328, %v6376
    %6401 = vst [vmem:[%s4] sm:$0x3f] %v6377
    %6402 = vst [vmem:[%s4 + $0x8] sm:$0x3f] %v6378
    %6403 = vst [vmem:[%s4 + $0x10] sm:$0x3f] %v6379
    %6404 = vst [vmem:[%s4 + $0x18] sm:$0x3f] %v6380
    %6405 = vst [vmem:[%s4 + $0x20] sm:$0x3f] %v6381
    %6406 = vst [vmem:[%s4 + $0x28] sm:$0x3f] %v6382
    %6407 = vst [vmem:[%s4 + $0x30] sm:$0x3f] %v6383
    %6408 = vst [vmem:[%s4 + $0x38] sm:$0x3f] %v6384
    %6409 = vst [vmem:[%s4 + $0x40] sm:$0x3f] %v6385
    %6410 = vst [vmem:[%s4 + $0x48] sm:$0x3f] %v6386
    %6411 = vst [vmem:[%s4 + $0x50] sm:$0x3f] %v6387
    %6412 = vst [vmem:[%s4 + $0x58] sm:$0x3f] %v6388
    %6413 = vst [vmem:[%s4 + $0x60] sm:$0x3f] %v6389
    %6414 = vst [vmem:[%s4 + $0x68] sm:$0x3f] %v6390
    %6415 = vst [vmem:[%s4 + $0x70] sm:$0x3f] %v6391
    %6416 = vst [vmem:[%s4 + $0x78] sm:$0x3f] %v6392
    %6417 = vst [vmem:[%s4 + $0x80] sm:$0x3f] %v6393
    %6418 = vst [vmem:[%s4 + $0x88] sm:$0x3f] %v6394
    %6419 = vst [vmem:[%s4 + $0x90] sm:$0x3f] %v6395
    %6420 = vst [vmem:[%s4 + $0x98] sm:$0x3f] %v6396
    %6421 = vst [vmem:[%s4 + $0xa0] sm:$0x3f] %v6397
    %6422 = vst [vmem:[%s4 + $0xa8] sm:$0x3f] %v6398
    %6423 = vst [vmem:[%s4 + $0xb0] sm:$0x3f] %v6399
    %6424 = vst [vmem:[%s4 + $0xb8] sm:$0x3f] %v6400
    // Predicated region
    $region18: #{tpu_custom_call.1} parent=1 // pred_check
      _
    $region19: #{tpu_custom_call.1} parent=1 // pred_check_branch
      %6426 = sbr.rel (0) target = $region21
    $region20: #{tpu_custom_call.1} parent=1 // pred_region
      %s6428 = ssub.s32 10880, 10880
      %6429 = vsyncadd [#allocation5], %s6428
      %s6430 = sshll.u32 [#allocation8], 4
      %s6431 = int_to_ptr.vmem [resolvable:$true] %s6430
      %6436 = dma.vmem_to_hbm [thread:$0]  %s6431, 10880, %s2, [#allocation5], 128, 128, 8
    $region21: #{tpu_custom_call.1} parent=1 // pred_fallthru
      _
    // Predicated region
    $region22: #{tpu_custom_call.1} parent=1 // pred_check
      _
    $region23: #{tpu_custom_call.1} parent=1 // pred_check_branch
      %6438 = sbr.rel (0) target = $region25
    $region24: #{tpu_custom_call.1} parent=1 // pred_region
      %s6440 = ssub.s32 10880, 10880
      %6441 = vsyncadd [#allocation10], %s6440
      %s6442 = sshll.u32 [#allocation9], 4
      %s6443 = int_to_ptr.vmem [resolvable:$true] %s6442
      %6448 = dma.vmem_to_hbm [thread:$0]  %s6443, 10880, %s3, [#allocation10], 128, 128, 8
    $region25: #{tpu_custom_call.1} parent=1 // pred_fallthru
      _
    // Predicated region
    $region26: #{tpu_custom_call.1} parent=1 // pred_check
      _
    $region27: #{tpu_custom_call.1} parent=1 // pred_check_branch
      %6450 = sbr.rel (0) target = $region29
    $region28: #{tpu_custom_call.1} parent=1 // pred_region
      _
    $region29: #{tpu_custom_call.1} parent=1 // pred_fallthru
      _
    // Predicated region
    $region30: #{tpu_custom_call.1} parent=1 // pred_check
      _
    $region31: #{tpu_custom_call.1} parent=1 // pred_check_branch
      %6452 = sbr.rel (0) target = $region33
    $region32: #{tpu_custom_call.1} parent=1 // pred_region
      %6453 = dma.done [#allocation5], 10880
    $region33: #{tpu_custom_call.1} parent=1 // pred_fallthru
      _
    // Predicated region
    $region34: #{tpu_custom_call.1} parent=1 // pred_check
      _
    $region35: #{tpu_custom_call.1} parent=1 // pred_check_branch
      %6455 = sbr.rel (0) target = $region37
    $region36: #{tpu_custom_call.1} parent=1 // pred_region
      %6456 = dma.done [#allocation10], 10880
    $region37: #{tpu_custom_call.1} parent=1 // pred_fallthru
      _
    // Predicated region
    $region38: #{tpu_custom_call.1} parent=1 // pred_check
      _
    $region39: #{tpu_custom_call.1} parent=1 // pred_check_branch
      %6458 = sbr.rel (0) target = $region41
    $region40: #{tpu_custom_call.1} parent=1 // pred_region
      _
    $region41: #{tpu_custom_call.1} parent=1 // pred_fallthru
      _
    %6459 = vsyncpa [#allocation4], 1
    %6460 = vsyncpa [#allocation7], 1
    %6461 = vsyncpa [#allocation5], 1
    %6462 = vsyncpa [#allocation10], 1

</llo_original>
